<compile_context>
chip_gen: v6e
topology: v6e:2x2x1
jax: 0.10.0
libtpu: 0.0.40
codegen_flags: <defaults>
</compile_context>

<pallas_src>
import jax
import jax.numpy as jnp
from jax.experimental import pallas as pl
from jax.experimental.pallas import tpu as pltpu


NK = 8  # grid steps streaming the big first/second-layer weights of both nets


# ---------------------------------------------------------------------------
# Fused whole-model kernel (grid = (NK,), reduction axis)
# ---------------------------------------------------------------------------
def _fused_model_kernel(
    # activations (whole, resident)
    eif_ref, ff_ref, seq_ref,
    # eif_net: 2048 -> 2048 -> 512 -> 256 -> 256
    e_w1, e_b1, e_w2, e_b2, e_w3, e_b3, e_w4, e_b4,
    # ff_net: 35 -> 60 -> 10 (padded to 128 lanes)
    f_w1, f_b1, f_w2, f_b2,
    # history_net: 512 -> 1024 -> 512 -> 256 -> 256
    h_w1, h_b1, h_w2, h_b2, h_w3, h_b3, h_w4, h_b4,
    # classifier: (256 + 10 + 256) -> 256 -> num_classes (W1 pre-split)
    c_w1e, c_w1f, c_w1h, c_b1, c_w2, c_b2,
    # output
    out_ref,
    # scratch accumulators (persist across grid steps)
    acc_e2, acc_h2,
):
    i = pl.program_id(0)

    @pl.when(i == 0)
    def _():
        acc_e2[...] = jnp.zeros_like(acc_e2)
        acc_h2[...] = jnp.zeros_like(acc_h2)

    # ---- streamed phase: layer-1 column block fused with layer-2 K partial sum
    # eif_net: e1_blk = relu(eif @ W1[:, blk] + b1[blk]);  acc_e2 += e1_blk @ W2[blk, :]
    e1 = jnp.dot(eif_ref[...], e_w1[...],
                 preferred_element_type=jnp.float32) + e_b1[...]
    e1 = jnp.maximum(e1, 0.0).astype(jnp.bfloat16)
    acc_e2[...] += jnp.dot(e1, e_w2[...], preferred_element_type=jnp.float32)

    # history_net: same structure
    h1 = jnp.dot(seq_ref[...], h_w1[...],
                 preferred_element_type=jnp.float32) + h_b1[...]
    h1 = jnp.maximum(h1, 0.0).astype(jnp.bfloat16)
    acc_h2[...] += jnp.dot(h1, h_w2[...], preferred_element_type=jnp.float32)

    # ---- epilogue on the last step: the small remaining layers + classifier
    @pl.when(i == pl.num_programs(0) - 1)
    def _():
        def dense(x, w_ref, b_ref, relu):
            y = jnp.dot(x.astype(jnp.bfloat16), w_ref[...],
                        preferred_element_type=jnp.float32) + b_ref[...]
            return jnp.maximum(y, 0.0) if relu else y

        # eif_net tail
        e2 = jnp.maximum(acc_e2[...] + e_b2[...], 0.0)
        e3 = dense(e2, e_w3, e_b3, True)
        e4 = dense(e3, e_w4, e_b4, False)          # (B, 256)

        # history_net tail
        h2 = jnp.maximum(acc_h2[...] + h_b2[...], 0.0)
        h3 = dense(h2, h_w3, h_b3, True)
        h4 = dense(h3, h_w4, h_b4, False)          # (B, 256)

        # ff_net (tiny, padded to 128 lanes; pads are exact zeros)
        f1 = dense(ff_ref[...], f_w1, f_b1, True)
        f2 = dense(f1, f_w2, f_b2, False)          # (B, 128), cols >=10 are 0

        # classifier layer 1:
        #   cat((_eif, _ff, _history), 1) @ W1 + b1 == e@W1e + f@W1f + h@W1h + b1
        z = (jnp.dot(e4.astype(jnp.bfloat16), c_w1e[...],
                     preferred_element_type=jnp.float32)
             + jnp.dot(f2.astype(jnp.bfloat16), c_w1f[...],
                       preferred_element_type=jnp.float32)
             + jnp.dot(h4.astype(jnp.bfloat16), c_w1h[...],
                       preferred_element_type=jnp.float32)
             + c_b1[...])
        z = jnp.maximum(z, 0.0)

        out = jnp.dot(z.astype(jnp.bfloat16), c_w2[...],
                      preferred_element_type=jnp.float32) + c_b2[...]
        out_ref[...] = out.astype(out_ref.dtype)


# ---------------------------------------------------------------------------
# Wrapper
# ---------------------------------------------------------------------------
def _whole(shape):
    n = len(shape)
    return pl.BlockSpec(shape, lambda i, _n=n: (0,) * _n)


def custom_model3_forward(params, eif, ff, sequence):
    """Inference forward of custom_model3. Returns (B, num_classes) f32 logits."""
    B = eif.shape[0]
    num_classes = params["cls_b2"].shape[-1]

    args = (
        eif.astype(jnp.bfloat16), ff.astype(jnp.bfloat16), sequence.astype(jnp.bfloat16),
        params["eif_w1"], params["eif_b1"], params["eif_w2"], params["eif_b2"],
        params["eif_w3"], params["eif_b3"], params["eif_w4"], params["eif_b4"],
        params["ff_w1"], params["ff_b1"], params["ff_w2"], params["ff_b2"],
        params["hist_w1"], params["hist_b1"], params["hist_w2"], params["hist_b2"],
        params["hist_w3"], params["hist_b3"], params["hist_w4"], params["hist_b4"],
        params["cls_w1e"], params["cls_w1f"], params["cls_w1h"], params["cls_b1"],
        params["cls_w2"], params["cls_b2"],
    )

    in_specs = [
        # activations: whole, resident (fetched once)
        _whole((B, 2048)), _whole((B, 35)), _whole((B, 512)),
        # eif_net: layer-1 weight streamed along N, layer-2 weight along K
        pl.BlockSpec((2048, 2048 // NK), lambda i: (0, i)),   # e_w1 (2048,2048)
        pl.BlockSpec((1, 2048 // NK),    lambda i: (0, i)),   # e_b1
        pl.BlockSpec((2048 // NK, 512),  lambda i: (i, 0)),   # e_w2 (2048,512)
        _whole((1, 512)),
        _whole((512, 256)), _whole((1, 256)),
        _whole((256, 256)), _whole((1, 256)),
        # ff_net (padded to 128 output lanes)
        _whole((35, 128)), _whole((1, 128)), _whole((128, 128)), _whole((1, 128)),
        # history_net: layer-1 weight streamed along N, layer-2 weight along K
        pl.BlockSpec((512, 1024 // NK), lambda i: (0, i)),    # h_w1 (512,1024)
        pl.BlockSpec((1, 1024 // NK),   lambda i: (0, i)),    # h_b1
        pl.BlockSpec((1024 // NK, 512), lambda i: (i, 0)),    # h_w2 (1024,512)
        _whole((1, 512)),
        _whole((512, 256)), _whole((1, 256)),
        _whole((256, 256)), _whole((1, 256)),
        # classifier
        _whole((256, 256)), _whole((128, 256)), _whole((256, 256)), _whole((1, 256)),
        _whole((256, num_classes)), _whole((1, num_classes)),
    ]

    return pl.pallas_call(
        _fused_model_kernel,
        out_shape=jax.ShapeDtypeStruct((B, num_classes), jnp.float32),
        grid_spec=pltpu.PrefetchScalarGridSpec(
            num_scalar_prefetch=0,
            grid=(NK,),
            in_specs=in_specs,
            out_specs=pl.BlockSpec((B, num_classes), lambda i: (0, 0)),
            scratch_shapes=[pltpu.VMEM((B, 512), jnp.float32),   # acc_e2
                            pltpu.VMEM((B, 512), jnp.float32)],  # acc_h2
        ),
        compiler_params=pltpu.CompilerParams(
            dimension_semantics=("arbitrary",),
        ),
    )(*args)


# ---------------------------------------------------------------------------
# Deterministic synthetic parameters (shapes from custom_model3.__init__).
# Weights stored (in_features, out_features) in bf16; biases f32 as (1, N).
# ff_net weights zero-padded to 128 lanes, classifier W1 pre-split, both at
# init time so the forward path does no per-call slicing/padding.
# ---------------------------------------------------------------------------
def init_params(key, num_classes=2):
    ks = jax.random.split(key, 12)

    def w(k, shape):
        scale = 1.0 / jnp.sqrt(jnp.float32(shape[0]))
        return (jax.random.normal(k, shape, jnp.float32) * scale).astype(jnp.bfloat16)

    def b(n):
        return jnp.zeros((1, n), jnp.float32)

    def pad_cols(x, n):
        return jnp.pad(x, ((0, 0), (0, n - x.shape[1])))

    def pad_rows(x, n):
        return jnp.pad(x, ((0, n - x.shape[0]), (0, 0)))

    p = {}
    # eif_net: 2048 -> 2048 -> 512 -> 256 -> 256
    p["eif_w1"], p["eif_b1"] = w(ks[0], (2048, 2048)), b(2048)
    p["eif_w2"], p["eif_b2"] = w(ks[1], (2048, 512)), b(512)
    p["eif_w3"], p["eif_b3"] = w(ks[2], (512, 256)), b(256)
    p["eif_w4"], p["eif_b4"] = w(ks[3], (256, 256)), b(256)
    # ff_net: 35 -> 60 -> 10 (zero-padded to 128 output lanes; exact)
    p["ff_w1"], p["ff_b1"] = pad_cols(w(ks[4], (35, 60)), 128), b(128)
    p["ff_w2"], p["ff_b2"] = pad_rows(pad_cols(w(ks[5], (60, 10)), 128), 128), b(128)
    # history_net: 512 -> 1024 -> 512 -> 256 -> 256
    p["hist_w1"], p["hist_b1"] = w(ks[6], (512, 1024)), b(1024)
    p["hist_w2"], p["hist_b2"] = w(ks[7], (1024, 512)), b(512)
    p["hist_w3"], p["hist_b3"] = w(ks[8], (512, 256)), b(256)
    p["hist_w4"], p["hist_b4"] = w(ks[9], (256, 256)), b(256)
    # classifier: 522 -> 256 -> num_classes, first weight pre-split row-wise
    cls_w1 = w(ks[10], (522, 256))
    p["cls_w1e"] = cls_w1[:256]                    # rows consumed by _eif
    p["cls_w1f"] = pad_rows(cls_w1[256:266], 128)  # rows consumed by _ff (padded)
    p["cls_w1h"] = cls_w1[266:]                    # rows consumed by _history
    p["cls_b1"] = b(256)
    p["cls_w2"], p["cls_b2"] = w(ks[11], (256, num_classes)), b(num_classes)
    return p


# ---------------------------------------------------------------------------
# Pure-JAX reference (same bf16 weight / f32 accumulation semantics)
# ---------------------------------------------------------------------------
def reference_forward(params, eif, ff, sequence):
    def dense(x, w, bias, relu):
        y = jnp.dot(x.astype(jnp.bfloat16), w,
                    preferred_element_type=jnp.float32) + bias
        return jnp.maximum(y, 0.0) if relu else y

    e = dense(eif, params["eif_w1"], params["eif_b1"], True)
    e = dense(e, params["eif_w2"], params["eif_b2"], True)
    e = dense(e, params["eif_w3"], params["eif_b3"], True)
    e = dense(e, params["eif_w4"], params["eif_b4"], False)
    f = dense(ff, params["ff_w1"], params["ff_b1"], True)
    f = dense(f, params["ff_w2"], params["ff_b2"], False)
    h = dense(sequence, params["hist_w1"], params["hist_b1"], True)
    h = dense(h, params["hist_w2"], params["hist_b2"], True)
    h = dense(h, params["hist_w3"], params["hist_b3"], True)
    h = dense(h, params["hist_w4"], params["hist_b4"], False)
    z = (jnp.dot(e.astype(jnp.bfloat16), params["cls_w1e"],
                 preferred_element_type=jnp.float32)
         + jnp.dot(f.astype(jnp.bfloat16), params["cls_w1f"],
                   preferred_element_type=jnp.float32)
         + jnp.dot(h.astype(jnp.bfloat16), params["cls_w1h"],
                   preferred_element_type=jnp.float32)
         + params["cls_b1"])
    z = jnp.maximum(z, 0.0)
    return jnp.dot(z.astype(jnp.bfloat16), params["cls_w2"],
                   preferred_element_type=jnp.float32) + params["cls_b2"]


# ---------------------------------------------------------------------------
if __name__ == "__main__":
    # TODO(synk): training-mode Gaussian input noise + Dropout are intentionally
    # omitted (inference semantics, matching model.eval()).
    batch, num_classes = 2, 2

    key = jax.random.PRNGKey(0)
    k_eif, k_ff, k_seq, k_params = jax.random.split(key, 4)
    eif = jax.random.normal(k_eif, (batch, 2048), jnp.float32)
    ff = jax.random.normal(k_ff, (batch, 35), jnp.float32)
    sequence = jax.random.normal(k_seq, (batch, 512), jnp.float32)

    params = init_params(k_params, num_classes)

    out = custom_model3_forward(params, eif, ff, sequence)
    out = jax.block_until_ready(out)

    assert out.shape == (batch, num_classes), out.shape
    assert bool(jnp.all(jnp.isfinite(out)))

    ref = reference_forward(params, eif, ff, sequence)
    max_err = float(jnp.max(jnp.abs(out - ref)))
    assert max_err < 0.1, (max_err, out, ref)

    print("KERNEL_OK")
</pallas_src>

<mosaic_0001>
module attributes {stable_mosaic.version = 11 : i64} {
  func.func @_fused_model_kernel(%arg0: i32, %arg1: memref<2x2048xbf16, #tpu.memory_space<vmem>>, %arg2: memref<2x35xbf16, #tpu.memory_space<vmem>>, %arg3: memref<2x512xbf16, #tpu.memory_space<vmem>>, %arg4: memref<2048x256xbf16, #tpu.memory_space<vmem>>, %arg5: memref<1x256xf32, #tpu.memory_space<vmem>>, %arg6: memref<256x512xbf16, #tpu.memory_space<vmem>>, %arg7: memref<1x512xf32, #tpu.memory_space<vmem>>, %arg8: memref<512x256xbf16, #tpu.memory_space<vmem>>, %arg9: memref<1x256xf32, #tpu.memory_space<vmem>>, %arg10: memref<256x256xbf16, #tpu.memory_space<vmem>>, %arg11: memref<1x256xf32, #tpu.memory_space<vmem>>, %arg12: memref<35x128xbf16, #tpu.memory_space<vmem>>, %arg13: memref<1x128xf32, #tpu.memory_space<vmem>>, %arg14: memref<128x128xbf16, #tpu.memory_space<vmem>>, %arg15: memref<1x128xf32, #tpu.memory_space<vmem>>, %arg16: memref<512x128xbf16, #tpu.memory_space<vmem>>, %arg17: memref<1x128xf32, #tpu.memory_space<vmem>>, %arg18: memref<128x512xbf16, #tpu.memory_space<vmem>>, %arg19: memref<1x512xf32, #tpu.memory_space<vmem>>, %arg20: memref<512x256xbf16, #tpu.memory_space<vmem>>, %arg21: memref<1x256xf32, #tpu.memory_space<vmem>>, %arg22: memref<256x256xbf16, #tpu.memory_space<vmem>>, %arg23: memref<1x256xf32, #tpu.memory_space<vmem>>, %arg24: memref<256x256xbf16, #tpu.memory_space<vmem>>, %arg25: memref<128x256xbf16, #tpu.memory_space<vmem>>, %arg26: memref<256x256xbf16, #tpu.memory_space<vmem>>, %arg27: memref<1x256xf32, #tpu.memory_space<vmem>>, %arg28: memref<256x2xbf16, #tpu.memory_space<vmem>>, %arg29: memref<1x2xf32, #tpu.memory_space<vmem>>, %arg30: memref<2x2xf32, #tpu.memory_space<vmem>>, %arg31: memref<2x512xf32, #tpu.memory_space<vmem>>, %arg32: memref<2x512xf32, #tpu.memory_space<vmem>>) attributes {dimension_semantics = [#tpu.dimension_semantics<arbitrary>], iteration_bounds = array<i64: 8>, scalar_prefetch = 0 : i64, scratch_operands = 2 : i64, tpu.core_type = #tpu.core_type<tc>, window_params = [{pipeline_mode = #tpu.pipeline_mode<synchronous>, transform_indices = @transform_0, window_bounds = array<i64: 2, 2048>}, {pipeline_mode = #tpu.pipeline_mode<synchronous>, transform_indices = @transform_1, window_bounds = array<i64: 2, 35>}, {pipeline_mode = #tpu.pipeline_mode<synchronous>, transform_indices = @transform_2, window_bounds = array<i64: 2, 512>}, {transform_indices = @transform_3, window_bounds = array<i64: 2048, 256>}, {transform_indices = @transform_4, window_bounds = array<i64: 1, 256>}, {transform_indices = @transform_5, window_bounds = array<i64: 256, 512>}, {pipeline_mode = #tpu.pipeline_mode<synchronous>, transform_indices = @transform_6, window_bounds = array<i64: 1, 512>}, {pipeline_mode = #tpu.pipeline_mode<synchronous>, transform_indices = @transform_7, window_bounds = array<i64: 512, 256>}, {pipeline_mode = #tpu.pipeline_mode<synchronous>, transform_indices = @transform_8, window_bounds = array<i64: 1, 256>}, {pipeline_mode = #tpu.pipeline_mode<synchronous>, transform_indices = @transform_9, window_bounds = array<i64: 256, 256>}, {pipeline_mode = #tpu.pipeline_mode<synchronous>, transform_indices = @transform_10, window_bounds = array<i64: 1, 256>}, {pipeline_mode = #tpu.pipeline_mode<synchronous>, transform_indices = @transform_11, window_bounds = array<i64: 35, 128>}, {pipeline_mode = #tpu.pipeline_mode<synchronous>, transform_indices = @transform_12, window_bounds = array<i64: 1, 128>}, {pipeline_mode = #tpu.pipeline_mode<synchronous>, transform_indices = @transform_13, window_bounds = array<i64: 128, 128>}, {pipeline_mode = #tpu.pipeline_mode<synchronous>, transform_indices = @transform_14, window_bounds = array<i64: 1, 128>}, {transform_indices = @transform_15, window_bounds = array<i64: 512, 128>}, {transform_indices = @transform_16, window_bounds = array<i64: 1, 128>}, {transform_indices = @transform_17, window_bounds = array<i64: 128, 512>}, {pipeline_mode = #tpu.pipeline_mode<synchronous>, transform_indices = @transform_18, window_bounds = array<i64: 1, 512>}, {pipeline_mode = #tpu.pipeline_mode<synchronous>, transform_indices = @transform_19, window_bounds = array<i64: 512, 256>}, {pipeline_mode = #tpu.pipeline_mode<synchronous>, transform_indices = @transform_20, window_bounds = array<i64: 1, 256>}, {pipeline_mode = #tpu.pipeline_mode<synchronous>, transform_indices = @transform_21, window_bounds = array<i64: 256, 256>}, {pipeline_mode = #tpu.pipeline_mode<synchronous>, transform_indices = @transform_22, window_bounds = array<i64: 1, 256>}, {pipeline_mode = #tpu.pipeline_mode<synchronous>, transform_indices = @transform_23, window_bounds = array<i64: 256, 256>}, {pipeline_mode = #tpu.pipeline_mode<synchronous>, transform_indices = @transform_24, window_bounds = array<i64: 128, 256>}, {pipeline_mode = #tpu.pipeline_mode<synchronous>, transform_indices = @transform_25, window_bounds = array<i64: 256, 256>}, {pipeline_mode = #tpu.pipeline_mode<synchronous>, transform_indices = @transform_26, window_bounds = array<i64: 1, 256>}, {pipeline_mode = #tpu.pipeline_mode<synchronous>, transform_indices = @transform_27, window_bounds = array<i64: 256, 2>}, {pipeline_mode = #tpu.pipeline_mode<synchronous>, transform_indices = @transform_28, window_bounds = array<i64: 1, 2>}, {pipeline_mode = #tpu.pipeline_mode<synchronous>, transform_indices = @transform_29, window_bounds = array<i64: 2, 2>}]} {
    %c0_i32 = arith.constant 0 : i32
    %0 = arith.cmpi eq, %arg0, %c0_i32 : i32
    %1 = arith.extui %0 : i1 to i32
    %c0_i32_0 = arith.constant 0 : i32
    %2 = arith.cmpi ne, %1, %c0_i32_0 : i32
    scf.if %2 {
      %cst_30 = arith.constant 0.000000e+00 : f32
      %34 = vector.broadcast %cst_30 : f32 to vector<2x512xf32>
      %c0_31 = arith.constant 0 : index
      %c0_32 = arith.constant 0 : index
      %35 = vector.load %arg31[%c0_31, %c0_32] : memref<2x512xf32, #tpu.memory_space<vmem>>, vector<2x512xf32>
      tpu.vector_store %arg31[%c0_31, %c0_32], %34 {strides = array<i32>} : memref<2x512xf32, #tpu.memory_space<vmem>>, vector<2x512xf32>,
      %cst_33 = arith.constant 0.000000e+00 : f32
      %36 = vector.broadcast %cst_33 : f32 to vector<2x512xf32>
      %c0_34 = arith.constant 0 : index
      %c0_35 = arith.constant 0 : index
      %37 = vector.load %arg32[%c0_34, %c0_35] : memref<2x512xf32, #tpu.memory_space<vmem>>, vector<2x512xf32>
      tpu.vector_store %arg32[%c0_34, %c0_35], %36 {strides = array<i32>} : memref<2x512xf32, #tpu.memory_space<vmem>>, vector<2x512xf32>,
    } else {
    }
    %c0 = arith.constant 0 : index
    %c0_1 = arith.constant 0 : index
    %3 = vector.load %arg1[%c0, %c0_1] : memref<2x2048xbf16, #tpu.memory_space<vmem>>, vector<2x2048xbf16>
    %c0_2 = arith.constant 0 : index
    %c0_3 = arith.constant 0 : index
    %4 = vector.load %arg4[%c0_2, %c0_3] : memref<2048x256xbf16, #tpu.memory_space<vmem>>, vector<2048x256xbf16>
    %cst = arith.constant dense<0.000000e+00> : vector<2x256xf32>
    %5 = tpu.matmul %3, %4, %cst {dimension_numbers = #tpu.dot_dimension_numbers<[1], [0], [0], [1], [0, 0, 1, 1], [], []>} : vector<2x2048xbf16>, vector<2048x256xbf16>, vector<2x256xf32> -> vector<2x256xf32>
    %c0_4 = arith.constant 0 : index
    %c0_5 = arith.constant 0 : index
    %6 = vector.load %arg5[%c0_4, %c0_5] : memref<1x256xf32, #tpu.memory_space<vmem>>, vector<1x256xf32>
    %7 = vector.broadcast %6 : vector<1x256xf32> to vector<2x256xf32>
    %8 = arith.addf %5, %7 : vector<2x256xf32>
    %cst_6 = arith.constant 0.000000e+00 : f32
    %9 = vector.broadcast %cst_6 : f32 to vector<2x256xf32>
    %10 = arith.maximumf %8, %9 : vector<2x256xf32>
    %11 = arith.truncf %10 : vector<2x256xf32> to vector<2x256xbf16>
    %c0_7 = arith.constant 0 : index
    %c0_8 = arith.constant 0 : index
    %12 = vector.load %arg31[%c0_7, %c0_8] : memref<2x512xf32, #tpu.memory_space<vmem>>, vector<2x512xf32>
    %c0_9 = arith.constant 0 : index
    %c0_10 = arith.constant 0 : index
    %13 = vector.load %arg6[%c0_9, %c0_10] : memref<256x512xbf16, #tpu.memory_space<vmem>>, vector<256x512xbf16>
    %cst_11 = arith.constant dense<0.000000e+00> : vector<2x512xf32>
    %14 = tpu.matmul %11, %13, %cst_11 {dimension_numbers = #tpu.dot_dimension_numbers<[1], [0], [0], [1], [0, 0, 1, 1], [], []>} : vector<2x256xbf16>, vector<256x512xbf16>, vector<2x512xf32> -> vector<2x512xf32>
    %15 = arith.addf %12, %14 : vector<2x512xf32>
    %c0_12 = arith.constant 0 : index
    %c0_13 = arith.constant 0 : index
    %16 = vector.load %arg31[%c0_12, %c0_13] : memref<2x512xf32, #tpu.memory_space<vmem>>, vector<2x512xf32>
    tpu.vector_store %arg31[%c0_12, %c0_13], %15 {strides = array<i32>} : memref<2x512xf32, #tpu.memory_space<vmem>>, vector<2x512xf32>,
    %c0_14 = arith.constant 0 : index
    %c0_15 = arith.constant 0 : index
    %17 = vector.load %arg3[%c0_14, %c0_15] : memref<2x512xbf16, #tpu.memory_space<vmem>>, vector<2x512xbf16>
    %c0_16 = arith.constant 0 : index
    %c0_17 = arith.constant 0 : index
    %18 = vector.load %arg16[%c0_16, %c0_17] : memref<512x128xbf16, #tpu.memory_space<vmem>>, vector<512x128xbf16>
    %cst_18 = arith.constant dense<0.000000e+00> : vector<2x128xf32>
    %19 = tpu.matmul %17, %18, %cst_18 {dimension_numbers = #tpu.dot_dimension_numbers<[1], [0], [0], [1], [0, 0, 1, 1], [], []>} : vector<2x512xbf16>, vector<512x128xbf16>, vector<2x128xf32> -> vector<2x128xf32>
    %c0_19 = arith.constant 0 : index
    %c0_20 = arith.constant 0 : index
    %20 = vector.load %arg17[%c0_19, %c0_20] : memref<1x128xf32, #tpu.memory_space<vmem>>, vector<1x128xf32>
    %21 = vector.broadcast %20 : vector<1x128xf32> to vector<2x128xf32>
    %22 = arith.addf %19, %21 : vector<2x128xf32>
    %cst_21 = arith.constant 0.000000e+00 : f32
    %23 = vector.broadcast %cst_21 : f32 to vector<2x128xf32>
    %24 = arith.maximumf %22, %23 : vector<2x128xf32>
    %25 = arith.truncf %24 : vector<2x128xf32> to vector<2x128xbf16>
    %c0_22 = arith.constant 0 : index
    %c0_23 = arith.constant 0 : index
    %26 = vector.load %arg32[%c0_22, %c0_23] : memref<2x512xf32, #tpu.memory_space<vmem>>, vector<2x512xf32>
    %c0_24 = arith.constant 0 : index
    %c0_25 = arith.constant 0 : index
    %27 = vector.load %arg18[%c0_24, %c0_25] : memref<128x512xbf16, #tpu.memory_space<vmem>>, vector<128x512xbf16>
    %cst_26 = arith.constant dense<0.000000e+00> : vector<2x512xf32>
    %28 = tpu.matmul %25, %27, %cst_26 {dimension_numbers = #tpu.dot_dimension_numbers<[1], [0], [0], [1], [0, 0, 1, 1], [], []>} : vector<2x128xbf16>, vector<128x512xbf16>, vector<2x512xf32> -> vector<2x512xf32>
    %29 = arith.addf %26, %28 : vector<2x512xf32>
    %c0_27 = arith.constant 0 : index
    %c0_28 = arith.constant 0 : index
    %30 = vector.load %arg32[%c0_27, %c0_28] : memref<2x512xf32, #tpu.memory_space<vmem>>, vector<2x512xf32>
    tpu.vector_store %arg32[%c0_27, %c0_28], %29 {strides = array<i32>} : memref<2x512xf32, #tpu.memory_space<vmem>>, vector<2x512xf32>,
    %c7_i32 = arith.constant 7 : i32
    %31 = arith.cmpi eq, %arg0, %c7_i32 : i32
    %32 = arith.extui %31 : i1 to i32
    %c0_i32_29 = arith.constant 0 : i32
    %33 = arith.cmpi ne, %32, %c0_i32_29 : i32
    scf.if %33 {
      %c0_30 = arith.constant 0 : index
      %c0_31 = arith.constant 0 : index
      %34 = vector.load %arg31[%c0_30, %c0_31] : memref<2x512xf32, #tpu.memory_space<vmem>>, vector<2x512xf32>
      %c0_32 = arith.constant 0 : index
      %c0_33 = arith.constant 0 : index
      %35 = vector.load %arg7[%c0_32, %c0_33] : memref<1x512xf32, #tpu.memory_space<vmem>>, vector<1x512xf32>
      %36 = vector.broadcast %35 : vector<1x512xf32> to vector<2x512xf32>
      %37 = arith.addf %34, %36 : vector<2x512xf32>
      %cst_34 = arith.constant 0.000000e+00 : f32
      %38 = vector.broadcast %cst_34 : f32 to vector<2x512xf32>
      %39 = arith.maximumf %37, %38 : vector<2x512xf32>
      %40 = arith.truncf %39 : vector<2x512xf32> to vector<2x512xbf16>
      %c0_35 = arith.constant 0 : index
      %c0_36 = arith.constant 0 : index
      %41 = vector.load %arg8[%c0_35, %c0_36] : memref<512x256xbf16, #tpu.memory_space<vmem>>, vector<512x256xbf16>
      %cst_37 = arith.constant dense<0.000000e+00> : vector<2x256xf32>
      %42 = tpu.matmul %40, %41, %cst_37 {dimension_numbers = #tpu.dot_dimension_numbers<[1], [0], [0], [1], [0, 0, 1, 1], [], []>} : vector<2x512xbf16>, vector<512x256xbf16>, vector<2x256xf32> -> vector<2x256xf32>
      %c0_38 = arith.constant 0 : index
      %c0_39 = arith.constant 0 : index
      %43 = vector.load %arg9[%c0_38, %c0_39] : memref<1x256xf32, #tpu.memory_space<vmem>>, vector<1x256xf32>
      %44 = vector.broadcast %43 : vector<1x256xf32> to vector<2x256xf32>
      %45 = arith.addf %42, %44 : vector<2x256xf32>
      %cst_40 = arith.constant 0.000000e+00 : f32
      %46 = vector.broadcast %cst_40 : f32 to vector<2x256xf32>
      %47 = arith.maximumf %45, %46 : vector<2x256xf32>
      %48 = arith.truncf %47 : vector<2x256xf32> to vector<2x256xbf16>
      %c0_41 = arith.constant 0 : index
      %c0_42 = arith.constant 0 : index
      %49 = vector.load %arg10[%c0_41, %c0_42] : memref<256x256xbf16, #tpu.memory_space<vmem>>, vector<256x256xbf16>
      %cst_43 = arith.constant dense<0.000000e+00> : vector<2x256xf32>
      %50 = tpu.matmul %48, %49, %cst_43 {dimension_numbers = #tpu.dot_dimension_numbers<[1], [0], [0], [1], [0, 0, 1, 1], [], []>} : vector<2x256xbf16>, vector<256x256xbf16>, vector<2x256xf32> -> vector<2x256xf32>
      %c0_44 = arith.constant 0 : index
      %c0_45 = arith.constant 0 : index
      %51 = vector.load %arg11[%c0_44, %c0_45] : memref<1x256xf32, #tpu.memory_space<vmem>>, vector<1x256xf32>
      %52 = vector.broadcast %51 : vector<1x256xf32> to vector<2x256xf32>
      %53 = arith.addf %50, %52 : vector<2x256xf32>
      %c0_46 = arith.constant 0 : index
      %c0_47 = arith.constant 0 : index
      %54 = vector.load %arg32[%c0_46, %c0_47] : memref<2x512xf32, #tpu.memory_space<vmem>>, vector<2x512xf32>
      %c0_48 = arith.constant 0 : index
      %c0_49 = arith.constant 0 : index
      %55 = vector.load %arg19[%c0_48, %c0_49] : memref<1x512xf32, #tpu.memory_space<vmem>>, vector<1x512xf32>
      %56 = vector.broadcast %55 : vector<1x512xf32> to vector<2x512xf32>
      %57 = arith.addf %54, %56 : vector<2x512xf32>
      %cst_50 = arith.constant 0.000000e+00 : f32
      %58 = vector.broadcast %cst_50 : f32 to vector<2x512xf32>
      %59 = arith.maximumf %57, %58 : vector<2x512xf32>
      %60 = arith.truncf %59 : vector<2x512xf32> to vector<2x512xbf16>
      %c0_51 = arith.constant 0 : index
      %c0_52 = arith.constant 0 : index
      %61 = vector.load %arg20[%c0_51, %c0_52] : memref<512x256xbf16, #tpu.memory_space<vmem>>, vector<512x256xbf16>
      %cst_53 = arith.constant dense<0.000000e+00> : vector<2x256xf32>
      %62 = tpu.matmul %60, %61, %cst_53 {dimension_numbers = #tpu.dot_dimension_numbers<[1], [0], [0], [1], [0, 0, 1, 1], [], []>} : vector<2x512xbf16>, vector<512x256xbf16>, vector<2x256xf32> -> vector<2x256xf32>
      %c0_54 = arith.constant 0 : index
      %c0_55 = arith.constant 0 : index
      %63 = vector.load %arg21[%c0_54, %c0_55] : memref<1x256xf32, #tpu.memory_space<vmem>>, vector<1x256xf32>
      %64 = vector.broadcast %63 : vector<1x256xf32> to vector<2x256xf32>
      %65 = arith.addf %62, %64 : vector<2x256xf32>
      %cst_56 = arith.constant 0.000000e+00 : f32
      %66 = vector.broadcast %cst_56 : f32 to vector<2x256xf32>
      %67 = arith.maximumf %65, %66 : vector<2x256xf32>
      %68 = arith.truncf %67 : vector<2x256xf32> to vector<2x256xbf16>
      %c0_57 = arith.constant 0 : index
      %c0_58 = arith.constant 0 : index
      %69 = vector.load %arg22[%c0_57, %c0_58] : memref<256x256xbf16, #tpu.memory_space<vmem>>, vector<256x256xbf16>
      %cst_59 = arith.constant dense<0.000000e+00> : vector<2x256xf32>
      %70 = tpu.matmul %68, %69, %cst_59 {dimension_numbers = #tpu.dot_dimension_numbers<[1], [0], [0], [1], [0, 0, 1, 1], [], []>} : vector<2x256xbf16>, vector<256x256xbf16>, vector<2x256xf32> -> vector<2x256xf32>
      %c0_60 = arith.constant 0 : index
      %c0_61 = arith.constant 0 : index
      %71 = vector.load %arg23[%c0_60, %c0_61] : memref<1x256xf32, #tpu.memory_space<vmem>>, vector<1x256xf32>
      %72 = vector.broadcast %71 : vector<1x256xf32> to vector<2x256xf32>
      %73 = arith.addf %70, %72 : vector<2x256xf32>
      %c0_62 = arith.constant 0 : index
      %c0_63 = arith.constant 0 : index
      %74 = vector.load %arg2[%c0_62, %c0_63] : memref<2x35xbf16, #tpu.memory_space<vmem>>, vector<2x35xbf16>
      %c0_64 = arith.constant 0 : index
      %c0_65 = arith.constant 0 : index
      %75 = vector.load %arg12[%c0_64, %c0_65] : memref<35x128xbf16, #tpu.memory_space<vmem>>, vector<35x128xbf16>
      %cst_66 = arith.constant dense<0.000000e+00> : vector<2x128xf32>
      %76 = tpu.matmul %74, %75, %cst_66 {dimension_numbers = #tpu.dot_dimension_numbers<[1], [0], [0], [1], [0, 0, 1, 1], [], []>} : vector<2x35xbf16>, vector<35x128xbf16>, vector<2x128xf32> -> vector<2x128xf32>
      %c0_67 = arith.constant 0 : index
      %c0_68 = arith.constant 0 : index
      %77 = vector.load %arg13[%c0_67, %c0_68] : memref<1x128xf32, #tpu.memory_space<vmem>>, vector<1x128xf32>
      %78 = vector.broadcast %77 : vector<1x128xf32> to vector<2x128xf32>
      %79 = arith.addf %76, %78 : vector<2x128xf32>
      %cst_69 = arith.constant 0.000000e+00 : f32
      %80 = vector.broadcast %cst_69 : f32 to vector<2x128xf32>
      %81 = arith.maximumf %79, %80 : vector<2x128xf32>
      %82 = arith.truncf %81 : vector<2x128xf32> to vector<2x128xbf16>
      %c0_70 = arith.constant 0 : index
      %c0_71 = arith.constant 0 : index
      %83 = vector.load %arg14[%c0_70, %c0_71] : memref<128x128xbf16, #tpu.memory_space<vmem>>, vector<128x128xbf16>
      %cst_72 = arith.constant dense<0.000000e+00> : vector<2x128xf32>
      %84 = tpu.matmul %82, %83, %cst_72 {dimension_numbers = #tpu.dot_dimension_numbers<[1], [0], [0], [1], [0, 0, 1, 1], [], []>} : vector<2x128xbf16>, vector<128x128xbf16>, vector<2x128xf32> -> vector<2x128xf32>
      %c0_73 = arith.constant 0 : index
      %c0_74 = arith.constant 0 : index
      %85 = vector.load %arg15[%c0_73, %c0_74] : memref<1x128xf32, #tpu.memory_space<vmem>>, vector<1x128xf32>
      %86 = vector.broadcast %85 : vector<1x128xf32> to vector<2x128xf32>
      %87 = arith.addf %84, %86 : vector<2x128xf32>
      %88 = arith.truncf %53 : vector<2x256xf32> to vector<2x256xbf16>
      %c0_75 = arith.constant 0 : index
      %c0_76 = arith.constant 0 : index
      %89 = vector.load %arg24[%c0_75, %c0_76] : memref<256x256xbf16, #tpu.memory_space<vmem>>, vector<256x256xbf16>
      %cst_77 = arith.constant dense<0.000000e+00> : vector<2x256xf32>
      %90 = tpu.matmul %88, %89, %cst_77 {dimension_numbers = #tpu.dot_dimension_numbers<[1], [0], [0], [1], [0, 0, 1, 1], [], []>} : vector<2x256xbf16>, vector<256x256xbf16>, vector<2x256xf32> -> vector<2x256xf32>
      %91 = arith.truncf %87 : vector<2x128xf32> to vector<2x128xbf16>
      %c0_78 = arith.constant 0 : index
      %c0_79 = arith.constant 0 : index
      %92 = vector.load %arg25[%c0_78, %c0_79] : memref<128x256xbf16, #tpu.memory_space<vmem>>, vector<128x256xbf16>
      %cst_80 = arith.constant dense<0.000000e+00> : vector<2x256xf32>
      %93 = tpu.matmul %91, %92, %cst_80 {dimension_numbers = #tpu.dot_dimension_numbers<[1], [0], [0], [1], [0, 0, 1, 1], [], []>} : vector<2x128xbf16>, vector<128x256xbf16>, vector<2x256xf32> -> vector<2x256xf32>
      %94 = arith.addf %90, %93 : vector<2x256xf32>
      %95 = arith.truncf %73 : vector<2x256xf32> to vector<2x256xbf16>
      %c0_81 = arith.constant 0 : index
      %c0_82 = arith.constant 0 : index
      %96 = vector.load %arg26[%c0_81, %c0_82] : memref<256x256xbf16, #tpu.memory_space<vmem>>, vector<256x256xbf16>
      %cst_83 = arith.constant dense<0.000000e+00> : vector<2x256xf32>
      %97 = tpu.matmul %95, %96, %cst_83 {dimension_numbers = #tpu.dot_dimension_numbers<[1], [0], [0], [1], [0, 0, 1, 1], [], []>} : vector<2x256xbf16>, vector<256x256xbf16>, vector<2x256xf32> -> vector<2x256xf32>
      %98 = arith.addf %94, %97 : vector<2x256xf32>
      %c0_84 = arith.constant 0 : index
      %c0_85 = arith.constant 0 : index
      %99 = vector.load %arg27[%c0_84, %c0_85] : memref<1x256xf32, #tpu.memory_space<vmem>>, vector<1x256xf32>
      %100 = vector.broadcast %99 : vector<1x256xf32> to vector<2x256xf32>
      %101 = arith.addf %98, %100 : vector<2x256xf32>
      %cst_86 = arith.constant 0.000000e+00 : f32
      %102 = vector.broadcast %cst_86 : f32 to vector<2x256xf32>
      %103 = arith.maximumf %101, %102 : vector<2x256xf32>
      %104 = arith.truncf %103 : vector<2x256xf32> to vector<2x256xbf16>
      %c0_87 = arith.constant 0 : index
      %c0_88 = arith.constant 0 : index
      %105 = vector.load %arg28[%c0_87, %c0_88] : memref<256x2xbf16, #tpu.memory_space<vmem>>, vector<256x2xbf16>
      %cst_89 = arith.constant dense<0.000000e+00> : vector<2x2xf32>
      %106 = tpu.matmul %104, %105, %cst_89 {dimension_numbers = #tpu.dot_dimension_numbers<[1], [0], [0], [1], [0, 0, 1, 1], [], []>} : vector<2x256xbf16>, vector<256x2xbf16>, vector<2x2xf32> -> vector<2x2xf32>
      %c0_90 = arith.constant 0 : index
      %c0_91 = arith.constant 0 : index
      %107 = vector.load %arg29[%c0_90, %c0_91] : memref<1x2xf32, #tpu.memory_space<vmem>>, vector<1x2xf32>
      %108 = vector.broadcast %107 : vector<1x2xf32> to vector<2x2xf32>
      %109 = arith.addf %106, %108 : vector<2x2xf32>
      %c0_92 = arith.constant 0 : index
      %c0_93 = arith.constant 0 : index
      %110 = vector.load %arg30[%c0_92, %c0_93] : memref<2x2xf32, #tpu.memory_space<vmem>>, vector<2x2xf32>
      tpu.vector_store %arg30[%c0_92, %c0_93], %109 {strides = array<i32>} : memref<2x2xf32, #tpu.memory_space<vmem>>, vector<2x2xf32>,
    } else {
    }
    return
  }
  func.func @transform_0(%arg0: i32) -> (i32, i32) {
    %c0_i32 = arith.constant 0 : i32
    %c0_i32_0 = arith.constant 0 : i32
    %c0_i32_1 = arith.constant 0 : i32
    return %c0_i32, %c0_i32_0 : i32, i32
  }
  func.func @transform_1(%arg0: i32) -> (i32, i32) {
    %c0_i32 = arith.constant 0 : i32
    %c0_i32_0 = arith.constant 0 : i32
    %c0_i32_1 = arith.constant 0 : i32
    return %c0_i32, %c0_i32_0 : i32, i32
  }
  func.func @transform_2(%arg0: i32) -> (i32, i32) {
    %c0_i32 = arith.constant 0 : i32
    %c0_i32_0 = arith.constant 0 : i32
    %c0_i32_1 = arith.constant 0 : i32
    return %c0_i32, %c0_i32_0 : i32, i32
  }
  func.func @transform_3(%arg0: i32) -> (i32, i32) {
    %c0_i32 = arith.constant 0 : i32
    %c0_i32_0 = arith.constant 0 : i32
    return %c0_i32, %arg0 : i32, i32
  }
  func.func @transform_4(%arg0: i32) -> (i32, i32) {
    %c0_i32 = arith.constant 0 : i32
    %c0_i32_0 = arith.constant 0 : i32
    return %c0_i32, %arg0 : i32, i32
  }
  func.func @transform_5(%arg0: i32) -> (i32, i32) {
    %c0_i32 = arith.constant 0 : i32
    %c0_i32_0 = arith.constant 0 : i32
    return %arg0, %c0_i32 : i32, i32
  }
  func.func @transform_6(%arg0: i32) -> (i32, i32) {
    %c0_i32 = arith.constant 0 : i32
    %c0_i32_0 = arith.constant 0 : i32
    %c0_i32_1 = arith.constant 0 : i32
    return %c0_i32, %c0_i32_0 : i32, i32
  }
  func.func @transform_7(%arg0: i32) -> (i32, i32) {
    %c0_i32 = arith.constant 0 : i32
    %c0_i32_0 = arith.constant 0 : i32
    %c0_i32_1 = arith.constant 0 : i32
    return %c0_i32, %c0_i32_0 : i32, i32
  }
  func.func @transform_8(%arg0: i32) -> (i32, i32) {
    %c0_i32 = arith.constant 0 : i32
    %c0_i32_0 = arith.constant 0 : i32
    %c0_i32_1 = arith.constant 0 : i32
    return %c0_i32, %c0_i32_0 : i32, i32
  }
  func.func @transform_9(%arg0: i32) -> (i32, i32) {
    %c0_i32 = arith.constant 0 : i32
    %c0_i32_0 = arith.constant 0 : i32
    %c0_i32_1 = arith.constant 0 : i32
    return %c0_i32, %c0_i32_0 : i32, i32
  }
  func.func @transform_10(%arg0: i32) -> (i32, i32) {
    %c0_i32 = arith.constant 0 : i32
    %c0_i32_0 = arith.constant 0 : i32
    %c0_i32_1 = arith.constant 0 : i32
    return %c0_i32, %c0_i32_0 : i32, i32
  }
  func.func @transform_11(%arg0: i32) -> (i32, i32) {
    %c0_i32 = arith.constant 0 : i32
    %c0_i32_0 = arith.constant 0 : i32
    %c0_i32_1 = arith.constant 0 : i32
    return %c0_i32, %c0_i32_0 : i32, i32
  }
  func.func @transform_12(%arg0: i32) -> (i32, i32) {
    %c0_i32 = arith.constant 0 : i32
    %c0_i32_0 = arith.constant 0 : i32
    %c0_i32_1 = arith.constant 0 : i32
    return %c0_i32, %c0_i32_0 : i32, i32
  }
  func.func @transform_13(%arg0: i32) -> (i32, i32) {
    %c0_i32 = arith.constant 0 : i32
    %c0_i32_0 = arith.constant 0 : i32
    %c0_i32_1 = arith.constant 0 : i32
    return %c0_i32, %c0_i32_0 : i32, i32
  }
  func.func @transform_14(%arg0: i32) -> (i32, i32) {
    %c0_i32 = arith.constant 0 : i32
    %c0_i32_0 = arith.constant 0 : i32
    %c0_i32_1 = arith.constant 0 : i32
    return %c0_i32, %c0_i32_0 : i32, i32
  }
  func.func @transform_15(%arg0: i32) -> (i32, i32) {
    %c0_i32 = arith.constant 0 : i32
    %c0_i32_0 = arith.constant 0 : i32
    return %c0_i32, %arg0 : i32, i32
  }
  func.func @transform_16(%arg0: i32) -> (i32, i32) {
    %c0_i32 = arith.constant 0 : i32
    %c0_i32_0 = arith.constant 0 : i32
    return %c0_i32, %arg0 : i32, i32
  }
  func.func @transform_17(%arg0: i32) -> (i32, i32) {
    %c0_i32 = arith.constant 0 : i32
    %c0_i32_0 = arith.constant 0 : i32
    return %arg0, %c0_i32 : i32, i32
  }
  func.func @transform_18(%arg0: i32) -> (i32, i32) {
    %c0_i32 = arith.constant 0 : i32
    %c0_i32_0 = arith.constant 0 : i32
    %c0_i32_1 = arith.constant 0 : i32
    return %c0_i32, %c0_i32_0 : i32, i32
  }
  func.func @transform_19(%arg0: i32) -> (i32, i32) {
    %c0_i32 = arith.constant 0 : i32
    %c0_i32_0 = arith.constant 0 : i32
    %c0_i32_1 = arith.constant 0 : i32
    return %c0_i32, %c0_i32_0 : i32, i32
  }
  func.func @transform_20(%arg0: i32) -> (i32, i32) {
    %c0_i32 = arith.constant 0 : i32
    %c0_i32_0 = arith.constant 0 : i32
    %c0_i32_1 = arith.constant 0 : i32
    return %c0_i32, %c0_i32_0 : i32, i32
  }
  func.func @transform_21(%arg0: i32) -> (i32, i32) {
    %c0_i32 = arith.constant 0 : i32
    %c0_i32_0 = arith.constant 0 : i32
    %c0_i32_1 = arith.constant 0 : i32
    return %c0_i32, %c0_i32_0 : i32, i32
  }
  func.func @transform_22(%arg0: i32) -> (i32, i32) {
    %c0_i32 = arith.constant 0 : i32
    %c0_i32_0 = arith.constant 0 : i32
    %c0_i32_1 = arith.constant 0 : i32
    return %c0_i32, %c0_i32_0 : i32, i32
  }
  func.func @transform_23(%arg0: i32) -> (i32, i32) {
    %c0_i32 = arith.constant 0 : i32
    %c0_i32_0 = arith.constant 0 : i32
    %c0_i32_1 = arith.constant 0 : i32
    return %c0_i32, %c0_i32_0 : i32, i32
  }
  func.func @transform_24(%arg0: i32) -> (i32, i32) {
    %c0_i32 = arith.constant 0 : i32
    %c0_i32_0 = arith.constant 0 : i32
    %c0_i32_1 = arith.constant 0 : i32
    return %c0_i32, %c0_i32_0 : i32, i32
  }
  func.func @transform_25(%arg0: i32) -> (i32, i32) {
    %c0_i32 = arith.constant 0 : i32
    %c0_i32_0 = arith.constant 0 : i32
    %c0_i32_1 = arith.constant 0 : i32
    return %c0_i32, %c0_i32_0 : i32, i32
  }
  func.func @transform_26(%arg0: i32) -> (i32, i32) {
    %c0_i32 = arith.constant 0 : i32
    %c0_i32_0 = arith.constant 0 : i32
    %c0_i32_1 = arith.constant 0 : i32
    return %c0_i32, %c0_i32_0 : i32, i32
  }
  func.func @transform_27(%arg0: i32) -> (i32, i32) {
    %c0_i32 = arith.constant 0 : i32
    %c0_i32_0 = arith.constant 0 : i32
    %c0_i32_1 = arith.constant 0 : i32
    return %c0_i32, %c0_i32_0 : i32, i32
  }
  func.func @transform_28(%arg0: i32) -> (i32, i32) {
    %c0_i32 = arith.constant 0 : i32
    %c0_i32_0 = arith.constant 0 : i32
    %c0_i32_1 = arith.constant 0 : i32
    return %c0_i32, %c0_i32_0 : i32, i32
  }
  func.func @transform_29(%arg0: i32) -> (i32, i32) {
    %c0_i32 = arith.constant 0 : i32
    %c0_i32_0 = arith.constant 0 : i32
    %c0_i32_1 = arith.constant 0 : i32
    return %c0_i32, %c0_i32_0 : i32, i32
  }
}

</mosaic_0001>

<llo_original>
// kernel: tpu_custom_call.1
$region0: #{tpu_custom_call.1}
  #allocation0 [shape = 'u32[]', space=smem, size = 0x4, offset = 0x4, fixed_abs, tag = 'smem constant byte address 0x4 - core index']
  #allocation1 [shape = 'u32[144,128]{1,0:T(1,128)}', space=vmem, size = 0x12000, scoped, tag = 'internal scratch']
  #allocation2 [shape = 'f32[2,512]{1,0:T(2,128)}', space=vmem, size = 0x1000, scoped, tag = 'scratch operand']
  #allocation3 [shape = 'f32[2,512]{1,0:T(2,128)}', space=vmem, size = 0x1000, scoped, tag = 'scratch operand']
  %s0 = inlined_call_operand.smem [shape: u32[30], index: -1, kind: input, shape index: {}]
  %s1 = sld [smem:[%s0]]
  %s2 = scalar_lea.smem %s0, 1
  %s3 = sld [smem:[%s2]]
  %s4 = scalar_lea.smem %s0, 2
  %s5 = sld [smem:[%s4]]
  %s6 = scalar_lea.smem %s0, 3
  %s7 = sld [smem:[%s6]]
  %s8 = scalar_lea.smem %s0, 4
  %s9 = sld [smem:[%s8]]
  %s10 = scalar_lea.smem %s0, 5
  %s11 = sld [smem:[%s10]]
  %s12 = scalar_lea.smem %s0, 6
  %s13 = sld [smem:[%s12]]
  %s14 = scalar_lea.smem %s0, 7
  %s15 = sld [smem:[%s14]]
  %s16 = scalar_lea.smem %s0, 8
  %s17 = sld [smem:[%s16]]
  %s18 = scalar_lea.smem %s0, 9
  %s19 = sld [smem:[%s18]]
  %s20 = scalar_lea.smem %s0, 10
  %s21 = sld [smem:[%s20]]
  %s22 = scalar_lea.smem %s0, 11
  %s23 = sld [smem:[%s22]]
  %s24 = scalar_lea.smem %s0, 12
  %s25 = sld [smem:[%s24]]
  %s26 = scalar_lea.smem %s0, 13
  %s27 = sld [smem:[%s26]]
  %s28 = scalar_lea.smem %s0, 14
  %s29 = sld [smem:[%s28]]
  %s30 = scalar_lea.smem %s0, 15
  %s31 = sld [smem:[%s30]]
  %s32 = scalar_lea.smem %s0, 16
  %s33 = sld [smem:[%s32]]
  %s34 = scalar_lea.smem %s0, 17
  %s35 = sld [smem:[%s34]]
  %s36 = scalar_lea.smem %s0, 18
  %s37 = sld [smem:[%s36]]
  %s38 = scalar_lea.smem %s0, 19
  %s39 = sld [smem:[%s38]]
  %s40 = scalar_lea.smem %s0, 20
  %s41 = sld [smem:[%s40]]
  %s42 = scalar_lea.smem %s0, 21
  %s43 = sld [smem:[%s42]]
  %s44 = scalar_lea.smem %s0, 22
  %s45 = sld [smem:[%s44]]
  %s46 = scalar_lea.smem %s0, 23
  %s47 = sld [smem:[%s46]]
  %s48 = scalar_lea.smem %s0, 24
  %s49 = sld [smem:[%s48]]
  %s50 = scalar_lea.smem %s0, 25
  %s51 = sld [smem:[%s50]]
  %s52 = scalar_lea.smem %s0, 26
  %s53 = sld [smem:[%s52]]
  %s54 = scalar_lea.smem %s0, 27
  %s55 = sld [smem:[%s54]]
  %s56 = scalar_lea.smem %s0, 28
  %s57 = sld [smem:[%s56]]
  %s58 = scalar_lea.smem %s0, 29
  %s59 = sld [smem:[%s58]]
  %s60 = sld [smem:[#allocation0]]
  $region269: #{tpu_custom_call.1} parent=0
    _
  %s62 = ssub.s32 1, %s60
  %s63 = scalar_select 0, %s62, %s60
  $region1: #{tpu_custom_call.1} parent=0
    #allocation4 [shape = 'u8[8192]{0}', space=vmem, size = 0x2000, scoped, tag = 'input window, operand 0, single buffered']
    #allocation5 [shape = 's32[2]{0}', space=sflag, size = 0x8, scoped, tag = 'scoped memory for tpu_custom_call.1']
    #allocation6 [shape = 's32[2]{0}', space=sflag, size = 0x8, scoped, tag = 'scoped memory for tpu_custom_call.1']
    #allocation7 [shape = 'u8[512]{0}', space=vmem, size = 0x400, scoped, tag = 'input window, operand 1, single buffered']
    #allocation8 [shape = 's32[1]{0}', space=sflag, size = 0x4, scoped, tag = 'scoped memory for tpu_custom_call.1']
    #allocation9 [shape = 'u8[2048]{0}', space=vmem, size = 0x800, scoped, tag = 'input window, operand 2, single buffered']
    #allocation10 [shape = 'u8[2097152]{0}', space=vmem, size = 0x200000, scoped, tag = 'input window, operand 3']
    #allocation11 [shape = 's32[2]{0}', space=sflag, size = 0x8, scoped, tag = 'scoped memory for tpu_custom_call.1']
    #allocation12 [shape = 'u8[2048]{0}', space=vmem, size = 0x800, scoped, tag = 'input window, operand 4']
    #allocation13 [shape = 'u8[524288]{0}', space=vmem, size = 0x80000, scoped, tag = 'input window, operand 5']
    #allocation14 [shape = 's32[2]{0}', space=sflag, size = 0x8, scoped, tag = 'scoped memory for tpu_custom_call.1']
    #allocation15 [shape = 'u8[2048]{0}', space=vmem, size = 0x800, scoped, tag = 'input window, operand 6, single buffered']
    #allocation16 [shape = 'u8[262144]{0}', space=vmem, size = 0x40000, scoped, tag = 'input window, operand 7, single buffered']
    #allocation17 [shape = 's32[1]{0}', space=sflag, size = 0x4, scoped, tag = 'scoped memory for tpu_custom_call.1']
    #allocation18 [shape = 'u8[1024]{0}', space=vmem, size = 0x400, scoped, tag = 'input window, operand 8, single buffered']
    #allocation19 [shape = 'u8[131072]{0}', space=vmem, size = 0x20000, scoped, tag = 'input window, operand 9, single buffered']
    #allocation20 [shape = 's32[1]{0}', space=sflag, size = 0x4, scoped, tag = 'scoped memory for tpu_custom_call.1']
    #allocation21 [shape = 'u8[1024]{0}', space=vmem, size = 0x400, scoped, tag = 'input window, operand 10, single buffered']
    #allocation22 [shape = 'u8[10240]{0}', space=vmem, size = 0x2800, scoped, tag = 'input window, operand 11, single buffered']
    #allocation23 [shape = 's32[1]{0}', space=sflag, size = 0x4, scoped, tag = 'scoped memory for tpu_custom_call.1']
    #allocation24 [shape = 'u8[512]{0}', space=vmem, size = 0x400, scoped, tag = 'input window, operand 12, single buffered']
    #allocation25 [shape = 'u8[32768]{0}', space=vmem, size = 0x8000, scoped, tag = 'input window, operand 13, single buffered']
    #allocation26 [shape = 's32[1]{0}', space=sflag, size = 0x4, scoped, tag = 'scoped memory for tpu_custom_call.1']
    #allocation27 [shape = 'u8[512]{0}', space=vmem, size = 0x400, scoped, tag = 'input window, operand 14, single buffered']
    #allocation28 [shape = 'u8[262144]{0}', space=vmem, size = 0x40000, scoped, tag = 'input window, operand 15']
    #allocation29 [shape = 's32[2]{0}', space=sflag, size = 0x8, scoped, tag = 'scoped memory for tpu_custom_call.1']
    #allocation30 [shape = 'u8[1024]{0}', space=vmem, size = 0x400, scoped, tag = 'input window, operand 16']
    #allocation31 [shape = 'u8[262144]{0}', space=vmem, size = 0x40000, scoped, tag = 'input window, operand 17']
    #allocation32 [shape = 's32[2]{0}', space=sflag, size = 0x8, scoped, tag = 'scoped memory for tpu_custom_call.1']
    #allocation33 [shape = 'u8[2048]{0}', space=vmem, size = 0x800, scoped, tag = 'input window, operand 18, single buffered']
    #allocation34 [shape = 'u8[262144]{0}', space=vmem, size = 0x40000, scoped, tag = 'input window, operand 19, single buffered']
    #allocation35 [shape = 's32[1]{0}', space=sflag, size = 0x4, scoped, tag = 'scoped memory for tpu_custom_call.1']
    #allocation36 [shape = 'u8[1024]{0}', space=vmem, size = 0x400, scoped, tag = 'input window, operand 20, single buffered']
    #allocation37 [shape = 'u8[131072]{0}', space=vmem, size = 0x20000, scoped, tag = 'input window, operand 21, single buffered']
    #allocation38 [shape = 's32[1]{0}', space=sflag, size = 0x4, scoped, tag = 'scoped memory for tpu_custom_call.1']
    #allocation39 [shape = 'u8[1024]{0}', space=vmem, size = 0x400, scoped, tag = 'input window, operand 22, single buffered']
    #allocation40 [shape = 'u8[131072]{0}', space=vmem, size = 0x20000, scoped, tag = 'input window, operand 23, single buffered']
    #allocation41 [shape = 's32[1]{0}', space=sflag, size = 0x4, scoped, tag = 'scoped memory for tpu_custom_call.1']
    #allocation42 [shape = 'u8[65536]{0}', space=vmem, size = 0x10000, scoped, tag = 'input window, operand 24, single buffered']
    #allocation43 [shape = 'u8[131072]{0}', space=vmem, size = 0x20000, scoped, tag = 'input window, operand 25, single buffered']
    #allocation44 [shape = 's32[1]{0}', space=sflag, size = 0x4, scoped, tag = 'scoped memory for tpu_custom_call.1']
    #allocation45 [shape = 'u8[1024]{0}', space=vmem, size = 0x400, scoped, tag = 'input window, operand 26, single buffered']
    #allocation46 [shape = 'u8[512]{0}', space=vmem, size = 0x400, scoped, tag = 'input window, operand 28, single buffered']
    #allocation47 [shape = 's32[1]{0}', space=sflag, size = 0x4, scoped, tag = 'scoped memory for tpu_custom_call.1']
    #allocation48 [shape = 'u8[1024]{0}', space=vmem, size = 0x400, scoped, tag = 'output window, operand 0, single buffered']
    %64 = vsyncpa [#allocation5], 0
    %65 = vsyncpa [#allocation8], 0
    %66 = vsyncpa [#allocation11], 0
    %s67 = scalar_lea.sflag [#allocation11], 1
    %68 = vsyncpa %s67, 0
    %69 = vsyncpa [#allocation14], 0
    %s70 = scalar_lea.sflag [#allocation14], 1
    %71 = vsyncpa %s70, 0
    %72 = vsyncpa [#allocation17], 0
    %73 = vsyncpa [#allocation20], 0
    %74 = vsyncpa [#allocation23], 0
    %75 = vsyncpa [#allocation26], 0
    %76 = vsyncpa [#allocation29], 0
    %s77 = scalar_lea.sflag [#allocation29], 1
    %78 = vsyncpa %s77, 0
    %79 = vsyncpa [#allocation32], 0
    %s80 = scalar_lea.sflag [#allocation32], 1
    %81 = vsyncpa %s80, 0
    %82 = vsyncpa [#allocation35], 0
    %83 = vsyncpa [#allocation38], 0
    %84 = vsyncpa [#allocation41], 0
    %85 = vsyncpa [#allocation44], 0
    %86 = vsyncpa [#allocation47], 0
    %87 = vsyncpa [#allocation6], 0
    loop: start=0, step=1, limit=10
    $region2: #{tpu_custom_call.1} parent=1 // loop_pre_header
      _
    $region3: #{tpu_custom_call.1} parent=1 // loop_header
      %s89 = sphi 0, %s93
      %p90 = scmp.ge.s32.totalorder %s89, 10
      %s97 = sphi 0, %s97
      %s99 = sphi 0, %s97
      %s100 = sphi 0, %s99
      %s114 = sphi 0, %s100
      %s118 = sphi 0, %s118
      %s120 = sphi 0, %s118
      %s121 = sphi 0, %s120
      %s135 = sphi 0, %s121
      %s139 = sphi 0, %s139
      %s141 = sphi 0, %s139
      %s142 = sphi 0, %s141
      %s156 = sphi 0, %s142
      %s162 = sphi 0, %s164
      %s165 = sphi 0, %s162
      %s166 = sphi 0, %s165
      %s182 = sphi 0, %s166
      %s188 = sphi 0, %s190
      %s191 = sphi 0, %s188
      %s192 = sphi 0, %s191
      %s208 = sphi 0, %s192
      %s214 = sphi 0, %s216
      %s217 = sphi 0, %s214
      %s218 = sphi 0, %s217
      %s234 = sphi 0, %s218
      %s238 = sphi 0, %s238
      %s240 = sphi 0, %s238
      %s241 = sphi 0, %s240
      %s255 = sphi 0, %s241
      %s259 = sphi 0, %s259
      %s261 = sphi 0, %s259
      %s262 = sphi 0, %s261
      %s276 = sphi 0, %s262
      %s280 = sphi 0, %s280
      %s282 = sphi 0, %s280
      %s283 = sphi 0, %s282
      %s297 = sphi 0, %s283
      %s301 = sphi 0, %s301
      %s303 = sphi 0, %s301
      %s304 = sphi 0, %s303
      %s318 = sphi 0, %s304
      %s322 = sphi 0, %s322
      %s324 = sphi 0, %s322
      %s325 = sphi 0, %s324
      %s339 = sphi 0, %s325
      %s343 = sphi 0, %s343
      %s345 = sphi 0, %s343
      %s346 = sphi 0, %s345
      %s360 = sphi 0, %s346
      %s364 = sphi 0, %s364
      %s366 = sphi 0, %s364
      %s367 = sphi 0, %s366
      %s381 = sphi 0, %s367
      %s385 = sphi 0, %s385
      %s387 = sphi 0, %s385
      %s388 = sphi 0, %s387
      %s402 = sphi 0, %s388
      %s406 = sphi 0, %s406
      %s408 = sphi 0, %s406
      %s409 = sphi 0, %s408
      %s423 = sphi 0, %s409
      %s429 = sphi 0, %s431
      %s432 = sphi 0, %s429
      %s433 = sphi 0, %s432
      %s449 = sphi 0, %s433
      %s455 = sphi 0, %s457
      %s458 = sphi 0, %s455
      %s459 = sphi 0, %s458
      %s475 = sphi 0, %s459
      %s481 = sphi 0, %s483
      %s484 = sphi 0, %s481
      %s485 = sphi 0, %s484
      %s501 = sphi 0, %s485
      %s505 = sphi 0, %s505
      %s507 = sphi 0, %s505
      %s508 = sphi 0, %s507
      %s522 = sphi 0, %s508
      %s526 = sphi 0, %s526
      %s528 = sphi 0, %s526
      %s529 = sphi 0, %s528
      %s543 = sphi 0, %s529
      %s547 = sphi 0, %s547
      %s549 = sphi 0, %s547
      %s550 = sphi 0, %s549
      %s564 = sphi 0, %s550
      %s568 = sphi 0, %s568
      %s570 = sphi 0, %s568
      %s571 = sphi 0, %s570
      %s585 = sphi 0, %s571
      %s589 = sphi 0, %s589
      %s591 = sphi 0, %s589
      %s592 = sphi 0, %s591
      %s606 = sphi 0, %s592
      %s610 = sphi 0, %s610
      %s612 = sphi 0, %s610
      %s613 = sphi 0, %s612
      %s627 = sphi 0, %s613
      %s631 = sphi 0, %s631
      %s633 = sphi 0, %s631
      %s634 = sphi 0, %s633
      %s648 = sphi 0, %s634
      %s652 = sphi 0, %s652
      %s654 = sphi 0, %s652
      %s655 = sphi 0, %s654
      %s669 = sphi 0, %s655
      %s673 = sphi 0, %s673
      %s675 = sphi 0, %s673
      %s676 = sphi 0, %s675
      %s690 = sphi 0, %s676
      %s694 = sphi 0, %s694
      %s696 = sphi 0, %s694
      %s697 = sphi 0, %s696
      %s711 = sphi 0, %s697
      %s715 = sphi 0, %s715
      %s717 = sphi 0, %s715
      %s718 = sphi 0, %s717
      %s732 = sphi 0, %s718
      %s736 = sphi 0, %s736
      %s738 = sphi 0, %s736
      %s739 = sphi 0, %s738
      %s753 = sphi 0, %s739
    $region4: #{tpu_custom_call.1} parent=1 // loop_header_branch
      %92 = sbr.rel (%p90) target = $region8
    $region5: #{tpu_custom_call.1} parent=1 // loop_body
      %s94 = ssub.s32 %s89, 1
      %s95 = ssub.s32 %s89, 2
      %s96 = sadd.s32 %s89, 1
      %s98 = sadd.s32 %s97, 1
      %p101 = scmp.eq.s32.totalorder %s89, 7
      %p102 = scmp.ne.s32.totalorder %s97, %s99
      %p103 = scmp.eq.s32.totalorder %s89, 0
      %p104 = por %p102, %p103
      %p105 = scmp.ne.s32.totalorder %s97, %s99
      %p106 = scmp.eq.s32.totalorder %s94, 7
      %p107 = por %p105, %p106
      %p108 = scmp.ne.s32.totalorder %s99, %s100
      %p109 = scmp.eq.s32.totalorder %s94, 0
      %p110 = por %p108, %p109
      %p111 = scmp.ne.s32.totalorder %s99, %s100
      %p112 = scmp.eq.s32.totalorder %s95, 7
      %p113 = por %p111, %p112
      %p115 = scmp.ne.s32.totalorder %s100, %s114
      %p116 = scmp.eq.s32.totalorder %s95, 0
      %p117 = por %p115, %p116
      %s119 = sadd.s32 %s118, 1
      %p122 = scmp.eq.s32.totalorder %s89, 7
      %p123 = scmp.ne.s32.totalorder %s118, %s120
      %p124 = scmp.eq.s32.totalorder %s89, 0
      %p125 = por %p123, %p124
      %p126 = scmp.ne.s32.totalorder %s118, %s120
      %p127 = scmp.eq.s32.totalorder %s94, 7
      %p128 = por %p126, %p127
      %p129 = scmp.ne.s32.totalorder %s120, %s121
      %p130 = scmp.eq.s32.totalorder %s94, 0
      %p131 = por %p129, %p130
      %p132 = scmp.ne.s32.totalorder %s120, %s121
      %p133 = scmp.eq.s32.totalorder %s95, 7
      %p134 = por %p132, %p133
      %p136 = scmp.ne.s32.totalorder %s121, %s135
      %p137 = scmp.eq.s32.totalorder %s95, 0
      %p138 = por %p136, %p137
      %s140 = sadd.s32 %s139, 1
      %p143 = scmp.eq.s32.totalorder %s89, 7
      %p144 = scmp.ne.s32.totalorder %s139, %s141
      %p145 = scmp.eq.s32.totalorder %s89, 0
      %p146 = por %p144, %p145
      %p147 = scmp.ne.s32.totalorder %s139, %s141
      %p148 = scmp.eq.s32.totalorder %s94, 7
      %p149 = por %p147, %p148
      %p150 = scmp.ne.s32.totalorder %s141, %s142
      %p151 = scmp.eq.s32.totalorder %s94, 0
      %p152 = por %p150, %p151
      %p153 = scmp.ne.s32.totalorder %s141, %s142
      %p154 = scmp.eq.s32.totalorder %s95, 7
      %p155 = por %p153, %p154
      %p157 = scmp.ne.s32.totalorder %s142, %s156
      %p158 = scmp.eq.s32.totalorder %s95, 0
      %p159 = por %p157, %p158
      %s160 = ssub.s32 %s89, %s96
      %p161 = scmp.eq.s32.totalorder %s160, 0
      %s163 = sadd.s32 %s162, 1
      %s164 = scalar_select %p161, %s162, %s163
      %p167 = pneg %p161
      %p168 = scmp.eq.s32.totalorder %s89, 7
      %p169 = por %p167, %p168
      %p170 = scmp.ne.s32.totalorder %s162, %s165
      %p171 = scmp.eq.s32.totalorder %s89, 0
      %p172 = por %p170, %p171
      %p173 = scmp.ne.s32.totalorder %s162, %s165
      %p174 = scmp.eq.s32.totalorder %s94, 7
      %p175 = por %p173, %p174
      %p176 = scmp.ne.s32.totalorder %s165, %s166
      %p177 = scmp.eq.s32.totalorder %s94, 0
      %p178 = por %p176, %p177
      %p179 = scmp.ne.s32.totalorder %s165, %s166
      %p180 = scmp.eq.s32.totalorder %s95, 7
      %p181 = por %p179, %p180
      %p183 = scmp.ne.s32.totalorder %s166, %s182
      %p184 = scmp.eq.s32.totalorder %s95, 0
      %p185 = por %p183, %p184
      %s186 = ssub.s32 %s89, %s96
      %p187 = scmp.eq.s32.totalorder %s186, 0
      %s189 = sadd.s32 %s188, 1
      %s190 = scalar_select %p187, %s188, %s189
      %p193 = pneg %p187
      %p194 = scmp.eq.s32.totalorder %s89, 7
      %p195 = por %p193, %p194
      %p196 = scmp.ne.s32.totalorder %s188, %s191
      %p197 = scmp.eq.s32.totalorder %s89, 0
      %p198 = por %p196, %p197
      %p199 = scmp.ne.s32.totalorder %s188, %s191
      %p200 = scmp.eq.s32.totalorder %s94, 7
      %p201 = por %p199, %p200
      %p202 = scmp.ne.s32.totalorder %s191, %s192
      %p203 = scmp.eq.s32.totalorder %s94, 0
      %p204 = por %p202, %p203
      %p205 = scmp.ne.s32.totalorder %s191, %s192
      %p206 = scmp.eq.s32.totalorder %s95, 7
      %p207 = por %p205, %p206
      %p209 = scmp.ne.s32.totalorder %s192, %s208
      %p210 = scmp.eq.s32.totalorder %s95, 0
      %p211 = por %p209, %p210
      %s212 = ssub.s32 %s89, %s96
      %p213 = scmp.eq.s32.totalorder %s212, 0
      %s215 = sadd.s32 %s214, 1
      %s216 = scalar_select %p213, %s214, %s215
      %p219 = pneg %p213
      %p220 = scmp.eq.s32.totalorder %s89, 7
      %p221 = por %p219, %p220
      %p222 = scmp.ne.s32.totalorder %s214, %s217
      %p223 = scmp.eq.s32.totalorder %s89, 0
      %p224 = por %p222, %p223
      %p225 = scmp.ne.s32.totalorder %s214, %s217
      %p226 = scmp.eq.s32.totalorder %s94, 7
      %p227 = por %p225, %p226
      %p228 = scmp.ne.s32.totalorder %s217, %s218
      %p229 = scmp.eq.s32.totalorder %s94, 0
      %p230 = por %p228, %p229
      %p231 = scmp.ne.s32.totalorder %s217, %s218
      %p232 = scmp.eq.s32.totalorder %s95, 7
      %p233 = por %p231, %p232
      %p235 = scmp.ne.s32.totalorder %s218, %s234
      %p236 = scmp.eq.s32.totalorder %s95, 0
      %p237 = por %p235, %p236
      %s239 = sadd.s32 %s238, 1
      %p242 = scmp.eq.s32.totalorder %s89, 7
      %p243 = scmp.ne.s32.totalorder %s238, %s240
      %p244 = scmp.eq.s32.totalorder %s89, 0
      %p245 = por %p243, %p244
      %p246 = scmp.ne.s32.totalorder %s238, %s240
      %p247 = scmp.eq.s32.totalorder %s94, 7
      %p248 = por %p246, %p247
      %p249 = scmp.ne.s32.totalorder %s240, %s241
      %p250 = scmp.eq.s32.totalorder %s94, 0
      %p251 = por %p249, %p250
      %p252 = scmp.ne.s32.totalorder %s240, %s241
      %p253 = scmp.eq.s32.totalorder %s95, 7
      %p254 = por %p252, %p253
      %p256 = scmp.ne.s32.totalorder %s241, %s255
      %p257 = scmp.eq.s32.totalorder %s95, 0
      %p258 = por %p256, %p257
      %s260 = sadd.s32 %s259, 1
      %p263 = scmp.eq.s32.totalorder %s89, 7
      %p264 = scmp.ne.s32.totalorder %s259, %s261
      %p265 = scmp.eq.s32.totalorder %s89, 0
      %p266 = por %p264, %p265
      %p267 = scmp.ne.s32.totalorder %s259, %s261
      %p268 = scmp.eq.s32.totalorder %s94, 7
      %p269 = por %p267, %p268
      %p270 = scmp.ne.s32.totalorder %s261, %s262
      %p271 = scmp.eq.s32.totalorder %s94, 0
      %p272 = por %p270, %p271
      %p273 = scmp.ne.s32.totalorder %s261, %s262
      %p274 = scmp.eq.s32.totalorder %s95, 7
      %p275 = por %p273, %p274
      %p277 = scmp.ne.s32.totalorder %s262, %s276
      %p278 = scmp.eq.s32.totalorder %s95, 0
      %p279 = por %p277, %p278
      %s281 = sadd.s32 %s280, 1
      %p284 = scmp.eq.s32.totalorder %s89, 7
      %p285 = scmp.ne.s32.totalorder %s280, %s282
      %p286 = scmp.eq.s32.totalorder %s89, 0
      %p287 = por %p285, %p286
      %p288 = scmp.ne.s32.totalorder %s280, %s282
      %p289 = scmp.eq.s32.totalorder %s94, 7
      %p290 = por %p288, %p289
      %p291 = scmp.ne.s32.totalorder %s282, %s283
      %p292 = scmp.eq.s32.totalorder %s94, 0
      %p293 = por %p291, %p292
      %p294 = scmp.ne.s32.totalorder %s282, %s283
      %p295 = scmp.eq.s32.totalorder %s95, 7
      %p296 = por %p294, %p295
      %p298 = scmp.ne.s32.totalorder %s283, %s297
      %p299 = scmp.eq.s32.totalorder %s95, 0
      %p300 = por %p298, %p299
      %s302 = sadd.s32 %s301, 1
      %p305 = scmp.eq.s32.totalorder %s89, 7
      %p306 = scmp.ne.s32.totalorder %s301, %s303
      %p307 = scmp.eq.s32.totalorder %s89, 0
      %p308 = por %p306, %p307
      %p309 = scmp.ne.s32.totalorder %s301, %s303
      %p310 = scmp.eq.s32.totalorder %s94, 7
      %p311 = por %p309, %p310
      %p312 = scmp.ne.s32.totalorder %s303, %s304
      %p313 = scmp.eq.s32.totalorder %s94, 0
      %p314 = por %p312, %p313
      %p315 = scmp.ne.s32.totalorder %s303, %s304
      %p316 = scmp.eq.s32.totalorder %s95, 7
      %p317 = por %p315, %p316
      %p319 = scmp.ne.s32.totalorder %s304, %s318
      %p320 = scmp.eq.s32.totalorder %s95, 0
      %p321 = por %p319, %p320
      %s323 = sadd.s32 %s322, 1
      %p326 = scmp.eq.s32.totalorder %s89, 7
      %p327 = scmp.ne.s32.totalorder %s322, %s324
      %p328 = scmp.eq.s32.totalorder %s89, 0
      %p329 = por %p327, %p328
      %p330 = scmp.ne.s32.totalorder %s322, %s324
      %p331 = scmp.eq.s32.totalorder %s94, 7
      %p332 = por %p330, %p331
      %p333 = scmp.ne.s32.totalorder %s324, %s325
      %p334 = scmp.eq.s32.totalorder %s94, 0
      %p335 = por %p333, %p334
      %p336 = scmp.ne.s32.totalorder %s324, %s325
      %p337 = scmp.eq.s32.totalorder %s95, 7
      %p338 = por %p336, %p337
      %p340 = scmp.ne.s32.totalorder %s325, %s339
      %p341 = scmp.eq.s32.totalorder %s95, 0
      %p342 = por %p340, %p341
      %s344 = sadd.s32 %s343, 1
      %p347 = scmp.eq.s32.totalorder %s89, 7
      %p348 = scmp.ne.s32.totalorder %s343, %s345
      %p349 = scmp.eq.s32.totalorder %s89, 0
      %p350 = por %p348, %p349
      %p351 = scmp.ne.s32.totalorder %s343, %s345
      %p352 = scmp.eq.s32.totalorder %s94, 7
      %p353 = por %p351, %p352
      %p354 = scmp.ne.s32.totalorder %s345, %s346
      %p355 = scmp.eq.s32.totalorder %s94, 0
      %p356 = por %p354, %p355
      %p357 = scmp.ne.s32.totalorder %s345, %s346
      %p358 = scmp.eq.s32.totalorder %s95, 7
      %p359 = por %p357, %p358
      %p361 = scmp.ne.s32.totalorder %s346, %s360
      %p362 = scmp.eq.s32.totalorder %s95, 0
      %p363 = por %p361, %p362
      %s365 = sadd.s32 %s364, 1
      %p368 = scmp.eq.s32.totalorder %s89, 7
      %p369 = scmp.ne.s32.totalorder %s364, %s366
      %p370 = scmp.eq.s32.totalorder %s89, 0
      %p371 = por %p369, %p370
      %p372 = scmp.ne.s32.totalorder %s364, %s366
      %p373 = scmp.eq.s32.totalorder %s94, 7
      %p374 = por %p372, %p373
      %p375 = scmp.ne.s32.totalorder %s366, %s367
      %p376 = scmp.eq.s32.totalorder %s94, 0
      %p377 = por %p375, %p376
      %p378 = scmp.ne.s32.totalorder %s366, %s367
      %p379 = scmp.eq.s32.totalorder %s95, 7
      %p380 = por %p378, %p379
      %p382 = scmp.ne.s32.totalorder %s367, %s381
      %p383 = scmp.eq.s32.totalorder %s95, 0
      %p384 = por %p382, %p383
      %s386 = sadd.s32 %s385, 1
      %p389 = scmp.eq.s32.totalorder %s89, 7
      %p390 = scmp.ne.s32.totalorder %s385, %s387
      %p391 = scmp.eq.s32.totalorder %s89, 0
      %p392 = por %p390, %p391
      %p393 = scmp.ne.s32.totalorder %s385, %s387
      %p394 = scmp.eq.s32.totalorder %s94, 7
      %p395 = por %p393, %p394
      %p396 = scmp.ne.s32.totalorder %s387, %s388
      %p397 = scmp.eq.s32.totalorder %s94, 0
      %p398 = por %p396, %p397
      %p399 = scmp.ne.s32.totalorder %s387, %s388
      %p400 = scmp.eq.s32.totalorder %s95, 7
      %p401 = por %p399, %p400
      %p403 = scmp.ne.s32.totalorder %s388, %s402
      %p404 = scmp.eq.s32.totalorder %s95, 0
      %p405 = por %p403, %p404
      %s407 = sadd.s32 %s406, 1
      %p410 = scmp.eq.s32.totalorder %s89, 7
      %p411 = scmp.ne.s32.totalorder %s406, %s408
      %p412 = scmp.eq.s32.totalorder %s89, 0
      %p413 = por %p411, %p412
      %p414 = scmp.ne.s32.totalorder %s406, %s408
      %p415 = scmp.eq.s32.totalorder %s94, 7
      %p416 = por %p414, %p415
      %p417 = scmp.ne.s32.totalorder %s408, %s409
      %p418 = scmp.eq.s32.totalorder %s94, 0
      %p419 = por %p417, %p418
      %p420 = scmp.ne.s32.totalorder %s408, %s409
      %p421 = scmp.eq.s32.totalorder %s95, 7
      %p422 = por %p420, %p421
      %p424 = scmp.ne.s32.totalorder %s409, %s423
      %p425 = scmp.eq.s32.totalorder %s95, 0
      %p426 = por %p424, %p425
      %s427 = ssub.s32 %s89, %s96
      %p428 = scmp.eq.s32.totalorder %s427, 0
      %s430 = sadd.s32 %s429, 1
      %s431 = scalar_select %p428, %s429, %s430
      %p434 = pneg %p428
      %p435 = scmp.eq.s32.totalorder %s89, 7
      %p436 = por %p434, %p435
      %p437 = scmp.ne.s32.totalorder %s429, %s432
      %p438 = scmp.eq.s32.totalorder %s89, 0
      %p439 = por %p437, %p438
      %p440 = scmp.ne.s32.totalorder %s429, %s432
      %p441 = scmp.eq.s32.totalorder %s94, 7
      %p442 = por %p440, %p441
      %p443 = scmp.ne.s32.totalorder %s432, %s433
      %p444 = scmp.eq.s32.totalorder %s94, 0
      %p445 = por %p443, %p444
      %p446 = scmp.ne.s32.totalorder %s432, %s433
      %p447 = scmp.eq.s32.totalorder %s95, 7
      %p448 = por %p446, %p447
      %p450 = scmp.ne.s32.totalorder %s433, %s449
      %p451 = scmp.eq.s32.totalorder %s95, 0
      %p452 = por %p450, %p451
      %s453 = ssub.s32 %s89, %s96
      %p454 = scmp.eq.s32.totalorder %s453, 0
      %s456 = sadd.s32 %s455, 1
      %s457 = scalar_select %p454, %s455, %s456
      %p460 = pneg %p454
      %p461 = scmp.eq.s32.totalorder %s89, 7
      %p462 = por %p460, %p461
      %p463 = scmp.ne.s32.totalorder %s455, %s458
      %p464 = scmp.eq.s32.totalorder %s89, 0
      %p465 = por %p463, %p464
      %p466 = scmp.ne.s32.totalorder %s455, %s458
      %p467 = scmp.eq.s32.totalorder %s94, 7
      %p468 = por %p466, %p467
      %p469 = scmp.ne.s32.totalorder %s458, %s459
      %p470 = scmp.eq.s32.totalorder %s94, 0
      %p471 = por %p469, %p470
      %p472 = scmp.ne.s32.totalorder %s458, %s459
      %p473 = scmp.eq.s32.totalorder %s95, 7
      %p474 = por %p472, %p473
      %p476 = scmp.ne.s32.totalorder %s459, %s475
      %p477 = scmp.eq.s32.totalorder %s95, 0
      %p478 = por %p476, %p477
      %s479 = ssub.s32 %s89, %s96
      %p480 = scmp.eq.s32.totalorder %s479, 0
      %s482 = sadd.s32 %s481, 1
      %s483 = scalar_select %p480, %s481, %s482
      %p486 = pneg %p480
      %p487 = scmp.eq.s32.totalorder %s89, 7
      %p488 = por %p486, %p487
      %p489 = scmp.ne.s32.totalorder %s481, %s484
      %p490 = scmp.eq.s32.totalorder %s89, 0
      %p491 = por %p489, %p490
      %p492 = scmp.ne.s32.totalorder %s481, %s484
      %p493 = scmp.eq.s32.totalorder %s94, 7
      %p494 = por %p492, %p493
      %p495 = scmp.ne.s32.totalorder %s484, %s485
      %p496 = scmp.eq.s32.totalorder %s94, 0
      %p497 = por %p495, %p496
      %p498 = scmp.ne.s32.totalorder %s484, %s485
      %p499 = scmp.eq.s32.totalorder %s95, 7
      %p500 = por %p498, %p499
      %p502 = scmp.ne.s32.totalorder %s485, %s501
      %p503 = scmp.eq.s32.totalorder %s95, 0
      %p504 = por %p502, %p503
      %s506 = sadd.s32 %s505, 1
      %p509 = scmp.eq.s32.totalorder %s89, 7
      %p510 = scmp.ne.s32.totalorder %s505, %s507
      %p511 = scmp.eq.s32.totalorder %s89, 0
      %p512 = por %p510, %p511
      %p513 = scmp.ne.s32.totalorder %s505, %s507
      %p514 = scmp.eq.s32.totalorder %s94, 7
      %p515 = por %p513, %p514
      %p516 = scmp.ne.s32.totalorder %s507, %s508
      %p517 = scmp.eq.s32.totalorder %s94, 0
      %p518 = por %p516, %p517
      %p519 = scmp.ne.s32.totalorder %s507, %s508
      %p520 = scmp.eq.s32.totalorder %s95, 7
      %p521 = por %p519, %p520
      %p523 = scmp.ne.s32.totalorder %s508, %s522
      %p524 = scmp.eq.s32.totalorder %s95, 0
      %p525 = por %p523, %p524
      %s527 = sadd.s32 %s526, 1
      %p530 = scmp.eq.s32.totalorder %s89, 7
      %p531 = scmp.ne.s32.totalorder %s526, %s528
      %p532 = scmp.eq.s32.totalorder %s89, 0
      %p533 = por %p531, %p532
      %p534 = scmp.ne.s32.totalorder %s526, %s528
      %p535 = scmp.eq.s32.totalorder %s94, 7
      %p536 = por %p534, %p535
      %p537 = scmp.ne.s32.totalorder %s528, %s529
      %p538 = scmp.eq.s32.totalorder %s94, 0
      %p539 = por %p537, %p538
      %p540 = scmp.ne.s32.totalorder %s528, %s529
      %p541 = scmp.eq.s32.totalorder %s95, 7
      %p542 = por %p540, %p541
      %p544 = scmp.ne.s32.totalorder %s529, %s543
      %p545 = scmp.eq.s32.totalorder %s95, 0
      %p546 = por %p544, %p545
      %s548 = sadd.s32 %s547, 1
      %p551 = scmp.eq.s32.totalorder %s89, 7
      %p552 = scmp.ne.s32.totalorder %s547, %s549
      %p553 = scmp.eq.s32.totalorder %s89, 0
      %p554 = por %p552, %p553
      %p555 = scmp.ne.s32.totalorder %s547, %s549
      %p556 = scmp.eq.s32.totalorder %s94, 7
      %p557 = por %p555, %p556
      %p558 = scmp.ne.s32.totalorder %s549, %s550
      %p559 = scmp.eq.s32.totalorder %s94, 0
      %p560 = por %p558, %p559
      %p561 = scmp.ne.s32.totalorder %s549, %s550
      %p562 = scmp.eq.s32.totalorder %s95, 7
      %p563 = por %p561, %p562
      %p565 = scmp.ne.s32.totalorder %s550, %s564
      %p566 = scmp.eq.s32.totalorder %s95, 0
      %p567 = por %p565, %p566
      %s569 = sadd.s32 %s568, 1
      %p572 = scmp.eq.s32.totalorder %s89, 7
      %p573 = scmp.ne.s32.totalorder %s568, %s570
      %p574 = scmp.eq.s32.totalorder %s89, 0
      %p575 = por %p573, %p574
      %p576 = scmp.ne.s32.totalorder %s568, %s570
      %p577 = scmp.eq.s32.totalorder %s94, 7
      %p578 = por %p576, %p577
      %p579 = scmp.ne.s32.totalorder %s570, %s571
      %p580 = scmp.eq.s32.totalorder %s94, 0
      %p581 = por %p579, %p580
      %p582 = scmp.ne.s32.totalorder %s570, %s571
      %p583 = scmp.eq.s32.totalorder %s95, 7
      %p584 = por %p582, %p583
      %p586 = scmp.ne.s32.totalorder %s571, %s585
      %p587 = scmp.eq.s32.totalorder %s95, 0
      %p588 = por %p586, %p587
      %s590 = sadd.s32 %s589, 1
      %p593 = scmp.eq.s32.totalorder %s89, 7
      %p594 = scmp.ne.s32.totalorder %s589, %s591
      %p595 = scmp.eq.s32.totalorder %s89, 0
      %p596 = por %p594, %p595
      %p597 = scmp.ne.s32.totalorder %s589, %s591
      %p598 = scmp.eq.s32.totalorder %s94, 7
      %p599 = por %p597, %p598
      %p600 = scmp.ne.s32.totalorder %s591, %s592
      %p601 = scmp.eq.s32.totalorder %s94, 0
      %p602 = por %p600, %p601
      %p603 = scmp.ne.s32.totalorder %s591, %s592
      %p604 = scmp.eq.s32.totalorder %s95, 7
      %p605 = por %p603, %p604
      %p607 = scmp.ne.s32.totalorder %s592, %s606
      %p608 = scmp.eq.s32.totalorder %s95, 0
      %p609 = por %p607, %p608
      %s611 = sadd.s32 %s610, 1
      %p614 = scmp.eq.s32.totalorder %s89, 7
      %p615 = scmp.ne.s32.totalorder %s610, %s612
      %p616 = scmp.eq.s32.totalorder %s89, 0
      %p617 = por %p615, %p616
      %p618 = scmp.ne.s32.totalorder %s610, %s612
      %p619 = scmp.eq.s32.totalorder %s94, 7
      %p620 = por %p618, %p619
      %p621 = scmp.ne.s32.totalorder %s612, %s613
      %p622 = scmp.eq.s32.totalorder %s94, 0
      %p623 = por %p621, %p622
      %p624 = scmp.ne.s32.totalorder %s612, %s613
      %p625 = scmp.eq.s32.totalorder %s95, 7
      %p626 = por %p624, %p625
      %p628 = scmp.ne.s32.totalorder %s613, %s627
      %p629 = scmp.eq.s32.totalorder %s95, 0
      %p630 = por %p628, %p629
      %s632 = sadd.s32 %s631, 1
      %p635 = scmp.eq.s32.totalorder %s89, 7
      %p636 = scmp.ne.s32.totalorder %s631, %s633
      %p637 = scmp.eq.s32.totalorder %s89, 0
      %p638 = por %p636, %p637
      %p639 = scmp.ne.s32.totalorder %s631, %s633
      %p640 = scmp.eq.s32.totalorder %s94, 7
      %p641 = por %p639, %p640
      %p642 = scmp.ne.s32.totalorder %s633, %s634
      %p643 = scmp.eq.s32.totalorder %s94, 0
      %p644 = por %p642, %p643
      %p645 = scmp.ne.s32.totalorder %s633, %s634
      %p646 = scmp.eq.s32.totalorder %s95, 7
      %p647 = por %p645, %p646
      %p649 = scmp.ne.s32.totalorder %s634, %s648
      %p650 = scmp.eq.s32.totalorder %s95, 0
      %p651 = por %p649, %p650
      %s653 = sadd.s32 %s652, 1
      %p656 = scmp.eq.s32.totalorder %s89, 7
      %p657 = scmp.ne.s32.totalorder %s652, %s654
      %p658 = scmp.eq.s32.totalorder %s89, 0
      %p659 = por %p657, %p658
      %p660 = scmp.ne.s32.totalorder %s652, %s654
      %p661 = scmp.eq.s32.totalorder %s94, 7
      %p662 = por %p660, %p661
      %p663 = scmp.ne.s32.totalorder %s654, %s655
      %p664 = scmp.eq.s32.totalorder %s94, 0
      %p665 = por %p663, %p664
      %p666 = scmp.ne.s32.totalorder %s654, %s655
      %p667 = scmp.eq.s32.totalorder %s95, 7
      %p668 = por %p666, %p667
      %p670 = scmp.ne.s32.totalorder %s655, %s669
      %p671 = scmp.eq.s32.totalorder %s95, 0
      %p672 = por %p670, %p671
      %s674 = sadd.s32 %s673, 1
      %p677 = scmp.eq.s32.totalorder %s89, 7
      %p678 = scmp.ne.s32.totalorder %s673, %s675
      %p679 = scmp.eq.s32.totalorder %s89, 0
      %p680 = por %p678, %p679
      %p681 = scmp.ne.s32.totalorder %s673, %s675
      %p682 = scmp.eq.s32.totalorder %s94, 7
      %p683 = por %p681, %p682
      %p684 = scmp.ne.s32.totalorder %s675, %s676
      %p685 = scmp.eq.s32.totalorder %s94, 0
      %p686 = por %p684, %p685
      %p687 = scmp.ne.s32.totalorder %s675, %s676
      %p688 = scmp.eq.s32.totalorder %s95, 7
      %p689 = por %p687, %p688
      %p691 = scmp.ne.s32.totalorder %s676, %s690
      %p692 = scmp.eq.s32.totalorder %s95, 0
      %p693 = por %p691, %p692
      %s695 = sadd.s32 %s694, 1
      %p698 = scmp.eq.s32.totalorder %s89, 7
      %p699 = scmp.ne.s32.totalorder %s694, %s696
      %p700 = scmp.eq.s32.totalorder %s89, 0
      %p701 = por %p699, %p700
      %p702 = scmp.ne.s32.totalorder %s694, %s696
      %p703 = scmp.eq.s32.totalorder %s94, 7
      %p704 = por %p702, %p703
      %p705 = scmp.ne.s32.totalorder %s696, %s697
      %p706 = scmp.eq.s32.totalorder %s94, 0
      %p707 = por %p705, %p706
      %p708 = scmp.ne.s32.totalorder %s696, %s697
      %p709 = scmp.eq.s32.totalorder %s95, 7
      %p710 = por %p708, %p709
      %p712 = scmp.ne.s32.totalorder %s697, %s711
      %p713 = scmp.eq.s32.totalorder %s95, 0
      %p714 = por %p712, %p713
      %s716 = sadd.s32 %s715, 1
      %p719 = scmp.eq.s32.totalorder %s89, 7
      %p720 = scmp.ne.s32.totalorder %s715, %s717
      %p721 = scmp.eq.s32.totalorder %s89, 0
      %p722 = por %p720, %p721
      %p723 = scmp.ne.s32.totalorder %s715, %s717
      %p724 = scmp.eq.s32.totalorder %s94, 7
      %p725 = por %p723, %p724
      %p726 = scmp.ne.s32.totalorder %s717, %s718
      %p727 = scmp.eq.s32.totalorder %s94, 0
      %p728 = por %p726, %p727
      %p729 = scmp.ne.s32.totalorder %s717, %s718
      %p730 = scmp.eq.s32.totalorder %s95, 7
      %p731 = por %p729, %p730
      %p733 = scmp.ne.s32.totalorder %s718, %s732
      %p734 = scmp.eq.s32.totalorder %s95, 0
      %p735 = por %p733, %p734
      %s737 = sadd.s32 %s736, 1
      %p740 = scmp.eq.s32.totalorder %s89, 7
      %p741 = scmp.ne.s32.totalorder %s736, %s738
      %p742 = scmp.eq.s32.totalorder %s89, 0
      %p743 = por %p741, %p742
      %p744 = scmp.ne.s32.totalorder %s736, %s738
      %p745 = scmp.eq.s32.totalorder %s94, 7
      %p746 = por %p744, %p745
      %p747 = scmp.ne.s32.totalorder %s738, %s739
      %p748 = scmp.eq.s32.totalorder %s94, 0
      %p749 = por %p747, %p748
      %p750 = scmp.ne.s32.totalorder %s738, %s739
      %p751 = scmp.eq.s32.totalorder %s95, 7
      %p752 = por %p750, %p751
      %p754 = scmp.ne.s32.totalorder %s739, %s753
      %p755 = scmp.eq.s32.totalorder %s95, 0
      %p756 = por %p754, %p755
      %p757 = scmp.le.s32.totalorder 1, %s89
      %p758 = scmp.lt.s32.totalorder %s89, 9
      %p759 = pnand %p757, %p758
      %p760 = pneg %p759
      // Predicated region
      $region9: #{tpu_custom_call.1} parent=5 // pred_check
        _
      $region10: #{tpu_custom_call.1} parent=5 // pred_check_branch
        %762 = sbr.rel (%p759) target = $region12
      $region11: #{tpu_custom_call.1} parent=5 // pred_region
        %s763 = ssub.s32 %s89, 1
        // Predicated region
        $region13: #{tpu_custom_call.1} parent=11 // pred_check
          %p764 = pneg %p110
        $region14: #{tpu_custom_call.1} parent=11 // pred_check_branch
          %766 = sbr.rel (%p764) target = $region16
        $region15: #{tpu_custom_call.1} parent=11 // pred_region
          %s768 = ssub.s32 256, 256
          %769 = vsyncadd [#allocation5], %s768
          %s771 = sshll.u32 [#allocation4], 4
          %s772 = int_to_ptr.vmem [resolvable:$true] %s771
          %774 = dma.hbm_to_vmem [thread:$0]  %s1, 256, %s772, [#allocation5]
        $region16: #{tpu_custom_call.1} parent=11 // pred_fallthru
          _
        // Predicated region
        $region17: #{tpu_custom_call.1} parent=11 // pred_check
          %p775 = pneg %p131
        $region18: #{tpu_custom_call.1} parent=11 // pred_check_branch
          %777 = sbr.rel (%p775) target = $region20
        $region19: #{tpu_custom_call.1} parent=11 // pred_region
          %s779 = ssub.s32 16, 16
          %780 = vsyncadd [#allocation8], %s779
          %s782 = sshll.u32 [#allocation7], 4
          %s783 = int_to_ptr.vmem [resolvable:$true] %s782
          %785 = dma.hbm_to_vmem [thread:$0]  %s3, 16, %s783, [#allocation8]
        $region20: #{tpu_custom_call.1} parent=11 // pred_fallthru
          _
        // Predicated region
        $region21: #{tpu_custom_call.1} parent=11 // pred_check
          %p786 = pneg %p152
        $region22: #{tpu_custom_call.1} parent=11 // pred_check_branch
          %788 = sbr.rel (%p786) target = $region24
        $region23: #{tpu_custom_call.1} parent=11 // pred_region
          %s790 = ssub.s32 64, 64
          %791 = vsyncadd [#allocation8], %s790
          %s793 = sshll.u32 [#allocation9], 4
          %s794 = int_to_ptr.vmem [resolvable:$true] %s793
          %796 = dma.hbm_to_vmem [thread:$0]  %s5, 64, %s794, [#allocation8]
        $region24: #{tpu_custom_call.1} parent=11 // pred_fallthru
          _
        // Predicated region
        $region25: #{tpu_custom_call.1} parent=11 // pred_check
          %p797 = pneg %p251
        $region26: #{tpu_custom_call.1} parent=11 // pred_check_branch
          %799 = sbr.rel (%p797) target = $region28
        $region27: #{tpu_custom_call.1} parent=11 // pred_region
          %s801 = ssub.s32 64, 64
          %802 = vsyncadd [#allocation14], %s801
          %s804 = sshll.u32 [#allocation15], 4
          %s805 = int_to_ptr.vmem [resolvable:$true] %s804
          %807 = dma.hbm_to_vmem [thread:$0]  %s13, 64, %s805, [#allocation14]
        $region28: #{tpu_custom_call.1} parent=11 // pred_fallthru
          _
        // Predicated region
        $region29: #{tpu_custom_call.1} parent=11 // pred_check
          %p808 = pneg %p272
        $region30: #{tpu_custom_call.1} parent=11 // pred_check_branch
          %810 = sbr.rel (%p808) target = $region32
        $region31: #{tpu_custom_call.1} parent=11 // pred_region
          %s812 = ssub.s32 8192, 8192
          %813 = vsyncadd [#allocation17], %s812
          %s814 = sshll.u32 [#allocation16], 4
          %s815 = int_to_ptr.vmem [resolvable:$true] %s814
          %820 = dma.hbm_to_vmem [thread:$0]  %s15, 8192, %s815, [#allocation17], 128, 128, 8
        $region32: #{tpu_custom_call.1} parent=11 // pred_fallthru
          _
        // Predicated region
        $region33: #{tpu_custom_call.1} parent=11 // pred_check
          %p821 = pneg %p293
        $region34: #{tpu_custom_call.1} parent=11 // pred_check_branch
          %823 = sbr.rel (%p821) target = $region36
        $region35: #{tpu_custom_call.1} parent=11 // pred_region
          %s825 = ssub.s32 32, 32
          %826 = vsyncadd [#allocation17], %s825
          %s828 = sshll.u32 [#allocation18], 4
          %s829 = int_to_ptr.vmem [resolvable:$true] %s828
          %831 = dma.hbm_to_vmem [thread:$0]  %s17, 32, %s829, [#allocation17]
        $region36: #{tpu_custom_call.1} parent=11 // pred_fallthru
          _
        // Predicated region
        $region37: #{tpu_custom_call.1} parent=11 // pred_check
          %p832 = pneg %p314
        $region38: #{tpu_custom_call.1} parent=11 // pred_check_branch
          %834 = sbr.rel (%p832) target = $region40
        $region39: #{tpu_custom_call.1} parent=11 // pred_region
          %s836 = ssub.s32 4096, 4096
          %837 = vsyncadd [#allocation20], %s836
          %s838 = sshll.u32 [#allocation19], 4
          %s839 = int_to_ptr.vmem [resolvable:$true] %s838
          %844 = dma.hbm_to_vmem [thread:$0]  %s19, 4096, %s839, [#allocation20], 128, 128, 8
        $region40: #{tpu_custom_call.1} parent=11 // pred_fallthru
          _
        // Predicated region
        $region41: #{tpu_custom_call.1} parent=11 // pred_check
          %p845 = pneg %p335
        $region42: #{tpu_custom_call.1} parent=11 // pred_check_branch
          %847 = sbr.rel (%p845) target = $region44
        $region43: #{tpu_custom_call.1} parent=11 // pred_region
          %s849 = ssub.s32 32, 32
          %850 = vsyncadd [#allocation20], %s849
          %s852 = sshll.u32 [#allocation21], 4
          %s853 = int_to_ptr.vmem [resolvable:$true] %s852
          %855 = dma.hbm_to_vmem [thread:$0]  %s21, 32, %s853, [#allocation20]
        $region44: #{tpu_custom_call.1} parent=11 // pred_fallthru
          _
        // Predicated region
        $region45: #{tpu_custom_call.1} parent=11 // pred_check
          %p856 = pneg %p356
        $region46: #{tpu_custom_call.1} parent=11 // pred_check_branch
          %858 = sbr.rel (%p856) target = $region48
        $region47: #{tpu_custom_call.1} parent=11 // pred_region
          %s860 = ssub.s32 320, 320
          %861 = vsyncadd [#allocation23], %s860
          %s862 = sshll.u32 [#allocation22], 4
          %s863 = int_to_ptr.vmem [resolvable:$true] %s862
          %868 = dma.hbm_to_vmem [thread:$0]  %s23, 320, %s863, [#allocation23], 64, 64, 4
        $region48: #{tpu_custom_call.1} parent=11 // pred_fallthru
          _
        // Predicated region
        $region49: #{tpu_custom_call.1} parent=11 // pred_check
          %p869 = pneg %p377
        $region50: #{tpu_custom_call.1} parent=11 // pred_check_branch
          %871 = sbr.rel (%p869) target = $region52
        $region51: #{tpu_custom_call.1} parent=11 // pred_region
          %s873 = ssub.s32 16, 16
          %874 = vsyncadd [#allocation23], %s873
          %s876 = sshll.u32 [#allocation24], 4
          %s877 = int_to_ptr.vmem [resolvable:$true] %s876
          %879 = dma.hbm_to_vmem [thread:$0]  %s25, 16, %s877, [#allocation23]
        $region52: #{tpu_custom_call.1} parent=11 // pred_fallthru
          _
        // Predicated region
        $region53: #{tpu_custom_call.1} parent=11 // pred_check
          %p880 = pneg %p398
        $region54: #{tpu_custom_call.1} parent=11 // pred_check_branch
          %882 = sbr.rel (%p880) target = $region56
        $region55: #{tpu_custom_call.1} parent=11 // pred_region
          %s884 = ssub.s32 1024, 1024
          %885 = vsyncadd [#allocation26], %s884
          %s886 = sshll.u32 [#allocation25], 4
          %s887 = int_to_ptr.vmem [resolvable:$true] %s886
          %892 = dma.hbm_to_vmem [thread:$0]  %s27, 1024, %s887, [#allocation26], 64, 64, 4
        $region56: #{tpu_custom_call.1} parent=11 // pred_fallthru
          _
        // Predicated region
        $region57: #{tpu_custom_call.1} parent=11 // pred_check
          %p893 = pneg %p419
        $region58: #{tpu_custom_call.1} parent=11 // pred_check_branch
          %895 = sbr.rel (%p893) target = $region60
        $region59: #{tpu_custom_call.1} parent=11 // pred_region
          %s897 = ssub.s32 16, 16
          %898 = vsyncadd [#allocation26], %s897
          %s900 = sshll.u32 [#allocation27], 4
          %s901 = int_to_ptr.vmem [resolvable:$true] %s900
          %903 = dma.hbm_to_vmem [thread:$0]  %s29, 16, %s901, [#allocation26]
        $region60: #{tpu_custom_call.1} parent=11 // pred_fallthru
          _
        // Predicated region
        $region61: #{tpu_custom_call.1} parent=11 // pred_check
          %p904 = pneg %p518
        $region62: #{tpu_custom_call.1} parent=11 // pred_check_branch
          %906 = sbr.rel (%p904) target = $region64
        $region63: #{tpu_custom_call.1} parent=11 // pred_region
          %s908 = ssub.s32 64, 64
          %909 = vsyncadd [#allocation32], %s908
          %s911 = sshll.u32 [#allocation33], 4
          %s912 = int_to_ptr.vmem [resolvable:$true] %s911
          %914 = dma.hbm_to_vmem [thread:$0]  %s37, 64, %s912, [#allocation32]
        $region64: #{tpu_custom_call.1} parent=11 // pred_fallthru
          _
        // Predicated region
        $region65: #{tpu_custom_call.1} parent=11 // pred_check
          %p915 = pneg %p539
        $region66: #{tpu_custom_call.1} parent=11 // pred_check_branch
          %917 = sbr.rel (%p915) target = $region68
        $region67: #{tpu_custom_call.1} parent=11 // pred_region
          %s919 = ssub.s32 8192, 8192
          %920 = vsyncadd [#allocation35], %s919
          %s921 = sshll.u32 [#allocation34], 4
          %s922 = int_to_ptr.vmem [resolvable:$true] %s921
          %927 = dma.hbm_to_vmem [thread:$0]  %s39, 8192, %s922, [#allocation35], 128, 128, 8
        $region68: #{tpu_custom_call.1} parent=11 // pred_fallthru
          _
        // Predicated region
        $region69: #{tpu_custom_call.1} parent=11 // pred_check
          %p928 = pneg %p560
        $region70: #{tpu_custom_call.1} parent=11 // pred_check_branch
          %930 = sbr.rel (%p928) target = $region72
        $region71: #{tpu_custom_call.1} parent=11 // pred_region
          %s932 = ssub.s32 32, 32
          %933 = vsyncadd [#allocation35], %s932
          %s935 = sshll.u32 [#allocation36], 4
          %s936 = int_to_ptr.vmem [resolvable:$true] %s935
          %938 = dma.hbm_to_vmem [thread:$0]  %s41, 32, %s936, [#allocation35]
        $region72: #{tpu_custom_call.1} parent=11 // pred_fallthru
          _
        // Predicated region
        $region73: #{tpu_custom_call.1} parent=11 // pred_check
          %p939 = pneg %p581
        $region74: #{tpu_custom_call.1} parent=11 // pred_check_branch
          %941 = sbr.rel (%p939) target = $region76
        $region75: #{tpu_custom_call.1} parent=11 // pred_region
          %s943 = ssub.s32 4096, 4096
          %944 = vsyncadd [#allocation38], %s943
          %s945 = sshll.u32 [#allocation37], 4
          %s946 = int_to_ptr.vmem [resolvable:$true] %s945
          %951 = dma.hbm_to_vmem [thread:$0]  %s43, 4096, %s946, [#allocation38], 128, 128, 8
        $region76: #{tpu_custom_call.1} parent=11 // pred_fallthru
          _
        // Predicated region
        $region77: #{tpu_custom_call.1} parent=11 // pred_check
          %p952 = pneg %p602
        $region78: #{tpu_custom_call.1} parent=11 // pred_check_branch
          %954 = sbr.rel (%p952) target = $region80
        $region79: #{tpu_custom_call.1} parent=11 // pred_region
          %s956 = ssub.s32 32, 32
          %957 = vsyncadd [#allocation38], %s956
          %s959 = sshll.u32 [#allocation39], 4
          %s960 = int_to_ptr.vmem [resolvable:$true] %s959
          %962 = dma.hbm_to_vmem [thread:$0]  %s45, 32, %s960, [#allocation38]
        $region80: #{tpu_custom_call.1} parent=11 // pred_fallthru
          _
        // Predicated region
        $region81: #{tpu_custom_call.1} parent=11 // pred_check
          %p963 = pneg %p623
        $region82: #{tpu_custom_call.1} parent=11 // pred_check_branch
          %965 = sbr.rel (%p963) target = $region84
        $region83: #{tpu_custom_call.1} parent=11 // pred_region
          %s967 = ssub.s32 4096, 4096
          %968 = vsyncadd [#allocation41], %s967
          %s969 = sshll.u32 [#allocation40], 4
          %s970 = int_to_ptr.vmem [resolvable:$true] %s969
          %975 = dma.hbm_to_vmem [thread:$0]  %s47, 4096, %s970, [#allocation41], 128, 128, 8
        $region84: #{tpu_custom_call.1} parent=11 // pred_fallthru
          _
        // Predicated region
        $region85: #{tpu_custom_call.1} parent=11 // pred_check
          %p976 = pneg %p644
        $region86: #{tpu_custom_call.1} parent=11 // pred_check_branch
          %978 = sbr.rel (%p976) target = $region88
        $region87: #{tpu_custom_call.1} parent=11 // pred_region
          %s980 = ssub.s32 2048, 2048
          %981 = vsyncadd [#allocation41], %s980
          %s982 = sshll.u32 [#allocation42], 4
          %s983 = int_to_ptr.vmem [resolvable:$true] %s982
          %988 = dma.hbm_to_vmem [thread:$0]  %s49, 2048, %s983, [#allocation41], 128, 128, 8
        $region88: #{tpu_custom_call.1} parent=11 // pred_fallthru
          _
        // Predicated region
        $region89: #{tpu_custom_call.1} parent=11 // pred_check
          %p989 = pneg %p665
        $region90: #{tpu_custom_call.1} parent=11 // pred_check_branch
          %991 = sbr.rel (%p989) target = $region92
        $region91: #{tpu_custom_call.1} parent=11 // pred_region
          %s993 = ssub.s32 4096, 4096
          %994 = vsyncadd [#allocation44], %s993
          %s995 = sshll.u32 [#allocation43], 4
          %s996 = int_to_ptr.vmem [resolvable:$true] %s995
          %1001 = dma.hbm_to_vmem [thread:$0]  %s51, 4096, %s996, [#allocation44], 128, 128, 8
        $region92: #{tpu_custom_call.1} parent=11 // pred_fallthru
          _
        // Predicated region
        $region93: #{tpu_custom_call.1} parent=11 // pred_check
          %p1002 = pneg %p686
        $region94: #{tpu_custom_call.1} parent=11 // pred_check_branch
          %1004 = sbr.rel (%p1002) target = $region96
        $region95: #{tpu_custom_call.1} parent=11 // pred_region
          %s1006 = ssub.s32 32, 32
          %1007 = vsyncadd [#allocation44], %s1006
          %s1009 = sshll.u32 [#allocation45], 4
          %s1010 = int_to_ptr.vmem [resolvable:$true] %s1009
          %1012 = dma.hbm_to_vmem [thread:$0]  %s53, 32, %s1010, [#allocation44]
        $region96: #{tpu_custom_call.1} parent=11 // pred_fallthru
          _
        // Predicated region
        $region97: #{tpu_custom_call.1} parent=11 // pred_check
          %p1013 = pneg %p707
        $region98: #{tpu_custom_call.1} parent=11 // pred_check_branch
          %1015 = sbr.rel (%p1013) target = $region100
        $region99: #{tpu_custom_call.1} parent=11 // pred_region
          _
        $region100: #{tpu_custom_call.1} parent=11 // pred_fallthru
          _
        // Predicated region
        $region101: #{tpu_custom_call.1} parent=11 // pred_check
          %p1016 = pneg %p728
        $region102: #{tpu_custom_call.1} parent=11 // pred_check_branch
          %1018 = sbr.rel (%p1016) target = $region104
        $region103: #{tpu_custom_call.1} parent=11 // pred_region
          %s1020 = ssub.s32 16, 16
          %1021 = vsyncadd [#allocation47], %s1020
          %s1023 = sshll.u32 [#allocation46], 4
          %s1024 = int_to_ptr.vmem [resolvable:$true] %s1023
          %1026 = dma.hbm_to_vmem [thread:$0]  %s57, 16, %s1024, [#allocation47]
        $region104: #{tpu_custom_call.1} parent=11 // pred_fallthru
          _
      $region12: #{tpu_custom_call.1} parent=5 // pred_fallthru
        _
      %p1027 = scmp.lt.s32.totalorder %s89, 8
      // Predicated region
      $region105: #{tpu_custom_call.1} parent=5 // pred_check
        %p1028 = pneg %p1027
      $region106: #{tpu_custom_call.1} parent=5 // pred_check_branch
        %1030 = sbr.rel (%p1028) target = $region108
      $region107: #{tpu_custom_call.1} parent=5 // pred_region
        // Predicated region
        $region109: #{tpu_custom_call.1} parent=107 // pred_check
          %p1031 = pneg %p172
        $region110: #{tpu_custom_call.1} parent=107 // pred_check_branch
          %1033 = sbr.rel (%p1031) target = $region112
        $region111: #{tpu_custom_call.1} parent=107 // pred_region
          %s1034 = sand.u32 %s89, 1
          %s1035 = scalar_lea.sflag [#allocation11], %s1034
          %s1036 = sand.u32 %s162, 1
          %s1037 = smul.addr %s1036, 2048
          %s1038 = scalar_lea.vmem [#allocation10], %s1037
          %s1039 = smul.u32 2, %s89
          %s1041 = ssub.s32 32768, 32768
          %1042 = vsyncadd %s1035, %s1041
          %s1043 = smul.addr %s1039, 64
          %s1044 = scalar_lea.hbm %s7, %s1043
          %s1045 = sshll.u32 %s1038, 4
          %s1046 = int_to_ptr.vmem [resolvable:$true] %s1045
          %1051 = dma.hbm_to_vmem [thread:$0]  %s1044, 32768, %s1046, %s1035, 1024, 128, 8
        $region112: #{tpu_custom_call.1} parent=107 // pred_fallthru
          _
        // Predicated region
        $region113: #{tpu_custom_call.1} parent=107 // pred_check
          %p1052 = pneg %p198
        $region114: #{tpu_custom_call.1} parent=107 // pred_check_branch
          %1054 = sbr.rel (%p1052) target = $region116
        $region115: #{tpu_custom_call.1} parent=107 // pred_region
          %s1055 = sand.u32 %s89, 1
          %s1056 = scalar_lea.sflag [#allocation11], %s1055
          %s1057 = sand.u32 %s188, 1
          %s1058 = smul.addr %s1057, 2
          %s1059 = scalar_lea.vmem [#allocation12], %s1058
          %s1060 = smul.u32 2, %s89
          %s1062 = ssub.s32 32, 32
          %1063 = vsyncadd %s1056, %s1062
          %s1064 = smul.addr %s1060, 16
          %s1065 = scalar_lea.hbm %s9, %s1064
          %s1067 = sshll.u32 %s1059, 4
          %s1068 = int_to_ptr.vmem [resolvable:$true] %s1067
          %1070 = dma.hbm_to_vmem [thread:$0]  %s1065, 32, %s1068, %s1056
        $region116: #{tpu_custom_call.1} parent=107 // pred_fallthru
          _
        // Predicated region
        $region117: #{tpu_custom_call.1} parent=107 // pred_check
          %p1071 = pneg %p224
        $region118: #{tpu_custom_call.1} parent=107 // pred_check_branch
          %1073 = sbr.rel (%p1071) target = $region120
        $region119: #{tpu_custom_call.1} parent=107 // pred_region
          %s1074 = sand.u32 %s89, 1
          %s1075 = scalar_lea.sflag [#allocation14], %s1074
          %s1076 = sand.u32 %s214, 1
          %s1077 = smul.addr %s1076, 512
          %s1078 = scalar_lea.vmem [#allocation13], %s1077
          %s1079 = smul.u32 32, %s89
          %s1081 = ssub.s32 8192, 8192
          %1082 = vsyncadd %s1075, %s1081
          %s1083 = smul.addr %s1079, 4
          %s1084 = smul.addr %s1083, 64
          %s1085 = scalar_lea.hbm %s11, %s1084
          %s1086 = sshll.u32 %s1078, 4
          %s1087 = int_to_ptr.vmem [resolvable:$true] %s1086
          %1092 = dma.hbm_to_vmem [thread:$0]  %s1085, 8192, %s1087, %s1075, 256, 256, 16
        $region120: #{tpu_custom_call.1} parent=107 // pred_fallthru
          _
        // Predicated region
        $region121: #{tpu_custom_call.1} parent=107 // pred_check
          %p1093 = pneg %p439
        $region122: #{tpu_custom_call.1} parent=107 // pred_check_branch
          %1095 = sbr.rel (%p1093) target = $region124
        $region123: #{tpu_custom_call.1} parent=107 // pred_region
          %s1096 = sand.u32 %s89, 1
          %s1097 = scalar_lea.sflag [#allocation29], %s1096
          %s1098 = sand.u32 %s429, 1
          %s1099 = smul.addr %s1098, 256
          %s1100 = scalar_lea.vmem [#allocation28], %s1099
          %s1102 = ssub.s32 4096, 4096
          %1103 = vsyncadd %s1097, %s1102
          %s1104 = smul.addr %s89, 64
          %s1105 = scalar_lea.hbm %s31, %s1104
          %s1106 = sshll.u32 %s1100, 4
          %s1107 = int_to_ptr.vmem [resolvable:$true] %s1106
          %1112 = dma.hbm_to_vmem [thread:$0]  %s1105, 4096, %s1107, %s1097, 512, 64, 4
        $region124: #{tpu_custom_call.1} parent=107 // pred_fallthru
          _
        // Predicated region
        $region125: #{tpu_custom_call.1} parent=107 // pred_check
          %p1113 = pneg %p465
        $region126: #{tpu_custom_call.1} parent=107 // pred_check_branch
          %1115 = sbr.rel (%p1113) target = $region128
        $region127: #{tpu_custom_call.1} parent=107 // pred_region
          %s1116 = sand.u32 %s89, 1
          %s1117 = scalar_lea.sflag [#allocation29], %s1116
          %s1118 = sand.u32 %s455, 1
          %s1119 = scalar_lea.vmem [#allocation30], %s1118
          %s1121 = ssub.s32 16, 16
          %1122 = vsyncadd %s1117, %s1121
          %s1123 = smul.addr %s89, 16
          %s1124 = scalar_lea.hbm %s33, %s1123
          %s1126 = sshll.u32 %s1119, 4
          %s1127 = int_to_ptr.vmem [resolvable:$true] %s1126
          %1129 = dma.hbm_to_vmem [thread:$0]  %s1124, 16, %s1127, %s1117
        $region128: #{tpu_custom_call.1} parent=107 // pred_fallthru
          _
        // Predicated region
        $region129: #{tpu_custom_call.1} parent=107 // pred_check
          %p1130 = pneg %p491
        $region130: #{tpu_custom_call.1} parent=107 // pred_check_branch
          %1132 = sbr.rel (%p1130) target = $region132
        $region131: #{tpu_custom_call.1} parent=107 // pred_region
          %s1133 = sand.u32 %s89, 1
          %s1134 = scalar_lea.sflag [#allocation32], %s1133
          %s1135 = sand.u32 %s481, 1
          %s1136 = smul.addr %s1135, 256
          %s1137 = scalar_lea.vmem [#allocation31], %s1136
          %s1138 = smul.u32 16, %s89
          %s1140 = ssub.s32 4096, 4096
          %1141 = vsyncadd %s1134, %s1140
          %s1142 = smul.addr %s1138, 4
          %s1143 = smul.addr %s1142, 64
          %s1144 = scalar_lea.hbm %s35, %s1143
          %s1145 = sshll.u32 %s1137, 4
          %s1146 = int_to_ptr.vmem [resolvable:$true] %s1145
          %1151 = dma.hbm_to_vmem [thread:$0]  %s1144, 4096, %s1146, %s1134, 256, 256, 16
        $region132: #{tpu_custom_call.1} parent=107 // pred_fallthru
          _
      $region108: #{tpu_custom_call.1} parent=5 // pred_fallthru
        _
      %p1152 = scmp.le.s32.totalorder 1, %s89
      %p1153 = scmp.lt.s32.totalorder %s89, 9
      %p1154 = pnand %p1152, %p1153
      %p1155 = pneg %p1154
      // Predicated region
      $region133: #{tpu_custom_call.1} parent=5 // pred_check
        _
      $region134: #{tpu_custom_call.1} parent=5 // pred_check_branch
        %1157 = sbr.rel (%p1154) target = $region136
      $region135: #{tpu_custom_call.1} parent=5 // pred_region
        %s1158 = ssub.s32 %s89, 1
        // Predicated region
        $region137: #{tpu_custom_call.1} parent=135 // pred_check
          %p1159 = pneg %p110
        $region138: #{tpu_custom_call.1} parent=135 // pred_check_branch
          %1161 = sbr.rel (%p1159) target = $region140
        $region139: #{tpu_custom_call.1} parent=135 // pred_region
          %1162 = dma.done [#allocation5], 256
        $region140: #{tpu_custom_call.1} parent=135 // pred_fallthru
          _
        // Predicated region
        $region141: #{tpu_custom_call.1} parent=135 // pred_check
          %p1163 = pneg %p131
        $region142: #{tpu_custom_call.1} parent=135 // pred_check_branch
          %1165 = sbr.rel (%p1163) target = $region144
        $region143: #{tpu_custom_call.1} parent=135 // pred_region
          %1166 = dma.done [#allocation8], 16
        $region144: #{tpu_custom_call.1} parent=135 // pred_fallthru
          _
        // Predicated region
        $region145: #{tpu_custom_call.1} parent=135 // pred_check
          %p1167 = pneg %p152
        $region146: #{tpu_custom_call.1} parent=135 // pred_check_branch
          %1169 = sbr.rel (%p1167) target = $region148
        $region147: #{tpu_custom_call.1} parent=135 // pred_region
          %1170 = dma.done [#allocation8], 64
        $region148: #{tpu_custom_call.1} parent=135 // pred_fallthru
          _
        %s1171 = sand.u32 %s94, 1
        %s1172 = scalar_lea.sflag [#allocation11], %s1171
        %s1173 = sand.u32 %s165, 1
        %s1174 = smul.addr %s1173, 2048
        %s1175 = scalar_lea.vmem [#allocation10], %s1174
        // Predicated region
        $region149: #{tpu_custom_call.1} parent=135 // pred_check
          %p1176 = pneg %p178
        $region150: #{tpu_custom_call.1} parent=135 // pred_check_branch
          %1178 = sbr.rel (%p1176) target = $region152
        $region151: #{tpu_custom_call.1} parent=135 // pred_region
          %1179 = dma.done %s1172, 32768
        $region152: #{tpu_custom_call.1} parent=135 // pred_fallthru
          _
        %s1180 = sand.u32 %s94, 1
        %s1181 = scalar_lea.sflag [#allocation11], %s1180
        %s1182 = sand.u32 %s191, 1
        %s1183 = smul.addr %s1182, 2
        %s1184 = scalar_lea.vmem [#allocation12], %s1183
        // Predicated region
        $region153: #{tpu_custom_call.1} parent=135 // pred_check
          %p1185 = pneg %p204
        $region154: #{tpu_custom_call.1} parent=135 // pred_check_branch
          %1187 = sbr.rel (%p1185) target = $region156
        $region155: #{tpu_custom_call.1} parent=135 // pred_region
          %1188 = dma.done %s1181, 32
        $region156: #{tpu_custom_call.1} parent=135 // pred_fallthru
          _
        %s1189 = sand.u32 %s94, 1
        %s1190 = scalar_lea.sflag [#allocation14], %s1189
        %s1191 = sand.u32 %s217, 1
        %s1192 = smul.addr %s1191, 512
        %s1193 = scalar_lea.vmem [#allocation13], %s1192
        // Predicated region
        $region157: #{tpu_custom_call.1} parent=135 // pred_check
          %p1194 = pneg %p230
        $region158: #{tpu_custom_call.1} parent=135 // pred_check_branch
          %1196 = sbr.rel (%p1194) target = $region160
        $region159: #{tpu_custom_call.1} parent=135 // pred_region
          %1197 = dma.done %s1190, 8192
        $region160: #{tpu_custom_call.1} parent=135 // pred_fallthru
          _
        // Predicated region
        $region161: #{tpu_custom_call.1} parent=135 // pred_check
          %p1198 = pneg %p251
        $region162: #{tpu_custom_call.1} parent=135 // pred_check_branch
          %1200 = sbr.rel (%p1198) target = $region164
        $region163: #{tpu_custom_call.1} parent=135 // pred_region
          %1201 = dma.done [#allocation14], 64
        $region164: #{tpu_custom_call.1} parent=135 // pred_fallthru
          _
        // Predicated region
        $region165: #{tpu_custom_call.1} parent=135 // pred_check
          %p1202 = pneg %p272
        $region166: #{tpu_custom_call.1} parent=135 // pred_check_branch
          %1204 = sbr.rel (%p1202) target = $region168
        $region167: #{tpu_custom_call.1} parent=135 // pred_region
          %1205 = dma.done [#allocation17], 8192
        $region168: #{tpu_custom_call.1} parent=135 // pred_fallthru
          _
        // Predicated region
        $region169: #{tpu_custom_call.1} parent=135 // pred_check
          %p1206 = pneg %p293
        $region170: #{tpu_custom_call.1} parent=135 // pred_check_branch
          %1208 = sbr.rel (%p1206) target = $region172
        $region171: #{tpu_custom_call.1} parent=135 // pred_region
          %1209 = dma.done [#allocation17], 32
        $region172: #{tpu_custom_call.1} parent=135 // pred_fallthru
          _
        // Predicated region
        $region173: #{tpu_custom_call.1} parent=135 // pred_check
          %p1210 = pneg %p314
        $region174: #{tpu_custom_call.1} parent=135 // pred_check_branch
          %1212 = sbr.rel (%p1210) target = $region176
        $region175: #{tpu_custom_call.1} parent=135 // pred_region
          %1213 = dma.done [#allocation20], 4096
        $region176: #{tpu_custom_call.1} parent=135 // pred_fallthru
          _
        // Predicated region
        $region177: #{tpu_custom_call.1} parent=135 // pred_check
          %p1214 = pneg %p335
        $region178: #{tpu_custom_call.1} parent=135 // pred_check_branch
          %1216 = sbr.rel (%p1214) target = $region180
        $region179: #{tpu_custom_call.1} parent=135 // pred_region
          %1217 = dma.done [#allocation20], 32
        $region180: #{tpu_custom_call.1} parent=135 // pred_fallthru
          _
        // Predicated region
        $region181: #{tpu_custom_call.1} parent=135 // pred_check
          %p1218 = pneg %p356
        $region182: #{tpu_custom_call.1} parent=135 // pred_check_branch
          %1220 = sbr.rel (%p1218) target = $region184
        $region183: #{tpu_custom_call.1} parent=135 // pred_region
          %1221 = dma.done [#allocation23], 320
        $region184: #{tpu_custom_call.1} parent=135 // pred_fallthru
          _
        // Predicated region
        $region185: #{tpu_custom_call.1} parent=135 // pred_check
          %p1222 = pneg %p377
        $region186: #{tpu_custom_call.1} parent=135 // pred_check_branch
          %1224 = sbr.rel (%p1222) target = $region188
        $region187: #{tpu_custom_call.1} parent=135 // pred_region
          %1225 = dma.done [#allocation23], 16
        $region188: #{tpu_custom_call.1} parent=135 // pred_fallthru
          _
        // Predicated region
        $region189: #{tpu_custom_call.1} parent=135 // pred_check
          %p1226 = pneg %p398
        $region190: #{tpu_custom_call.1} parent=135 // pred_check_branch
          %1228 = sbr.rel (%p1226) target = $region192
        $region191: #{tpu_custom_call.1} parent=135 // pred_region
          %1229 = dma.done [#allocation26], 1024
        $region192: #{tpu_custom_call.1} parent=135 // pred_fallthru
          _
        // Predicated region
        $region193: #{tpu_custom_call.1} parent=135 // pred_check
          %p1230 = pneg %p419
        $region194: #{tpu_custom_call.1} parent=135 // pred_check_branch
          %1232 = sbr.rel (%p1230) target = $region196
        $region195: #{tpu_custom_call.1} parent=135 // pred_region
          %1233 = dma.done [#allocation26], 16
        $region196: #{tpu_custom_call.1} parent=135 // pred_fallthru
          _
        %s1234 = sand.u32 %s94, 1
        %s1235 = scalar_lea.sflag [#allocation29], %s1234
        %s1236 = sand.u32 %s432, 1
        %s1237 = smul.addr %s1236, 256
        %s1238 = scalar_lea.vmem [#allocation28], %s1237
        // Predicated region
        $region197: #{tpu_custom_call.1} parent=135 // pred_check
          %p1239 = pneg %p445
        $region198: #{tpu_custom_call.1} parent=135 // pred_check_branch
          %1241 = sbr.rel (%p1239) target = $region200
        $region199: #{tpu_custom_call.1} parent=135 // pred_region
          %1242 = dma.done %s1235, 4096
        $region200: #{tpu_custom_call.1} parent=135 // pred_fallthru
          _
        %s1243 = sand.u32 %s94, 1
        %s1244 = scalar_lea.sflag [#allocation29], %s1243
        %s1245 = sand.u32 %s458, 1
        %s1246 = scalar_lea.vmem [#allocation30], %s1245
        // Predicated region
        $region201: #{tpu_custom_call.1} parent=135 // pred_check
          %p1247 = pneg %p471
        $region202: #{tpu_custom_call.1} parent=135 // pred_check_branch
          %1249 = sbr.rel (%p1247) target = $region204
        $region203: #{tpu_custom_call.1} parent=135 // pred_region
          %1250 = dma.done %s1244, 16
        $region204: #{tpu_custom_call.1} parent=135 // pred_fallthru
          _
        %s1251 = sand.u32 %s94, 1
        %s1252 = scalar_lea.sflag [#allocation32], %s1251
        %s1253 = sand.u32 %s484, 1
        %s1254 = smul.addr %s1253, 256
        %s1255 = scalar_lea.vmem [#allocation31], %s1254
        // Predicated region
        $region205: #{tpu_custom_call.1} parent=135 // pred_check
          %p1256 = pneg %p497
        $region206: #{tpu_custom_call.1} parent=135 // pred_check_branch
          %1258 = sbr.rel (%p1256) target = $region208
        $region207: #{tpu_custom_call.1} parent=135 // pred_region
          %1259 = dma.done %s1252, 4096
        $region208: #{tpu_custom_call.1} parent=135 // pred_fallthru
          _
        // Predicated region
        $region209: #{tpu_custom_call.1} parent=135 // pred_check
          %p1260 = pneg %p518
        $region210: #{tpu_custom_call.1} parent=135 // pred_check_branch
          %1262 = sbr.rel (%p1260) target = $region212
        $region211: #{tpu_custom_call.1} parent=135 // pred_region
          %1263 = dma.done [#allocation32], 64
        $region212: #{tpu_custom_call.1} parent=135 // pred_fallthru
          _
        // Predicated region
        $region213: #{tpu_custom_call.1} parent=135 // pred_check
          %p1264 = pneg %p539
        $region214: #{tpu_custom_call.1} parent=135 // pred_check_branch
          %1266 = sbr.rel (%p1264) target = $region216
        $region215: #{tpu_custom_call.1} parent=135 // pred_region
          %1267 = dma.done [#allocation35], 8192
        $region216: #{tpu_custom_call.1} parent=135 // pred_fallthru
          _
        // Predicated region
        $region217: #{tpu_custom_call.1} parent=135 // pred_check
          %p1268 = pneg %p560
        $region218: #{tpu_custom_call.1} parent=135 // pred_check_branch
          %1270 = sbr.rel (%p1268) target = $region220
        $region219: #{tpu_custom_call.1} parent=135 // pred_region
          %1271 = dma.done [#allocation35], 32
        $region220: #{tpu_custom_call.1} parent=135 // pred_fallthru
          _
        // Predicated region
        $region221: #{tpu_custom_call.1} parent=135 // pred_check
          %p1272 = pneg %p581
        $region222: #{tpu_custom_call.1} parent=135 // pred_check_branch
          %1274 = sbr.rel (%p1272) target = $region224
        $region223: #{tpu_custom_call.1} parent=135 // pred_region
          %1275 = dma.done [#allocation38], 4096
        $region224: #{tpu_custom_call.1} parent=135 // pred_fallthru
          _
        // Predicated region
        $region225: #{tpu_custom_call.1} parent=135 // pred_check
          %p1276 = pneg %p602
        $region226: #{tpu_custom_call.1} parent=135 // pred_check_branch
          %1278 = sbr.rel (%p1276) target = $region228
        $region227: #{tpu_custom_call.1} parent=135 // pred_region
          %1279 = dma.done [#allocation38], 32
        $region228: #{tpu_custom_call.1} parent=135 // pred_fallthru
          _
        // Predicated region
        $region229: #{tpu_custom_call.1} parent=135 // pred_check
          %p1280 = pneg %p623
        $region230: #{tpu_custom_call.1} parent=135 // pred_check_branch
          %1282 = sbr.rel (%p1280) target = $region232
        $region231: #{tpu_custom_call.1} parent=135 // pred_region
          %1283 = dma.done [#allocation41], 4096
        $region232: #{tpu_custom_call.1} parent=135 // pred_fallthru
          _
        // Predicated region
        $region233: #{tpu_custom_call.1} parent=135 // pred_check
          %p1284 = pneg %p644
        $region234: #{tpu_custom_call.1} parent=135 // pred_check_branch
          %1286 = sbr.rel (%p1284) target = $region236
        $region235: #{tpu_custom_call.1} parent=135 // pred_region
          %1287 = dma.done [#allocation41], 2048
        $region236: #{tpu_custom_call.1} parent=135 // pred_fallthru
          _
        // Predicated region
        $region237: #{tpu_custom_call.1} parent=135 // pred_check
          %p1288 = pneg %p665
        $region238: #{tpu_custom_call.1} parent=135 // pred_check_branch
          %1290 = sbr.rel (%p1288) target = $region240
        $region239: #{tpu_custom_call.1} parent=135 // pred_region
          %1291 = dma.done [#allocation44], 4096
        $region240: #{tpu_custom_call.1} parent=135 // pred_fallthru
          _
        // Predicated region
        $region241: #{tpu_custom_call.1} parent=135 // pred_check
          %p1292 = pneg %p686
        $region242: #{tpu_custom_call.1} parent=135 // pred_check_branch
          %1294 = sbr.rel (%p1292) target = $region244
        $region243: #{tpu_custom_call.1} parent=135 // pred_region
          %1295 = dma.done [#allocation44], 32
        $region244: #{tpu_custom_call.1} parent=135 // pred_fallthru
          _
        // Predicated region
        $region245: #{tpu_custom_call.1} parent=135 // pred_check
          %p1296 = pneg %p728
        $region246: #{tpu_custom_call.1} parent=135 // pred_check_branch
          %1298 = sbr.rel (%p1296) target = $region248
        $region247: #{tpu_custom_call.1} parent=135 // pred_region
          %1299 = dma.done [#allocation47], 16
        $region248: #{tpu_custom_call.1} parent=135 // pred_fallthru
          _
        %p1300 = pneg %p110
        %p1301 = pneg %p107
        %p1302 = pneg %p131
        %p1303 = pneg %p128
        %p1304 = pneg %p152
        %p1305 = pneg %p149
        %s1306 = sand.u32 %s94, 1
        %s1307 = scalar_lea.sflag [#allocation11], %s1306
        %s1308 = sand.u32 %s165, 1
        %s1309 = smul.addr %s1308, 2048
        %s1310 = scalar_lea.vmem [#allocation10], %s1309
        %p1311 = pneg %p178
        %p1312 = pneg %p175
        %s1313 = sand.u32 %s94, 1
        %s1314 = scalar_lea.sflag [#allocation11], %s1313
        %s1315 = sand.u32 %s191, 1
        %s1316 = smul.addr %s1315, 2
        %s1317 = scalar_lea.vmem [#allocation12], %s1316
        %p1318 = pneg %p204
        %p1319 = pneg %p201
        %s1320 = sand.u32 %s94, 1
        %s1321 = scalar_lea.sflag [#allocation14], %s1320
        %s1322 = sand.u32 %s217, 1
        %s1323 = smul.addr %s1322, 512
        %s1324 = scalar_lea.vmem [#allocation13], %s1323
        %p1325 = pneg %p230
        %p1326 = pneg %p227
        %p1327 = pneg %p251
        %p1328 = pneg %p248
        %p1329 = pneg %p272
        %p1330 = pneg %p269
        %p1331 = pneg %p293
        %p1332 = pneg %p290
        %p1333 = pneg %p314
        %p1334 = pneg %p311
        %p1335 = pneg %p335
        %p1336 = pneg %p332
        %p1337 = pneg %p356
        %p1338 = pneg %p353
        %p1339 = pneg %p377
        %p1340 = pneg %p374
        %p1341 = pneg %p398
        %p1342 = pneg %p395
        %p1343 = pneg %p419
        %p1344 = pneg %p416
        %s1345 = sand.u32 %s94, 1
        %s1346 = scalar_lea.sflag [#allocation29], %s1345
        %s1347 = sand.u32 %s432, 1
        %s1348 = smul.addr %s1347, 256
        %s1349 = scalar_lea.vmem [#allocation28], %s1348
        %p1350 = pneg %p445
        %p1351 = pneg %p442
        %s1352 = sand.u32 %s94, 1
        %s1353 = scalar_lea.sflag [#allocation29], %s1352
        %s1354 = sand.u32 %s458, 1
        %s1355 = scalar_lea.vmem [#allocation30], %s1354
        %p1356 = pneg %p471
        %p1357 = pneg %p468
        %s1358 = sand.u32 %s94, 1
        %s1359 = scalar_lea.sflag [#allocation32], %s1358
        %s1360 = sand.u32 %s484, 1
        %s1361 = smul.addr %s1360, 256
        %s1362 = scalar_lea.vmem [#allocation31], %s1361
        %p1363 = pneg %p497
        %p1364 = pneg %p494
        %p1365 = pneg %p518
        %p1366 = pneg %p515
        %p1367 = pneg %p539
        %p1368 = pneg %p536
        %p1369 = pneg %p560
        %p1370 = pneg %p557
        %p1371 = pneg %p581
        %p1372 = pneg %p578
        %p1373 = pneg %p602
        %p1374 = pneg %p599
        %p1375 = pneg %p623
        %p1376 = pneg %p620
        %p1377 = pneg %p644
        %p1378 = pneg %p641
        %p1379 = pneg %p665
        %p1380 = pneg %p662
        %p1381 = pneg %p686
        %p1382 = pneg %p683
        %p1383 = pneg %p707
        %p1384 = pneg %p704
        %p1385 = pneg %p728
        %p1386 = pneg %p725
        %p1387 = pneg %p749
        %p1388 = pneg %p746
        %s1389 = smul.u32 2, %s94
        %s1390 = smul.u32 2, %s94
        %s1391 = smul.u32 32, %s94
        %s1392 = smul.u32 16, %s94
        %p1394 = scmp.eq.s32.totalorder %s94, 0
        // Predicated region
        $region249: #{tpu_custom_call.1} parent=135 // pred_check
          %p1395 = pneg %p1394
        $region250: #{tpu_custom_call.1} parent=135 // pred_check_branch
          %1397 = sbr.rel (%p1395) target = $region252
        $region251: #{tpu_custom_call.1} parent=135 // pred_region
          %1398 = vst [vmem:[#allocation2] sm:$0xff] 0.0
          %1399 = vst [vmem:[#allocation3] sm:$0xff] 0.0
        $region252: #{tpu_custom_call.1} parent=135 // pred_fallthru
          _
        %v1400 = vld [vmem:[#allocation4] sm:$0xff]
        %v1401 = vld [vmem:[#allocation4 + $0x8] sm:$0xff]
        %v1402 = vld [vmem:[%s1175] sm:$0xff]
        %v1403 = vld [vmem:[%s1175 + $0x8] sm:$0xff]
        %v1404 = vld [vmem:[%s1175 + $0x10] sm:$0xff]
        %v1405 = vld [vmem:[%s1175 + $0x18] sm:$0xff]
        %v1406 = vld [vmem:[%s1175 + $0x20] sm:$0xff]
        %v1407 = vld [vmem:[%s1175 + $0x28] sm:$0xff]
        %v1408 = vld [vmem:[%s1175 + $0x30] sm:$0xff]
        %v1409 = vld [vmem:[%s1175 + $0x38] sm:$0xff]
        %v1410 = vld [vmem:[%s1175 + $0x40] sm:$0xff]
        %v1411 = vld [vmem:[%s1175 + $0x48] sm:$0xff]
        %v1412 = vld [vmem:[%s1175 + $0x50] sm:$0xff]
        %v1413 = vld [vmem:[%s1175 + $0x58] sm:$0xff]
        %v1414 = vld [vmem:[%s1175 + $0x60] sm:$0xff]
        %v1415 = vld [vmem:[%s1175 + $0x68] sm:$0xff]
        %v1416 = vld [vmem:[%s1175 + $0x70] sm:$0xff]
        %v1417 = vld [vmem:[%s1175 + $0x78] sm:$0xff]
        %v1418 = vld [vmem:[%s1175 + $0x80] sm:$0xff]
        %v1419 = vld [vmem:[%s1175 + $0x88] sm:$0xff]
        %v1420 = vld [vmem:[%s1175 + $0x90] sm:$0xff]
        %v1421 = vld [vmem:[%s1175 + $0x98] sm:$0xff]
        %v1422 = vld [vmem:[%s1175 + $0xa0] sm:$0xff]
        %v1423 = vld [vmem:[%s1175 + $0xa8] sm:$0xff]
        %v1424 = vld [vmem:[%s1175 + $0xb0] sm:$0xff]
        %v1425 = vld [vmem:[%s1175 + $0xb8] sm:$0xff]
        %v1426 = vld [vmem:[%s1175 + $0xc0] sm:$0xff]
        %v1427 = vld [vmem:[%s1175 + $0xc8] sm:$0xff]
        %v1428 = vld [vmem:[%s1175 + $0xd0] sm:$0xff]
        %v1429 = vld [vmem:[%s1175 + $0xd8] sm:$0xff]
        %v1430 = vld [vmem:[%s1175 + $0xe0] sm:$0xff]
        %v1431 = vld [vmem:[%s1175 + $0xe8] sm:$0xff]
        %v1432 = vld [vmem:[%s1175 + $0xf0] sm:$0xff]
        %v1433 = vld [vmem:[%s1175 + $0xf8] sm:$0xff]
        %v1434 = vld [vmem:[%s1175 + $0x100] sm:$0xff]
        %v1435 = vld [vmem:[%s1175 + $0x108] sm:$0xff]
        %v1436 = vld [vmem:[%s1175 + $0x110] sm:$0xff]
        %v1437 = vld [vmem:[%s1175 + $0x118] sm:$0xff]
        %v1438 = vld [vmem:[%s1175 + $0x120] sm:$0xff]
        %v1439 = vld [vmem:[%s1175 + $0x128] sm:$0xff]
        %v1440 = vld [vmem:[%s1175 + $0x130] sm:$0xff]
        %v1441 = vld [vmem:[%s1175 + $0x138] sm:$0xff]
        %v1442 = vld [vmem:[%s1175 + $0x140] sm:$0xff]
        %v1443 = vld [vmem:[%s1175 + $0x148] sm:$0xff]
        %v1444 = vld [vmem:[%s1175 + $0x150] sm:$0xff]
        %v1445 = vld [vmem:[%s1175 + $0x158] sm:$0xff]
        %v1446 = vld [vmem:[%s1175 + $0x160] sm:$0xff]
        %v1447 = vld [vmem:[%s1175 + $0x168] sm:$0xff]
        %v1448 = vld [vmem:[%s1175 + $0x170] sm:$0xff]
        %v1449 = vld [vmem:[%s1175 + $0x178] sm:$0xff]
        %v1450 = vld [vmem:[%s1175 + $0x180] sm:$0xff]
        %v1451 = vld [vmem:[%s1175 + $0x188] sm:$0xff]
        %v1452 = vld [vmem:[%s1175 + $0x190] sm:$0xff]
        %v1453 = vld [vmem:[%s1175 + $0x198] sm:$0xff]
        %v1454 = vld [vmem:[%s1175 + $0x1a0] sm:$0xff]
        %v1455 = vld [vmem:[%s1175 + $0x1a8] sm:$0xff]
        %v1456 = vld [vmem:[%s1175 + $0x1b0] sm:$0xff]
        %v1457 = vld [vmem:[%s1175 + $0x1b8] sm:$0xff]
        %v1458 = vld [vmem:[%s1175 + $0x1c0] sm:$0xff]
        %v1459 = vld [vmem:[%s1175 + $0x1c8] sm:$0xff]
        %v1460 = vld [vmem:[%s1175 + $0x1d0] sm:$0xff]
        %v1461 = vld [vmem:[%s1175 + $0x1d8] sm:$0xff]
        %v1462 = vld [vmem:[%s1175 + $0x1e0] sm:$0xff]
        %v1463 = vld [vmem:[%s1175 + $0x1e8] sm:$0xff]
        %v1464 = vld [vmem:[%s1175 + $0x1f0] sm:$0xff]
        %v1465 = vld [vmem:[%s1175 + $0x1f8] sm:$0xff]
        %v1466 = vld [vmem:[%s1175 + $0x200] sm:$0xff]
        %v1467 = vld [vmem:[%s1175 + $0x208] sm:$0xff]
        %v1468 = vld [vmem:[%s1175 + $0x210] sm:$0xff]
        %v1469 = vld [vmem:[%s1175 + $0x218] sm:$0xff]
        %v1470 = vld [vmem:[%s1175 + $0x220] sm:$0xff]
        %v1471 = vld [vmem:[%s1175 + $0x228] sm:$0xff]
        %v1472 = vld [vmem:[%s1175 + $0x230] sm:$0xff]
        %v1473 = vld [vmem:[%s1175 + $0x238] sm:$0xff]
        %v1474 = vld [vmem:[%s1175 + $0x240] sm:$0xff]
        %v1475 = vld [vmem:[%s1175 + $0x248] sm:$0xff]
        %v1476 = vld [vmem:[%s1175 + $0x250] sm:$0xff]
        %v1477 = vld [vmem:[%s1175 + $0x258] sm:$0xff]
        %v1478 = vld [vmem:[%s1175 + $0x260] sm:$0xff]
        %v1479 = vld [vmem:[%s1175 + $0x268] sm:$0xff]
        %v1480 = vld [vmem:[%s1175 + $0x270] sm:$0xff]
        %v1481 = vld [vmem:[%s1175 + $0x278] sm:$0xff]
        %v1482 = vld [vmem:[%s1175 + $0x280] sm:$0xff]
        %v1483 = vld [vmem:[%s1175 + $0x288] sm:$0xff]
        %v1484 = vld [vmem:[%s1175 + $0x290] sm:$0xff]
        %v1485 = vld [vmem:[%s1175 + $0x298] sm:$0xff]
        %v1486 = vld [vmem:[%s1175 + $0x2a0] sm:$0xff]
        %v1487 = vld [vmem:[%s1175 + $0x2a8] sm:$0xff]
        %v1488 = vld [vmem:[%s1175 + $0x2b0] sm:$0xff]
        %v1489 = vld [vmem:[%s1175 + $0x2b8] sm:$0xff]
        %v1490 = vld [vmem:[%s1175 + $0x2c0] sm:$0xff]
        %v1491 = vld [vmem:[%s1175 + $0x2c8] sm:$0xff]
        %v1492 = vld [vmem:[%s1175 + $0x2d0] sm:$0xff]
        %v1493 = vld [vmem:[%s1175 + $0x2d8] sm:$0xff]
        %v1494 = vld [vmem:[%s1175 + $0x2e0] sm:$0xff]
        %v1495 = vld [vmem:[%s1175 + $0x2e8] sm:$0xff]
        %v1496 = vld [vmem:[%s1175 + $0x2f0] sm:$0xff]
        %v1497 = vld [vmem:[%s1175 + $0x2f8] sm:$0xff]
        %v1498 = vld [vmem:[%s1175 + $0x300] sm:$0xff]
        %v1499 = vld [vmem:[%s1175 + $0x308] sm:$0xff]
        %v1500 = vld [vmem:[%s1175 + $0x310] sm:$0xff]
        %v1501 = vld [vmem:[%s1175 + $0x318] sm:$0xff]
        %v1502 = vld [vmem:[%s1175 + $0x320] sm:$0xff]
        %v1503 = vld [vmem:[%s1175 + $0x328] sm:$0xff]
        %v1504 = vld [vmem:[%s1175 + $0x330] sm:$0xff]
        %v1505 = vld [vmem:[%s1175 + $0x338] sm:$0xff]
        %v1506 = vld [vmem:[%s1175 + $0x340] sm:$0xff]
        %v1507 = vld [vmem:[%s1175 + $0x348] sm:$0xff]
        %v1508 = vld [vmem:[%s1175 + $0x350] sm:$0xff]
        %v1509 = vld [vmem:[%s1175 + $0x358] sm:$0xff]
        %v1510 = vld [vmem:[%s1175 + $0x360] sm:$0xff]
        %v1511 = vld [vmem:[%s1175 + $0x368] sm:$0xff]
        %v1512 = vld [vmem:[%s1175 + $0x370] sm:$0xff]
        %v1513 = vld [vmem:[%s1175 + $0x378] sm:$0xff]
        %v1514 = vld [vmem:[%s1175 + $0x380] sm:$0xff]
        %v1515 = vld [vmem:[%s1175 + $0x388] sm:$0xff]
        %v1516 = vld [vmem:[%s1175 + $0x390] sm:$0xff]
        %v1517 = vld [vmem:[%s1175 + $0x398] sm:$0xff]
        %v1518 = vld [vmem:[%s1175 + $0x3a0] sm:$0xff]
        %v1519 = vld [vmem:[%s1175 + $0x3a8] sm:$0xff]
        %v1520 = vld [vmem:[%s1175 + $0x3b0] sm:$0xff]
        %v1521 = vld [vmem:[%s1175 + $0x3b8] sm:$0xff]
        %v1522 = vld [vmem:[%s1175 + $0x3c0] sm:$0xff]
        %v1523 = vld [vmem:[%s1175 + $0x3c8] sm:$0xff]
        %v1524 = vld [vmem:[%s1175 + $0x3d0] sm:$0xff]
        %v1525 = vld [vmem:[%s1175 + $0x3d8] sm:$0xff]
        %v1526 = vld [vmem:[%s1175 + $0x3e0] sm:$0xff]
        %v1527 = vld [vmem:[%s1175 + $0x3e8] sm:$0xff]
        %v1528 = vld [vmem:[%s1175 + $0x3f0] sm:$0xff]
        %v1529 = vld [vmem:[%s1175 + $0x3f8] sm:$0xff]
        %v1530 = vld [vmem:[%s1175 + $0x400] sm:$0xff]
        %v1531 = vld [vmem:[%s1175 + $0x408] sm:$0xff]
        %v1532 = vld [vmem:[%s1175 + $0x410] sm:$0xff]
        %v1533 = vld [vmem:[%s1175 + $0x418] sm:$0xff]
        %v1534 = vld [vmem:[%s1175 + $0x420] sm:$0xff]
        %v1535 = vld [vmem:[%s1175 + $0x428] sm:$0xff]
        %v1536 = vld [vmem:[%s1175 + $0x430] sm:$0xff]
        %v1537 = vld [vmem:[%s1175 + $0x438] sm:$0xff]
        %v1538 = vld [vmem:[%s1175 + $0x440] sm:$0xff]
        %v1539 = vld [vmem:[%s1175 + $0x448] sm:$0xff]
        %v1540 = vld [vmem:[%s1175 + $0x450] sm:$0xff]
        %v1541 = vld [vmem:[%s1175 + $0x458] sm:$0xff]
        %v1542 = vld [vmem:[%s1175 + $0x460] sm:$0xff]
        %v1543 = vld [vmem:[%s1175 + $0x468] sm:$0xff]
        %v1544 = vld [vmem:[%s1175 + $0x470] sm:$0xff]
        %v1545 = vld [vmem:[%s1175 + $0x478] sm:$0xff]
        %v1546 = vld [vmem:[%s1175 + $0x480] sm:$0xff]
        %v1547 = vld [vmem:[%s1175 + $0x488] sm:$0xff]
        %v1548 = vld [vmem:[%s1175 + $0x490] sm:$0xff]
        %v1549 = vld [vmem:[%s1175 + $0x498] sm:$0xff]
        %v1550 = vld [vmem:[%s1175 + $0x4a0] sm:$0xff]
        %v1551 = vld [vmem:[%s1175 + $0x4a8] sm:$0xff]
        %v1552 = vld [vmem:[%s1175 + $0x4b0] sm:$0xff]
        %v1553 = vld [vmem:[%s1175 + $0x4b8] sm:$0xff]
        %v1554 = vld [vmem:[%s1175 + $0x4c0] sm:$0xff]
        %v1555 = vld [vmem:[%s1175 + $0x4c8] sm:$0xff]
        %v1556 = vld [vmem:[%s1175 + $0x4d0] sm:$0xff]
        %v1557 = vld [vmem:[%s1175 + $0x4d8] sm:$0xff]
        %v1558 = vld [vmem:[%s1175 + $0x4e0] sm:$0xff]
        %v1559 = vld [vmem:[%s1175 + $0x4e8] sm:$0xff]
        %v1560 = vld [vmem:[%s1175 + $0x4f0] sm:$0xff]
        %v1561 = vld [vmem:[%s1175 + $0x4f8] sm:$0xff]
        %v1562 = vld [vmem:[%s1175 + $0x500] sm:$0xff]
        %v1563 = vld [vmem:[%s1175 + $0x508] sm:$0xff]
        %v1564 = vld [vmem:[%s1175 + $0x510] sm:$0xff]
        %v1565 = vld [vmem:[%s1175 + $0x518] sm:$0xff]
        %v1566 = vld [vmem:[%s1175 + $0x520] sm:$0xff]
        %v1567 = vld [vmem:[%s1175 + $0x528] sm:$0xff]
        %v1568 = vld [vmem:[%s1175 + $0x530] sm:$0xff]
        %v1569 = vld [vmem:[%s1175 + $0x538] sm:$0xff]
        %v1570 = vld [vmem:[%s1175 + $0x540] sm:$0xff]
        %v1571 = vld [vmem:[%s1175 + $0x548] sm:$0xff]
        %v1572 = vld [vmem:[%s1175 + $0x550] sm:$0xff]
        %v1573 = vld [vmem:[%s1175 + $0x558] sm:$0xff]
        %v1574 = vld [vmem:[%s1175 + $0x560] sm:$0xff]
        %v1575 = vld [vmem:[%s1175 + $0x568] sm:$0xff]
        %v1576 = vld [vmem:[%s1175 + $0x570] sm:$0xff]
        %v1577 = vld [vmem:[%s1175 + $0x578] sm:$0xff]
        %v1578 = vld [vmem:[%s1175 + $0x580] sm:$0xff]
        %v1579 = vld [vmem:[%s1175 + $0x588] sm:$0xff]
        %v1580 = vld [vmem:[%s1175 + $0x590] sm:$0xff]
        %v1581 = vld [vmem:[%s1175 + $0x598] sm:$0xff]
        %v1582 = vld [vmem:[%s1175 + $0x5a0] sm:$0xff]
        %v1583 = vld [vmem:[%s1175 + $0x5a8] sm:$0xff]
        %v1584 = vld [vmem:[%s1175 + $0x5b0] sm:$0xff]
        %v1585 = vld [vmem:[%s1175 + $0x5b8] sm:$0xff]
        %v1586 = vld [vmem:[%s1175 + $0x5c0] sm:$0xff]
        %v1587 = vld [vmem:[%s1175 + $0x5c8] sm:$0xff]
        %v1588 = vld [vmem:[%s1175 + $0x5d0] sm:$0xff]
        %v1589 = vld [vmem:[%s1175 + $0x5d8] sm:$0xff]
        %v1590 = vld [vmem:[%s1175 + $0x5e0] sm:$0xff]
        %v1591 = vld [vmem:[%s1175 + $0x5e8] sm:$0xff]
        %v1592 = vld [vmem:[%s1175 + $0x5f0] sm:$0xff]
        %v1593 = vld [vmem:[%s1175 + $0x5f8] sm:$0xff]
        %v1594 = vld [vmem:[%s1175 + $0x600] sm:$0xff]
        %v1595 = vld [vmem:[%s1175 + $0x608] sm:$0xff]
        %v1596 = vld [vmem:[%s1175 + $0x610] sm:$0xff]
        %v1597 = vld [vmem:[%s1175 + $0x618] sm:$0xff]
        %v1598 = vld [vmem:[%s1175 + $0x620] sm:$0xff]
        %v1599 = vld [vmem:[%s1175 + $0x628] sm:$0xff]
        %v1600 = vld [vmem:[%s1175 + $0x630] sm:$0xff]
        %v1601 = vld [vmem:[%s1175 + $0x638] sm:$0xff]
        %v1602 = vld [vmem:[%s1175 + $0x640] sm:$0xff]
        %v1603 = vld [vmem:[%s1175 + $0x648] sm:$0xff]
        %v1604 = vld [vmem:[%s1175 + $0x650] sm:$0xff]
        %v1605 = vld [vmem:[%s1175 + $0x658] sm:$0xff]
        %v1606 = vld [vmem:[%s1175 + $0x660] sm:$0xff]
        %v1607 = vld [vmem:[%s1175 + $0x668] sm:$0xff]
        %v1608 = vld [vmem:[%s1175 + $0x670] sm:$0xff]
        %v1609 = vld [vmem:[%s1175 + $0x678] sm:$0xff]
        %v1610 = vld [vmem:[%s1175 + $0x680] sm:$0xff]
        %v1611 = vld [vmem:[%s1175 + $0x688] sm:$0xff]
        %v1612 = vld [vmem:[%s1175 + $0x690] sm:$0xff]
        %v1613 = vld [vmem:[%s1175 + $0x698] sm:$0xff]
        %v1614 = vld [vmem:[%s1175 + $0x6a0] sm:$0xff]
        %v1615 = vld [vmem:[%s1175 + $0x6a8] sm:$0xff]
        %v1616 = vld [vmem:[%s1175 + $0x6b0] sm:$0xff]
        %v1617 = vld [vmem:[%s1175 + $0x6b8] sm:$0xff]
        %v1618 = vld [vmem:[%s1175 + $0x6c0] sm:$0xff]
        %v1619 = vld [vmem:[%s1175 + $0x6c8] sm:$0xff]
        %v1620 = vld [vmem:[%s1175 + $0x6d0] sm:$0xff]
        %v1621 = vld [vmem:[%s1175 + $0x6d8] sm:$0xff]
        %v1622 = vld [vmem:[%s1175 + $0x6e0] sm:$0xff]
        %v1623 = vld [vmem:[%s1175 + $0x6e8] sm:$0xff]
        %v1624 = vld [vmem:[%s1175 + $0x6f0] sm:$0xff]
        %v1625 = vld [vmem:[%s1175 + $0x6f8] sm:$0xff]
        %v1626 = vld [vmem:[%s1175 + $0x700] sm:$0xff]
        %v1627 = vld [vmem:[%s1175 + $0x708] sm:$0xff]
        %v1628 = vld [vmem:[%s1175 + $0x710] sm:$0xff]
        %v1629 = vld [vmem:[%s1175 + $0x718] sm:$0xff]
        %v1630 = vld [vmem:[%s1175 + $0x720] sm:$0xff]
        %v1631 = vld [vmem:[%s1175 + $0x728] sm:$0xff]
        %v1632 = vld [vmem:[%s1175 + $0x730] sm:$0xff]
        %v1633 = vld [vmem:[%s1175 + $0x738] sm:$0xff]
        %v1634 = vld [vmem:[%s1175 + $0x740] sm:$0xff]
        %v1635 = vld [vmem:[%s1175 + $0x748] sm:$0xff]
        %v1636 = vld [vmem:[%s1175 + $0x750] sm:$0xff]
        %v1637 = vld [vmem:[%s1175 + $0x758] sm:$0xff]
        %v1638 = vld [vmem:[%s1175 + $0x760] sm:$0xff]
        %v1639 = vld [vmem:[%s1175 + $0x768] sm:$0xff]
        %v1640 = vld [vmem:[%s1175 + $0x770] sm:$0xff]
        %v1641 = vld [vmem:[%s1175 + $0x778] sm:$0xff]
        %v1642 = vld [vmem:[%s1175 + $0x780] sm:$0xff]
        %v1643 = vld [vmem:[%s1175 + $0x788] sm:$0xff]
        %v1644 = vld [vmem:[%s1175 + $0x790] sm:$0xff]
        %v1645 = vld [vmem:[%s1175 + $0x798] sm:$0xff]
        %v1646 = vld [vmem:[%s1175 + $0x7a0] sm:$0xff]
        %v1647 = vld [vmem:[%s1175 + $0x7a8] sm:$0xff]
        %v1648 = vld [vmem:[%s1175 + $0x7b0] sm:$0xff]
        %v1649 = vld [vmem:[%s1175 + $0x7b8] sm:$0xff]
        %v1650 = vld [vmem:[%s1175 + $0x7c0] sm:$0xff]
        %v1651 = vld [vmem:[%s1175 + $0x7c8] sm:$0xff]
        %v1652 = vld [vmem:[%s1175 + $0x7d0] sm:$0xff]
        %v1653 = vld [vmem:[%s1175 + $0x7d8] sm:$0xff]
        %v1654 = vld [vmem:[%s1175 + $0x7e0] sm:$0xff]
        %v1655 = vld [vmem:[%s1175 + $0x7e8] sm:$0xff]
        %v1656 = vld [vmem:[%s1175 + $0x7f0] sm:$0xff]
        %v1657 = vld [vmem:[%s1175 + $0x7f8] sm:$0xff]
        %v1658 = vld [vmem:[%s1184] sm:$0x3]
        %v1660 = vlaneseq
        %v1661 = vshrl.u32 %v1660, 7
        %v1662 = vsub.s32 0, %v1661
        %v1663 = vrot.slane %v1658, %v1662
        %v1664 = vlaneseq
        %v1665 = vshrl.u32 %v1664, 7
        %v1666 = vsub.s32 1, %v1665
        %v1667 = vrot.slane %v1658, %v1666
        %v1672 = vcombine.high %v1400, %v1400
        %v1674 = vunpack.c.l.s4 1966171168
        %v1675 = vunpack.c.0.s8 %v1674
        %v1676 = vlaneseq
        %v1677 = vshrl.u32 %v1676, 7
        %v1678 = vsub.s32 %v1675, %v1677
        %v1679 = vrot.slane %v1400, %v1678
        %v1681 = vunpack.c.l.s4 1966171168
        %v1682 = vunpack.c.0.s8 %v1681
        %v1683 = vlaneseq
        %v1684 = vshrl.u32 %v1683, 7
        %v1685 = vsub.s32 %v1682, %v1684
        %v1686 = vrot.slane %v1672, %v1685
        %v1687 = vcombine.high %v1679, %v1679
        %v1688 = vcombine.high %v1686, %v1686
        %v1690 = vunpack.c.l.s4 1966171168
        %v1691 = vunpack.c.0.s8 %v1690
        %v1692 = vlaneseq
        %v1693 = vshrl.u32 %v1692, 7
        %v1694 = vsub.s32 %v1691, %v1693
        %v1695 = vrot.slane %v1679, %v1694
        %v1697 = vunpack.c.l.s4 1966171168
        %v1698 = vunpack.c.0.s8 %v1697
        %v1699 = vlaneseq
        %v1700 = vshrl.u32 %v1699, 7
        %v1701 = vsub.s32 %v1698, %v1700
        %v1702 = vrot.slane %v1686, %v1701
        %v1704 = vunpack.c.l.s4 1966171168
        %v1705 = vunpack.c.0.s8 %v1704
        %v1706 = vlaneseq
        %v1707 = vshrl.u32 %v1706, 7
        %v1708 = vsub.s32 %v1705, %v1707
        %v1709 = vrot.slane %v1687, %v1708
        %v1711 = vunpack.c.l.s4 1966171168
        %v1712 = vunpack.c.0.s8 %v1711
        %v1713 = vlaneseq
        %v1714 = vshrl.u32 %v1713, 7
        %v1715 = vsub.s32 %v1712, %v1714
        %v1716 = vrot.slane %v1688, %v1715
        %v1717 = vcombine.high %v1695, %v1695
        %v1718 = vcombine.high %v1702, %v1702
        %v1719 = vcombine.high %v1709, %v1709
        %v1720 = vcombine.high %v1716, %v1716
        %v1721 = vcombine.high %v1401, %v1401
        %v1723 = vunpack.c.l.s4 1966171168
        %v1724 = vunpack.c.0.s8 %v1723
        %v1725 = vlaneseq
        %v1726 = vshrl.u32 %v1725, 7
        %v1727 = vsub.s32 %v1724, %v1726
        %v1728 = vrot.slane %v1401, %v1727
        %v1730 = vunpack.c.l.s4 1966171168
        %v1731 = vunpack.c.0.s8 %v1730
        %v1732 = vlaneseq
        %v1733 = vshrl.u32 %v1732, 7
        %v1734 = vsub.s32 %v1731, %v1733
        %v1735 = vrot.slane %v1721, %v1734
        %v1736 = vcombine.high %v1728, %v1728
        %v1737 = vcombine.high %v1735, %v1735
        %v1739 = vunpack.c.l.s4 1966171168
        %v1740 = vunpack.c.0.s8 %v1739
        %v1741 = vlaneseq
        %v1742 = vshrl.u32 %v1741, 7
        %v1743 = vsub.s32 %v1740, %v1742
        %v1744 = vrot.slane %v1728, %v1743
        %v1746 = vunpack.c.l.s4 1966171168
        %v1747 = vunpack.c.0.s8 %v1746
        %v1748 = vlaneseq
        %v1749 = vshrl.u32 %v1748, 7
        %v1750 = vsub.s32 %v1747, %v1749
        %v1751 = vrot.slane %v1735, %v1750
        %v1753 = vunpack.c.l.s4 1966171168
        %v1754 = vunpack.c.0.s8 %v1753
        %v1755 = vlaneseq
        %v1756 = vshrl.u32 %v1755, 7
        %v1757 = vsub.s32 %v1754, %v1756
        %v1758 = vrot.slane %v1736, %v1757
        %v1760 = vunpack.c.l.s4 1966171168
        %v1761 = vunpack.c.0.s8 %v1760
        %v1762 = vlaneseq
        %v1763 = vshrl.u32 %v1762, 7
        %v1764 = vsub.s32 %v1761, %v1763
        %v1765 = vrot.slane %v1737, %v1764
        %v1766 = vcombine.high %v1744, %v1744
        %v1767 = vcombine.high %v1751, %v1751
        %v1768 = vcombine.high %v1758, %v1758
        %v1769 = vcombine.high %v1765, %v1765
        %v2042 = vunpack.c.l.b16 %v1402
        %v2043 = vunpack.c.h.b16 %v1402
        %v2044 = vunpack.c.l.b16 %v1403
        %v2045 = vunpack.c.h.b16 %v1403
        %v2046 = vunpack.c.l.b16 %v1404
        %v2047 = vunpack.c.h.b16 %v1404
        %v2048 = vunpack.c.l.b16 %v1405
        %v2049 = vunpack.c.h.b16 %v1405
        %v2050 = vunpack.c.l.b16 %v1406
        %v2051 = vunpack.c.h.b16 %v1406
        %v2052 = vunpack.c.l.b16 %v1407
        %v2053 = vunpack.c.h.b16 %v1407
        %v2054 = vunpack.c.l.b16 %v1408
        %v2055 = vunpack.c.h.b16 %v1408
        %v2056 = vunpack.c.l.b16 %v1409
        %v2057 = vunpack.c.h.b16 %v1409
        %v2058 = vunpack.c.l.b16 %v1410
        %v2059 = vunpack.c.h.b16 %v1410
        %v2060 = vunpack.c.l.b16 %v1411
        %v2061 = vunpack.c.h.b16 %v1411
        %v2062 = vunpack.c.l.b16 %v1412
        %v2063 = vunpack.c.h.b16 %v1412
        %v2064 = vunpack.c.l.b16 %v1413
        %v2065 = vunpack.c.h.b16 %v1413
        %v2066 = vunpack.c.l.b16 %v1414
        %v2067 = vunpack.c.h.b16 %v1414
        %v2068 = vunpack.c.l.b16 %v1415
        %v2069 = vunpack.c.h.b16 %v1415
        %v2070 = vunpack.c.l.b16 %v1416
        %v2071 = vunpack.c.h.b16 %v1416
        %v2072 = vunpack.c.l.b16 %v1417
        %v2073 = vunpack.c.h.b16 %v1417
        %v2074 = vunpack.c.l.b16 %v1418
        %v2075 = vunpack.c.h.b16 %v1418
        %v2076 = vunpack.c.l.b16 %v1419
        %v2077 = vunpack.c.h.b16 %v1419
        %v2078 = vunpack.c.l.b16 %v1420
        %v2079 = vunpack.c.h.b16 %v1420
        %v2080 = vunpack.c.l.b16 %v1421
        %v2081 = vunpack.c.h.b16 %v1421
        %v2082 = vunpack.c.l.b16 %v1422
        %v2083 = vunpack.c.h.b16 %v1422
        %v2084 = vunpack.c.l.b16 %v1423
        %v2085 = vunpack.c.h.b16 %v1423
        %v2086 = vunpack.c.l.b16 %v1424
        %v2087 = vunpack.c.h.b16 %v1424
        %v2088 = vunpack.c.l.b16 %v1425
        %v2089 = vunpack.c.h.b16 %v1425
        %v2090 = vunpack.c.l.b16 %v1426
        %v2091 = vunpack.c.h.b16 %v1426
        %v2092 = vunpack.c.l.b16 %v1427
        %v2093 = vunpack.c.h.b16 %v1427
        %v2094 = vunpack.c.l.b16 %v1428
        %v2095 = vunpack.c.h.b16 %v1428
        %v2096 = vunpack.c.l.b16 %v1429
        %v2097 = vunpack.c.h.b16 %v1429
        %v2098 = vunpack.c.l.b16 %v1430
        %v2099 = vunpack.c.h.b16 %v1430
        %v2100 = vunpack.c.l.b16 %v1431
        %v2101 = vunpack.c.h.b16 %v1431
        %v2102 = vunpack.c.l.b16 %v1432
        %v2103 = vunpack.c.h.b16 %v1432
        %v2104 = vunpack.c.l.b16 %v1433
        %v2105 = vunpack.c.h.b16 %v1433
        %v2106 = vunpack.c.l.b16 %v1434
        %v2107 = vunpack.c.h.b16 %v1434
        %v2108 = vunpack.c.l.b16 %v1435
        %v2109 = vunpack.c.h.b16 %v1435
        %v2110 = vunpack.c.l.b16 %v1436
        %v2111 = vunpack.c.h.b16 %v1436
        %v2112 = vunpack.c.l.b16 %v1437
        %v2113 = vunpack.c.h.b16 %v1437
        %v2114 = vunpack.c.l.b16 %v1438
        %v2115 = vunpack.c.h.b16 %v1438
        %v2116 = vunpack.c.l.b16 %v1439
        %v2117 = vunpack.c.h.b16 %v1439
        %v2118 = vunpack.c.l.b16 %v1440
        %v2119 = vunpack.c.h.b16 %v1440
        %v2120 = vunpack.c.l.b16 %v1441
        %v2121 = vunpack.c.h.b16 %v1441
        %v2122 = vunpack.c.l.b16 %v1442
        %v2123 = vunpack.c.h.b16 %v1442
        %v2124 = vunpack.c.l.b16 %v1443
        %v2125 = vunpack.c.h.b16 %v1443
        %v2126 = vunpack.c.l.b16 %v1444
        %v2127 = vunpack.c.h.b16 %v1444
        %v2128 = vunpack.c.l.b16 %v1445
        %v2129 = vunpack.c.h.b16 %v1445
        %v2130 = vunpack.c.l.b16 %v1446
        %v2131 = vunpack.c.h.b16 %v1446
        %v2132 = vunpack.c.l.b16 %v1447
        %v2133 = vunpack.c.h.b16 %v1447
        %v2134 = vunpack.c.l.b16 %v1448
        %v2135 = vunpack.c.h.b16 %v1448
        %v2136 = vunpack.c.l.b16 %v1449
        %v2137 = vunpack.c.h.b16 %v1449
        %v2138 = vunpack.c.l.b16 %v1450
        %v2139 = vunpack.c.h.b16 %v1450
        %v2140 = vunpack.c.l.b16 %v1451
        %v2141 = vunpack.c.h.b16 %v1451
        %v2142 = vunpack.c.l.b16 %v1452
        %v2143 = vunpack.c.h.b16 %v1452
        %v2144 = vunpack.c.l.b16 %v1453
        %v2145 = vunpack.c.h.b16 %v1453
        %v2146 = vunpack.c.l.b16 %v1454
        %v2147 = vunpack.c.h.b16 %v1454
        %v2148 = vunpack.c.l.b16 %v1455
        %v2149 = vunpack.c.h.b16 %v1455
        %v2150 = vunpack.c.l.b16 %v1456
        %v2151 = vunpack.c.h.b16 %v1456
        %v2152 = vunpack.c.l.b16 %v1457
        %v2153 = vunpack.c.h.b16 %v1457
        %v2154 = vunpack.c.l.b16 %v1458
        %v2155 = vunpack.c.h.b16 %v1458
        %v2156 = vunpack.c.l.b16 %v1459
        %v2157 = vunpack.c.h.b16 %v1459
        %v2158 = vunpack.c.l.b16 %v1460
        %v2159 = vunpack.c.h.b16 %v1460
        %v2160 = vunpack.c.l.b16 %v1461
        %v2161 = vunpack.c.h.b16 %v1461
        %v2162 = vunpack.c.l.b16 %v1462
        %v2163 = vunpack.c.h.b16 %v1462
        %v2164 = vunpack.c.l.b16 %v1463
        %v2165 = vunpack.c.h.b16 %v1463
        %v2166 = vunpack.c.l.b16 %v1464
        %v2167 = vunpack.c.h.b16 %v1464
        %v2168 = vunpack.c.l.b16 %v1465
        %v2169 = vunpack.c.h.b16 %v1465
        %v2170 = vunpack.c.l.b16 %v1466
        %v2171 = vunpack.c.h.b16 %v1466
        %v2172 = vunpack.c.l.b16 %v1467
        %v2173 = vunpack.c.h.b16 %v1467
        %v2174 = vunpack.c.l.b16 %v1468
        %v2175 = vunpack.c.h.b16 %v1468
        %v2176 = vunpack.c.l.b16 %v1469
        %v2177 = vunpack.c.h.b16 %v1469
        %v2178 = vunpack.c.l.b16 %v1470
        %v2179 = vunpack.c.h.b16 %v1470
        %v2180 = vunpack.c.l.b16 %v1471
        %v2181 = vunpack.c.h.b16 %v1471
        %v2182 = vunpack.c.l.b16 %v1472
        %v2183 = vunpack.c.h.b16 %v1472
        %v2184 = vunpack.c.l.b16 %v1473
        %v2185 = vunpack.c.h.b16 %v1473
        %v2186 = vunpack.c.l.b16 %v1474
        %v2187 = vunpack.c.h.b16 %v1474
        %v2188 = vunpack.c.l.b16 %v1475
        %v2189 = vunpack.c.h.b16 %v1475
        %v2190 = vunpack.c.l.b16 %v1476
        %v2191 = vunpack.c.h.b16 %v1476
        %v2192 = vunpack.c.l.b16 %v1477
        %v2193 = vunpack.c.h.b16 %v1477
        %v2194 = vunpack.c.l.b16 %v1478
        %v2195 = vunpack.c.h.b16 %v1478
        %v2196 = vunpack.c.l.b16 %v1479
        %v2197 = vunpack.c.h.b16 %v1479
        %v2198 = vunpack.c.l.b16 %v1480
        %v2199 = vunpack.c.h.b16 %v1480
        %v2200 = vunpack.c.l.b16 %v1481
        %v2201 = vunpack.c.h.b16 %v1481
        %v2202 = vunpack.c.l.b16 %v1482
        %v2203 = vunpack.c.h.b16 %v1482
        %v2204 = vunpack.c.l.b16 %v1483
        %v2205 = vunpack.c.h.b16 %v1483
        %v2206 = vunpack.c.l.b16 %v1484
        %v2207 = vunpack.c.h.b16 %v1484
        %v2208 = vunpack.c.l.b16 %v1485
        %v2209 = vunpack.c.h.b16 %v1485
        %v2210 = vunpack.c.l.b16 %v1486
        %v2211 = vunpack.c.h.b16 %v1486
        %v2212 = vunpack.c.l.b16 %v1487
        %v2213 = vunpack.c.h.b16 %v1487
        %v2214 = vunpack.c.l.b16 %v1488
        %v2215 = vunpack.c.h.b16 %v1488
        %v2216 = vunpack.c.l.b16 %v1489
        %v2217 = vunpack.c.h.b16 %v1489
        %v2218 = vunpack.c.l.b16 %v1490
        %v2219 = vunpack.c.h.b16 %v1490
        %v2220 = vunpack.c.l.b16 %v1491
        %v2221 = vunpack.c.h.b16 %v1491
        %v2222 = vunpack.c.l.b16 %v1492
        %v2223 = vunpack.c.h.b16 %v1492
        %v2224 = vunpack.c.l.b16 %v1493
        %v2225 = vunpack.c.h.b16 %v1493
        %v2226 = vunpack.c.l.b16 %v1494
        %v2227 = vunpack.c.h.b16 %v1494
        %v2228 = vunpack.c.l.b16 %v1495
        %v2229 = vunpack.c.h.b16 %v1495
        %v2230 = vunpack.c.l.b16 %v1496
        %v2231 = vunpack.c.h.b16 %v1496
        %v2232 = vunpack.c.l.b16 %v1497
        %v2233 = vunpack.c.h.b16 %v1497
        %v2234 = vunpack.c.l.b16 %v1498
        %v2235 = vunpack.c.h.b16 %v1498
        %v2236 = vunpack.c.l.b16 %v1499
        %v2237 = vunpack.c.h.b16 %v1499
        %v2238 = vunpack.c.l.b16 %v1500
        %v2239 = vunpack.c.h.b16 %v1500
        %v2240 = vunpack.c.l.b16 %v1501
        %v2241 = vunpack.c.h.b16 %v1501
        %v2242 = vunpack.c.l.b16 %v1502
        %v2243 = vunpack.c.h.b16 %v1502
        %v2244 = vunpack.c.l.b16 %v1503
        %v2245 = vunpack.c.h.b16 %v1503
        %v2246 = vunpack.c.l.b16 %v1504
        %v2247 = vunpack.c.h.b16 %v1504
        %v2248 = vunpack.c.l.b16 %v1505
        %v2249 = vunpack.c.h.b16 %v1505
        %v2250 = vunpack.c.l.b16 %v1506
        %v2251 = vunpack.c.h.b16 %v1506
        %v2252 = vunpack.c.l.b16 %v1507
        %v2253 = vunpack.c.h.b16 %v1507
        %v2254 = vunpack.c.l.b16 %v1508
        %v2255 = vunpack.c.h.b16 %v1508
        %v2256 = vunpack.c.l.b16 %v1509
        %v2257 = vunpack.c.h.b16 %v1509
        %v2258 = vunpack.c.l.b16 %v1510
        %v2259 = vunpack.c.h.b16 %v1510
        %v2260 = vunpack.c.l.b16 %v1511
        %v2261 = vunpack.c.h.b16 %v1511
        %v2262 = vunpack.c.l.b16 %v1512
        %v2263 = vunpack.c.h.b16 %v1512
        %v2264 = vunpack.c.l.b16 %v1513
        %v2265 = vunpack.c.h.b16 %v1513
        %v2266 = vunpack.c.l.b16 %v1514
        %v2267 = vunpack.c.h.b16 %v1514
        %v2268 = vunpack.c.l.b16 %v1515
        %v2269 = vunpack.c.h.b16 %v1515
        %v2270 = vunpack.c.l.b16 %v1516
        %v2271 = vunpack.c.h.b16 %v1516
        %v2272 = vunpack.c.l.b16 %v1517
        %v2273 = vunpack.c.h.b16 %v1517
        %v2274 = vunpack.c.l.b16 %v1518
        %v2275 = vunpack.c.h.b16 %v1518
        %v2276 = vunpack.c.l.b16 %v1519
        %v2277 = vunpack.c.h.b16 %v1519
        %v2278 = vunpack.c.l.b16 %v1520
        %v2279 = vunpack.c.h.b16 %v1520
        %v2280 = vunpack.c.l.b16 %v1521
        %v2281 = vunpack.c.h.b16 %v1521
        %v2282 = vunpack.c.l.b16 %v1522
        %v2283 = vunpack.c.h.b16 %v1522
        %v2284 = vunpack.c.l.b16 %v1523
        %v2285 = vunpack.c.h.b16 %v1523
        %v2286 = vunpack.c.l.b16 %v1524
        %v2287 = vunpack.c.h.b16 %v1524
        %v2288 = vunpack.c.l.b16 %v1525
        %v2289 = vunpack.c.h.b16 %v1525
        %v2290 = vunpack.c.l.b16 %v1526
        %v2291 = vunpack.c.h.b16 %v1526
        %v2292 = vunpack.c.l.b16 %v1527
        %v2293 = vunpack.c.h.b16 %v1527
        %v2294 = vunpack.c.l.b16 %v1528
        %v2295 = vunpack.c.h.b16 %v1528
        %v2296 = vunpack.c.l.b16 %v1529
        %v2297 = vunpack.c.h.b16 %v1529
        %v2298 = vunpack.c.l.b16 %v1530
        %v2299 = vunpack.c.h.b16 %v1530
        %v2300 = vunpack.c.l.b16 %v1531
        %v2301 = vunpack.c.h.b16 %v1531
        %v2302 = vunpack.c.l.b16 %v1532
        %v2303 = vunpack.c.h.b16 %v1532
        %v2304 = vunpack.c.l.b16 %v1533
        %v2305 = vunpack.c.h.b16 %v1533
        %v2306 = vunpack.c.l.b16 %v1534
        %v2307 = vunpack.c.h.b16 %v1534
        %v2308 = vunpack.c.l.b16 %v1535
        %v2309 = vunpack.c.h.b16 %v1535
        %v2310 = vunpack.c.l.b16 %v1536
        %v2311 = vunpack.c.h.b16 %v1536
        %v2312 = vunpack.c.l.b16 %v1537
        %v2313 = vunpack.c.h.b16 %v1537
        %v2314 = vunpack.c.l.b16 %v1538
        %v2315 = vunpack.c.h.b16 %v1538
        %v2316 = vunpack.c.l.b16 %v1539
        %v2317 = vunpack.c.h.b16 %v1539
        %v2318 = vunpack.c.l.b16 %v1540
        %v2319 = vunpack.c.h.b16 %v1540
        %v2320 = vunpack.c.l.b16 %v1541
        %v2321 = vunpack.c.h.b16 %v1541
        %v2322 = vunpack.c.l.b16 %v1542
        %v2323 = vunpack.c.h.b16 %v1542
        %v2324 = vunpack.c.l.b16 %v1543
        %v2325 = vunpack.c.h.b16 %v1543
        %v2326 = vunpack.c.l.b16 %v1544
        %v2327 = vunpack.c.h.b16 %v1544
        %v2328 = vunpack.c.l.b16 %v1545
        %v2329 = vunpack.c.h.b16 %v1545
        %v2330 = vunpack.c.l.b16 %v1546
        %v2331 = vunpack.c.h.b16 %v1546
        %v2332 = vunpack.c.l.b16 %v1547
        %v2333 = vunpack.c.h.b16 %v1547
        %v2334 = vunpack.c.l.b16 %v1548
        %v2335 = vunpack.c.h.b16 %v1548
        %v2336 = vunpack.c.l.b16 %v1549
        %v2337 = vunpack.c.h.b16 %v1549
        %v2338 = vunpack.c.l.b16 %v1550
        %v2339 = vunpack.c.h.b16 %v1550
        %v2340 = vunpack.c.l.b16 %v1551
        %v2341 = vunpack.c.h.b16 %v1551
        %v2342 = vunpack.c.l.b16 %v1552
        %v2343 = vunpack.c.h.b16 %v1552
        %v2344 = vunpack.c.l.b16 %v1553
        %v2345 = vunpack.c.h.b16 %v1553
        %v2346 = vunpack.c.l.b16 %v1554
        %v2347 = vunpack.c.h.b16 %v1554
        %v2348 = vunpack.c.l.b16 %v1555
        %v2349 = vunpack.c.h.b16 %v1555
        %v2350 = vunpack.c.l.b16 %v1556
        %v2351 = vunpack.c.h.b16 %v1556
        %v2352 = vunpack.c.l.b16 %v1557
        %v2353 = vunpack.c.h.b16 %v1557
        %v2354 = vunpack.c.l.b16 %v1558
        %v2355 = vunpack.c.h.b16 %v1558
        %v2356 = vunpack.c.l.b16 %v1559
        %v2357 = vunpack.c.h.b16 %v1559
        %v2358 = vunpack.c.l.b16 %v1560
        %v2359 = vunpack.c.h.b16 %v1560
        %v2360 = vunpack.c.l.b16 %v1561
        %v2361 = vunpack.c.h.b16 %v1561
        %v2362 = vunpack.c.l.b16 %v1562
        %v2363 = vunpack.c.h.b16 %v1562
        %v2364 = vunpack.c.l.b16 %v1563
        %v2365 = vunpack.c.h.b16 %v1563
        %v2366 = vunpack.c.l.b16 %v1564
        %v2367 = vunpack.c.h.b16 %v1564
        %v2368 = vunpack.c.l.b16 %v1565
        %v2369 = vunpack.c.h.b16 %v1565
        %v2370 = vunpack.c.l.b16 %v1566
        %v2371 = vunpack.c.h.b16 %v1566
        %v2372 = vunpack.c.l.b16 %v1567
        %v2373 = vunpack.c.h.b16 %v1567
        %v2374 = vunpack.c.l.b16 %v1568
        %v2375 = vunpack.c.h.b16 %v1568
        %v2376 = vunpack.c.l.b16 %v1569
        %v2377 = vunpack.c.h.b16 %v1569
        %v2378 = vunpack.c.l.b16 %v1570
        %v2379 = vunpack.c.h.b16 %v1570
        %v2380 = vunpack.c.l.b16 %v1571
        %v2381 = vunpack.c.h.b16 %v1571
        %v2382 = vunpack.c.l.b16 %v1572
        %v2383 = vunpack.c.h.b16 %v1572
        %v2384 = vunpack.c.l.b16 %v1573
        %v2385 = vunpack.c.h.b16 %v1573
        %v2386 = vunpack.c.l.b16 %v1574
        %v2387 = vunpack.c.h.b16 %v1574
        %v2388 = vunpack.c.l.b16 %v1575
        %v2389 = vunpack.c.h.b16 %v1575
        %v2390 = vunpack.c.l.b16 %v1576
        %v2391 = vunpack.c.h.b16 %v1576
        %v2392 = vunpack.c.l.b16 %v1577
        %v2393 = vunpack.c.h.b16 %v1577
        %v2394 = vunpack.c.l.b16 %v1578
        %v2395 = vunpack.c.h.b16 %v1578
        %v2396 = vunpack.c.l.b16 %v1579
        %v2397 = vunpack.c.h.b16 %v1579
        %v2398 = vunpack.c.l.b16 %v1580
        %v2399 = vunpack.c.h.b16 %v1580
        %v2400 = vunpack.c.l.b16 %v1581
        %v2401 = vunpack.c.h.b16 %v1581
        %v2402 = vunpack.c.l.b16 %v1582
        %v2403 = vunpack.c.h.b16 %v1582
        %v2404 = vunpack.c.l.b16 %v1583
        %v2405 = vunpack.c.h.b16 %v1583
        %v2406 = vunpack.c.l.b16 %v1584
        %v2407 = vunpack.c.h.b16 %v1584
        %v2408 = vunpack.c.l.b16 %v1585
        %v2409 = vunpack.c.h.b16 %v1585
        %v2410 = vunpack.c.l.b16 %v1586
        %v2411 = vunpack.c.h.b16 %v1586
        %v2412 = vunpack.c.l.b16 %v1587
        %v2413 = vunpack.c.h.b16 %v1587
        %v2414 = vunpack.c.l.b16 %v1588
        %v2415 = vunpack.c.h.b16 %v1588
        %v2416 = vunpack.c.l.b16 %v1589
        %v2417 = vunpack.c.h.b16 %v1589
        %v2418 = vunpack.c.l.b16 %v1590
        %v2419 = vunpack.c.h.b16 %v1590
        %v2420 = vunpack.c.l.b16 %v1591
        %v2421 = vunpack.c.h.b16 %v1591
        %v2422 = vunpack.c.l.b16 %v1592
        %v2423 = vunpack.c.h.b16 %v1592
        %v2424 = vunpack.c.l.b16 %v1593
        %v2425 = vunpack.c.h.b16 %v1593
        %v2426 = vunpack.c.l.b16 %v1594
        %v2427 = vunpack.c.h.b16 %v1594
        %v2428 = vunpack.c.l.b16 %v1595
        %v2429 = vunpack.c.h.b16 %v1595
        %v2430 = vunpack.c.l.b16 %v1596
        %v2431 = vunpack.c.h.b16 %v1596
        %v2432 = vunpack.c.l.b16 %v1597
        %v2433 = vunpack.c.h.b16 %v1597
        %v2434 = vunpack.c.l.b16 %v1598
        %v2435 = vunpack.c.h.b16 %v1598
        %v2436 = vunpack.c.l.b16 %v1599
        %v2437 = vunpack.c.h.b16 %v1599
        %v2438 = vunpack.c.l.b16 %v1600
        %v2439 = vunpack.c.h.b16 %v1600
        %v2440 = vunpack.c.l.b16 %v1601
        %v2441 = vunpack.c.h.b16 %v1601
        %v2442 = vunpack.c.l.b16 %v1602
        %v2443 = vunpack.c.h.b16 %v1602
        %v2444 = vunpack.c.l.b16 %v1603
        %v2445 = vunpack.c.h.b16 %v1603
        %v2446 = vunpack.c.l.b16 %v1604
        %v2447 = vunpack.c.h.b16 %v1604
        %v2448 = vunpack.c.l.b16 %v1605
        %v2449 = vunpack.c.h.b16 %v1605
        %v2450 = vunpack.c.l.b16 %v1606
        %v2451 = vunpack.c.h.b16 %v1606
        %v2452 = vunpack.c.l.b16 %v1607
        %v2453 = vunpack.c.h.b16 %v1607
        %v2454 = vunpack.c.l.b16 %v1608
        %v2455 = vunpack.c.h.b16 %v1608
        %v2456 = vunpack.c.l.b16 %v1609
        %v2457 = vunpack.c.h.b16 %v1609
        %v2458 = vunpack.c.l.b16 %v1610
        %v2459 = vunpack.c.h.b16 %v1610
        %v2460 = vunpack.c.l.b16 %v1611
        %v2461 = vunpack.c.h.b16 %v1611
        %v2462 = vunpack.c.l.b16 %v1612
        %v2463 = vunpack.c.h.b16 %v1612
        %v2464 = vunpack.c.l.b16 %v1613
        %v2465 = vunpack.c.h.b16 %v1613
        %v2466 = vunpack.c.l.b16 %v1614
        %v2467 = vunpack.c.h.b16 %v1614
        %v2468 = vunpack.c.l.b16 %v1615
        %v2469 = vunpack.c.h.b16 %v1615
        %v2470 = vunpack.c.l.b16 %v1616
        %v2471 = vunpack.c.h.b16 %v1616
        %v2472 = vunpack.c.l.b16 %v1617
        %v2473 = vunpack.c.h.b16 %v1617
        %v2474 = vunpack.c.l.b16 %v1618
        %v2475 = vunpack.c.h.b16 %v1618
        %v2476 = vunpack.c.l.b16 %v1619
        %v2477 = vunpack.c.h.b16 %v1619
        %v2478 = vunpack.c.l.b16 %v1620
        %v2479 = vunpack.c.h.b16 %v1620
        %v2480 = vunpack.c.l.b16 %v1621
        %v2481 = vunpack.c.h.b16 %v1621
        %v2482 = vunpack.c.l.b16 %v1622
        %v2483 = vunpack.c.h.b16 %v1622
        %v2484 = vunpack.c.l.b16 %v1623
        %v2485 = vunpack.c.h.b16 %v1623
        %v2486 = vunpack.c.l.b16 %v1624
        %v2487 = vunpack.c.h.b16 %v1624
        %v2488 = vunpack.c.l.b16 %v1625
        %v2489 = vunpack.c.h.b16 %v1625
        %v2490 = vunpack.c.l.b16 %v1626
        %v2491 = vunpack.c.h.b16 %v1626
        %v2492 = vunpack.c.l.b16 %v1627
        %v2493 = vunpack.c.h.b16 %v1627
        %v2494 = vunpack.c.l.b16 %v1628
        %v2495 = vunpack.c.h.b16 %v1628
        %v2496 = vunpack.c.l.b16 %v1629
        %v2497 = vunpack.c.h.b16 %v1629
        %v2498 = vunpack.c.l.b16 %v1630
        %v2499 = vunpack.c.h.b16 %v1630
        %v2500 = vunpack.c.l.b16 %v1631
        %v2501 = vunpack.c.h.b16 %v1631
        %v2502 = vunpack.c.l.b16 %v1632
        %v2503 = vunpack.c.h.b16 %v1632
        %v2504 = vunpack.c.l.b16 %v1633
        %v2505 = vunpack.c.h.b16 %v1633
        %v2506 = vunpack.c.l.b16 %v1634
        %v2507 = vunpack.c.h.b16 %v1634
        %v2508 = vunpack.c.l.b16 %v1635
        %v2509 = vunpack.c.h.b16 %v1635
        %v2510 = vunpack.c.l.b16 %v1636
        %v2511 = vunpack.c.h.b16 %v1636
        %v2512 = vunpack.c.l.b16 %v1637
        %v2513 = vunpack.c.h.b16 %v1637
        %v2514 = vunpack.c.l.b16 %v1638
        %v2515 = vunpack.c.h.b16 %v1638
        %v2516 = vunpack.c.l.b16 %v1639
        %v2517 = vunpack.c.h.b16 %v1639
        %v2518 = vunpack.c.l.b16 %v1640
        %v2519 = vunpack.c.h.b16 %v1640
        %v2520 = vunpack.c.l.b16 %v1641
        %v2521 = vunpack.c.h.b16 %v1641
        %v2522 = vunpack.c.l.b16 %v1642
        %v2523 = vunpack.c.h.b16 %v1642
        %v2524 = vunpack.c.l.b16 %v1643
        %v2525 = vunpack.c.h.b16 %v1643
        %v2526 = vunpack.c.l.b16 %v1644
        %v2527 = vunpack.c.h.b16 %v1644
        %v2528 = vunpack.c.l.b16 %v1645
        %v2529 = vunpack.c.h.b16 %v1645
        %v2530 = vunpack.c.l.b16 %v1646
        %v2531 = vunpack.c.h.b16 %v1646
        %v2532 = vunpack.c.l.b16 %v1647
        %v2533 = vunpack.c.h.b16 %v1647
        %v2534 = vunpack.c.l.b16 %v1648
        %v2535 = vunpack.c.h.b16 %v1648
        %v2536 = vunpack.c.l.b16 %v1649
        %v2537 = vunpack.c.h.b16 %v1649
        %v2538 = vunpack.c.l.b16 %v1650
        %v2539 = vunpack.c.h.b16 %v1650
        %v2540 = vunpack.c.l.b16 %v1651
        %v2541 = vunpack.c.h.b16 %v1651
        %v2542 = vunpack.c.l.b16 %v1652
        %v2543 = vunpack.c.h.b16 %v1652
        %v2544 = vunpack.c.l.b16 %v1653
        %v2545 = vunpack.c.h.b16 %v1653
        %v2546 = vunpack.c.l.b16 %v1654
        %v2547 = vunpack.c.h.b16 %v1654
        %v2548 = vunpack.c.l.b16 %v1655
        %v2549 = vunpack.c.h.b16 %v1655
        %v2550 = vunpack.c.l.b16 %v1656
        %v2551 = vunpack.c.h.b16 %v1656
        %v2552 = vunpack.c.l.b16 %v1657
        %v2553 = vunpack.c.h.b16 %v1657
        %v2554 = vpack.c.b16 %v2044, %v2042
        %v2555 = vpack.c.b16 %v2045, %v2043
        %v2556 = vpack.c.b16 %v2048, %v2046
        %v2557 = vpack.c.b16 %v2049, %v2047
        %v2558 = vpack.c.b16 %v2052, %v2050
        %v2559 = vpack.c.b16 %v2053, %v2051
        %v2560 = vpack.c.b16 %v2056, %v2054
        %v2561 = vpack.c.b16 %v2057, %v2055
        %v2562 = vpack.c.b16 %v2060, %v2058
        %v2563 = vpack.c.b16 %v2061, %v2059
        %v2564 = vpack.c.b16 %v2064, %v2062
        %v2565 = vpack.c.b16 %v2065, %v2063
        %v2566 = vpack.c.b16 %v2068, %v2066
        %v2567 = vpack.c.b16 %v2069, %v2067
        %v2568 = vpack.c.b16 %v2072, %v2070
        %v2569 = vpack.c.b16 %v2073, %v2071
        %v2570 = vpack.c.b16 %v2076, %v2074
        %v2571 = vpack.c.b16 %v2077, %v2075
        %v2572 = vpack.c.b16 %v2080, %v2078
        %v2573 = vpack.c.b16 %v2081, %v2079
        %v2574 = vpack.c.b16 %v2084, %v2082
        %v2575 = vpack.c.b16 %v2085, %v2083
        %v2576 = vpack.c.b16 %v2088, %v2086
        %v2577 = vpack.c.b16 %v2089, %v2087
        %v2578 = vpack.c.b16 %v2092, %v2090
        %v2579 = vpack.c.b16 %v2093, %v2091
        %v2580 = vpack.c.b16 %v2096, %v2094
        %v2581 = vpack.c.b16 %v2097, %v2095
        %v2582 = vpack.c.b16 %v2100, %v2098
        %v2583 = vpack.c.b16 %v2101, %v2099
        %v2584 = vpack.c.b16 %v2104, %v2102
        %v2585 = vpack.c.b16 %v2105, %v2103
        %v2586 = vpack.c.b16 %v2108, %v2106
        %v2587 = vpack.c.b16 %v2109, %v2107
        %v2588 = vpack.c.b16 %v2112, %v2110
        %v2589 = vpack.c.b16 %v2113, %v2111
        %v2590 = vpack.c.b16 %v2116, %v2114
        %v2591 = vpack.c.b16 %v2117, %v2115
        %v2592 = vpack.c.b16 %v2120, %v2118
        %v2593 = vpack.c.b16 %v2121, %v2119
        %v2594 = vpack.c.b16 %v2124, %v2122
        %v2595 = vpack.c.b16 %v2125, %v2123
        %v2596 = vpack.c.b16 %v2128, %v2126
        %v2597 = vpack.c.b16 %v2129, %v2127
        %v2598 = vpack.c.b16 %v2132, %v2130
        %v2599 = vpack.c.b16 %v2133, %v2131
        %v2600 = vpack.c.b16 %v2136, %v2134
        %v2601 = vpack.c.b16 %v2137, %v2135
        %v2602 = vpack.c.b16 %v2140, %v2138
        %v2603 = vpack.c.b16 %v2141, %v2139
        %v2604 = vpack.c.b16 %v2144, %v2142
        %v2605 = vpack.c.b16 %v2145, %v2143
        %v2606 = vpack.c.b16 %v2148, %v2146
        %v2607 = vpack.c.b16 %v2149, %v2147
        %v2608 = vpack.c.b16 %v2152, %v2150
        %v2609 = vpack.c.b16 %v2153, %v2151
        %v2610 = vpack.c.b16 %v2156, %v2154
        %v2611 = vpack.c.b16 %v2157, %v2155
        %v2612 = vpack.c.b16 %v2160, %v2158
        %v2613 = vpack.c.b16 %v2161, %v2159
        %v2614 = vpack.c.b16 %v2164, %v2162
        %v2615 = vpack.c.b16 %v2165, %v2163
        %v2616 = vpack.c.b16 %v2168, %v2166
        %v2617 = vpack.c.b16 %v2169, %v2167
        %v2618 = vpack.c.b16 %v2172, %v2170
        %v2619 = vpack.c.b16 %v2173, %v2171
        %v2620 = vpack.c.b16 %v2176, %v2174
        %v2621 = vpack.c.b16 %v2177, %v2175
        %v2622 = vpack.c.b16 %v2180, %v2178
        %v2623 = vpack.c.b16 %v2181, %v2179
        %v2624 = vpack.c.b16 %v2184, %v2182
        %v2625 = vpack.c.b16 %v2185, %v2183
        %v2626 = vpack.c.b16 %v2188, %v2186
        %v2627 = vpack.c.b16 %v2189, %v2187
        %v2628 = vpack.c.b16 %v2192, %v2190
        %v2629 = vpack.c.b16 %v2193, %v2191
        %v2630 = vpack.c.b16 %v2196, %v2194
        %v2631 = vpack.c.b16 %v2197, %v2195
        %v2632 = vpack.c.b16 %v2200, %v2198
        %v2633 = vpack.c.b16 %v2201, %v2199
        %v2634 = vpack.c.b16 %v2204, %v2202
        %v2635 = vpack.c.b16 %v2205, %v2203
        %v2636 = vpack.c.b16 %v2208, %v2206
        %v2637 = vpack.c.b16 %v2209, %v2207
        %v2638 = vpack.c.b16 %v2212, %v2210
        %v2639 = vpack.c.b16 %v2213, %v2211
        %v2640 = vpack.c.b16 %v2216, %v2214
        %v2641 = vpack.c.b16 %v2217, %v2215
        %v2642 = vpack.c.b16 %v2220, %v2218
        %v2643 = vpack.c.b16 %v2221, %v2219
        %v2644 = vpack.c.b16 %v2224, %v2222
        %v2645 = vpack.c.b16 %v2225, %v2223
        %v2646 = vpack.c.b16 %v2228, %v2226
        %v2647 = vpack.c.b16 %v2229, %v2227
        %v2648 = vpack.c.b16 %v2232, %v2230
        %v2649 = vpack.c.b16 %v2233, %v2231
        %v2650 = vpack.c.b16 %v2236, %v2234
        %v2651 = vpack.c.b16 %v2237, %v2235
        %v2652 = vpack.c.b16 %v2240, %v2238
        %v2653 = vpack.c.b16 %v2241, %v2239
        %v2654 = vpack.c.b16 %v2244, %v2242
        %v2655 = vpack.c.b16 %v2245, %v2243
        %v2656 = vpack.c.b16 %v2248, %v2246
        %v2657 = vpack.c.b16 %v2249, %v2247
        %v2658 = vpack.c.b16 %v2252, %v2250
        %v2659 = vpack.c.b16 %v2253, %v2251
        %v2660 = vpack.c.b16 %v2256, %v2254
        %v2661 = vpack.c.b16 %v2257, %v2255
        %v2662 = vpack.c.b16 %v2260, %v2258
        %v2663 = vpack.c.b16 %v2261, %v2259
        %v2664 = vpack.c.b16 %v2264, %v2262
        %v2665 = vpack.c.b16 %v2265, %v2263
        %v2666 = vpack.c.b16 %v2268, %v2266
        %v2667 = vpack.c.b16 %v2269, %v2267
        %v2668 = vpack.c.b16 %v2272, %v2270
        %v2669 = vpack.c.b16 %v2273, %v2271
        %v2670 = vpack.c.b16 %v2276, %v2274
        %v2671 = vpack.c.b16 %v2277, %v2275
        %v2672 = vpack.c.b16 %v2280, %v2278
        %v2673 = vpack.c.b16 %v2281, %v2279
        %v2674 = vpack.c.b16 %v2284, %v2282
        %v2675 = vpack.c.b16 %v2285, %v2283
        %v2676 = vpack.c.b16 %v2288, %v2286
        %v2677 = vpack.c.b16 %v2289, %v2287
        %v2678 = vpack.c.b16 %v2292, %v2290
        %v2679 = vpack.c.b16 %v2293, %v2291
        %v2680 = vpack.c.b16 %v2296, %v2294
        %v2681 = vpack.c.b16 %v2297, %v2295
        %v2682 = vpack.c.b16 %v2300, %v2298
        %v2683 = vpack.c.b16 %v2301, %v2299
        %v2684 = vpack.c.b16 %v2304, %v2302
        %v2685 = vpack.c.b16 %v2305, %v2303
        %v2686 = vpack.c.b16 %v2308, %v2306
        %v2687 = vpack.c.b16 %v2309, %v2307
        %v2688 = vpack.c.b16 %v2312, %v2310
        %v2689 = vpack.c.b16 %v2313, %v2311
        %v2690 = vpack.c.b16 %v2316, %v2314
        %v2691 = vpack.c.b16 %v2317, %v2315
        %v2692 = vpack.c.b16 %v2320, %v2318
        %v2693 = vpack.c.b16 %v2321, %v2319
        %v2694 = vpack.c.b16 %v2324, %v2322
        %v2695 = vpack.c.b16 %v2325, %v2323
        %v2696 = vpack.c.b16 %v2328, %v2326
        %v2697 = vpack.c.b16 %v2329, %v2327
        %v2698 = vpack.c.b16 %v2332, %v2330
        %v2699 = vpack.c.b16 %v2333, %v2331
        %v2700 = vpack.c.b16 %v2336, %v2334
        %v2701 = vpack.c.b16 %v2337, %v2335
        %v2702 = vpack.c.b16 %v2340, %v2338
        %v2703 = vpack.c.b16 %v2341, %v2339
        %v2704 = vpack.c.b16 %v2344, %v2342
        %v2705 = vpack.c.b16 %v2345, %v2343
        %v2706 = vpack.c.b16 %v2348, %v2346
        %v2707 = vpack.c.b16 %v2349, %v2347
        %v2708 = vpack.c.b16 %v2352, %v2350
        %v2709 = vpack.c.b16 %v2353, %v2351
        %v2710 = vpack.c.b16 %v2356, %v2354
        %v2711 = vpack.c.b16 %v2357, %v2355
        %v2712 = vpack.c.b16 %v2360, %v2358
        %v2713 = vpack.c.b16 %v2361, %v2359
        %v2714 = vpack.c.b16 %v2364, %v2362
        %v2715 = vpack.c.b16 %v2365, %v2363
        %v2716 = vpack.c.b16 %v2368, %v2366
        %v2717 = vpack.c.b16 %v2369, %v2367
        %v2718 = vpack.c.b16 %v2372, %v2370
        %v2719 = vpack.c.b16 %v2373, %v2371
        %v2720 = vpack.c.b16 %v2376, %v2374
        %v2721 = vpack.c.b16 %v2377, %v2375
        %v2722 = vpack.c.b16 %v2380, %v2378
        %v2723 = vpack.c.b16 %v2381, %v2379
        %v2724 = vpack.c.b16 %v2384, %v2382
        %v2725 = vpack.c.b16 %v2385, %v2383
        %v2726 = vpack.c.b16 %v2388, %v2386
        %v2727 = vpack.c.b16 %v2389, %v2387
        %v2728 = vpack.c.b16 %v2392, %v2390
        %v2729 = vpack.c.b16 %v2393, %v2391
        %v2730 = vpack.c.b16 %v2396, %v2394
        %v2731 = vpack.c.b16 %v2397, %v2395
        %v2732 = vpack.c.b16 %v2400, %v2398
        %v2733 = vpack.c.b16 %v2401, %v2399
        %v2734 = vpack.c.b16 %v2404, %v2402
        %v2735 = vpack.c.b16 %v2405, %v2403
        %v2736 = vpack.c.b16 %v2408, %v2406
        %v2737 = vpack.c.b16 %v2409, %v2407
        %v2738 = vpack.c.b16 %v2412, %v2410
        %v2739 = vpack.c.b16 %v2413, %v2411
        %v2740 = vpack.c.b16 %v2416, %v2414
        %v2741 = vpack.c.b16 %v2417, %v2415
        %v2742 = vpack.c.b16 %v2420, %v2418
        %v2743 = vpack.c.b16 %v2421, %v2419
        %v2744 = vpack.c.b16 %v2424, %v2422
        %v2745 = vpack.c.b16 %v2425, %v2423
        %v2746 = vpack.c.b16 %v2428, %v2426
        %v2747 = vpack.c.b16 %v2429, %v2427
        %v2748 = vpack.c.b16 %v2432, %v2430
        %v2749 = vpack.c.b16 %v2433, %v2431
        %v2750 = vpack.c.b16 %v2436, %v2434
        %v2751 = vpack.c.b16 %v2437, %v2435
        %v2752 = vpack.c.b16 %v2440, %v2438
        %v2753 = vpack.c.b16 %v2441, %v2439
        %v2754 = vpack.c.b16 %v2444, %v2442
        %v2755 = vpack.c.b16 %v2445, %v2443
        %v2756 = vpack.c.b16 %v2448, %v2446
        %v2757 = vpack.c.b16 %v2449, %v2447
        %v2758 = vpack.c.b16 %v2452, %v2450
        %v2759 = vpack.c.b16 %v2453, %v2451
        %v2760 = vpack.c.b16 %v2456, %v2454
        %v2761 = vpack.c.b16 %v2457, %v2455
        %v2762 = vpack.c.b16 %v2460, %v2458
        %v2763 = vpack.c.b16 %v2461, %v2459
        %v2764 = vpack.c.b16 %v2464, %v2462
        %v2765 = vpack.c.b16 %v2465, %v2463
        %v2766 = vpack.c.b16 %v2468, %v2466
        %v2767 = vpack.c.b16 %v2469, %v2467
        %v2768 = vpack.c.b16 %v2472, %v2470
        %v2769 = vpack.c.b16 %v2473, %v2471
        %v2770 = vpack.c.b16 %v2476, %v2474
        %v2771 = vpack.c.b16 %v2477, %v2475
        %v2772 = vpack.c.b16 %v2480, %v2478
        %v2773 = vpack.c.b16 %v2481, %v2479
        %v2774 = vpack.c.b16 %v2484, %v2482
        %v2775 = vpack.c.b16 %v2485, %v2483
        %v2776 = vpack.c.b16 %v2488, %v2486
        %v2777 = vpack.c.b16 %v2489, %v2487
        %v2778 = vpack.c.b16 %v2492, %v2490
        %v2779 = vpack.c.b16 %v2493, %v2491
        %v2780 = vpack.c.b16 %v2496, %v2494
        %v2781 = vpack.c.b16 %v2497, %v2495
        %v2782 = vpack.c.b16 %v2500, %v2498
        %v2783 = vpack.c.b16 %v2501, %v2499
        %v2784 = vpack.c.b16 %v2504, %v2502
        %v2785 = vpack.c.b16 %v2505, %v2503
        %v2786 = vpack.c.b16 %v2508, %v2506
        %v2787 = vpack.c.b16 %v2509, %v2507
        %v2788 = vpack.c.b16 %v2512, %v2510
        %v2789 = vpack.c.b16 %v2513, %v2511
        %v2790 = vpack.c.b16 %v2516, %v2514
        %v2791 = vpack.c.b16 %v2517, %v2515
        %v2792 = vpack.c.b16 %v2520, %v2518
        %v2793 = vpack.c.b16 %v2521, %v2519
        %v2794 = vpack.c.b16 %v2524, %v2522
        %v2795 = vpack.c.b16 %v2525, %v2523
        %v2796 = vpack.c.b16 %v2528, %v2526
        %v2797 = vpack.c.b16 %v2529, %v2527
        %v2798 = vpack.c.b16 %v2532, %v2530
        %v2799 = vpack.c.b16 %v2533, %v2531
        %v2800 = vpack.c.b16 %v2536, %v2534
        %v2801 = vpack.c.b16 %v2537, %v2535
        %v2802 = vpack.c.b16 %v2540, %v2538
        %v2803 = vpack.c.b16 %v2541, %v2539
        %v2804 = vpack.c.b16 %v2544, %v2542
        %v2805 = vpack.c.b16 %v2545, %v2543
        %v2806 = vpack.c.b16 %v2548, %v2546
        %v2807 = vpack.c.b16 %v2549, %v2547
        %v2808 = vpack.c.b16 %v2552, %v2550
        %v2809 = vpack.c.b16 %v2553, %v2551
        %3066 = vmatprep.subr.bf16.mxu0 %v2569
        %3067 = vmatpush1.bf16.msra.mxu0 %v2568
        %3068 = vmatprep.subr.bf16.mxu0 %v2567
        %3069 = vmatpush1.bf16.msra.mxu0 %v2566
        %3070 = vmatprep.subr.bf16.mxu0 %v2565
        %3071 = vmatpush1.bf16.msra.mxu0 %v2564
        %3072 = vmatprep.subr.bf16.mxu0 %v2563
        %3073 = vmatpush1.bf16.msra.mxu0 %v2562
        %3074 = vmatprep.subr.bf16.mxu0 %v2561
        %3075 = vmatpush1.bf16.msra.mxu0 %v2560
        %3076 = vmatprep.subr.bf16.mxu0 %v2559
        %3077 = vmatpush1.bf16.msra.mxu0 %v2558
        %3078 = vmatprep.subr.bf16.mxu0 %v2557
        %3079 = vmatpush1.bf16.msra.mxu0 %v2556
        %3080 = vmatprep.subr.bf16.mxu0 %v2555
        %3081 = vmatpush1.bf16.msra.mxu0 %v2554
        %3082 = vmatprep.subr.bf16.mxu0 %v2585
        %3083 = vmatpush2.bf16.msra.mxu0 %v2584
        %3084 = vmatprep.subr.bf16.mxu0 %v2583
        %3085 = vmatpush2.bf16.msra.mxu0 %v2582
        %3086 = vmatprep.subr.bf16.mxu0 %v2581
        %3087 = vmatpush2.bf16.msra.mxu0 %v2580
        %3088 = vmatprep.subr.bf16.mxu0 %v2579
        %3089 = vmatpush2.bf16.msra.mxu0 %v2578
        %3090 = vmatprep.subr.bf16.mxu0 %v2577
        %3091 = vmatpush2.bf16.msra.mxu0 %v2576
        %3092 = vmatprep.subr.bf16.mxu0 %v2575
        %3093 = vmatpush2.bf16.msra.mxu0 %v2574
        %3094 = vmatprep.subr.bf16.mxu0 %v2573
        %3095 = vmatpush2.bf16.msra.mxu0 %v2572
        %3096 = vmatprep.subr.bf16.mxu0 %v2571
        %3097 = vmatpush2.bf16.msra.mxu0 %v2570
        %3098 = vmatprep.mubr.bf16.mxu0 %v1709
        %3099 = vmatmul.mubr.bf16.gmra.mxu0 %v1695
        %v3100 = vpop.f32.mrf.mxu0
        %v3101 = vadd.f32 %v1663, %v3100
        %v3102 = vpop.f32.mrf.mxu0
        %v3103 = vadd.f32 %v1667, %v3102
        %v3104 = vpop.f32.mrf.mxu0
        %v3105 = vpop.f32.mrf.mxu0
        %3106 = vdwg.mxu0
        %3107 = vmatprep.subr.bf16.mxu0 %v2601
        %3108 = vmatpush1.bf16.msra.mxu0 %v2600
        %3109 = vmatprep.subr.bf16.mxu0 %v2599
        %3110 = vmatpush1.bf16.msra.mxu0 %v2598
        %3111 = vmatprep.subr.bf16.mxu0 %v2597
        %3112 = vmatpush1.bf16.msra.mxu0 %v2596
        %3113 = vmatprep.subr.bf16.mxu0 %v2595
        %3114 = vmatpush1.bf16.msra.mxu0 %v2594
        %3115 = vmatprep.subr.bf16.mxu0 %v2593
        %3116 = vmatpush1.bf16.msra.mxu0 %v2592
        %3117 = vmatprep.subr.bf16.mxu0 %v2591
        %3118 = vmatpush1.bf16.msra.mxu0 %v2590
        %3119 = vmatprep.subr.bf16.mxu0 %v2589
        %3120 = vmatpush1.bf16.msra.mxu0 %v2588
        %3121 = vmatprep.subr.bf16.mxu0 %v2587
        %3122 = vmatpush1.bf16.msra.mxu0 %v2586
        %3123 = vmatprep.subr.bf16.mxu0 %v2617
        %3124 = vmatpush2.bf16.msra.mxu0 %v2616
        %3125 = vmatprep.subr.bf16.mxu0 %v2615
        %3126 = vmatpush2.bf16.msra.mxu0 %v2614
        %3127 = vmatprep.subr.bf16.mxu0 %v2613
        %3128 = vmatpush2.bf16.msra.mxu0 %v2612
        %3129 = vmatprep.subr.bf16.mxu0 %v2611
        %3130 = vmatpush2.bf16.msra.mxu0 %v2610
        %3131 = vmatprep.subr.bf16.mxu0 %v2609
        %3132 = vmatpush2.bf16.msra.mxu0 %v2608
        %3133 = vmatprep.subr.bf16.mxu0 %v2607
        %3134 = vmatpush2.bf16.msra.mxu0 %v2606
        %3135 = vmatprep.subr.bf16.mxu0 %v2605
        %3136 = vmatpush2.bf16.msra.mxu0 %v2604
        %3137 = vmatprep.subr.bf16.mxu0 %v2603
        %3138 = vmatpush2.bf16.msra.mxu0 %v2602
        %3139 = vmatprep.mubr.bf16.mxu0 %v1719
        %3140 = vmatmul.mubr.bf16.gmra.mxu0 %v1717
        %v3141 = vpop.f32.mrf.mxu0
        %v3142 = vadd.f32 %v3101, %v3141
        %v3143 = vpop.f32.mrf.mxu0
        %v3144 = vadd.f32 %v3103, %v3143
        %v3145 = vpop.f32.mrf.mxu0
        %v3146 = vpop.f32.mrf.mxu0
        %3147 = vdwg.mxu0
        %3148 = vmatprep.subr.bf16.mxu0 %v2633
        %3149 = vmatpush1.bf16.msra.mxu0 %v2632
        %3150 = vmatprep.subr.bf16.mxu0 %v2631
        %3151 = vmatpush1.bf16.msra.mxu0 %v2630
        %3152 = vmatprep.subr.bf16.mxu0 %v2629
        %3153 = vmatpush1.bf16.msra.mxu0 %v2628
        %3154 = vmatprep.subr.bf16.mxu0 %v2627
        %3155 = vmatpush1.bf16.msra.mxu0 %v2626
        %3156 = vmatprep.subr.bf16.mxu0 %v2625
        %3157 = vmatpush1.bf16.msra.mxu0 %v2624
        %3158 = vmatprep.subr.bf16.mxu0 %v2623
        %3159 = vmatpush1.bf16.msra.mxu0 %v2622
        %3160 = vmatprep.subr.bf16.mxu0 %v2621
        %3161 = vmatpush1.bf16.msra.mxu0 %v2620
        %3162 = vmatprep.subr.bf16.mxu0 %v2619
        %3163 = vmatpush1.bf16.msra.mxu0 %v2618
        %3164 = vmatprep.subr.bf16.mxu0 %v2649
        %3165 = vmatpush2.bf16.msra.mxu0 %v2648
        %3166 = vmatprep.subr.bf16.mxu0 %v2647
        %3167 = vmatpush2.bf16.msra.mxu0 %v2646
        %3168 = vmatprep.subr.bf16.mxu0 %v2645
        %3169 = vmatpush2.bf16.msra.mxu0 %v2644
        %3170 = vmatprep.subr.bf16.mxu0 %v2643
        %3171 = vmatpush2.bf16.msra.mxu0 %v2642
        %3172 = vmatprep.subr.bf16.mxu0 %v2641
        %3173 = vmatpush2.bf16.msra.mxu0 %v2640
        %3174 = vmatprep.subr.bf16.mxu0 %v2639
        %3175 = vmatpush2.bf16.msra.mxu0 %v2638
        %3176 = vmatprep.subr.bf16.mxu0 %v2637
        %3177 = vmatpush2.bf16.msra.mxu0 %v2636
        %3178 = vmatprep.subr.bf16.mxu0 %v2635
        %3179 = vmatpush2.bf16.msra.mxu0 %v2634
        %3180 = vmatprep.mubr.bf16.mxu0 %v1716
        %3181 = vmatmul.mubr.bf16.gmra.mxu0 %v1702
        %v3182 = vpop.f32.mrf.mxu0
        %v3183 = vadd.f32 %v3142, %v3182
        %v3184 = vpop.f32.mrf.mxu0
        %v3185 = vadd.f32 %v3144, %v3184
        %v3186 = vpop.f32.mrf.mxu0
        %v3187 = vpop.f32.mrf.mxu0
        %3188 = vdwg.mxu0
        %3189 = vmatprep.subr.bf16.mxu0 %v2665
        %3190 = vmatpush1.bf16.msra.mxu0 %v2664
        %3191 = vmatprep.subr.bf16.mxu0 %v2663
        %3192 = vmatpush1.bf16.msra.mxu0 %v2662
        %3193 = vmatprep.subr.bf16.mxu0 %v2661
        %3194 = vmatpush1.bf16.msra.mxu0 %v2660
        %3195 = vmatprep.subr.bf16.mxu0 %v2659
        %3196 = vmatpush1.bf16.msra.mxu0 %v2658
        %3197 = vmatprep.subr.bf16.mxu0 %v2657
        %3198 = vmatpush1.bf16.msra.mxu0 %v2656
        %3199 = vmatprep.subr.bf16.mxu0 %v2655
        %3200 = vmatpush1.bf16.msra.mxu0 %v2654
        %3201 = vmatprep.subr.bf16.mxu0 %v2653
        %3202 = vmatpush1.bf16.msra.mxu0 %v2652
        %3203 = vmatprep.subr.bf16.mxu0 %v2651
        %3204 = vmatpush1.bf16.msra.mxu0 %v2650
        %3205 = vmatprep.subr.bf16.mxu0 %v2681
        %3206 = vmatpush2.bf16.msra.mxu0 %v2680
        %3207 = vmatprep.subr.bf16.mxu0 %v2679
        %3208 = vmatpush2.bf16.msra.mxu0 %v2678
        %3209 = vmatprep.subr.bf16.mxu0 %v2677
        %3210 = vmatpush2.bf16.msra.mxu0 %v2676
        %3211 = vmatprep.subr.bf16.mxu0 %v2675
        %3212 = vmatpush2.bf16.msra.mxu0 %v2674
        %3213 = vmatprep.subr.bf16.mxu0 %v2673
        %3214 = vmatpush2.bf16.msra.mxu0 %v2672
        %3215 = vmatprep.subr.bf16.mxu0 %v2671
        %3216 = vmatpush2.bf16.msra.mxu0 %v2670
        %3217 = vmatprep.subr.bf16.mxu0 %v2669
        %3218 = vmatpush2.bf16.msra.mxu0 %v2668
        %3219 = vmatprep.subr.bf16.mxu0 %v2667
        %3220 = vmatpush2.bf16.msra.mxu0 %v2666
        %3221 = vmatprep.mubr.bf16.mxu0 %v1720
        %3222 = vmatmul.mubr.bf16.gmra.mxu0 %v1718
        %v3223 = vpop.f32.mrf.mxu0
        %v3224 = vadd.f32 %v3183, %v3223
        %v3225 = vpop.f32.mrf.mxu0
        %v3226 = vadd.f32 %v3185, %v3225
        %v3227 = vpop.f32.mrf.mxu0
        %v3228 = vpop.f32.mrf.mxu0
        %3229 = vdwg.mxu0
        %3230 = vmatprep.subr.bf16.mxu0 %v2697
        %3231 = vmatpush1.bf16.msra.mxu0 %v2696
        %3232 = vmatprep.subr.bf16.mxu0 %v2695
        %3233 = vmatpush1.bf16.msra.mxu0 %v2694
        %3234 = vmatprep.subr.bf16.mxu0 %v2693
        %3235 = vmatpush1.bf16.msra.mxu0 %v2692
        %3236 = vmatprep.subr.bf16.mxu0 %v2691
        %3237 = vmatpush1.bf16.msra.mxu0 %v2690
        %3238 = vmatprep.subr.bf16.mxu0 %v2689
        %3239 = vmatpush1.bf16.msra.mxu0 %v2688
        %3240 = vmatprep.subr.bf16.mxu0 %v2687
        %3241 = vmatpush1.bf16.msra.mxu0 %v2686
        %3242 = vmatprep.subr.bf16.mxu0 %v2685
        %3243 = vmatpush1.bf16.msra.mxu0 %v2684
        %3244 = vmatprep.subr.bf16.mxu0 %v2683
        %3245 = vmatpush1.bf16.msra.mxu0 %v2682
        %3246 = vmatprep.subr.bf16.mxu0 %v2713
        %3247 = vmatpush2.bf16.msra.mxu0 %v2712
        %3248 = vmatprep.subr.bf16.mxu0 %v2711
        %3249 = vmatpush2.bf16.msra.mxu0 %v2710
        %3250 = vmatprep.subr.bf16.mxu0 %v2709
        %3251 = vmatpush2.bf16.msra.mxu0 %v2708
        %3252 = vmatprep.subr.bf16.mxu0 %v2707
        %3253 = vmatpush2.bf16.msra.mxu0 %v2706
        %3254 = vmatprep.subr.bf16.mxu0 %v2705
        %3255 = vmatpush2.bf16.msra.mxu0 %v2704
        %3256 = vmatprep.subr.bf16.mxu0 %v2703
        %3257 = vmatpush2.bf16.msra.mxu0 %v2702
        %3258 = vmatprep.subr.bf16.mxu0 %v2701
        %3259 = vmatpush2.bf16.msra.mxu0 %v2700
        %3260 = vmatprep.subr.bf16.mxu0 %v2699
        %3261 = vmatpush2.bf16.msra.mxu0 %v2698
        %3262 = vmatprep.mubr.bf16.mxu0 %v1758
        %3263 = vmatmul.mubr.bf16.gmra.mxu0 %v1744
        %v3264 = vpop.f32.mrf.mxu0
        %v3265 = vadd.f32 %v3224, %v3264
        %v3266 = vpop.f32.mrf.mxu0
        %v3267 = vadd.f32 %v3226, %v3266
        %v3268 = vpop.f32.mrf.mxu0
        %v3269 = vpop.f32.mrf.mxu0
        %3270 = vdwg.mxu0
        %3271 = vmatprep.subr.bf16.mxu0 %v2729
        %3272 = vmatpush1.bf16.msra.mxu0 %v2728
        %3273 = vmatprep.subr.bf16.mxu0 %v2727
        %3274 = vmatpush1.bf16.msra.mxu0 %v2726
        %3275 = vmatprep.subr.bf16.mxu0 %v2725
        %3276 = vmatpush1.bf16.msra.mxu0 %v2724
        %3277 = vmatprep.subr.bf16.mxu0 %v2723
        %3278 = vmatpush1.bf16.msra.mxu0 %v2722
        %3279 = vmatprep.subr.bf16.mxu0 %v2721
        %3280 = vmatpush1.bf16.msra.mxu0 %v2720
        %3281 = vmatprep.subr.bf16.mxu0 %v2719
        %3282 = vmatpush1.bf16.msra.mxu0 %v2718
        %3283 = vmatprep.subr.bf16.mxu0 %v2717
        %3284 = vmatpush1.bf16.msra.mxu0 %v2716
        %3285 = vmatprep.subr.bf16.mxu0 %v2715
        %3286 = vmatpush1.bf16.msra.mxu0 %v2714
        %3287 = vmatprep.subr.bf16.mxu0 %v2745
        %3288 = vmatpush2.bf16.msra.mxu0 %v2744
        %3289 = vmatprep.subr.bf16.mxu0 %v2743
        %3290 = vmatpush2.bf16.msra.mxu0 %v2742
        %3291 = vmatprep.subr.bf16.mxu0 %v2741
        %3292 = vmatpush2.bf16.msra.mxu0 %v2740
        %3293 = vmatprep.subr.bf16.mxu0 %v2739
        %3294 = vmatpush2.bf16.msra.mxu0 %v2738
        %3295 = vmatprep.subr.bf16.mxu0 %v2737
        %3296 = vmatpush2.bf16.msra.mxu0 %v2736
        %3297 = vmatprep.subr.bf16.mxu0 %v2735
        %3298 = vmatpush2.bf16.msra.mxu0 %v2734
        %3299 = vmatprep.subr.bf16.mxu0 %v2733
        %3300 = vmatpush2.bf16.msra.mxu0 %v2732
        %3301 = vmatprep.subr.bf16.mxu0 %v2731
        %3302 = vmatpush2.bf16.msra.mxu0 %v2730
        %3303 = vmatprep.mubr.bf16.mxu0 %v1768
        %3304 = vmatmul.mubr.bf16.gmra.mxu0 %v1766
        %v3305 = vpop.f32.mrf.mxu0
        %v3306 = vadd.f32 %v3265, %v3305
        %v3307 = vpop.f32.mrf.mxu0
        %v3308 = vadd.f32 %v3267, %v3307
        %v3309 = vpop.f32.mrf.mxu0
        %v3310 = vpop.f32.mrf.mxu0
        %3311 = vdwg.mxu0
        %3312 = vmatprep.subr.bf16.mxu0 %v2761
        %3313 = vmatpush1.bf16.msra.mxu0 %v2760
        %3314 = vmatprep.subr.bf16.mxu0 %v2759
        %3315 = vmatpush1.bf16.msra.mxu0 %v2758
        %3316 = vmatprep.subr.bf16.mxu0 %v2757
        %3317 = vmatpush1.bf16.msra.mxu0 %v2756
        %3318 = vmatprep.subr.bf16.mxu0 %v2755
        %3319 = vmatpush1.bf16.msra.mxu0 %v2754
        %3320 = vmatprep.subr.bf16.mxu0 %v2753
        %3321 = vmatpush1.bf16.msra.mxu0 %v2752
        %3322 = vmatprep.subr.bf16.mxu0 %v2751
        %3323 = vmatpush1.bf16.msra.mxu0 %v2750
        %3324 = vmatprep.subr.bf16.mxu0 %v2749
        %3325 = vmatpush1.bf16.msra.mxu0 %v2748
        %3326 = vmatprep.subr.bf16.mxu0 %v2747
        %3327 = vmatpush1.bf16.msra.mxu0 %v2746
        %3328 = vmatprep.subr.bf16.mxu0 %v2777
        %3329 = vmatpush2.bf16.msra.mxu0 %v2776
        %3330 = vmatprep.subr.bf16.mxu0 %v2775
        %3331 = vmatpush2.bf16.msra.mxu0 %v2774
        %3332 = vmatprep.subr.bf16.mxu0 %v2773
        %3333 = vmatpush2.bf16.msra.mxu0 %v2772
        %3334 = vmatprep.subr.bf16.mxu0 %v2771
        %3335 = vmatpush2.bf16.msra.mxu0 %v2770
        %3336 = vmatprep.subr.bf16.mxu0 %v2769
        %3337 = vmatpush2.bf16.msra.mxu0 %v2768
        %3338 = vmatprep.subr.bf16.mxu0 %v2767
        %3339 = vmatpush2.bf16.msra.mxu0 %v2766
        %3340 = vmatprep.subr.bf16.mxu0 %v2765
        %3341 = vmatpush2.bf16.msra.mxu0 %v2764
        %3342 = vmatprep.subr.bf16.mxu0 %v2763
        %3343 = vmatpush2.bf16.msra.mxu0 %v2762
        %3344 = vmatprep.mubr.bf16.mxu0 %v1765
        %3345 = vmatmul.mubr.bf16.gmra.mxu0 %v1751
        %v3346 = vpop.f32.mrf.mxu0
        %v3347 = vadd.f32 %v3306, %v3346
        %v3348 = vpop.f32.mrf.mxu0
        %v3349 = vadd.f32 %v3308, %v3348
        %v3350 = vpop.f32.mrf.mxu0
        %v3351 = vpop.f32.mrf.mxu0
        %3352 = vdwg.mxu0
        %3353 = vmatprep.subr.bf16.mxu0 %v2793
        %3354 = vmatpush1.bf16.msra.mxu0 %v2792
        %3355 = vmatprep.subr.bf16.mxu0 %v2791
        %3356 = vmatpush1.bf16.msra.mxu0 %v2790
        %3357 = vmatprep.subr.bf16.mxu0 %v2789
        %3358 = vmatpush1.bf16.msra.mxu0 %v2788
        %3359 = vmatprep.subr.bf16.mxu0 %v2787
        %3360 = vmatpush1.bf16.msra.mxu0 %v2786
        %3361 = vmatprep.subr.bf16.mxu0 %v2785
        %3362 = vmatpush1.bf16.msra.mxu0 %v2784
        %3363 = vmatprep.subr.bf16.mxu0 %v2783
        %3364 = vmatpush1.bf16.msra.mxu0 %v2782
        %3365 = vmatprep.subr.bf16.mxu0 %v2781
        %3366 = vmatpush1.bf16.msra.mxu0 %v2780
        %3367 = vmatprep.subr.bf16.mxu0 %v2779
        %3368 = vmatpush1.bf16.msra.mxu0 %v2778
        %3369 = vmatprep.subr.bf16.mxu0 %v2809
        %3370 = vmatpush2.bf16.msra.mxu0 %v2808
        %3371 = vmatprep.subr.bf16.mxu0 %v2807
        %3372 = vmatpush2.bf16.msra.mxu0 %v2806
        %3373 = vmatprep.subr.bf16.mxu0 %v2805
        %3374 = vmatpush2.bf16.msra.mxu0 %v2804
        %3375 = vmatprep.subr.bf16.mxu0 %v2803
        %3376 = vmatpush2.bf16.msra.mxu0 %v2802
        %3377 = vmatprep.subr.bf16.mxu0 %v2801
        %3378 = vmatpush2.bf16.msra.mxu0 %v2800
        %3379 = vmatprep.subr.bf16.mxu0 %v2799
        %3380 = vmatpush2.bf16.msra.mxu0 %v2798
        %3381 = vmatprep.subr.bf16.mxu0 %v2797
        %3382 = vmatpush2.bf16.msra.mxu0 %v2796
        %3383 = vmatprep.subr.bf16.mxu0 %v2795
        %3384 = vmatpush2.bf16.msra.mxu0 %v2794
        %3385 = vmatprep.mubr.bf16.mxu0 %v1769
        %3386 = vmatmul.mubr.bf16.gmra.mxu0 %v1767
        %v3387 = vpop.f32.mrf.mxu0
        %v3388 = vadd.f32 %v3347, %v3387
        %v3389 = vpop.f32.mrf.mxu0
        %v3390 = vadd.f32 %v3349, %v3389
        %v3391 = vpop.f32.mrf.mxu0
        %v3392 = vpop.f32.mrf.mxu0
        %3393 = vdwg.mxu0
        %v3394 = vmax.f32 %v3388, 0.0
        %v3395 = vmax.f32 %v3390, 0.0
        %v3396 = vpack.c.bf16 %v3394, %v3394
        %v3397 = vpack.c.bf16 %v3395, %v3395
        %v3398 = vld [vmem:[#allocation2] sm:$0xff]
        %v3399 = vld [vmem:[%s1193] sm:$0xff]
        %v3400 = vld [vmem:[%s1193 + $0x8] sm:$0xff]
        %v3401 = vld [vmem:[%s1193 + $0x10] sm:$0xff]
        %v3402 = vld [vmem:[%s1193 + $0x18] sm:$0xff]
        %v3403 = vld [vmem:[%s1193 + $0x20] sm:$0xff]
        %v3404 = vld [vmem:[%s1193 + $0x28] sm:$0xff]
        %v3405 = vld [vmem:[%s1193 + $0x30] sm:$0xff]
        %v3406 = vld [vmem:[%s1193 + $0x38] sm:$0xff]
        %v3407 = vld [vmem:[%s1193 + $0x40] sm:$0xff]
        %v3408 = vld [vmem:[%s1193 + $0x48] sm:$0xff]
        %v3409 = vld [vmem:[%s1193 + $0x50] sm:$0xff]
        %v3410 = vld [vmem:[%s1193 + $0x58] sm:$0xff]
        %v3411 = vld [vmem:[%s1193 + $0x60] sm:$0xff]
        %v3412 = vld [vmem:[%s1193 + $0x68] sm:$0xff]
        %v3413 = vld [vmem:[%s1193 + $0x70] sm:$0xff]
        %v3414 = vld [vmem:[%s1193 + $0x78] sm:$0xff]
        %v3415 = vld [vmem:[%s1193 + $0x80] sm:$0xff]
        %v3416 = vld [vmem:[%s1193 + $0x88] sm:$0xff]
        %v3417 = vld [vmem:[%s1193 + $0x90] sm:$0xff]
        %v3418 = vld [vmem:[%s1193 + $0x98] sm:$0xff]
        %v3419 = vld [vmem:[%s1193 + $0xa0] sm:$0xff]
        %v3420 = vld [vmem:[%s1193 + $0xa8] sm:$0xff]
        %v3421 = vld [vmem:[%s1193 + $0xb0] sm:$0xff]
        %v3422 = vld [vmem:[%s1193 + $0xb8] sm:$0xff]
        %v3423 = vld [vmem:[%s1193 + $0xc0] sm:$0xff]
        %v3424 = vld [vmem:[%s1193 + $0xc8] sm:$0xff]
        %v3425 = vld [vmem:[%s1193 + $0xd0] sm:$0xff]
        %v3426 = vld [vmem:[%s1193 + $0xd8] sm:$0xff]
        %v3427 = vld [vmem:[%s1193 + $0xe0] sm:$0xff]
        %v3428 = vld [vmem:[%s1193 + $0xe8] sm:$0xff]
        %v3429 = vld [vmem:[%s1193 + $0xf0] sm:$0xff]
        %v3430 = vld [vmem:[%s1193 + $0xf8] sm:$0xff]
        %v3431 = vld [vmem:[%s1193 + $0x100] sm:$0xff]
        %v3432 = vld [vmem:[%s1193 + $0x108] sm:$0xff]
        %v3433 = vld [vmem:[%s1193 + $0x110] sm:$0xff]
        %v3434 = vld [vmem:[%s1193 + $0x118] sm:$0xff]
        %v3435 = vld [vmem:[%s1193 + $0x120] sm:$0xff]
        %v3436 = vld [vmem:[%s1193 + $0x128] sm:$0xff]
        %v3437 = vld [vmem:[%s1193 + $0x130] sm:$0xff]
        %v3438 = vld [vmem:[%s1193 + $0x138] sm:$0xff]
        %v3439 = vld [vmem:[%s1193 + $0x140] sm:$0xff]
        %v3440 = vld [vmem:[%s1193 + $0x148] sm:$0xff]
        %v3441 = vld [vmem:[%s1193 + $0x150] sm:$0xff]
        %v3442 = vld [vmem:[%s1193 + $0x158] sm:$0xff]
        %v3443 = vld [vmem:[%s1193 + $0x160] sm:$0xff]
        %v3444 = vld [vmem:[%s1193 + $0x168] sm:$0xff]
        %v3445 = vld [vmem:[%s1193 + $0x170] sm:$0xff]
        %v3446 = vld [vmem:[%s1193 + $0x178] sm:$0xff]
        %v3447 = vld [vmem:[%s1193 + $0x180] sm:$0xff]
        %v3448 = vld [vmem:[%s1193 + $0x188] sm:$0xff]
        %v3449 = vld [vmem:[%s1193 + $0x190] sm:$0xff]
        %v3450 = vld [vmem:[%s1193 + $0x198] sm:$0xff]
        %v3451 = vld [vmem:[%s1193 + $0x1a0] sm:$0xff]
        %v3452 = vld [vmem:[%s1193 + $0x1a8] sm:$0xff]
        %v3453 = vld [vmem:[%s1193 + $0x1b0] sm:$0xff]
        %v3454 = vld [vmem:[%s1193 + $0x1b8] sm:$0xff]
        %v3455 = vld [vmem:[%s1193 + $0x1c0] sm:$0xff]
        %v3456 = vld [vmem:[%s1193 + $0x1c8] sm:$0xff]
        %v3457 = vld [vmem:[%s1193 + $0x1d0] sm:$0xff]
        %v3458 = vld [vmem:[%s1193 + $0x1d8] sm:$0xff]
        %v3459 = vld [vmem:[%s1193 + $0x1e0] sm:$0xff]
        %v3460 = vld [vmem:[%s1193 + $0x1e8] sm:$0xff]
        %v3461 = vld [vmem:[%s1193 + $0x1f0] sm:$0xff]
        %v3462 = vld [vmem:[%s1193 + $0x1f8] sm:$0xff]
        %v3527 = vunpack.c.l.b16 %v3399
        %v3528 = vunpack.c.h.b16 %v3399
        %v3529 = vunpack.c.l.b16 %v3400
        %v3530 = vunpack.c.h.b16 %v3400
        %v3531 = vunpack.c.l.b16 %v3401
        %v3532 = vunpack.c.h.b16 %v3401
        %v3533 = vunpack.c.l.b16 %v3402
        %v3534 = vunpack.c.h.b16 %v3402
        %v3535 = vunpack.c.l.b16 %v3403
        %v3536 = vunpack.c.h.b16 %v3403
        %v3537 = vunpack.c.l.b16 %v3404
        %v3538 = vunpack.c.h.b16 %v3404
        %v3539 = vunpack.c.l.b16 %v3405
        %v3540 = vunpack.c.h.b16 %v3405
        %v3541 = vunpack.c.l.b16 %v3406
        %v3542 = vunpack.c.h.b16 %v3406
        %v3543 = vunpack.c.l.b16 %v3407
        %v3544 = vunpack.c.h.b16 %v3407
        %v3545 = vunpack.c.l.b16 %v3408
        %v3546 = vunpack.c.h.b16 %v3408
        %v3547 = vunpack.c.l.b16 %v3409
        %v3548 = vunpack.c.h.b16 %v3409
        %v3549 = vunpack.c.l.b16 %v3410
        %v3550 = vunpack.c.h.b16 %v3410
        %v3551 = vunpack.c.l.b16 %v3411
        %v3552 = vunpack.c.h.b16 %v3411
        %v3553 = vunpack.c.l.b16 %v3412
        %v3554 = vunpack.c.h.b16 %v3412
        %v3555 = vunpack.c.l.b16 %v3413
        %v3556 = vunpack.c.h.b16 %v3413
        %v3557 = vunpack.c.l.b16 %v3414
        %v3558 = vunpack.c.h.b16 %v3414
        %v3559 = vunpack.c.l.b16 %v3415
        %v3560 = vunpack.c.h.b16 %v3415
        %v3561 = vunpack.c.l.b16 %v3416
        %v3562 = vunpack.c.h.b16 %v3416
        %v3563 = vunpack.c.l.b16 %v3417
        %v3564 = vunpack.c.h.b16 %v3417
        %v3565 = vunpack.c.l.b16 %v3418
        %v3566 = vunpack.c.h.b16 %v3418
        %v3567 = vunpack.c.l.b16 %v3419
        %v3568 = vunpack.c.h.b16 %v3419
        %v3569 = vunpack.c.l.b16 %v3420
        %v3570 = vunpack.c.h.b16 %v3420
        %v3571 = vunpack.c.l.b16 %v3421
        %v3572 = vunpack.c.h.b16 %v3421
        %v3573 = vunpack.c.l.b16 %v3422
        %v3574 = vunpack.c.h.b16 %v3422
        %v3575 = vunpack.c.l.b16 %v3423
        %v3576 = vunpack.c.h.b16 %v3423
        %v3577 = vunpack.c.l.b16 %v3424
        %v3578 = vunpack.c.h.b16 %v3424
        %v3579 = vunpack.c.l.b16 %v3425
        %v3580 = vunpack.c.h.b16 %v3425
        %v3581 = vunpack.c.l.b16 %v3426
        %v3582 = vunpack.c.h.b16 %v3426
        %v3583 = vunpack.c.l.b16 %v3427
        %v3584 = vunpack.c.h.b16 %v3427
        %v3585 = vunpack.c.l.b16 %v3428
        %v3586 = vunpack.c.h.b16 %v3428
        %v3587 = vunpack.c.l.b16 %v3429
        %v3588 = vunpack.c.h.b16 %v3429
        %v3589 = vunpack.c.l.b16 %v3430
        %v3590 = vunpack.c.h.b16 %v3430
        %v3591 = vunpack.c.l.b16 %v3431
        %v3592 = vunpack.c.h.b16 %v3431
        %v3593 = vunpack.c.l.b16 %v3432
        %v3594 = vunpack.c.h.b16 %v3432
        %v3595 = vunpack.c.l.b16 %v3433
        %v3596 = vunpack.c.h.b16 %v3433
        %v3597 = vunpack.c.l.b16 %v3434
        %v3598 = vunpack.c.h.b16 %v3434
        %v3599 = vunpack.c.l.b16 %v3435
        %v3600 = vunpack.c.h.b16 %v3435
        %v3601 = vunpack.c.l.b16 %v3436
        %v3602 = vunpack.c.h.b16 %v3436
        %v3603 = vunpack.c.l.b16 %v3437
        %v3604 = vunpack.c.h.b16 %v3437
        %v3605 = vunpack.c.l.b16 %v3438
        %v3606 = vunpack.c.h.b16 %v3438
        %v3607 = vunpack.c.l.b16 %v3439
        %v3608 = vunpack.c.h.b16 %v3439
        %v3609 = vunpack.c.l.b16 %v3440
        %v3610 = vunpack.c.h.b16 %v3440
        %v3611 = vunpack.c.l.b16 %v3441
        %v3612 = vunpack.c.h.b16 %v3441
        %v3613 = vunpack.c.l.b16 %v3442
        %v3614 = vunpack.c.h.b16 %v3442
        %v3615 = vunpack.c.l.b16 %v3443
        %v3616 = vunpack.c.h.b16 %v3443
        %v3617 = vunpack.c.l.b16 %v3444
        %v3618 = vunpack.c.h.b16 %v3444
        %v3619 = vunpack.c.l.b16 %v3445
        %v3620 = vunpack.c.h.b16 %v3445
        %v3621 = vunpack.c.l.b16 %v3446
        %v3622 = vunpack.c.h.b16 %v3446
        %v3623 = vunpack.c.l.b16 %v3447
        %v3624 = vunpack.c.h.b16 %v3447
        %v3625 = vunpack.c.l.b16 %v3448
        %v3626 = vunpack.c.h.b16 %v3448
        %v3627 = vunpack.c.l.b16 %v3449
        %v3628 = vunpack.c.h.b16 %v3449
        %v3629 = vunpack.c.l.b16 %v3450
        %v3630 = vunpack.c.h.b16 %v3450
        %v3631 = vunpack.c.l.b16 %v3451
        %v3632 = vunpack.c.h.b16 %v3451
        %v3633 = vunpack.c.l.b16 %v3452
        %v3634 = vunpack.c.h.b16 %v3452
        %v3635 = vunpack.c.l.b16 %v3453
        %v3636 = vunpack.c.h.b16 %v3453
        %v3637 = vunpack.c.l.b16 %v3454
        %v3638 = vunpack.c.h.b16 %v3454
        %v3639 = vunpack.c.l.b16 %v3455
        %v3640 = vunpack.c.h.b16 %v3455
        %v3641 = vunpack.c.l.b16 %v3456
        %v3642 = vunpack.c.h.b16 %v3456
        %v3643 = vunpack.c.l.b16 %v3457
        %v3644 = vunpack.c.h.b16 %v3457
        %v3645 = vunpack.c.l.b16 %v3458
        %v3646 = vunpack.c.h.b16 %v3458
        %v3647 = vunpack.c.l.b16 %v3459
        %v3648 = vunpack.c.h.b16 %v3459
        %v3649 = vunpack.c.l.b16 %v3460
        %v3650 = vunpack.c.h.b16 %v3460
        %v3651 = vunpack.c.l.b16 %v3461
        %v3652 = vunpack.c.h.b16 %v3461
        %v3653 = vunpack.c.l.b16 %v3462
        %v3654 = vunpack.c.h.b16 %v3462
        %v3655 = vpack.c.b16 %v3531, %v3527
        %v3656 = vpack.c.b16 %v3532, %v3528
        %v3657 = vpack.c.b16 %v3533, %v3529
        %v3658 = vpack.c.b16 %v3534, %v3530
        %v3659 = vpack.c.b16 %v3539, %v3535
        %v3660 = vpack.c.b16 %v3540, %v3536
        %v3661 = vpack.c.b16 %v3541, %v3537
        %v3662 = vpack.c.b16 %v3542, %v3538
        %v3663 = vpack.c.b16 %v3547, %v3543
        %v3664 = vpack.c.b16 %v3548, %v3544
        %v3665 = vpack.c.b16 %v3549, %v3545
        %v3666 = vpack.c.b16 %v3550, %v3546
        %v3667 = vpack.c.b16 %v3555, %v3551
        %v3668 = vpack.c.b16 %v3556, %v3552
        %v3669 = vpack.c.b16 %v3557, %v3553
        %v3670 = vpack.c.b16 %v3558, %v3554
        %v3671 = vpack.c.b16 %v3563, %v3559
        %v3672 = vpack.c.b16 %v3564, %v3560
        %v3673 = vpack.c.b16 %v3565, %v3561
        %v3674 = vpack.c.b16 %v3566, %v3562
        %v3675 = vpack.c.b16 %v3571, %v3567
        %v3676 = vpack.c.b16 %v3572, %v3568
        %v3677 = vpack.c.b16 %v3573, %v3569
        %v3678 = vpack.c.b16 %v3574, %v3570
        %v3679 = vpack.c.b16 %v3579, %v3575
        %v3680 = vpack.c.b16 %v3580, %v3576
        %v3681 = vpack.c.b16 %v3581, %v3577
        %v3682 = vpack.c.b16 %v3582, %v3578
        %v3683 = vpack.c.b16 %v3587, %v3583
        %v3684 = vpack.c.b16 %v3588, %v3584
        %v3685 = vpack.c.b16 %v3589, %v3585
        %v3686 = vpack.c.b16 %v3590, %v3586
        %v3687 = vpack.c.b16 %v3595, %v3591
        %v3688 = vpack.c.b16 %v3596, %v3592
        %v3689 = vpack.c.b16 %v3597, %v3593
        %v3690 = vpack.c.b16 %v3598, %v3594
        %v3691 = vpack.c.b16 %v3603, %v3599
        %v3692 = vpack.c.b16 %v3604, %v3600
        %v3693 = vpack.c.b16 %v3605, %v3601
        %v3694 = vpack.c.b16 %v3606, %v3602
        %v3695 = vpack.c.b16 %v3611, %v3607
        %v3696 = vpack.c.b16 %v3612, %v3608
        %v3697 = vpack.c.b16 %v3613, %v3609
        %v3698 = vpack.c.b16 %v3614, %v3610
        %v3699 = vpack.c.b16 %v3619, %v3615
        %v3700 = vpack.c.b16 %v3620, %v3616
        %v3701 = vpack.c.b16 %v3621, %v3617
        %v3702 = vpack.c.b16 %v3622, %v3618
        %v3703 = vpack.c.b16 %v3627, %v3623
        %v3704 = vpack.c.b16 %v3628, %v3624
        %v3705 = vpack.c.b16 %v3629, %v3625
        %v3706 = vpack.c.b16 %v3630, %v3626
        %v3707 = vpack.c.b16 %v3635, %v3631
        %v3708 = vpack.c.b16 %v3636, %v3632
        %v3709 = vpack.c.b16 %v3637, %v3633
        %v3710 = vpack.c.b16 %v3638, %v3634
        %v3711 = vpack.c.b16 %v3643, %v3639
        %v3712 = vpack.c.b16 %v3644, %v3640
        %v3713 = vpack.c.b16 %v3645, %v3641
        %v3714 = vpack.c.b16 %v3646, %v3642
        %v3715 = vpack.c.b16 %v3651, %v3647
        %v3716 = vpack.c.b16 %v3652, %v3648
        %v3717 = vpack.c.b16 %v3653, %v3649
        %v3718 = vpack.c.b16 %v3654, %v3650
        %3783 = vmatprep.subr.bf16.mxu0 %v3684
        %3784 = vmatpush1.bf16.msra.mxu0 %v3683
        %3785 = vmatprep.subr.bf16.mxu0 %v3680
        %3786 = vmatpush1.bf16.msra.mxu0 %v3679
        %3787 = vmatprep.subr.bf16.mxu0 %v3676
        %3788 = vmatpush1.bf16.msra.mxu0 %v3675
        %3789 = vmatprep.subr.bf16.mxu0 %v3672
        %3790 = vmatpush1.bf16.msra.mxu0 %v3671
        %3791 = vmatprep.subr.bf16.mxu0 %v3668
        %3792 = vmatpush1.bf16.msra.mxu0 %v3667
        %3793 = vmatprep.subr.bf16.mxu0 %v3664
        %3794 = vmatpush1.bf16.msra.mxu0 %v3663
        %3795 = vmatprep.subr.bf16.mxu0 %v3660
        %3796 = vmatpush1.bf16.msra.mxu0 %v3659
        %3797 = vmatprep.subr.bf16.mxu0 %v3656
        %3798 = vmatpush1.bf16.msra.mxu0 %v3655
        %3799 = vmatprep.subr.bf16.mxu0 %v3716
        %3800 = vmatpush2.bf16.msra.mxu0 %v3715
        %3801 = vmatprep.subr.bf16.mxu0 %v3712
        %3802 = vmatpush2.bf16.msra.mxu0 %v3711
        %3803 = vmatprep.subr.bf16.mxu0 %v3708
        %3804 = vmatpush2.bf16.msra.mxu0 %v3707
        %3805 = vmatprep.subr.bf16.mxu0 %v3704
        %3806 = vmatpush2.bf16.msra.mxu0 %v3703
        %3807 = vmatprep.subr.bf16.mxu0 %v3700
        %3808 = vmatpush2.bf16.msra.mxu0 %v3699
        %3809 = vmatprep.subr.bf16.mxu0 %v3696
        %3810 = vmatpush2.bf16.msra.mxu0 %v3695
        %3811 = vmatprep.subr.bf16.mxu0 %v3692
        %3812 = vmatpush2.bf16.msra.mxu0 %v3691
        %3813 = vmatprep.subr.bf16.mxu0 %v3688
        %3814 = vmatpush2.bf16.msra.mxu0 %v3687
        %3815 = vmatprep.mubr.bf16.mxu0 %v3397
        %3816 = vmatmul.mubr.bf16.gmra.mxu0 %v3396
        %v3817 = vpop.f32.mrf.mxu0
        %v3818 = vadd.f32 0.0, %v3817
        %v3819 = vpop.f32.mrf.mxu0
        %v3820 = vadd.f32 0.0, %v3819
        %v3821 = vpop.f32.mrf.mxu0
        %v3822 = vpop.f32.mrf.mxu0
        %3823 = vdwg.mxu0
        %3824 = vmatprep.subr.bf16.mxu0 %v3686
        %3825 = vmatpush1.bf16.msra.mxu0 %v3685
        %3826 = vmatprep.subr.bf16.mxu0 %v3682
        %3827 = vmatpush1.bf16.msra.mxu0 %v3681
        %3828 = vmatprep.subr.bf16.mxu0 %v3678
        %3829 = vmatpush1.bf16.msra.mxu0 %v3677
        %3830 = vmatprep.subr.bf16.mxu0 %v3674
        %3831 = vmatpush1.bf16.msra.mxu0 %v3673
        %3832 = vmatprep.subr.bf16.mxu0 %v3670
        %3833 = vmatpush1.bf16.msra.mxu0 %v3669
        %3834 = vmatprep.subr.bf16.mxu0 %v3666
        %3835 = vmatpush1.bf16.msra.mxu0 %v3665
        %3836 = vmatprep.subr.bf16.mxu0 %v3662
        %3837 = vmatpush1.bf16.msra.mxu0 %v3661
        %3838 = vmatprep.subr.bf16.mxu0 %v3658
        %3839 = vmatpush1.bf16.msra.mxu0 %v3657
        %3840 = vmatprep.subr.bf16.mxu0 %v3718
        %3841 = vmatpush2.bf16.msra.mxu0 %v3717
        %3842 = vmatprep.subr.bf16.mxu0 %v3714
        %3843 = vmatpush2.bf16.msra.mxu0 %v3713
        %3844 = vmatprep.subr.bf16.mxu0 %v3710
        %3845 = vmatpush2.bf16.msra.mxu0 %v3709
        %3846 = vmatprep.subr.bf16.mxu0 %v3706
        %3847 = vmatpush2.bf16.msra.mxu0 %v3705
        %3848 = vmatprep.subr.bf16.mxu0 %v3702
        %3849 = vmatpush2.bf16.msra.mxu0 %v3701
        %3850 = vmatprep.subr.bf16.mxu0 %v3698
        %3851 = vmatpush2.bf16.msra.mxu0 %v3697
        %3852 = vmatprep.subr.bf16.mxu0 %v3694
        %3853 = vmatpush2.bf16.msra.mxu0 %v3693
        %3854 = vmatprep.subr.bf16.mxu0 %v3690
        %3855 = vmatpush2.bf16.msra.mxu0 %v3689
        %3856 = vmatprep.mubr.bf16.mxu0 %v3397
        %3857 = vmatmul.mubr.bf16.gmra.mxu0 %v3396
        %v3858 = vpop.f32.mrf.mxu0
        %v3859 = vadd.f32 0.0, %v3858
        %v3860 = vpop.f32.mrf.mxu0
        %v3861 = vadd.f32 0.0, %v3860
        %v3862 = vpop.f32.mrf.mxu0
        %v3863 = vpop.f32.mrf.mxu0
        %3864 = vdwg.mxu0
        %v3869 = vcombine.low %v3818, %v3820
        %v3870 = vcombine.low %v3859, %v3861
        %v3872 = vunpack.c.l.s4 1983009808
        %v3873 = vunpack.c.0.s8 %v3872
        %v3874 = vlaneseq
        %v3875 = vshrl.u32 %v3874, 7
        %v3876 = vsub.s32 %v3873, %v3875
        %v3877 = vrot.slane %v3869, %v3876
        %v3879 = vunpack.c.l.s4 1983009808
        %v3880 = vunpack.c.0.s8 %v3879
        %v3881 = vlaneseq
        %v3882 = vshrl.u32 %v3881, 7
        %v3883 = vsub.s32 %v3880, %v3882
        %v3884 = vrot.slane %v3870, %v3883
        %v3885 = vcombine.low %v3877, %v3884
        %v3887 = vadd.f32 %v3398, %v3885
        %3888 = vst [vmem:[#allocation2] sm:$0xff] %v3887
        %v3889 = vld [vmem:[#allocation9] sm:$0xf]
        %v3890 = vld [vmem:[%s1238] sm:$0xf]
        %v3891 = vld [vmem:[%s1238 + $0x4] sm:$0xf]
        %v3892 = vld [vmem:[%s1238 + $0x8] sm:$0xf]
        %v3893 = vld [vmem:[%s1238 + $0xc] sm:$0xf]
        %v3894 = vld [vmem:[%s1238 + $0x10] sm:$0xf]
        %v3895 = vld [vmem:[%s1238 + $0x14] sm:$0xf]
        %v3896 = vld [vmem:[%s1238 + $0x18] sm:$0xf]
        %v3897 = vld [vmem:[%s1238 + $0x1c] sm:$0xf]
        %v3898 = vld [vmem:[%s1238 + $0x20] sm:$0xf]
        %v3899 = vld [vmem:[%s1238 + $0x24] sm:$0xf]
        %v3900 = vld [vmem:[%s1238 + $0x28] sm:$0xf]
        %v3901 = vld [vmem:[%s1238 + $0x2c] sm:$0xf]
        %v3902 = vld [vmem:[%s1238 + $0x30] sm:$0xf]
        %v3903 = vld [vmem:[%s1238 + $0x34] sm:$0xf]
        %v3904 = vld [vmem:[%s1238 + $0x38] sm:$0xf]
        %v3905 = vld [vmem:[%s1238 + $0x3c] sm:$0xf]
        %v3906 = vld [vmem:[%s1238 + $0x40] sm:$0xf]
        %v3907 = vld [vmem:[%s1238 + $0x44] sm:$0xf]
        %v3908 = vld [vmem:[%s1238 + $0x48] sm:$0xf]
        %v3909 = vld [vmem:[%s1238 + $0x4c] sm:$0xf]
        %v3910 = vld [vmem:[%s1238 + $0x50] sm:$0xf]
        %v3911 = vld [vmem:[%s1238 + $0x54] sm:$0xf]
        %v3912 = vld [vmem:[%s1238 + $0x58] sm:$0xf]
        %v3913 = vld [vmem:[%s1238 + $0x5c] sm:$0xf]
        %v3914 = vld [vmem:[%s1238 + $0x60] sm:$0xf]
        %v3915 = vld [vmem:[%s1238 + $0x64] sm:$0xf]
        %v3916 = vld [vmem:[%s1238 + $0x68] sm:$0xf]
        %v3917 = vld [vmem:[%s1238 + $0x6c] sm:$0xf]
        %v3918 = vld [vmem:[%s1238 + $0x70] sm:$0xf]
        %v3919 = vld [vmem:[%s1238 + $0x74] sm:$0xf]
        %v3920 = vld [vmem:[%s1238 + $0x78] sm:$0xf]
        %v3921 = vld [vmem:[%s1238 + $0x7c] sm:$0xf]
        %v3922 = vld [vmem:[%s1238 + $0x80] sm:$0xf]
        %v3923 = vld [vmem:[%s1238 + $0x84] sm:$0xf]
        %v3924 = vld [vmem:[%s1238 + $0x88] sm:$0xf]
        %v3925 = vld [vmem:[%s1238 + $0x8c] sm:$0xf]
        %v3926 = vld [vmem:[%s1238 + $0x90] sm:$0xf]
        %v3927 = vld [vmem:[%s1238 + $0x94] sm:$0xf]
        %v3928 = vld [vmem:[%s1238 + $0x98] sm:$0xf]
        %v3929 = vld [vmem:[%s1238 + $0x9c] sm:$0xf]
        %v3930 = vld [vmem:[%s1238 + $0xa0] sm:$0xf]
        %v3931 = vld [vmem:[%s1238 + $0xa4] sm:$0xf]
        %v3932 = vld [vmem:[%s1238 + $0xa8] sm:$0xf]
        %v3933 = vld [vmem:[%s1238 + $0xac] sm:$0xf]
        %v3934 = vld [vmem:[%s1238 + $0xb0] sm:$0xf]
        %v3935 = vld [vmem:[%s1238 + $0xb4] sm:$0xf]
        %v3936 = vld [vmem:[%s1238 + $0xb8] sm:$0xf]
        %v3937 = vld [vmem:[%s1238 + $0xbc] sm:$0xf]
        %v3938 = vld [vmem:[%s1238 + $0xc0] sm:$0xf]
        %v3939 = vld [vmem:[%s1238 + $0xc4] sm:$0xf]
        %v3940 = vld [vmem:[%s1238 + $0xc8] sm:$0xf]
        %v3941 = vld [vmem:[%s1238 + $0xcc] sm:$0xf]
        %v3942 = vld [vmem:[%s1238 + $0xd0] sm:$0xf]
        %v3943 = vld [vmem:[%s1238 + $0xd4] sm:$0xf]
        %v3944 = vld [vmem:[%s1238 + $0xd8] sm:$0xf]
        %v3945 = vld [vmem:[%s1238 + $0xdc] sm:$0xf]
        %v3946 = vld [vmem:[%s1238 + $0xe0] sm:$0xf]
        %v3947 = vld [vmem:[%s1238 + $0xe4] sm:$0xf]
        %v3948 = vld [vmem:[%s1238 + $0xe8] sm:$0xf]
        %v3949 = vld [vmem:[%s1238 + $0xec] sm:$0xf]
        %v3950 = vld [vmem:[%s1238 + $0xf0] sm:$0xf]
        %v3951 = vld [vmem:[%s1238 + $0xf4] sm:$0xf]
        %v3952 = vld [vmem:[%s1238 + $0xf8] sm:$0xf]
        %v3953 = vld [vmem:[%s1238 + $0xfc] sm:$0xf]
        %v3954 = vld [vmem:[%s1246] sm:$0x1]
        %v3956 = vlaneseq
        %v3957 = vshrl.u32 %v3956, 7
        %v3958 = vsub.s32 0, %v3957
        %v3959 = vrot.slane %v3954, %v3958
        %v3963 = vunpack.c.l.s4 1966171168
        %v3964 = vunpack.c.0.s8 %v3963
        %v3965 = vlaneseq
        %v3966 = vshrl.u32 %v3965, 7
        %v3967 = vsub.s32 %v3964, %v3966
        %v3968 = vrot.slane %v3889, %v3967
        %v3969 = vcombine.high %v3968, %v3968
        %v3971 = vunpack.c.l.s4 1966171168
        %v3972 = vunpack.c.0.s8 %v3971
        %v3973 = vlaneseq
        %v3974 = vshrl.u32 %v3973, 7
        %v3975 = vsub.s32 %v3972, %v3974
        %v3976 = vrot.slane %v3968, %v3975
        %v3978 = vunpack.c.l.s4 1966171168
        %v3979 = vunpack.c.0.s8 %v3978
        %v3980 = vlaneseq
        %v3981 = vshrl.u32 %v3980, 7
        %v3982 = vsub.s32 %v3979, %v3981
        %v3983 = vrot.slane %v3969, %v3982
        %v3984 = vcombine.high %v3976, %v3976
        %v3985 = vcombine.high %v3983, %v3983
        %v4054 = vunpack.c.l.b16 %v3890
        %v4055 = vunpack.c.l.b16 %v3891
        %v4056 = vunpack.c.l.b16 %v3892
        %v4057 = vunpack.c.l.b16 %v3893
        %v4058 = vunpack.c.l.b16 %v3894
        %v4059 = vunpack.c.l.b16 %v3895
        %v4060 = vunpack.c.l.b16 %v3896
        %v4061 = vunpack.c.l.b16 %v3897
        %v4062 = vunpack.c.l.b16 %v3898
        %v4063 = vunpack.c.l.b16 %v3899
        %v4064 = vunpack.c.l.b16 %v3900
        %v4065 = vunpack.c.l.b16 %v3901
        %v4066 = vunpack.c.l.b16 %v3902
        %v4067 = vunpack.c.l.b16 %v3903
        %v4068 = vunpack.c.l.b16 %v3904
        %v4069 = vunpack.c.l.b16 %v3905
        %v4070 = vunpack.c.l.b16 %v3906
        %v4071 = vunpack.c.l.b16 %v3907
        %v4072 = vunpack.c.l.b16 %v3908
        %v4073 = vunpack.c.l.b16 %v3909
        %v4074 = vunpack.c.l.b16 %v3910
        %v4075 = vunpack.c.l.b16 %v3911
        %v4076 = vunpack.c.l.b16 %v3912
        %v4077 = vunpack.c.l.b16 %v3913
        %v4078 = vunpack.c.l.b16 %v3914
        %v4079 = vunpack.c.l.b16 %v3915
        %v4080 = vunpack.c.l.b16 %v3916
        %v4081 = vunpack.c.l.b16 %v3917
        %v4082 = vunpack.c.l.b16 %v3918
        %v4083 = vunpack.c.l.b16 %v3919
        %v4084 = vunpack.c.l.b16 %v3920
        %v4085 = vunpack.c.l.b16 %v3921
        %v4086 = vunpack.c.l.b16 %v3922
        %v4087 = vunpack.c.l.b16 %v3923
        %v4088 = vunpack.c.l.b16 %v3924
        %v4089 = vunpack.c.l.b16 %v3925
        %v4090 = vunpack.c.l.b16 %v3926
        %v4091 = vunpack.c.l.b16 %v3927
        %v4092 = vunpack.c.l.b16 %v3928
        %v4093 = vunpack.c.l.b16 %v3929
        %v4094 = vunpack.c.l.b16 %v3930
        %v4095 = vunpack.c.l.b16 %v3931
        %v4096 = vunpack.c.l.b16 %v3932
        %v4097 = vunpack.c.l.b16 %v3933
        %v4098 = vunpack.c.l.b16 %v3934
        %v4099 = vunpack.c.l.b16 %v3935
        %v4100 = vunpack.c.l.b16 %v3936
        %v4101 = vunpack.c.l.b16 %v3937
        %v4102 = vunpack.c.l.b16 %v3938
        %v4103 = vunpack.c.l.b16 %v3939
        %v4104 = vunpack.c.l.b16 %v3940
        %v4105 = vunpack.c.l.b16 %v3941
        %v4106 = vunpack.c.l.b16 %v3942
        %v4107 = vunpack.c.l.b16 %v3943
        %v4108 = vunpack.c.l.b16 %v3944
        %v4109 = vunpack.c.l.b16 %v3945
        %v4110 = vunpack.c.l.b16 %v3946
        %v4111 = vunpack.c.l.b16 %v3947
        %v4112 = vunpack.c.l.b16 %v3948
        %v4113 = vunpack.c.l.b16 %v3949
        %v4114 = vunpack.c.l.b16 %v3950
        %v4115 = vunpack.c.l.b16 %v3951
        %v4116 = vunpack.c.l.b16 %v3952
        %v4117 = vunpack.c.l.b16 %v3953
        %v4118 = vpack.c.b16 %v4055, %v4054
        %v4119 = vpack.c.b16 %v4057, %v4056
        %v4120 = vpack.c.b16 %v4059, %v4058
        %v4121 = vpack.c.b16 %v4061, %v4060
        %v4122 = vpack.c.b16 %v4063, %v4062
        %v4123 = vpack.c.b16 %v4065, %v4064
        %v4124 = vpack.c.b16 %v4067, %v4066
        %v4125 = vpack.c.b16 %v4069, %v4068
        %v4126 = vpack.c.b16 %v4071, %v4070
        %v4127 = vpack.c.b16 %v4073, %v4072
        %v4128 = vpack.c.b16 %v4075, %v4074
        %v4129 = vpack.c.b16 %v4077, %v4076
        %v4130 = vpack.c.b16 %v4079, %v4078
        %v4131 = vpack.c.b16 %v4081, %v4080
        %v4132 = vpack.c.b16 %v4083, %v4082
        %v4133 = vpack.c.b16 %v4085, %v4084
        %v4134 = vpack.c.b16 %v4087, %v4086
        %v4135 = vpack.c.b16 %v4089, %v4088
        %v4136 = vpack.c.b16 %v4091, %v4090
        %v4137 = vpack.c.b16 %v4093, %v4092
        %v4138 = vpack.c.b16 %v4095, %v4094
        %v4139 = vpack.c.b16 %v4097, %v4096
        %v4140 = vpack.c.b16 %v4099, %v4098
        %v4141 = vpack.c.b16 %v4101, %v4100
        %v4142 = vpack.c.b16 %v4103, %v4102
        %v4143 = vpack.c.b16 %v4105, %v4104
        %v4144 = vpack.c.b16 %v4107, %v4106
        %v4145 = vpack.c.b16 %v4109, %v4108
        %v4146 = vpack.c.b16 %v4111, %v4110
        %v4147 = vpack.c.b16 %v4113, %v4112
        %v4148 = vpack.c.b16 %v4115, %v4114
        %v4149 = vpack.c.b16 %v4117, %v4116
        %4182 = vmatprep.subr.bf16.mxu0 0
        %4183 = vmatpush1.bf16.msra.mxu0 %v4125
        %4184 = vmatprep.subr.bf16.mxu0 0
        %4185 = vmatpush1.bf16.msra.mxu0 %v4124
        %4186 = vmatprep.subr.bf16.mxu0 0
        %4187 = vmatpush1.bf16.msra.mxu0 %v4123
        %4188 = vmatprep.subr.bf16.mxu0 0
        %4189 = vmatpush1.bf16.msra.mxu0 %v4122
        %4190 = vmatprep.subr.bf16.mxu0 0
        %4191 = vmatpush1.bf16.msra.mxu0 %v4121
        %4192 = vmatprep.subr.bf16.mxu0 0
        %4193 = vmatpush1.bf16.msra.mxu0 %v4120
        %4194 = vmatprep.subr.bf16.mxu0 0
        %4195 = vmatpush1.bf16.msra.mxu0 %v4119
        %4196 = vmatprep.subr.bf16.mxu0 0
        %4197 = vmatpush1.bf16.msra.mxu0 %v4118
        %4198 = vmatprep.subr.bf16.mxu0 0
        %4199 = vmatpush2.bf16.msra.mxu0 %v4133
        %4200 = vmatprep.subr.bf16.mxu0 0
        %4201 = vmatpush2.bf16.msra.mxu0 %v4132
        %4202 = vmatprep.subr.bf16.mxu0 0
        %4203 = vmatpush2.bf16.msra.mxu0 %v4131
        %4204 = vmatprep.subr.bf16.mxu0 0
        %4205 = vmatpush2.bf16.msra.mxu0 %v4130
        %4206 = vmatprep.subr.bf16.mxu0 0
        %4207 = vmatpush2.bf16.msra.mxu0 %v4129
        %4208 = vmatprep.subr.bf16.mxu0 0
        %4209 = vmatpush2.bf16.msra.mxu0 %v4128
        %4210 = vmatprep.subr.bf16.mxu0 0
        %4211 = vmatpush2.bf16.msra.mxu0 %v4127
        %4212 = vmatprep.subr.bf16.mxu0 0
        %4213 = vmatpush2.bf16.msra.mxu0 %v4126
        %4214 = vmatprep.mubr.bf16.mxu0 %v3983
        %4215 = vmatmul.mubr.bf16.gmra.mxu0 %v3976
        %v4216 = vpop.f32.mrf.mxu0
        %v4217 = vadd.f32 %v3959, %v4216
        %v4218 = vpop.f32.mrf.mxu0
        %v4219 = vpop.f32.mrf.mxu0
        %v4220 = vpop.f32.mrf.mxu0
        %4221 = vdwg.mxu0
        %4222 = vmatprep.subr.bf16.mxu0 0
        %4223 = vmatpush1.bf16.msra.mxu0 %v4141
        %4224 = vmatprep.subr.bf16.mxu0 0
        %4225 = vmatpush1.bf16.msra.mxu0 %v4140
        %4226 = vmatprep.subr.bf16.mxu0 0
        %4227 = vmatpush1.bf16.msra.mxu0 %v4139
        %4228 = vmatprep.subr.bf16.mxu0 0
        %4229 = vmatpush1.bf16.msra.mxu0 %v4138
        %4230 = vmatprep.subr.bf16.mxu0 0
        %4231 = vmatpush1.bf16.msra.mxu0 %v4137
        %4232 = vmatprep.subr.bf16.mxu0 0
        %4233 = vmatpush1.bf16.msra.mxu0 %v4136
        %4234 = vmatprep.subr.bf16.mxu0 0
        %4235 = vmatpush1.bf16.msra.mxu0 %v4135
        %4236 = vmatprep.subr.bf16.mxu0 0
        %4237 = vmatpush1.bf16.msra.mxu0 %v4134
        %4238 = vmatprep.subr.bf16.mxu0 0
        %4239 = vmatpush2.bf16.msra.mxu0 %v4149
        %4240 = vmatprep.subr.bf16.mxu0 0
        %4241 = vmatpush2.bf16.msra.mxu0 %v4148
        %4242 = vmatprep.subr.bf16.mxu0 0
        %4243 = vmatpush2.bf16.msra.mxu0 %v4147
        %4244 = vmatprep.subr.bf16.mxu0 0
        %4245 = vmatpush2.bf16.msra.mxu0 %v4146
        %4246 = vmatprep.subr.bf16.mxu0 0
        %4247 = vmatpush2.bf16.msra.mxu0 %v4145
        %4248 = vmatprep.subr.bf16.mxu0 0
        %4249 = vmatpush2.bf16.msra.mxu0 %v4144
        %4250 = vmatprep.subr.bf16.mxu0 0
        %4251 = vmatpush2.bf16.msra.mxu0 %v4143
        %4252 = vmatprep.subr.bf16.mxu0 0
        %4253 = vmatpush2.bf16.msra.mxu0 %v4142
        %4254 = vmatprep.mubr.bf16.mxu0 %v3985
        %4255 = vmatmul.mubr.bf16.gmra.mxu0 %v3984
        %v4256 = vpop.f32.mrf.mxu0
        %v4257 = vadd.f32 %v4217, %v4256
        %v4258 = vpop.f32.mrf.mxu0
        %v4259 = vpop.f32.mrf.mxu0
        %v4260 = vpop.f32.mrf.mxu0
        %4261 = vdwg.mxu0
        %v4262 = vmax.f32 %v4257, 0.0
        %v4263 = vpack.c.bf16 %v4262, %v4262
        %v4264 = vld [vmem:[#allocation3] sm:$0xff]
        %v4265 = vld [vmem:[%s1255] sm:$0xff]
        %v4266 = vld [vmem:[%s1255 + $0x8] sm:$0xff]
        %v4267 = vld [vmem:[%s1255 + $0x10] sm:$0xff]
        %v4268 = vld [vmem:[%s1255 + $0x18] sm:$0xff]
        %v4269 = vld [vmem:[%s1255 + $0x20] sm:$0xff]
        %v4270 = vld [vmem:[%s1255 + $0x28] sm:$0xff]
        %v4271 = vld [vmem:[%s1255 + $0x30] sm:$0xff]
        %v4272 = vld [vmem:[%s1255 + $0x38] sm:$0xff]
        %v4273 = vld [vmem:[%s1255 + $0x40] sm:$0xff]
        %v4274 = vld [vmem:[%s1255 + $0x48] sm:$0xff]
        %v4275 = vld [vmem:[%s1255 + $0x50] sm:$0xff]
        %v4276 = vld [vmem:[%s1255 + $0x58] sm:$0xff]
        %v4277 = vld [vmem:[%s1255 + $0x60] sm:$0xff]
        %v4278 = vld [vmem:[%s1255 + $0x68] sm:$0xff]
        %v4279 = vld [vmem:[%s1255 + $0x70] sm:$0xff]
        %v4280 = vld [vmem:[%s1255 + $0x78] sm:$0xff]
        %v4281 = vld [vmem:[%s1255 + $0x80] sm:$0xff]
        %v4282 = vld [vmem:[%s1255 + $0x88] sm:$0xff]
        %v4283 = vld [vmem:[%s1255 + $0x90] sm:$0xff]
        %v4284 = vld [vmem:[%s1255 + $0x98] sm:$0xff]
        %v4285 = vld [vmem:[%s1255 + $0xa0] sm:$0xff]
        %v4286 = vld [vmem:[%s1255 + $0xa8] sm:$0xff]
        %v4287 = vld [vmem:[%s1255 + $0xb0] sm:$0xff]
        %v4288 = vld [vmem:[%s1255 + $0xb8] sm:$0xff]
        %v4289 = vld [vmem:[%s1255 + $0xc0] sm:$0xff]
        %v4290 = vld [vmem:[%s1255 + $0xc8] sm:$0xff]
        %v4291 = vld [vmem:[%s1255 + $0xd0] sm:$0xff]
        %v4292 = vld [vmem:[%s1255 + $0xd8] sm:$0xff]
        %v4293 = vld [vmem:[%s1255 + $0xe0] sm:$0xff]
        %v4294 = vld [vmem:[%s1255 + $0xe8] sm:$0xff]
        %v4295 = vld [vmem:[%s1255 + $0xf0] sm:$0xff]
        %v4296 = vld [vmem:[%s1255 + $0xf8] sm:$0xff]
        %v4329 = vunpack.c.l.b16 %v4265
        %v4330 = vunpack.c.h.b16 %v4265
        %v4331 = vunpack.c.l.b16 %v4266
        %v4332 = vunpack.c.h.b16 %v4266
        %v4333 = vunpack.c.l.b16 %v4267
        %v4334 = vunpack.c.h.b16 %v4267
        %v4335 = vunpack.c.l.b16 %v4268
        %v4336 = vunpack.c.h.b16 %v4268
        %v4337 = vunpack.c.l.b16 %v4269
        %v4338 = vunpack.c.h.b16 %v4269
        %v4339 = vunpack.c.l.b16 %v4270
        %v4340 = vunpack.c.h.b16 %v4270
        %v4341 = vunpack.c.l.b16 %v4271
        %v4342 = vunpack.c.h.b16 %v4271
        %v4343 = vunpack.c.l.b16 %v4272
        %v4344 = vunpack.c.h.b16 %v4272
        %v4345 = vunpack.c.l.b16 %v4273
        %v4346 = vunpack.c.h.b16 %v4273
        %v4347 = vunpack.c.l.b16 %v4274
        %v4348 = vunpack.c.h.b16 %v4274
        %v4349 = vunpack.c.l.b16 %v4275
        %v4350 = vunpack.c.h.b16 %v4275
        %v4351 = vunpack.c.l.b16 %v4276
        %v4352 = vunpack.c.h.b16 %v4276
        %v4353 = vunpack.c.l.b16 %v4277
        %v4354 = vunpack.c.h.b16 %v4277
        %v4355 = vunpack.c.l.b16 %v4278
        %v4356 = vunpack.c.h.b16 %v4278
        %v4357 = vunpack.c.l.b16 %v4279
        %v4358 = vunpack.c.h.b16 %v4279
        %v4359 = vunpack.c.l.b16 %v4280
        %v4360 = vunpack.c.h.b16 %v4280
        %v4361 = vunpack.c.l.b16 %v4281
        %v4362 = vunpack.c.h.b16 %v4281
        %v4363 = vunpack.c.l.b16 %v4282
        %v4364 = vunpack.c.h.b16 %v4282
        %v4365 = vunpack.c.l.b16 %v4283
        %v4366 = vunpack.c.h.b16 %v4283
        %v4367 = vunpack.c.l.b16 %v4284
        %v4368 = vunpack.c.h.b16 %v4284
        %v4369 = vunpack.c.l.b16 %v4285
        %v4370 = vunpack.c.h.b16 %v4285
        %v4371 = vunpack.c.l.b16 %v4286
        %v4372 = vunpack.c.h.b16 %v4286
        %v4373 = vunpack.c.l.b16 %v4287
        %v4374 = vunpack.c.h.b16 %v4287
        %v4375 = vunpack.c.l.b16 %v4288
        %v4376 = vunpack.c.h.b16 %v4288
        %v4377 = vunpack.c.l.b16 %v4289
        %v4378 = vunpack.c.h.b16 %v4289
        %v4379 = vunpack.c.l.b16 %v4290
        %v4380 = vunpack.c.h.b16 %v4290
        %v4381 = vunpack.c.l.b16 %v4291
        %v4382 = vunpack.c.h.b16 %v4291
        %v4383 = vunpack.c.l.b16 %v4292
        %v4384 = vunpack.c.h.b16 %v4292
        %v4385 = vunpack.c.l.b16 %v4293
        %v4386 = vunpack.c.h.b16 %v4293
        %v4387 = vunpack.c.l.b16 %v4294
        %v4388 = vunpack.c.h.b16 %v4294
        %v4389 = vunpack.c.l.b16 %v4295
        %v4390 = vunpack.c.h.b16 %v4295
        %v4391 = vunpack.c.l.b16 %v4296
        %v4392 = vunpack.c.h.b16 %v4296
        %v4393 = vpack.c.b16 %v4333, %v4329
        %v4394 = vpack.c.b16 %v4334, %v4330
        %v4395 = vpack.c.b16 %v4335, %v4331
        %v4396 = vpack.c.b16 %v4336, %v4332
        %v4397 = vpack.c.b16 %v4341, %v4337
        %v4398 = vpack.c.b16 %v4342, %v4338
        %v4399 = vpack.c.b16 %v4343, %v4339
        %v4400 = vpack.c.b16 %v4344, %v4340
        %v4401 = vpack.c.b16 %v4349, %v4345
        %v4402 = vpack.c.b16 %v4350, %v4346
        %v4403 = vpack.c.b16 %v4351, %v4347
        %v4404 = vpack.c.b16 %v4352, %v4348
        %v4405 = vpack.c.b16 %v4357, %v4353
        %v4406 = vpack.c.b16 %v4358, %v4354
        %v4407 = vpack.c.b16 %v4359, %v4355
        %v4408 = vpack.c.b16 %v4360, %v4356
        %v4409 = vpack.c.b16 %v4365, %v4361
        %v4410 = vpack.c.b16 %v4366, %v4362
        %v4411 = vpack.c.b16 %v4367, %v4363
        %v4412 = vpack.c.b16 %v4368, %v4364
        %v4413 = vpack.c.b16 %v4373, %v4369
        %v4414 = vpack.c.b16 %v4374, %v4370
        %v4415 = vpack.c.b16 %v4375, %v4371
        %v4416 = vpack.c.b16 %v4376, %v4372
        %v4417 = vpack.c.b16 %v4381, %v4377
        %v4418 = vpack.c.b16 %v4382, %v4378
        %v4419 = vpack.c.b16 %v4383, %v4379
        %v4420 = vpack.c.b16 %v4384, %v4380
        %v4421 = vpack.c.b16 %v4389, %v4385
        %v4422 = vpack.c.b16 %v4390, %v4386
        %v4423 = vpack.c.b16 %v4391, %v4387
        %v4424 = vpack.c.b16 %v4392, %v4388
        %4457 = vmatprep.subr.bf16.mxu0 %v4422
        %4458 = vmatpush1.bf16.msra.mxu0 %v4421
        %4459 = vmatprep.subr.bf16.mxu0 %v4418
        %4460 = vmatpush1.bf16.msra.mxu0 %v4417
        %4461 = vmatprep.subr.bf16.mxu0 %v4414
        %4462 = vmatpush1.bf16.msra.mxu0 %v4413
        %4463 = vmatprep.subr.bf16.mxu0 %v4410
        %4464 = vmatpush1.bf16.msra.mxu0 %v4409
        %4465 = vmatprep.subr.bf16.mxu0 %v4406
        %4466 = vmatpush1.bf16.msra.mxu0 %v4405
        %4467 = vmatprep.subr.bf16.mxu0 %v4402
        %4468 = vmatpush1.bf16.msra.mxu0 %v4401
        %4469 = vmatprep.subr.bf16.mxu0 %v4398
        %4470 = vmatpush1.bf16.msra.mxu0 %v4397
        %4471 = vmatprep.subr.bf16.mxu0 %v4394
        %4472 = vmatpush1.bf16.msra.mxu0 %v4393
        %4473 = vmatprep.subr.bf16.mxu0 0
        %4474 = vmatpush2.bf16.msra.mxu0 0
        %4475 = vmatprep.subr.bf16.mxu0 0
        %4476 = vmatpush2.bf16.msra.mxu0 0
        %4477 = vmatprep.subr.bf16.mxu0 0
        %4478 = vmatpush2.bf16.msra.mxu0 0
        %4479 = vmatprep.subr.bf16.mxu0 0
        %4480 = vmatpush2.bf16.msra.mxu0 0
        %4481 = vmatprep.subr.bf16.mxu0 0
        %4482 = vmatpush2.bf16.msra.mxu0 0
        %4483 = vmatprep.subr.bf16.mxu0 0
        %4484 = vmatpush2.bf16.msra.mxu0 0
        %4485 = vmatprep.subr.bf16.mxu0 0
        %4486 = vmatpush2.bf16.msra.mxu0 0
        %4487 = vmatprep.subr.bf16.mxu0 0
        %4488 = vmatpush2.bf16.msra.mxu0 0
        %4489 = vmatprep.mubr.bf16.mxu0 0
        %4490 = vmatmul.mubr.bf16.gmra.mxu0 %v4263
        %v4491 = vpop.f32.mrf.mxu0
        %v4492 = vadd.f32 0.0, %v4491
        %v4493 = vpop.f32.mrf.mxu0
        %v4494 = vadd.f32 0.0, %v4493
        %v4495 = vpop.f32.mrf.mxu0
        %v4496 = vpop.f32.mrf.mxu0
        %4497 = vdwg.mxu0
        %4498 = vmatprep.subr.bf16.mxu0 %v4424
        %4499 = vmatpush1.bf16.msra.mxu0 %v4423
        %4500 = vmatprep.subr.bf16.mxu0 %v4420
        %4501 = vmatpush1.bf16.msra.mxu0 %v4419
        %4502 = vmatprep.subr.bf16.mxu0 %v4416
        %4503 = vmatpush1.bf16.msra.mxu0 %v4415
        %4504 = vmatprep.subr.bf16.mxu0 %v4412
        %4505 = vmatpush1.bf16.msra.mxu0 %v4411
        %4506 = vmatprep.subr.bf16.mxu0 %v4408
        %4507 = vmatpush1.bf16.msra.mxu0 %v4407
        %4508 = vmatprep.subr.bf16.mxu0 %v4404
        %4509 = vmatpush1.bf16.msra.mxu0 %v4403
        %4510 = vmatprep.subr.bf16.mxu0 %v4400
        %4511 = vmatpush1.bf16.msra.mxu0 %v4399
        %4512 = vmatprep.subr.bf16.mxu0 %v4396
        %4513 = vmatpush1.bf16.msra.mxu0 %v4395
        %4514 = vmatprep.subr.bf16.mxu0 0
        %4515 = vmatpush2.bf16.msra.mxu0 0
        %4516 = vmatprep.subr.bf16.mxu0 0
        %4517 = vmatpush2.bf16.msra.mxu0 0
        %4518 = vmatprep.subr.bf16.mxu0 0
        %4519 = vmatpush2.bf16.msra.mxu0 0
        %4520 = vmatprep.subr.bf16.mxu0 0
        %4521 = vmatpush2.bf16.msra.mxu0 0
        %4522 = vmatprep.subr.bf16.mxu0 0
        %4523 = vmatpush2.bf16.msra.mxu0 0
        %4524 = vmatprep.subr.bf16.mxu0 0
        %4525 = vmatpush2.bf16.msra.mxu0 0
        %4526 = vmatprep.subr.bf16.mxu0 0
        %4527 = vmatpush2.bf16.msra.mxu0 0
        %4528 = vmatprep.subr.bf16.mxu0 0
        %4529 = vmatpush2.bf16.msra.mxu0 0
        %4530 = vmatprep.mubr.bf16.mxu0 0
        %4531 = vmatmul.mubr.bf16.gmra.mxu0 %v4263
        %v4532 = vpop.f32.mrf.mxu0
        %v4533 = vadd.f32 0.0, %v4532
        %v4534 = vpop.f32.mrf.mxu0
        %v4535 = vadd.f32 0.0, %v4534
        %v4536 = vpop.f32.mrf.mxu0
        %v4537 = vpop.f32.mrf.mxu0
        %4538 = vdwg.mxu0
        %v4543 = vcombine.low %v4492, %v4494
        %v4544 = vcombine.low %v4533, %v4535
        %v4546 = vunpack.c.l.s4 1983009808
        %v4547 = vunpack.c.0.s8 %v4546
        %v4548 = vlaneseq
        %v4549 = vshrl.u32 %v4548, 7
        %v4550 = vsub.s32 %v4547, %v4549
        %v4551 = vrot.slane %v4543, %v4550
        %v4553 = vunpack.c.l.s4 1983009808
        %v4554 = vunpack.c.0.s8 %v4553
        %v4555 = vlaneseq
        %v4556 = vshrl.u32 %v4555, 7
        %v4557 = vsub.s32 %v4554, %v4556
        %v4558 = vrot.slane %v4544, %v4557
        %v4559 = vcombine.low %v4551, %v4558
        %v4561 = vadd.f32 %v4264, %v4559
        %4562 = vst [vmem:[#allocation3] sm:$0xff] %v4561
        %p4563 = scmp.eq.s32.totalorder %s94, 7
        // Predicated region
        $region253: #{tpu_custom_call.1} parent=135 // pred_check
          %p4564 = pneg %p4563
        $region254: #{tpu_custom_call.1} parent=135 // pred_check_branch
          %4566 = sbr.rel (%p4564) target = $region256
        $region255: #{tpu_custom_call.1} parent=135 // pred_region
          %v4567 = vld [vmem:[#allocation2] sm:$0xff]
          %v4568 = vld [vmem:[#allocation15] sm:$0xf]
          %v4570 = vlaneseq
          %v4571 = vshrl.u32 %v4570, 7
          %v4572 = vsub.s32 0, %v4571
          %v4573 = vrot.slane %v4568, %v4572
          %v4574 = vlaneseq
          %v4575 = vshrl.u32 %v4574, 7
          %v4576 = vsub.s32 1, %v4575
          %v4577 = vrot.slane %v4568, %v4576
          %v4578 = vlaneseq
          %v4579 = vshrl.u32 %v4578, 7
          %v4580 = vsub.s32 2, %v4579
          %v4581 = vrot.slane %v4568, %v4580
          %v4582 = vlaneseq
          %v4583 = vshrl.u32 %v4582, 7
          %v4584 = vsub.s32 3, %v4583
          %v4585 = vrot.slane %v4568, %v4584
          %v4586 = vcombine.low %v4573, %v4577
          %v4587 = vcombine.low %v4581, %v4585
          %v4589 = vunpack.c.l.s4 1983009808
          %v4590 = vunpack.c.0.s8 %v4589
          %v4591 = vlaneseq
          %v4592 = vshrl.u32 %v4591, 7
          %v4593 = vsub.s32 %v4590, %v4592
          %v4594 = vrot.slane %v4586, %v4593
          %v4596 = vunpack.c.l.s4 1983009808
          %v4597 = vunpack.c.0.s8 %v4596
          %v4598 = vlaneseq
          %v4599 = vshrl.u32 %v4598, 7
          %v4600 = vsub.s32 %v4597, %v4599
          %v4601 = vrot.slane %v4587, %v4600
          %v4602 = vcombine.low %v4594, %v4601
          %v4604 = vadd.f32 %v4567, %v4602
          %v4605 = vmax.f32 %v4604, 0.0
          %v4607 = vcombine.high %v4605, %v4605
          %v4609 = vunpack.c.l.s4 1983009808
          %v4610 = vunpack.c.0.s8 %v4609
          %v4611 = vlaneseq
          %v4612 = vshrl.u32 %v4611, 7
          %v4613 = vsub.s32 %v4610, %v4612
          %v4614 = vrot.slane %v4605, %v4613
          %v4616 = vunpack.c.l.s4 1983009808
          %v4617 = vunpack.c.0.s8 %v4616
          %v4618 = vlaneseq
          %v4619 = vshrl.u32 %v4618, 7
          %v4620 = vsub.s32 %v4617, %v4619
          %v4621 = vrot.slane %v4607, %v4620
          %v4622 = vcombine.high %v4614, %v4614
          %v4623 = vcombine.high %v4621, %v4621
          %v4628 = vpack.c.bf16 %v4614, %v4614
          %v4629 = vpack.c.bf16 %v4622, %v4622
          %v4630 = vpack.c.bf16 %v4621, %v4621
          %v4631 = vpack.c.bf16 %v4623, %v4623
          %v4632 = vld [vmem:[#allocation16] sm:$0xff]
          %v4633 = vld [vmem:[#allocation16 + $0x8] sm:$0xff]
          %v4634 = vld [vmem:[#allocation16 + $0x10] sm:$0xff]
          %v4635 = vld [vmem:[#allocation16 + $0x18] sm:$0xff]
          %v4636 = vld [vmem:[#allocation16 + $0x20] sm:$0xff]
          %v4637 = vld [vmem:[#allocation16 + $0x28] sm:$0xff]
          %v4638 = vld [vmem:[#allocation16 + $0x30] sm:$0xff]
          %v4639 = vld [vmem:[#allocation16 + $0x38] sm:$0xff]
          %v4640 = vld [vmem:[#allocation16 + $0x40] sm:$0xff]
          %v4641 = vld [vmem:[#allocation16 + $0x48] sm:$0xff]
          %v4642 = vld [vmem:[#allocation16 + $0x50] sm:$0xff]
          %v4643 = vld [vmem:[#allocation16 + $0x58] sm:$0xff]
          %v4644 = vld [vmem:[#allocation16 + $0x60] sm:$0xff]
          %v4645 = vld [vmem:[#allocation16 + $0x68] sm:$0xff]
          %v4646 = vld [vmem:[#allocation16 + $0x70] sm:$0xff]
          %v4647 = vld [vmem:[#allocation16 + $0x78] sm:$0xff]
          %v4648 = vld [vmem:[#allocation16 + $0x80] sm:$0xff]
          %v4649 = vld [vmem:[#allocation16 + $0x88] sm:$0xff]
          %v4650 = vld [vmem:[#allocation16 + $0x90] sm:$0xff]
          %v4651 = vld [vmem:[#allocation16 + $0x98] sm:$0xff]
          %v4652 = vld [vmem:[#allocation16 + $0xa0] sm:$0xff]
          %v4653 = vld [vmem:[#allocation16 + $0xa8] sm:$0xff]
          %v4654 = vld [vmem:[#allocation16 + $0xb0] sm:$0xff]
          %v4655 = vld [vmem:[#allocation16 + $0xb8] sm:$0xff]
          %v4656 = vld [vmem:[#allocation16 + $0xc0] sm:$0xff]
          %v4657 = vld [vmem:[#allocation16 + $0xc8] sm:$0xff]
          %v4658 = vld [vmem:[#allocation16 + $0xd0] sm:$0xff]
          %v4659 = vld [vmem:[#allocation16 + $0xd8] sm:$0xff]
          %v4660 = vld [vmem:[#allocation16 + $0xe0] sm:$0xff]
          %v4661 = vld [vmem:[#allocation16 + $0xe8] sm:$0xff]
          %v4662 = vld [vmem:[#allocation16 + $0xf0] sm:$0xff]
          %v4663 = vld [vmem:[#allocation16 + $0xf8] sm:$0xff]
          %v4664 = vld [vmem:[#allocation16 + $0x100] sm:$0xff]
          %v4665 = vld [vmem:[#allocation16 + $0x108] sm:$0xff]
          %v4666 = vld [vmem:[#allocation16 + $0x110] sm:$0xff]
          %v4667 = vld [vmem:[#allocation16 + $0x118] sm:$0xff]
          %v4668 = vld [vmem:[#allocation16 + $0x120] sm:$0xff]
          %v4669 = vld [vmem:[#allocation16 + $0x128] sm:$0xff]
          %v4670 = vld [vmem:[#allocation16 + $0x130] sm:$0xff]
          %v4671 = vld [vmem:[#allocation16 + $0x138] sm:$0xff]
          %v4672 = vld [vmem:[#allocation16 + $0x140] sm:$0xff]
          %v4673 = vld [vmem:[#allocation16 + $0x148] sm:$0xff]
          %v4674 = vld [vmem:[#allocation16 + $0x150] sm:$0xff]
          %v4675 = vld [vmem:[#allocation16 + $0x158] sm:$0xff]
          %v4676 = vld [vmem:[#allocation16 + $0x160] sm:$0xff]
          %v4677 = vld [vmem:[#allocation16 + $0x168] sm:$0xff]
          %v4678 = vld [vmem:[#allocation16 + $0x170] sm:$0xff]
          %v4679 = vld [vmem:[#allocation16 + $0x178] sm:$0xff]
          %v4680 = vld [vmem:[#allocation16 + $0x180] sm:$0xff]
          %v4681 = vld [vmem:[#allocation16 + $0x188] sm:$0xff]
          %v4682 = vld [vmem:[#allocation16 + $0x190] sm:$0xff]
          %v4683 = vld [vmem:[#allocation16 + $0x198] sm:$0xff]
          %v4684 = vld [vmem:[#allocation16 + $0x1a0] sm:$0xff]
          %v4685 = vld [vmem:[#allocation16 + $0x1a8] sm:$0xff]
          %v4686 = vld [vmem:[#allocation16 + $0x1b0] sm:$0xff]
          %v4687 = vld [vmem:[#allocation16 + $0x1b8] sm:$0xff]
          %v4688 = vld [vmem:[#allocation16 + $0x1c0] sm:$0xff]
          %v4689 = vld [vmem:[#allocation16 + $0x1c8] sm:$0xff]
          %v4690 = vld [vmem:[#allocation16 + $0x1d0] sm:$0xff]
          %v4691 = vld [vmem:[#allocation16 + $0x1d8] sm:$0xff]
          %v4692 = vld [vmem:[#allocation16 + $0x1e0] sm:$0xff]
          %v4693 = vld [vmem:[#allocation16 + $0x1e8] sm:$0xff]
          %v4694 = vld [vmem:[#allocation16 + $0x1f0] sm:$0xff]
          %v4695 = vld [vmem:[#allocation16 + $0x1f8] sm:$0xff]
          %v4696 = vld [vmem:[#allocation18] sm:$0x3]
          %v4698 = vlaneseq
          %v4699 = vshrl.u32 %v4698, 7
          %v4700 = vsub.s32 0, %v4699
          %v4701 = vrot.slane %v4696, %v4700
          %v4702 = vlaneseq
          %v4703 = vshrl.u32 %v4702, 7
          %v4704 = vsub.s32 1, %v4703
          %v4705 = vrot.slane %v4696, %v4704
          %v4772 = vunpack.c.l.b16 %v4632
          %v4773 = vunpack.c.h.b16 %v4632
          %v4774 = vunpack.c.l.b16 %v4633
          %v4775 = vunpack.c.h.b16 %v4633
          %v4776 = vunpack.c.l.b16 %v4634
          %v4777 = vunpack.c.h.b16 %v4634
          %v4778 = vunpack.c.l.b16 %v4635
          %v4779 = vunpack.c.h.b16 %v4635
          %v4780 = vunpack.c.l.b16 %v4636
          %v4781 = vunpack.c.h.b16 %v4636
          %v4782 = vunpack.c.l.b16 %v4637
          %v4783 = vunpack.c.h.b16 %v4637
          %v4784 = vunpack.c.l.b16 %v4638
          %v4785 = vunpack.c.h.b16 %v4638
          %v4786 = vunpack.c.l.b16 %v4639
          %v4787 = vunpack.c.h.b16 %v4639
          %v4788 = vunpack.c.l.b16 %v4640
          %v4789 = vunpack.c.h.b16 %v4640
          %v4790 = vunpack.c.l.b16 %v4641
          %v4791 = vunpack.c.h.b16 %v4641
          %v4792 = vunpack.c.l.b16 %v4642
          %v4793 = vunpack.c.h.b16 %v4642
          %v4794 = vunpack.c.l.b16 %v4643
          %v4795 = vunpack.c.h.b16 %v4643
          %v4796 = vunpack.c.l.b16 %v4644
          %v4797 = vunpack.c.h.b16 %v4644
          %v4798 = vunpack.c.l.b16 %v4645
          %v4799 = vunpack.c.h.b16 %v4645
          %v4800 = vunpack.c.l.b16 %v4646
          %v4801 = vunpack.c.h.b16 %v4646
          %v4802 = vunpack.c.l.b16 %v4647
          %v4803 = vunpack.c.h.b16 %v4647
          %v4804 = vunpack.c.l.b16 %v4648
          %v4805 = vunpack.c.h.b16 %v4648
          %v4806 = vunpack.c.l.b16 %v4649
          %v4807 = vunpack.c.h.b16 %v4649
          %v4808 = vunpack.c.l.b16 %v4650
          %v4809 = vunpack.c.h.b16 %v4650
          %v4810 = vunpack.c.l.b16 %v4651
          %v4811 = vunpack.c.h.b16 %v4651
          %v4812 = vunpack.c.l.b16 %v4652
          %v4813 = vunpack.c.h.b16 %v4652
          %v4814 = vunpack.c.l.b16 %v4653
          %v4815 = vunpack.c.h.b16 %v4653
          %v4816 = vunpack.c.l.b16 %v4654
          %v4817 = vunpack.c.h.b16 %v4654
          %v4818 = vunpack.c.l.b16 %v4655
          %v4819 = vunpack.c.h.b16 %v4655
          %v4820 = vunpack.c.l.b16 %v4656
          %v4821 = vunpack.c.h.b16 %v4656
          %v4822 = vunpack.c.l.b16 %v4657
          %v4823 = vunpack.c.h.b16 %v4657
          %v4824 = vunpack.c.l.b16 %v4658
          %v4825 = vunpack.c.h.b16 %v4658
          %v4826 = vunpack.c.l.b16 %v4659
          %v4827 = vunpack.c.h.b16 %v4659
          %v4828 = vunpack.c.l.b16 %v4660
          %v4829 = vunpack.c.h.b16 %v4660
          %v4830 = vunpack.c.l.b16 %v4661
          %v4831 = vunpack.c.h.b16 %v4661
          %v4832 = vunpack.c.l.b16 %v4662
          %v4833 = vunpack.c.h.b16 %v4662
          %v4834 = vunpack.c.l.b16 %v4663
          %v4835 = vunpack.c.h.b16 %v4663
          %v4836 = vunpack.c.l.b16 %v4664
          %v4837 = vunpack.c.h.b16 %v4664
          %v4838 = vunpack.c.l.b16 %v4665
          %v4839 = vunpack.c.h.b16 %v4665
          %v4840 = vunpack.c.l.b16 %v4666
          %v4841 = vunpack.c.h.b16 %v4666
          %v4842 = vunpack.c.l.b16 %v4667
          %v4843 = vunpack.c.h.b16 %v4667
          %v4844 = vunpack.c.l.b16 %v4668
          %v4845 = vunpack.c.h.b16 %v4668
          %v4846 = vunpack.c.l.b16 %v4669
          %v4847 = vunpack.c.h.b16 %v4669
          %v4848 = vunpack.c.l.b16 %v4670
          %v4849 = vunpack.c.h.b16 %v4670
          %v4850 = vunpack.c.l.b16 %v4671
          %v4851 = vunpack.c.h.b16 %v4671
          %v4852 = vunpack.c.l.b16 %v4672
          %v4853 = vunpack.c.h.b16 %v4672
          %v4854 = vunpack.c.l.b16 %v4673
          %v4855 = vunpack.c.h.b16 %v4673
          %v4856 = vunpack.c.l.b16 %v4674
          %v4857 = vunpack.c.h.b16 %v4674
          %v4858 = vunpack.c.l.b16 %v4675
          %v4859 = vunpack.c.h.b16 %v4675
          %v4860 = vunpack.c.l.b16 %v4676
          %v4861 = vunpack.c.h.b16 %v4676
          %v4862 = vunpack.c.l.b16 %v4677
          %v4863 = vunpack.c.h.b16 %v4677
          %v4864 = vunpack.c.l.b16 %v4678
          %v4865 = vunpack.c.h.b16 %v4678
          %v4866 = vunpack.c.l.b16 %v4679
          %v4867 = vunpack.c.h.b16 %v4679
          %v4868 = vunpack.c.l.b16 %v4680
          %v4869 = vunpack.c.h.b16 %v4680
          %v4870 = vunpack.c.l.b16 %v4681
          %v4871 = vunpack.c.h.b16 %v4681
          %v4872 = vunpack.c.l.b16 %v4682
          %v4873 = vunpack.c.h.b16 %v4682
          %v4874 = vunpack.c.l.b16 %v4683
          %v4875 = vunpack.c.h.b16 %v4683
          %v4876 = vunpack.c.l.b16 %v4684
          %v4877 = vunpack.c.h.b16 %v4684
          %v4878 = vunpack.c.l.b16 %v4685
          %v4879 = vunpack.c.h.b16 %v4685
          %v4880 = vunpack.c.l.b16 %v4686
          %v4881 = vunpack.c.h.b16 %v4686
          %v4882 = vunpack.c.l.b16 %v4687
          %v4883 = vunpack.c.h.b16 %v4687
          %v4884 = vunpack.c.l.b16 %v4688
          %v4885 = vunpack.c.h.b16 %v4688
          %v4886 = vunpack.c.l.b16 %v4689
          %v4887 = vunpack.c.h.b16 %v4689
          %v4888 = vunpack.c.l.b16 %v4690
          %v4889 = vunpack.c.h.b16 %v4690
          %v4890 = vunpack.c.l.b16 %v4691
          %v4891 = vunpack.c.h.b16 %v4691
          %v4892 = vunpack.c.l.b16 %v4692
          %v4893 = vunpack.c.h.b16 %v4692
          %v4894 = vunpack.c.l.b16 %v4693
          %v4895 = vunpack.c.h.b16 %v4693
          %v4896 = vunpack.c.l.b16 %v4694
          %v4897 = vunpack.c.h.b16 %v4694
          %v4898 = vunpack.c.l.b16 %v4695
          %v4899 = vunpack.c.h.b16 %v4695
          %v4900 = vpack.c.b16 %v4774, %v4772
          %v4901 = vpack.c.b16 %v4775, %v4773
          %v4902 = vpack.c.b16 %v4778, %v4776
          %v4903 = vpack.c.b16 %v4779, %v4777
          %v4904 = vpack.c.b16 %v4782, %v4780
          %v4905 = vpack.c.b16 %v4783, %v4781
          %v4906 = vpack.c.b16 %v4786, %v4784
          %v4907 = vpack.c.b16 %v4787, %v4785
          %v4908 = vpack.c.b16 %v4790, %v4788
          %v4909 = vpack.c.b16 %v4791, %v4789
          %v4910 = vpack.c.b16 %v4794, %v4792
          %v4911 = vpack.c.b16 %v4795, %v4793
          %v4912 = vpack.c.b16 %v4798, %v4796
          %v4913 = vpack.c.b16 %v4799, %v4797
          %v4914 = vpack.c.b16 %v4802, %v4800
          %v4915 = vpack.c.b16 %v4803, %v4801
          %v4916 = vpack.c.b16 %v4806, %v4804
          %v4917 = vpack.c.b16 %v4807, %v4805
          %v4918 = vpack.c.b16 %v4810, %v4808
          %v4919 = vpack.c.b16 %v4811, %v4809
          %v4920 = vpack.c.b16 %v4814, %v4812
          %v4921 = vpack.c.b16 %v4815, %v4813
          %v4922 = vpack.c.b16 %v4818, %v4816
          %v4923 = vpack.c.b16 %v4819, %v4817
          %v4924 = vpack.c.b16 %v4822, %v4820
          %v4925 = vpack.c.b16 %v4823, %v4821
          %v4926 = vpack.c.b16 %v4826, %v4824
          %v4927 = vpack.c.b16 %v4827, %v4825
          %v4928 = vpack.c.b16 %v4830, %v4828
          %v4929 = vpack.c.b16 %v4831, %v4829
          %v4930 = vpack.c.b16 %v4834, %v4832
          %v4931 = vpack.c.b16 %v4835, %v4833
          %v4932 = vpack.c.b16 %v4838, %v4836
          %v4933 = vpack.c.b16 %v4839, %v4837
          %v4934 = vpack.c.b16 %v4842, %v4840
          %v4935 = vpack.c.b16 %v4843, %v4841
          %v4936 = vpack.c.b16 %v4846, %v4844
          %v4937 = vpack.c.b16 %v4847, %v4845
          %v4938 = vpack.c.b16 %v4850, %v4848
          %v4939 = vpack.c.b16 %v4851, %v4849
          %v4940 = vpack.c.b16 %v4854, %v4852
          %v4941 = vpack.c.b16 %v4855, %v4853
          %v4942 = vpack.c.b16 %v4858, %v4856
          %v4943 = vpack.c.b16 %v4859, %v4857
          %v4944 = vpack.c.b16 %v4862, %v4860
          %v4945 = vpack.c.b16 %v4863, %v4861
          %v4946 = vpack.c.b16 %v4866, %v4864
          %v4947 = vpack.c.b16 %v4867, %v4865
          %v4948 = vpack.c.b16 %v4870, %v4868
          %v4949 = vpack.c.b16 %v4871, %v4869
          %v4950 = vpack.c.b16 %v4874, %v4872
          %v4951 = vpack.c.b16 %v4875, %v4873
          %v4952 = vpack.c.b16 %v4878, %v4876
          %v4953 = vpack.c.b16 %v4879, %v4877
          %v4954 = vpack.c.b16 %v4882, %v4880
          %v4955 = vpack.c.b16 %v4883, %v4881
          %v4956 = vpack.c.b16 %v4886, %v4884
          %v4957 = vpack.c.b16 %v4887, %v4885
          %v4958 = vpack.c.b16 %v4890, %v4888
          %v4959 = vpack.c.b16 %v4891, %v4889
          %v4960 = vpack.c.b16 %v4894, %v4892
          %v4961 = vpack.c.b16 %v4895, %v4893
          %v4962 = vpack.c.b16 %v4898, %v4896
          %v4963 = vpack.c.b16 %v4899, %v4897
          %5028 = vmatprep.subr.bf16.mxu0 %v4915
          %5029 = vmatpush1.bf16.msra.mxu0 %v4914
          %5030 = vmatprep.subr.bf16.mxu0 %v4913
          %5031 = vmatpush1.bf16.msra.mxu0 %v4912
          %5032 = vmatprep.subr.bf16.mxu0 %v4911
          %5033 = vmatpush1.bf16.msra.mxu0 %v4910
          %5034 = vmatprep.subr.bf16.mxu0 %v4909
          %5035 = vmatpush1.bf16.msra.mxu0 %v4908
          %5036 = vmatprep.subr.bf16.mxu0 %v4907
          %5037 = vmatpush1.bf16.msra.mxu0 %v4906
          %5038 = vmatprep.subr.bf16.mxu0 %v4905
          %5039 = vmatpush1.bf16.msra.mxu0 %v4904
          %5040 = vmatprep.subr.bf16.mxu0 %v4903
          %5041 = vmatpush1.bf16.msra.mxu0 %v4902
          %5042 = vmatprep.subr.bf16.mxu0 %v4901
          %5043 = vmatpush1.bf16.msra.mxu0 %v4900
          %5044 = vmatprep.subr.bf16.mxu0 %v4931
          %5045 = vmatpush2.bf16.msra.mxu0 %v4930
          %5046 = vmatprep.subr.bf16.mxu0 %v4929
          %5047 = vmatpush2.bf16.msra.mxu0 %v4928
          %5048 = vmatprep.subr.bf16.mxu0 %v4927
          %5049 = vmatpush2.bf16.msra.mxu0 %v4926
          %5050 = vmatprep.subr.bf16.mxu0 %v4925
          %5051 = vmatpush2.bf16.msra.mxu0 %v4924
          %5052 = vmatprep.subr.bf16.mxu0 %v4923
          %5053 = vmatpush2.bf16.msra.mxu0 %v4922
          %5054 = vmatprep.subr.bf16.mxu0 %v4921
          %5055 = vmatpush2.bf16.msra.mxu0 %v4920
          %5056 = vmatprep.subr.bf16.mxu0 %v4919
          %5057 = vmatpush2.bf16.msra.mxu0 %v4918
          %5058 = vmatprep.subr.bf16.mxu0 %v4917
          %5059 = vmatpush2.bf16.msra.mxu0 %v4916
          %5060 = vmatprep.mubr.bf16.mxu0 %v4629
          %5061 = vmatmul.mubr.bf16.gmra.mxu0 %v4628
          %v5062 = vpop.f32.mrf.mxu0
          %v5063 = vadd.f32 %v4701, %v5062
          %v5064 = vpop.f32.mrf.mxu0
          %v5065 = vadd.f32 %v4705, %v5064
          %v5066 = vpop.f32.mrf.mxu0
          %v5067 = vpop.f32.mrf.mxu0
          %5068 = vdwg.mxu0
          %5069 = vmatprep.subr.bf16.mxu0 %v4947
          %5070 = vmatpush1.bf16.msra.mxu0 %v4946
          %5071 = vmatprep.subr.bf16.mxu0 %v4945
          %5072 = vmatpush1.bf16.msra.mxu0 %v4944
          %5073 = vmatprep.subr.bf16.mxu0 %v4943
          %5074 = vmatpush1.bf16.msra.mxu0 %v4942
          %5075 = vmatprep.subr.bf16.mxu0 %v4941
          %5076 = vmatpush1.bf16.msra.mxu0 %v4940
          %5077 = vmatprep.subr.bf16.mxu0 %v4939
          %5078 = vmatpush1.bf16.msra.mxu0 %v4938
          %5079 = vmatprep.subr.bf16.mxu0 %v4937
          %5080 = vmatpush1.bf16.msra.mxu0 %v4936
          %5081 = vmatprep.subr.bf16.mxu0 %v4935
          %5082 = vmatpush1.bf16.msra.mxu0 %v4934
          %5083 = vmatprep.subr.bf16.mxu0 %v4933
          %5084 = vmatpush1.bf16.msra.mxu0 %v4932
          %5085 = vmatprep.subr.bf16.mxu0 %v4963
          %5086 = vmatpush2.bf16.msra.mxu0 %v4962
          %5087 = vmatprep.subr.bf16.mxu0 %v4961
          %5088 = vmatpush2.bf16.msra.mxu0 %v4960
          %5089 = vmatprep.subr.bf16.mxu0 %v4959
          %5090 = vmatpush2.bf16.msra.mxu0 %v4958
          %5091 = vmatprep.subr.bf16.mxu0 %v4957
          %5092 = vmatpush2.bf16.msra.mxu0 %v4956
          %5093 = vmatprep.subr.bf16.mxu0 %v4955
          %5094 = vmatpush2.bf16.msra.mxu0 %v4954
          %5095 = vmatprep.subr.bf16.mxu0 %v4953
          %5096 = vmatpush2.bf16.msra.mxu0 %v4952
          %5097 = vmatprep.subr.bf16.mxu0 %v4951
          %5098 = vmatpush2.bf16.msra.mxu0 %v4950
          %5099 = vmatprep.subr.bf16.mxu0 %v4949
          %5100 = vmatpush2.bf16.msra.mxu0 %v4948
          %5101 = vmatprep.mubr.bf16.mxu0 %v4631
          %5102 = vmatmul.mubr.bf16.gmra.mxu0 %v4630
          %v5103 = vpop.f32.mrf.mxu0
          %v5104 = vadd.f32 %v5063, %v5103
          %v5105 = vpop.f32.mrf.mxu0
          %v5106 = vadd.f32 %v5065, %v5105
          %v5107 = vpop.f32.mrf.mxu0
          %v5108 = vpop.f32.mrf.mxu0
          %5109 = vdwg.mxu0
          %v5110 = vmax.f32 %v5104, 0.0
          %v5111 = vmax.f32 %v5106, 0.0
          %v5112 = vpack.c.bf16 %v5110, %v5110
          %v5113 = vpack.c.bf16 %v5111, %v5111
          %v5114 = vld [vmem:[#allocation19] sm:$0xff]
          %v5115 = vld [vmem:[#allocation19 + $0x8] sm:$0xff]
          %v5116 = vld [vmem:[#allocation19 + $0x10] sm:$0xff]
          %v5117 = vld [vmem:[#allocation19 + $0x18] sm:$0xff]
          %v5118 = vld [vmem:[#allocation19 + $0x20] sm:$0xff]
          %v5119 = vld [vmem:[#allocation19 + $0x28] sm:$0xff]
          %v5120 = vld [vmem:[#allocation19 + $0x30] sm:$0xff]
          %v5121 = vld [vmem:[#allocation19 + $0x38] sm:$0xff]
          %v5122 = vld [vmem:[#allocation19 + $0x40] sm:$0xff]
          %v5123 = vld [vmem:[#allocation19 + $0x48] sm:$0xff]
          %v5124 = vld [vmem:[#allocation19 + $0x50] sm:$0xff]
          %v5125 = vld [vmem:[#allocation19 + $0x58] sm:$0xff]
          %v5126 = vld [vmem:[#allocation19 + $0x60] sm:$0xff]
          %v5127 = vld [vmem:[#allocation19 + $0x68] sm:$0xff]
          %v5128 = vld [vmem:[#allocation19 + $0x70] sm:$0xff]
          %v5129 = vld [vmem:[#allocation19 + $0x78] sm:$0xff]
          %v5130 = vld [vmem:[#allocation19 + $0x80] sm:$0xff]
          %v5131 = vld [vmem:[#allocation19 + $0x88] sm:$0xff]
          %v5132 = vld [vmem:[#allocation19 + $0x90] sm:$0xff]
          %v5133 = vld [vmem:[#allocation19 + $0x98] sm:$0xff]
          %v5134 = vld [vmem:[#allocation19 + $0xa0] sm:$0xff]
          %v5135 = vld [vmem:[#allocation19 + $0xa8] sm:$0xff]
          %v5136 = vld [vmem:[#allocation19 + $0xb0] sm:$0xff]
          %v5137 = vld [vmem:[#allocation19 + $0xb8] sm:$0xff]
          %v5138 = vld [vmem:[#allocation19 + $0xc0] sm:$0xff]
          %v5139 = vld [vmem:[#allocation19 + $0xc8] sm:$0xff]
          %v5140 = vld [vmem:[#allocation19 + $0xd0] sm:$0xff]
          %v5141 = vld [vmem:[#allocation19 + $0xd8] sm:$0xff]
          %v5142 = vld [vmem:[#allocation19 + $0xe0] sm:$0xff]
          %v5143 = vld [vmem:[#allocation19 + $0xe8] sm:$0xff]
          %v5144 = vld [vmem:[#allocation19 + $0xf0] sm:$0xff]
          %v5145 = vld [vmem:[#allocation19 + $0xf8] sm:$0xff]
          %v5146 = vld [vmem:[#allocation21] sm:$0x3]
          %v5148 = vlaneseq
          %v5149 = vshrl.u32 %v5148, 7
          %v5150 = vsub.s32 0, %v5149
          %v5151 = vrot.slane %v5146, %v5150
          %v5152 = vlaneseq
          %v5153 = vshrl.u32 %v5152, 7
          %v5154 = vsub.s32 1, %v5153
          %v5155 = vrot.slane %v5146, %v5154
          %v5190 = vunpack.c.l.b16 %v5114
          %v5191 = vunpack.c.h.b16 %v5114
          %v5192 = vunpack.c.l.b16 %v5115
          %v5193 = vunpack.c.h.b16 %v5115
          %v5194 = vunpack.c.l.b16 %v5116
          %v5195 = vunpack.c.h.b16 %v5116
          %v5196 = vunpack.c.l.b16 %v5117
          %v5197 = vunpack.c.h.b16 %v5117
          %v5198 = vunpack.c.l.b16 %v5118
          %v5199 = vunpack.c.h.b16 %v5118
          %v5200 = vunpack.c.l.b16 %v5119
          %v5201 = vunpack.c.h.b16 %v5119
          %v5202 = vunpack.c.l.b16 %v5120
          %v5203 = vunpack.c.h.b16 %v5120
          %v5204 = vunpack.c.l.b16 %v5121
          %v5205 = vunpack.c.h.b16 %v5121
          %v5206 = vunpack.c.l.b16 %v5122
          %v5207 = vunpack.c.h.b16 %v5122
          %v5208 = vunpack.c.l.b16 %v5123
          %v5209 = vunpack.c.h.b16 %v5123
          %v5210 = vunpack.c.l.b16 %v5124
          %v5211 = vunpack.c.h.b16 %v5124
          %v5212 = vunpack.c.l.b16 %v5125
          %v5213 = vunpack.c.h.b16 %v5125
          %v5214 = vunpack.c.l.b16 %v5126
          %v5215 = vunpack.c.h.b16 %v5126
          %v5216 = vunpack.c.l.b16 %v5127
          %v5217 = vunpack.c.h.b16 %v5127
          %v5218 = vunpack.c.l.b16 %v5128
          %v5219 = vunpack.c.h.b16 %v5128
          %v5220 = vunpack.c.l.b16 %v5129
          %v5221 = vunpack.c.h.b16 %v5129
          %v5222 = vunpack.c.l.b16 %v5130
          %v5223 = vunpack.c.h.b16 %v5130
          %v5224 = vunpack.c.l.b16 %v5131
          %v5225 = vunpack.c.h.b16 %v5131
          %v5226 = vunpack.c.l.b16 %v5132
          %v5227 = vunpack.c.h.b16 %v5132
          %v5228 = vunpack.c.l.b16 %v5133
          %v5229 = vunpack.c.h.b16 %v5133
          %v5230 = vunpack.c.l.b16 %v5134
          %v5231 = vunpack.c.h.b16 %v5134
          %v5232 = vunpack.c.l.b16 %v5135
          %v5233 = vunpack.c.h.b16 %v5135
          %v5234 = vunpack.c.l.b16 %v5136
          %v5235 = vunpack.c.h.b16 %v5136
          %v5236 = vunpack.c.l.b16 %v5137
          %v5237 = vunpack.c.h.b16 %v5137
          %v5238 = vunpack.c.l.b16 %v5138
          %v5239 = vunpack.c.h.b16 %v5138
          %v5240 = vunpack.c.l.b16 %v5139
          %v5241 = vunpack.c.h.b16 %v5139
          %v5242 = vunpack.c.l.b16 %v5140
          %v5243 = vunpack.c.h.b16 %v5140
          %v5244 = vunpack.c.l.b16 %v5141
          %v5245 = vunpack.c.h.b16 %v5141
          %v5246 = vunpack.c.l.b16 %v5142
          %v5247 = vunpack.c.h.b16 %v5142
          %v5248 = vunpack.c.l.b16 %v5143
          %v5249 = vunpack.c.h.b16 %v5143
          %v5250 = vunpack.c.l.b16 %v5144
          %v5251 = vunpack.c.h.b16 %v5144
          %v5252 = vunpack.c.l.b16 %v5145
          %v5253 = vunpack.c.h.b16 %v5145
          %v5254 = vpack.c.b16 %v5192, %v5190
          %v5255 = vpack.c.b16 %v5193, %v5191
          %v5256 = vpack.c.b16 %v5196, %v5194
          %v5257 = vpack.c.b16 %v5197, %v5195
          %v5258 = vpack.c.b16 %v5200, %v5198
          %v5259 = vpack.c.b16 %v5201, %v5199
          %v5260 = vpack.c.b16 %v5204, %v5202
          %v5261 = vpack.c.b16 %v5205, %v5203
          %v5262 = vpack.c.b16 %v5208, %v5206
          %v5263 = vpack.c.b16 %v5209, %v5207
          %v5264 = vpack.c.b16 %v5212, %v5210
          %v5265 = vpack.c.b16 %v5213, %v5211
          %v5266 = vpack.c.b16 %v5216, %v5214
          %v5267 = vpack.c.b16 %v5217, %v5215
          %v5268 = vpack.c.b16 %v5220, %v5218
          %v5269 = vpack.c.b16 %v5221, %v5219
          %v5270 = vpack.c.b16 %v5224, %v5222
          %v5271 = vpack.c.b16 %v5225, %v5223
          %v5272 = vpack.c.b16 %v5228, %v5226
          %v5273 = vpack.c.b16 %v5229, %v5227
          %v5274 = vpack.c.b16 %v5232, %v5230
          %v5275 = vpack.c.b16 %v5233, %v5231
          %v5276 = vpack.c.b16 %v5236, %v5234
          %v5277 = vpack.c.b16 %v5237, %v5235
          %v5278 = vpack.c.b16 %v5240, %v5238
          %v5279 = vpack.c.b16 %v5241, %v5239
          %v5280 = vpack.c.b16 %v5244, %v5242
          %v5281 = vpack.c.b16 %v5245, %v5243
          %v5282 = vpack.c.b16 %v5248, %v5246
          %v5283 = vpack.c.b16 %v5249, %v5247
          %v5284 = vpack.c.b16 %v5252, %v5250
          %v5285 = vpack.c.b16 %v5253, %v5251
          %5318 = vmatprep.subr.bf16.mxu0 %v5269
          %5319 = vmatpush1.bf16.msra.mxu0 %v5268
          %5320 = vmatprep.subr.bf16.mxu0 %v5267
          %5321 = vmatpush1.bf16.msra.mxu0 %v5266
          %5322 = vmatprep.subr.bf16.mxu0 %v5265
          %5323 = vmatpush1.bf16.msra.mxu0 %v5264
          %5324 = vmatprep.subr.bf16.mxu0 %v5263
          %5325 = vmatpush1.bf16.msra.mxu0 %v5262
          %5326 = vmatprep.subr.bf16.mxu0 %v5261
          %5327 = vmatpush1.bf16.msra.mxu0 %v5260
          %5328 = vmatprep.subr.bf16.mxu0 %v5259
          %5329 = vmatpush1.bf16.msra.mxu0 %v5258
          %5330 = vmatprep.subr.bf16.mxu0 %v5257
          %5331 = vmatpush1.bf16.msra.mxu0 %v5256
          %5332 = vmatprep.subr.bf16.mxu0 %v5255
          %5333 = vmatpush1.bf16.msra.mxu0 %v5254
          %5334 = vmatprep.subr.bf16.mxu0 %v5285
          %5335 = vmatpush2.bf16.msra.mxu0 %v5284
          %5336 = vmatprep.subr.bf16.mxu0 %v5283
          %5337 = vmatpush2.bf16.msra.mxu0 %v5282
          %5338 = vmatprep.subr.bf16.mxu0 %v5281
          %5339 = vmatpush2.bf16.msra.mxu0 %v5280
          %5340 = vmatprep.subr.bf16.mxu0 %v5279
          %5341 = vmatpush2.bf16.msra.mxu0 %v5278
          %5342 = vmatprep.subr.bf16.mxu0 %v5277
          %5343 = vmatpush2.bf16.msra.mxu0 %v5276
          %5344 = vmatprep.subr.bf16.mxu0 %v5275
          %5345 = vmatpush2.bf16.msra.mxu0 %v5274
          %5346 = vmatprep.subr.bf16.mxu0 %v5273
          %5347 = vmatpush2.bf16.msra.mxu0 %v5272
          %5348 = vmatprep.subr.bf16.mxu0 %v5271
          %5349 = vmatpush2.bf16.msra.mxu0 %v5270
          %5350 = vmatprep.mubr.bf16.mxu0 %v5113
          %5351 = vmatmul.mubr.bf16.gmra.mxu0 %v5112
          %v5352 = vpop.f32.mrf.mxu0
          %v5353 = vadd.f32 %v5151, %v5352
          %v5354 = vpop.f32.mrf.mxu0
          %v5355 = vadd.f32 %v5155, %v5354
          %v5356 = vpop.f32.mrf.mxu0
          %v5357 = vpop.f32.mrf.mxu0
          %5358 = vdwg.mxu0
          %v5359 = vld [vmem:[#allocation3] sm:$0xff]
          %v5360 = vld [vmem:[#allocation33] sm:$0xf]
          %v5362 = vlaneseq
          %v5363 = vshrl.u32 %v5362, 7
          %v5364 = vsub.s32 0, %v5363
          %v5365 = vrot.slane %v5360, %v5364
          %v5366 = vlaneseq
          %v5367 = vshrl.u32 %v5366, 7
          %v5368 = vsub.s32 1, %v5367
          %v5369 = vrot.slane %v5360, %v5368
          %v5370 = vlaneseq
          %v5371 = vshrl.u32 %v5370, 7
          %v5372 = vsub.s32 2, %v5371
          %v5373 = vrot.slane %v5360, %v5372
          %v5374 = vlaneseq
          %v5375 = vshrl.u32 %v5374, 7
          %v5376 = vsub.s32 3, %v5375
          %v5377 = vrot.slane %v5360, %v5376
          %v5378 = vcombine.low %v5365, %v5369
          %v5379 = vcombine.low %v5373, %v5377
          %v5381 = vunpack.c.l.s4 1983009808
          %v5382 = vunpack.c.0.s8 %v5381
          %v5383 = vlaneseq
          %v5384 = vshrl.u32 %v5383, 7
          %v5385 = vsub.s32 %v5382, %v5384
          %v5386 = vrot.slane %v5378, %v5385
          %v5388 = vunpack.c.l.s4 1983009808
          %v5389 = vunpack.c.0.s8 %v5388
          %v5390 = vlaneseq
          %v5391 = vshrl.u32 %v5390, 7
          %v5392 = vsub.s32 %v5389, %v5391
          %v5393 = vrot.slane %v5379, %v5392
          %v5394 = vcombine.low %v5386, %v5393
          %v5396 = vadd.f32 %v5359, %v5394
          %v5397 = vmax.f32 %v5396, 0.0
          %v5399 = vcombine.high %v5397, %v5397
          %v5401 = vunpack.c.l.s4 1983009808
          %v5402 = vunpack.c.0.s8 %v5401
          %v5403 = vlaneseq
          %v5404 = vshrl.u32 %v5403, 7
          %v5405 = vsub.s32 %v5402, %v5404
          %v5406 = vrot.slane %v5397, %v5405
          %v5408 = vunpack.c.l.s4 1983009808
          %v5409 = vunpack.c.0.s8 %v5408
          %v5410 = vlaneseq
          %v5411 = vshrl.u32 %v5410, 7
          %v5412 = vsub.s32 %v5409, %v5411
          %v5413 = vrot.slane %v5399, %v5412
          %v5414 = vcombine.high %v5406, %v5406
          %v5415 = vcombine.high %v5413, %v5413
          %v5420 = vpack.c.bf16 %v5406, %v5406
          %v5421 = vpack.c.bf16 %v5414, %v5414
          %v5422 = vpack.c.bf16 %v5413, %v5413
          %v5423 = vpack.c.bf16 %v5415, %v5415
          %v5424 = vld [vmem:[#allocation34] sm:$0xff]
          %v5425 = vld [vmem:[#allocation34 + $0x8] sm:$0xff]
          %v5426 = vld [vmem:[#allocation34 + $0x10] sm:$0xff]
          %v5427 = vld [vmem:[#allocation34 + $0x18] sm:$0xff]
          %v5428 = vld [vmem:[#allocation34 + $0x20] sm:$0xff]
          %v5429 = vld [vmem:[#allocation34 + $0x28] sm:$0xff]
          %v5430 = vld [vmem:[#allocation34 + $0x30] sm:$0xff]
          %v5431 = vld [vmem:[#allocation34 + $0x38] sm:$0xff]
          %v5432 = vld [vmem:[#allocation34 + $0x40] sm:$0xff]
          %v5433 = vld [vmem:[#allocation34 + $0x48] sm:$0xff]
          %v5434 = vld [vmem:[#allocation34 + $0x50] sm:$0xff]
          %v5435 = vld [vmem:[#allocation34 + $0x58] sm:$0xff]
          %v5436 = vld [vmem:[#allocation34 + $0x60] sm:$0xff]
          %v5437 = vld [vmem:[#allocation34 + $0x68] sm:$0xff]
          %v5438 = vld [vmem:[#allocation34 + $0x70] sm:$0xff]
          %v5439 = vld [vmem:[#allocation34 + $0x78] sm:$0xff]
          %v5440 = vld [vmem:[#allocation34 + $0x80] sm:$0xff]
          %v5441 = vld [vmem:[#allocation34 + $0x88] sm:$0xff]
          %v5442 = vld [vmem:[#allocation34 + $0x90] sm:$0xff]
          %v5443 = vld [vmem:[#allocation34 + $0x98] sm:$0xff]
          %v5444 = vld [vmem:[#allocation34 + $0xa0] sm:$0xff]
          %v5445 = vld [vmem:[#allocation34 + $0xa8] sm:$0xff]
          %v5446 = vld [vmem:[#allocation34 + $0xb0] sm:$0xff]
          %v5447 = vld [vmem:[#allocation34 + $0xb8] sm:$0xff]
          %v5448 = vld [vmem:[#allocation34 + $0xc0] sm:$0xff]
          %v5449 = vld [vmem:[#allocation34 + $0xc8] sm:$0xff]
          %v5450 = vld [vmem:[#allocation34 + $0xd0] sm:$0xff]
          %v5451 = vld [vmem:[#allocation34 + $0xd8] sm:$0xff]
          %v5452 = vld [vmem:[#allocation34 + $0xe0] sm:$0xff]
          %v5453 = vld [vmem:[#allocation34 + $0xe8] sm:$0xff]
          %v5454 = vld [vmem:[#allocation34 + $0xf0] sm:$0xff]
          %v5455 = vld [vmem:[#allocation34 + $0xf8] sm:$0xff]
          %v5456 = vld [vmem:[#allocation34 + $0x100] sm:$0xff]
          %v5457 = vld [vmem:[#allocation34 + $0x108] sm:$0xff]
          %v5458 = vld [vmem:[#allocation34 + $0x110] sm:$0xff]
          %v5459 = vld [vmem:[#allocation34 + $0x118] sm:$0xff]
          %v5460 = vld [vmem:[#allocation34 + $0x120] sm:$0xff]
          %v5461 = vld [vmem:[#allocation34 + $0x128] sm:$0xff]
          %v5462 = vld [vmem:[#allocation34 + $0x130] sm:$0xff]
          %v5463 = vld [vmem:[#allocation34 + $0x138] sm:$0xff]
          %v5464 = vld [vmem:[#allocation34 + $0x140] sm:$0xff]
          %v5465 = vld [vmem:[#allocation34 + $0x148] sm:$0xff]
          %v5466 = vld [vmem:[#allocation34 + $0x150] sm:$0xff]
          %v5467 = vld [vmem:[#allocation34 + $0x158] sm:$0xff]
          %v5468 = vld [vmem:[#allocation34 + $0x160] sm:$0xff]
          %v5469 = vld [vmem:[#allocation34 + $0x168] sm:$0xff]
          %v5470 = vld [vmem:[#allocation34 + $0x170] sm:$0xff]
          %v5471 = vld [vmem:[#allocation34 + $0x178] sm:$0xff]
          %v5472 = vld [vmem:[#allocation34 + $0x180] sm:$0xff]
          %v5473 = vld [vmem:[#allocation34 + $0x188] sm:$0xff]
          %v5474 = vld [vmem:[#allocation34 + $0x190] sm:$0xff]
          %v5475 = vld [vmem:[#allocation34 + $0x198] sm:$0xff]
          %v5476 = vld [vmem:[#allocation34 + $0x1a0] sm:$0xff]
          %v5477 = vld [vmem:[#allocation34 + $0x1a8] sm:$0xff]
          %v5478 = vld [vmem:[#allocation34 + $0x1b0] sm:$0xff]
          %v5479 = vld [vmem:[#allocation34 + $0x1b8] sm:$0xff]
          %v5480 = vld [vmem:[#allocation34 + $0x1c0] sm:$0xff]
          %v5481 = vld [vmem:[#allocation34 + $0x1c8] sm:$0xff]
          %v5482 = vld [vmem:[#allocation34 + $0x1d0] sm:$0xff]
          %v5483 = vld [vmem:[#allocation34 + $0x1d8] sm:$0xff]
          %v5484 = vld [vmem:[#allocation34 + $0x1e0] sm:$0xff]
          %v5485 = vld [vmem:[#allocation34 + $0x1e8] sm:$0xff]
          %v5486 = vld [vmem:[#allocation34 + $0x1f0] sm:$0xff]
          %v5487 = vld [vmem:[#allocation34 + $0x1f8] sm:$0xff]
          %v5488 = vld [vmem:[#allocation36] sm:$0x3]
          %v5490 = vlaneseq
          %v5491 = vshrl.u32 %v5490, 7
          %v5492 = vsub.s32 0, %v5491
          %v5493 = vrot.slane %v5488, %v5492
          %v5494 = vlaneseq
          %v5495 = vshrl.u32 %v5494, 7
          %v5496 = vsub.s32 1, %v5495
          %v5497 = vrot.slane %v5488, %v5496
          %v5564 = vunpack.c.l.b16 %v5424
          %v5565 = vunpack.c.h.b16 %v5424
          %v5566 = vunpack.c.l.b16 %v5425
          %v5567 = vunpack.c.h.b16 %v5425
          %v5568 = vunpack.c.l.b16 %v5426
          %v5569 = vunpack.c.h.b16 %v5426
          %v5570 = vunpack.c.l.b16 %v5427
          %v5571 = vunpack.c.h.b16 %v5427
          %v5572 = vunpack.c.l.b16 %v5428
          %v5573 = vunpack.c.h.b16 %v5428
          %v5574 = vunpack.c.l.b16 %v5429
          %v5575 = vunpack.c.h.b16 %v5429
          %v5576 = vunpack.c.l.b16 %v5430
          %v5577 = vunpack.c.h.b16 %v5430
          %v5578 = vunpack.c.l.b16 %v5431
          %v5579 = vunpack.c.h.b16 %v5431
          %v5580 = vunpack.c.l.b16 %v5432
          %v5581 = vunpack.c.h.b16 %v5432
          %v5582 = vunpack.c.l.b16 %v5433
          %v5583 = vunpack.c.h.b16 %v5433
          %v5584 = vunpack.c.l.b16 %v5434
          %v5585 = vunpack.c.h.b16 %v5434
          %v5586 = vunpack.c.l.b16 %v5435
          %v5587 = vunpack.c.h.b16 %v5435
          %v5588 = vunpack.c.l.b16 %v5436
          %v5589 = vunpack.c.h.b16 %v5436
          %v5590 = vunpack.c.l.b16 %v5437
          %v5591 = vunpack.c.h.b16 %v5437
          %v5592 = vunpack.c.l.b16 %v5438
          %v5593 = vunpack.c.h.b16 %v5438
          %v5594 = vunpack.c.l.b16 %v5439
          %v5595 = vunpack.c.h.b16 %v5439
          %v5596 = vunpack.c.l.b16 %v5440
          %v5597 = vunpack.c.h.b16 %v5440
          %v5598 = vunpack.c.l.b16 %v5441
          %v5599 = vunpack.c.h.b16 %v5441
          %v5600 = vunpack.c.l.b16 %v5442
          %v5601 = vunpack.c.h.b16 %v5442
          %v5602 = vunpack.c.l.b16 %v5443
          %v5603 = vunpack.c.h.b16 %v5443
          %v5604 = vunpack.c.l.b16 %v5444
          %v5605 = vunpack.c.h.b16 %v5444
          %v5606 = vunpack.c.l.b16 %v5445
          %v5607 = vunpack.c.h.b16 %v5445
          %v5608 = vunpack.c.l.b16 %v5446
          %v5609 = vunpack.c.h.b16 %v5446
          %v5610 = vunpack.c.l.b16 %v5447
          %v5611 = vunpack.c.h.b16 %v5447
          %v5612 = vunpack.c.l.b16 %v5448
          %v5613 = vunpack.c.h.b16 %v5448
          %v5614 = vunpack.c.l.b16 %v5449
          %v5615 = vunpack.c.h.b16 %v5449
          %v5616 = vunpack.c.l.b16 %v5450
          %v5617 = vunpack.c.h.b16 %v5450
          %v5618 = vunpack.c.l.b16 %v5451
          %v5619 = vunpack.c.h.b16 %v5451
          %v5620 = vunpack.c.l.b16 %v5452
          %v5621 = vunpack.c.h.b16 %v5452
          %v5622 = vunpack.c.l.b16 %v5453
          %v5623 = vunpack.c.h.b16 %v5453
          %v5624 = vunpack.c.l.b16 %v5454
          %v5625 = vunpack.c.h.b16 %v5454
          %v5626 = vunpack.c.l.b16 %v5455
          %v5627 = vunpack.c.h.b16 %v5455
          %v5628 = vunpack.c.l.b16 %v5456
          %v5629 = vunpack.c.h.b16 %v5456
          %v5630 = vunpack.c.l.b16 %v5457
          %v5631 = vunpack.c.h.b16 %v5457
          %v5632 = vunpack.c.l.b16 %v5458
          %v5633 = vunpack.c.h.b16 %v5458
          %v5634 = vunpack.c.l.b16 %v5459
          %v5635 = vunpack.c.h.b16 %v5459
          %v5636 = vunpack.c.l.b16 %v5460
          %v5637 = vunpack.c.h.b16 %v5460
          %v5638 = vunpack.c.l.b16 %v5461
          %v5639 = vunpack.c.h.b16 %v5461
          %v5640 = vunpack.c.l.b16 %v5462
          %v5641 = vunpack.c.h.b16 %v5462
          %v5642 = vunpack.c.l.b16 %v5463
          %v5643 = vunpack.c.h.b16 %v5463
          %v5644 = vunpack.c.l.b16 %v5464
          %v5645 = vunpack.c.h.b16 %v5464
          %v5646 = vunpack.c.l.b16 %v5465
          %v5647 = vunpack.c.h.b16 %v5465
          %v5648 = vunpack.c.l.b16 %v5466
          %v5649 = vunpack.c.h.b16 %v5466
          %v5650 = vunpack.c.l.b16 %v5467
          %v5651 = vunpack.c.h.b16 %v5467
          %v5652 = vunpack.c.l.b16 %v5468
          %v5653 = vunpack.c.h.b16 %v5468
          %v5654 = vunpack.c.l.b16 %v5469
          %v5655 = vunpack.c.h.b16 %v5469
          %v5656 = vunpack.c.l.b16 %v5470
          %v5657 = vunpack.c.h.b16 %v5470
          %v5658 = vunpack.c.l.b16 %v5471
          %v5659 = vunpack.c.h.b16 %v5471
          %v5660 = vunpack.c.l.b16 %v5472
          %v5661 = vunpack.c.h.b16 %v5472
          %v5662 = vunpack.c.l.b16 %v5473
          %v5663 = vunpack.c.h.b16 %v5473
          %v5664 = vunpack.c.l.b16 %v5474
          %v5665 = vunpack.c.h.b16 %v5474
          %v5666 = vunpack.c.l.b16 %v5475
          %v5667 = vunpack.c.h.b16 %v5475
          %v5668 = vunpack.c.l.b16 %v5476
          %v5669 = vunpack.c.h.b16 %v5476
          %v5670 = vunpack.c.l.b16 %v5477
          %v5671 = vunpack.c.h.b16 %v5477
          %v5672 = vunpack.c.l.b16 %v5478
          %v5673 = vunpack.c.h.b16 %v5478
          %v5674 = vunpack.c.l.b16 %v5479
          %v5675 = vunpack.c.h.b16 %v5479
          %v5676 = vunpack.c.l.b16 %v5480
          %v5677 = vunpack.c.h.b16 %v5480
          %v5678 = vunpack.c.l.b16 %v5481
          %v5679 = vunpack.c.h.b16 %v5481
          %v5680 = vunpack.c.l.b16 %v5482
          %v5681 = vunpack.c.h.b16 %v5482
          %v5682 = vunpack.c.l.b16 %v5483
          %v5683 = vunpack.c.h.b16 %v5483
          %v5684 = vunpack.c.l.b16 %v5484
          %v5685 = vunpack.c.h.b16 %v5484
          %v5686 = vunpack.c.l.b16 %v5485
          %v5687 = vunpack.c.h.b16 %v5485
          %v5688 = vunpack.c.l.b16 %v5486
          %v5689 = vunpack.c.h.b16 %v5486
          %v5690 = vunpack.c.l.b16 %v5487
          %v5691 = vunpack.c.h.b16 %v5487
          %v5692 = vpack.c.b16 %v5566, %v5564
          %v5693 = vpack.c.b16 %v5567, %v5565
          %v5694 = vpack.c.b16 %v5570, %v5568
          %v5695 = vpack.c.b16 %v5571, %v5569
          %v5696 = vpack.c.b16 %v5574, %v5572
          %v5697 = vpack.c.b16 %v5575, %v5573
          %v5698 = vpack.c.b16 %v5578, %v5576
          %v5699 = vpack.c.b16 %v5579, %v5577
          %v5700 = vpack.c.b16 %v5582, %v5580
          %v5701 = vpack.c.b16 %v5583, %v5581
          %v5702 = vpack.c.b16 %v5586, %v5584
          %v5703 = vpack.c.b16 %v5587, %v5585
          %v5704 = vpack.c.b16 %v5590, %v5588
          %v5705 = vpack.c.b16 %v5591, %v5589
          %v5706 = vpack.c.b16 %v5594, %v5592
          %v5707 = vpack.c.b16 %v5595, %v5593
          %v5708 = vpack.c.b16 %v5598, %v5596
          %v5709 = vpack.c.b16 %v5599, %v5597
          %v5710 = vpack.c.b16 %v5602, %v5600
          %v5711 = vpack.c.b16 %v5603, %v5601
          %v5712 = vpack.c.b16 %v5606, %v5604
          %v5713 = vpack.c.b16 %v5607, %v5605
          %v5714 = vpack.c.b16 %v5610, %v5608
          %v5715 = vpack.c.b16 %v5611, %v5609
          %v5716 = vpack.c.b16 %v5614, %v5612
          %v5717 = vpack.c.b16 %v5615, %v5613
          %v5718 = vpack.c.b16 %v5618, %v5616
          %v5719 = vpack.c.b16 %v5619, %v5617
          %v5720 = vpack.c.b16 %v5622, %v5620
          %v5721 = vpack.c.b16 %v5623, %v5621
          %v5722 = vpack.c.b16 %v5626, %v5624
          %v5723 = vpack.c.b16 %v5627, %v5625
          %v5724 = vpack.c.b16 %v5630, %v5628
          %v5725 = vpack.c.b16 %v5631, %v5629
          %v5726 = vpack.c.b16 %v5634, %v5632
          %v5727 = vpack.c.b16 %v5635, %v5633
          %v5728 = vpack.c.b16 %v5638, %v5636
          %v5729 = vpack.c.b16 %v5639, %v5637
          %v5730 = vpack.c.b16 %v5642, %v5640
          %v5731 = vpack.c.b16 %v5643, %v5641
          %v5732 = vpack.c.b16 %v5646, %v5644
          %v5733 = vpack.c.b16 %v5647, %v5645
          %v5734 = vpack.c.b16 %v5650, %v5648
          %v5735 = vpack.c.b16 %v5651, %v5649
          %v5736 = vpack.c.b16 %v5654, %v5652
          %v5737 = vpack.c.b16 %v5655, %v5653
          %v5738 = vpack.c.b16 %v5658, %v5656
          %v5739 = vpack.c.b16 %v5659, %v5657
          %v5740 = vpack.c.b16 %v5662, %v5660
          %v5741 = vpack.c.b16 %v5663, %v5661
          %v5742 = vpack.c.b16 %v5666, %v5664
          %v5743 = vpack.c.b16 %v5667, %v5665
          %v5744 = vpack.c.b16 %v5670, %v5668
          %v5745 = vpack.c.b16 %v5671, %v5669
          %v5746 = vpack.c.b16 %v5674, %v5672
          %v5747 = vpack.c.b16 %v5675, %v5673
          %v5748 = vpack.c.b16 %v5678, %v5676
          %v5749 = vpack.c.b16 %v5679, %v5677
          %v5750 = vpack.c.b16 %v5682, %v5680
          %v5751 = vpack.c.b16 %v5683, %v5681
          %v5752 = vpack.c.b16 %v5686, %v5684
          %v5753 = vpack.c.b16 %v5687, %v5685
          %v5754 = vpack.c.b16 %v5690, %v5688
          %v5755 = vpack.c.b16 %v5691, %v5689
          %5820 = vmatprep.subr.bf16.mxu0 %v5707
          %5821 = vmatpush1.bf16.msra.mxu0 %v5706
          %5822 = vmatprep.subr.bf16.mxu0 %v5705
          %5823 = vmatpush1.bf16.msra.mxu0 %v5704
          %5824 = vmatprep.subr.bf16.mxu0 %v5703
          %5825 = vmatpush1.bf16.msra.mxu0 %v5702
          %5826 = vmatprep.subr.bf16.mxu0 %v5701
          %5827 = vmatpush1.bf16.msra.mxu0 %v5700
          %5828 = vmatprep.subr.bf16.mxu0 %v5699
          %5829 = vmatpush1.bf16.msra.mxu0 %v5698
          %5830 = vmatprep.subr.bf16.mxu0 %v5697
          %5831 = vmatpush1.bf16.msra.mxu0 %v5696
          %5832 = vmatprep.subr.bf16.mxu0 %v5695
          %5833 = vmatpush1.bf16.msra.mxu0 %v5694
          %5834 = vmatprep.subr.bf16.mxu0 %v5693
          %5835 = vmatpush1.bf16.msra.mxu0 %v5692
          %5836 = vmatprep.subr.bf16.mxu0 %v5723
          %5837 = vmatpush2.bf16.msra.mxu0 %v5722
          %5838 = vmatprep.subr.bf16.mxu0 %v5721
          %5839 = vmatpush2.bf16.msra.mxu0 %v5720
          %5840 = vmatprep.subr.bf16.mxu0 %v5719
          %5841 = vmatpush2.bf16.msra.mxu0 %v5718
          %5842 = vmatprep.subr.bf16.mxu0 %v5717
          %5843 = vmatpush2.bf16.msra.mxu0 %v5716
          %5844 = vmatprep.subr.bf16.mxu0 %v5715
          %5845 = vmatpush2.bf16.msra.mxu0 %v5714
          %5846 = vmatprep.subr.bf16.mxu0 %v5713
          %5847 = vmatpush2.bf16.msra.mxu0 %v5712
          %5848 = vmatprep.subr.bf16.mxu0 %v5711
          %5849 = vmatpush2.bf16.msra.mxu0 %v5710
          %5850 = vmatprep.subr.bf16.mxu0 %v5709
          %5851 = vmatpush2.bf16.msra.mxu0 %v5708
          %5852 = vmatprep.mubr.bf16.mxu0 %v5421
          %5853 = vmatmul.mubr.bf16.gmra.mxu0 %v5420
          %v5854 = vpop.f32.mrf.mxu0
          %v5855 = vadd.f32 %v5493, %v5854
          %v5856 = vpop.f32.mrf.mxu0
          %v5857 = vadd.f32 %v5497, %v5856
          %v5858 = vpop.f32.mrf.mxu0
          %v5859 = vpop.f32.mrf.mxu0
          %5860 = vdwg.mxu0
          %5861 = vmatprep.subr.bf16.mxu0 %v5739
          %5862 = vmatpush1.bf16.msra.mxu0 %v5738
          %5863 = vmatprep.subr.bf16.mxu0 %v5737
          %5864 = vmatpush1.bf16.msra.mxu0 %v5736
          %5865 = vmatprep.subr.bf16.mxu0 %v5735
          %5866 = vmatpush1.bf16.msra.mxu0 %v5734
          %5867 = vmatprep.subr.bf16.mxu0 %v5733
          %5868 = vmatpush1.bf16.msra.mxu0 %v5732
          %5869 = vmatprep.subr.bf16.mxu0 %v5731
          %5870 = vmatpush1.bf16.msra.mxu0 %v5730
          %5871 = vmatprep.subr.bf16.mxu0 %v5729
          %5872 = vmatpush1.bf16.msra.mxu0 %v5728
          %5873 = vmatprep.subr.bf16.mxu0 %v5727
          %5874 = vmatpush1.bf16.msra.mxu0 %v5726
          %5875 = vmatprep.subr.bf16.mxu0 %v5725
          %5876 = vmatpush1.bf16.msra.mxu0 %v5724
          %5877 = vmatprep.subr.bf16.mxu0 %v5755
          %5878 = vmatpush2.bf16.msra.mxu0 %v5754
          %5879 = vmatprep.subr.bf16.mxu0 %v5753
          %5880 = vmatpush2.bf16.msra.mxu0 %v5752
          %5881 = vmatprep.subr.bf16.mxu0 %v5751
          %5882 = vmatpush2.bf16.msra.mxu0 %v5750
          %5883 = vmatprep.subr.bf16.mxu0 %v5749
          %5884 = vmatpush2.bf16.msra.mxu0 %v5748
          %5885 = vmatprep.subr.bf16.mxu0 %v5747
          %5886 = vmatpush2.bf16.msra.mxu0 %v5746
          %5887 = vmatprep.subr.bf16.mxu0 %v5745
          %5888 = vmatpush2.bf16.msra.mxu0 %v5744
          %5889 = vmatprep.subr.bf16.mxu0 %v5743
          %5890 = vmatpush2.bf16.msra.mxu0 %v5742
          %5891 = vmatprep.subr.bf16.mxu0 %v5741
          %5892 = vmatpush2.bf16.msra.mxu0 %v5740
          %5893 = vmatprep.mubr.bf16.mxu0 %v5423
          %5894 = vmatmul.mubr.bf16.gmra.mxu0 %v5422
          %v5895 = vpop.f32.mrf.mxu0
          %v5896 = vadd.f32 %v5855, %v5895
          %v5897 = vpop.f32.mrf.mxu0
          %v5898 = vadd.f32 %v5857, %v5897
          %v5899 = vpop.f32.mrf.mxu0
          %v5900 = vpop.f32.mrf.mxu0
          %5901 = vdwg.mxu0
          %v5902 = vmax.f32 %v5896, 0.0
          %v5903 = vmax.f32 %v5898, 0.0
          %v5904 = vpack.c.bf16 %v5902, %v5902
          %v5905 = vpack.c.bf16 %v5903, %v5903
          %v5906 = vld [vmem:[#allocation37] sm:$0xff]
          %v5907 = vld [vmem:[#allocation37 + $0x8] sm:$0xff]
          %v5908 = vld [vmem:[#allocation37 + $0x10] sm:$0xff]
          %v5909 = vld [vmem:[#allocation37 + $0x18] sm:$0xff]
          %v5910 = vld [vmem:[#allocation37 + $0x20] sm:$0xff]
          %v5911 = vld [vmem:[#allocation37 + $0x28] sm:$0xff]
          %v5912 = vld [vmem:[#allocation37 + $0x30] sm:$0xff]
          %v5913 = vld [vmem:[#allocation37 + $0x38] sm:$0xff]
          %v5914 = vld [vmem:[#allocation37 + $0x40] sm:$0xff]
          %v5915 = vld [vmem:[#allocation37 + $0x48] sm:$0xff]
          %v5916 = vld [vmem:[#allocation37 + $0x50] sm:$0xff]
          %v5917 = vld [vmem:[#allocation37 + $0x58] sm:$0xff]
          %v5918 = vld [vmem:[#allocation37 + $0x60] sm:$0xff]
          %v5919 = vld [vmem:[#allocation37 + $0x68] sm:$0xff]
          %v5920 = vld [vmem:[#allocation37 + $0x70] sm:$0xff]
          %v5921 = vld [vmem:[#allocation37 + $0x78] sm:$0xff]
          %v5922 = vld [vmem:[#allocation37 + $0x80] sm:$0xff]
          %v5923 = vld [vmem:[#allocation37 + $0x88] sm:$0xff]
          %v5924 = vld [vmem:[#allocation37 + $0x90] sm:$0xff]
          %v5925 = vld [vmem:[#allocation37 + $0x98] sm:$0xff]
          %v5926 = vld [vmem:[#allocation37 + $0xa0] sm:$0xff]
          %v5927 = vld [vmem:[#allocation37 + $0xa8] sm:$0xff]
          %v5928 = vld [vmem:[#allocation37 + $0xb0] sm:$0xff]
          %v5929 = vld [vmem:[#allocation37 + $0xb8] sm:$0xff]
          %v5930 = vld [vmem:[#allocation37 + $0xc0] sm:$0xff]
          %v5931 = vld [vmem:[#allocation37 + $0xc8] sm:$0xff]
          %v5932 = vld [vmem:[#allocation37 + $0xd0] sm:$0xff]
          %v5933 = vld [vmem:[#allocation37 + $0xd8] sm:$0xff]
          %v5934 = vld [vmem:[#allocation37 + $0xe0] sm:$0xff]
          %v5935 = vld [vmem:[#allocation37 + $0xe8] sm:$0xff]
          %v5936 = vld [vmem:[#allocation37 + $0xf0] sm:$0xff]
          %v5937 = vld [vmem:[#allocation37 + $0xf8] sm:$0xff]
          %v5938 = vld [vmem:[#allocation39] sm:$0x3]
          %v5940 = vlaneseq
          %v5941 = vshrl.u32 %v5940, 7
          %v5942 = vsub.s32 0, %v5941
          %v5943 = vrot.slane %v5938, %v5942
          %v5944 = vlaneseq
          %v5945 = vshrl.u32 %v5944, 7
          %v5946 = vsub.s32 1, %v5945
          %v5947 = vrot.slane %v5938, %v5946
          %v5982 = vunpack.c.l.b16 %v5906
          %v5983 = vunpack.c.h.b16 %v5906
          %v5984 = vunpack.c.l.b16 %v5907
          %v5985 = vunpack.c.h.b16 %v5907
          %v5986 = vunpack.c.l.b16 %v5908
          %v5987 = vunpack.c.h.b16 %v5908
          %v5988 = vunpack.c.l.b16 %v5909
          %v5989 = vunpack.c.h.b16 %v5909
          %v5990 = vunpack.c.l.b16 %v5910
          %v5991 = vunpack.c.h.b16 %v5910
          %v5992 = vunpack.c.l.b16 %v5911
          %v5993 = vunpack.c.h.b16 %v5911
          %v5994 = vunpack.c.l.b16 %v5912
          %v5995 = vunpack.c.h.b16 %v5912
          %v5996 = vunpack.c.l.b16 %v5913
          %v5997 = vunpack.c.h.b16 %v5913
          %v5998 = vunpack.c.l.b16 %v5914
          %v5999 = vunpack.c.h.b16 %v5914
          %v6000 = vunpack.c.l.b16 %v5915
          %v6001 = vunpack.c.h.b16 %v5915
          %v6002 = vunpack.c.l.b16 %v5916
          %v6003 = vunpack.c.h.b16 %v5916
          %v6004 = vunpack.c.l.b16 %v5917
          %v6005 = vunpack.c.h.b16 %v5917
          %v6006 = vunpack.c.l.b16 %v5918
          %v6007 = vunpack.c.h.b16 %v5918
          %v6008 = vunpack.c.l.b16 %v5919
          %v6009 = vunpack.c.h.b16 %v5919
          %v6010 = vunpack.c.l.b16 %v5920
          %v6011 = vunpack.c.h.b16 %v5920
          %v6012 = vunpack.c.l.b16 %v5921
          %v6013 = vunpack.c.h.b16 %v5921
          %v6014 = vunpack.c.l.b16 %v5922
          %v6015 = vunpack.c.h.b16 %v5922
          %v6016 = vunpack.c.l.b16 %v5923
          %v6017 = vunpack.c.h.b16 %v5923
          %v6018 = vunpack.c.l.b16 %v5924
          %v6019 = vunpack.c.h.b16 %v5924
          %v6020 = vunpack.c.l.b16 %v5925
          %v6021 = vunpack.c.h.b16 %v5925
          %v6022 = vunpack.c.l.b16 %v5926
          %v6023 = vunpack.c.h.b16 %v5926
          %v6024 = vunpack.c.l.b16 %v5927
          %v6025 = vunpack.c.h.b16 %v5927
          %v6026 = vunpack.c.l.b16 %v5928
          %v6027 = vunpack.c.h.b16 %v5928
          %v6028 = vunpack.c.l.b16 %v5929
          %v6029 = vunpack.c.h.b16 %v5929
          %v6030 = vunpack.c.l.b16 %v5930
          %v6031 = vunpack.c.h.b16 %v5930
          %v6032 = vunpack.c.l.b16 %v5931
          %v6033 = vunpack.c.h.b16 %v5931
          %v6034 = vunpack.c.l.b16 %v5932
          %v6035 = vunpack.c.h.b16 %v5932
          %v6036 = vunpack.c.l.b16 %v5933
          %v6037 = vunpack.c.h.b16 %v5933
          %v6038 = vunpack.c.l.b16 %v5934
          %v6039 = vunpack.c.h.b16 %v5934
          %v6040 = vunpack.c.l.b16 %v5935
          %v6041 = vunpack.c.h.b16 %v5935
          %v6042 = vunpack.c.l.b16 %v5936
          %v6043 = vunpack.c.h.b16 %v5936
          %v6044 = vunpack.c.l.b16 %v5937
          %v6045 = vunpack.c.h.b16 %v5937
          %v6046 = vpack.c.b16 %v5984, %v5982
          %v6047 = vpack.c.b16 %v5985, %v5983
          %v6048 = vpack.c.b16 %v5988, %v5986
          %v6049 = vpack.c.b16 %v5989, %v5987
          %v6050 = vpack.c.b16 %v5992, %v5990
          %v6051 = vpack.c.b16 %v5993, %v5991
          %v6052 = vpack.c.b16 %v5996, %v5994
          %v6053 = vpack.c.b16 %v5997, %v5995
          %v6054 = vpack.c.b16 %v6000, %v5998
          %v6055 = vpack.c.b16 %v6001, %v5999
          %v6056 = vpack.c.b16 %v6004, %v6002
          %v6057 = vpack.c.b16 %v6005, %v6003
          %v6058 = vpack.c.b16 %v6008, %v6006
          %v6059 = vpack.c.b16 %v6009, %v6007
          %v6060 = vpack.c.b16 %v6012, %v6010
          %v6061 = vpack.c.b16 %v6013, %v6011
          %v6062 = vpack.c.b16 %v6016, %v6014
          %v6063 = vpack.c.b16 %v6017, %v6015
          %v6064 = vpack.c.b16 %v6020, %v6018
          %v6065 = vpack.c.b16 %v6021, %v6019
          %v6066 = vpack.c.b16 %v6024, %v6022
          %v6067 = vpack.c.b16 %v6025, %v6023
          %v6068 = vpack.c.b16 %v6028, %v6026
          %v6069 = vpack.c.b16 %v6029, %v6027
          %v6070 = vpack.c.b16 %v6032, %v6030
          %v6071 = vpack.c.b16 %v6033, %v6031
          %v6072 = vpack.c.b16 %v6036, %v6034
          %v6073 = vpack.c.b16 %v6037, %v6035
          %v6074 = vpack.c.b16 %v6040, %v6038
          %v6075 = vpack.c.b16 %v6041, %v6039
          %v6076 = vpack.c.b16 %v6044, %v6042
          %v6077 = vpack.c.b16 %v6045, %v6043
          %6110 = vmatprep.subr.bf16.mxu0 %v6061
          %6111 = vmatpush1.bf16.msra.mxu0 %v6060
          %6112 = vmatprep.subr.bf16.mxu0 %v6059
          %6113 = vmatpush1.bf16.msra.mxu0 %v6058
          %6114 = vmatprep.subr.bf16.mxu0 %v6057
          %6115 = vmatpush1.bf16.msra.mxu0 %v6056
          %6116 = vmatprep.subr.bf16.mxu0 %v6055
          %6117 = vmatpush1.bf16.msra.mxu0 %v6054
          %6118 = vmatprep.subr.bf16.mxu0 %v6053
          %6119 = vmatpush1.bf16.msra.mxu0 %v6052
          %6120 = vmatprep.subr.bf16.mxu0 %v6051
          %6121 = vmatpush1.bf16.msra.mxu0 %v6050
          %6122 = vmatprep.subr.bf16.mxu0 %v6049
          %6123 = vmatpush1.bf16.msra.mxu0 %v6048
          %6124 = vmatprep.subr.bf16.mxu0 %v6047
          %6125 = vmatpush1.bf16.msra.mxu0 %v6046
          %6126 = vmatprep.subr.bf16.mxu0 %v6077
          %6127 = vmatpush2.bf16.msra.mxu0 %v6076
          %6128 = vmatprep.subr.bf16.mxu0 %v6075
          %6129 = vmatpush2.bf16.msra.mxu0 %v6074
          %6130 = vmatprep.subr.bf16.mxu0 %v6073
          %6131 = vmatpush2.bf16.msra.mxu0 %v6072
          %6132 = vmatprep.subr.bf16.mxu0 %v6071
          %6133 = vmatpush2.bf16.msra.mxu0 %v6070
          %6134 = vmatprep.subr.bf16.mxu0 %v6069
          %6135 = vmatpush2.bf16.msra.mxu0 %v6068
          %6136 = vmatprep.subr.bf16.mxu0 %v6067
          %6137 = vmatpush2.bf16.msra.mxu0 %v6066
          %6138 = vmatprep.subr.bf16.mxu0 %v6065
          %6139 = vmatpush2.bf16.msra.mxu0 %v6064
          %6140 = vmatprep.subr.bf16.mxu0 %v6063
          %6141 = vmatpush2.bf16.msra.mxu0 %v6062
          %6142 = vmatprep.mubr.bf16.mxu0 %v5905
          %6143 = vmatmul.mubr.bf16.gmra.mxu0 %v5904
          %v6144 = vpop.f32.mrf.mxu0
          %v6145 = vadd.f32 %v5943, %v6144
          %v6146 = vpop.f32.mrf.mxu0
          %v6147 = vadd.f32 %v5947, %v6146
          %v6148 = vpop.f32.mrf.mxu0
          %v6149 = vpop.f32.mrf.mxu0
          %6150 = vdwg.mxu0
          %v6151 = vld [vmem:[#allocation7] sm:$0x1]
          %v6152 = vld [vmem:[#allocation22] sm:$0xf]
          %v6153 = vld [vmem:[#allocation22 + $0x4] sm:$0xf]
          %v6154 = vld [vmem:[#allocation22 + $0x8] sm:$0xf]
          %v6155 = vld [vmem:[#allocation22 + $0xc] sm:$0xf]
          %v6156 = vld [vmem:[#allocation22 + $0x10] sm:$0x3]
          %v6157 = vld [vmem:[#allocation24] sm:$0x1]
          %v6159 = vlaneseq
          %v6160 = vshrl.u32 %v6159, 7
          %v6161 = vsub.s32 0, %v6160
          %v6162 = vrot.slane %v6157, %v6161
          %v6169 = vunpack.c.l.b16 %v6152
          %v6170 = vunpack.c.l.b16 %v6153
          %v6171 = vunpack.c.l.b16 %v6154
          %v6172 = vunpack.c.l.b16 %v6155
          %v6173 = vunpack.c.l.b16 %v6156
          %v6174 = vpack.c.b16 %v6170, %v6169
          %v6175 = vpack.c.b16 %v6172, %v6171
          %v6176 = vpack.c.b16 %v6173, %v6173
          %vm6179 = vcmask 285696
          %v6181 = vsel %vm6179, %v6151, 0
          %vm6183 = vcmask 1040384
          %vm6184 = vcmask 1041408
          %v6185 = vsel %vm6183, 4294967295, 65535
          %v6186 = vsel %vm6184, %v6185, 0
          %v6188 = vand.u32 %v6176, %v6186
          %6190 = vmatprep.subr.bf16.mxu0 0
          %6191 = vmatpush1.bf16.msra.mxu0 0
          %6192 = vmatprep.subr.bf16.mxu0 0
          %6193 = vmatpush1.bf16.msra.mxu0 0
          %6194 = vmatprep.subr.bf16.mxu0 0
          %6195 = vmatpush1.bf16.msra.mxu0 0
          %6196 = vmatprep.subr.bf16.mxu0 0
          %6197 = vmatpush1.bf16.msra.mxu0 0
          %6198 = vmatprep.subr.bf16.mxu0 0
          %6199 = vmatpush1.bf16.msra.mxu0 0
          %6200 = vmatprep.subr.bf16.mxu0 0
          %6201 = vmatpush1.bf16.msra.mxu0 %v6188
          %6202 = vmatprep.subr.bf16.mxu0 0
          %6203 = vmatpush1.bf16.msra.mxu0 %v6175
          %6204 = vmatprep.subr.bf16.mxu0 0
          %6205 = vmatpush1.bf16.msra.mxu0 %v6174
          %6206 = vmatprep.subr.bf16.mxu0 0
          %6207 = vmatpush2.bf16.msra.mxu0 0
          %6208 = vmatprep.subr.bf16.mxu0 0
          %6209 = vmatpush2.bf16.msra.mxu0 0
          %6210 = vmatprep.subr.bf16.mxu0 0
          %6211 = vmatpush2.bf16.msra.mxu0 0
          %6212 = vmatprep.subr.bf16.mxu0 0
          %6213 = vmatpush2.bf16.msra.mxu0 0
          %6214 = vmatprep.subr.bf16.mxu0 0
          %6215 = vmatpush2.bf16.msra.mxu0 0
          %6216 = vmatprep.subr.bf16.mxu0 0
          %6217 = vmatpush2.bf16.msra.mxu0 0
          %6218 = vmatprep.subr.bf16.mxu0 0
          %6219 = vmatpush2.bf16.msra.mxu0 0
          %6220 = vmatprep.subr.bf16.mxu0 0
          %6221 = vmatpush2.bf16.msra.mxu0 0
          %6222 = vmatprep.mubr.bf16.mxu0 0
          %6223 = vmatmul.mubr.bf16.gmra.mxu0 %v6181
          %v6224 = vpop.f32.mrf.mxu0
          %v6225 = vadd.f32 %v6162, %v6224
          %v6226 = vpop.f32.mrf.mxu0
          %v6227 = vpop.f32.mrf.mxu0
          %v6228 = vpop.f32.mrf.mxu0
          %6229 = vdwg.mxu0
          %v6230 = vmax.f32 %v6225, 0.0
          %v6231 = vpack.c.bf16 %v6230, %v6230
          %v6232 = vld [vmem:[#allocation25] sm:$0xf]
          %v6233 = vld [vmem:[#allocation25 + $0x4] sm:$0xf]
          %v6234 = vld [vmem:[#allocation25 + $0x8] sm:$0xf]
          %v6235 = vld [vmem:[#allocation25 + $0xc] sm:$0xf]
          %v6236 = vld [vmem:[#allocation25 + $0x10] sm:$0xf]
          %v6237 = vld [vmem:[#allocation25 + $0x14] sm:$0xf]
          %v6238 = vld [vmem:[#allocation25 + $0x18] sm:$0xf]
          %v6239 = vld [vmem:[#allocation25 + $0x1c] sm:$0xf]
          %v6240 = vld [vmem:[#allocation25 + $0x20] sm:$0xf]
          %v6241 = vld [vmem:[#allocation25 + $0x24] sm:$0xf]
          %v6242 = vld [vmem:[#allocation25 + $0x28] sm:$0xf]
          %v6243 = vld [vmem:[#allocation25 + $0x2c] sm:$0xf]
          %v6244 = vld [vmem:[#allocation25 + $0x30] sm:$0xf]
          %v6245 = vld [vmem:[#allocation25 + $0x34] sm:$0xf]
          %v6246 = vld [vmem:[#allocation25 + $0x38] sm:$0xf]
          %v6247 = vld [vmem:[#allocation25 + $0x3c] sm:$0xf]
          %v6248 = vld [vmem:[#allocation27] sm:$0x1]
          %v6250 = vlaneseq
          %v6251 = vshrl.u32 %v6250, 7
          %v6252 = vsub.s32 0, %v6251
          %v6253 = vrot.slane %v6248, %v6252
          %v6271 = vunpack.c.l.b16 %v6232
          %v6272 = vunpack.c.l.b16 %v6233
          %v6273 = vunpack.c.l.b16 %v6234
          %v6274 = vunpack.c.l.b16 %v6235
          %v6275 = vunpack.c.l.b16 %v6236
          %v6276 = vunpack.c.l.b16 %v6237
          %v6277 = vunpack.c.l.b16 %v6238
          %v6278 = vunpack.c.l.b16 %v6239
          %v6279 = vunpack.c.l.b16 %v6240
          %v6280 = vunpack.c.l.b16 %v6241
          %v6281 = vunpack.c.l.b16 %v6242
          %v6282 = vunpack.c.l.b16 %v6243
          %v6283 = vunpack.c.l.b16 %v6244
          %v6284 = vunpack.c.l.b16 %v6245
          %v6285 = vunpack.c.l.b16 %v6246
          %v6286 = vunpack.c.l.b16 %v6247
          %v6287 = vpack.c.b16 %v6272, %v6271
          %v6288 = vpack.c.b16 %v6274, %v6273
          %v6289 = vpack.c.b16 %v6276, %v6275
          %v6290 = vpack.c.b16 %v6278, %v6277
          %v6291 = vpack.c.b16 %v6280, %v6279
          %v6292 = vpack.c.b16 %v6282, %v6281
          %v6293 = vpack.c.b16 %v6284, %v6283
          %v6294 = vpack.c.b16 %v6286, %v6285
          %6303 = vmatprep.subr.bf16.mxu0 0
          %6304 = vmatpush1.bf16.msra.mxu0 %v6294
          %6305 = vmatprep.subr.bf16.mxu0 0
          %6306 = vmatpush1.bf16.msra.mxu0 %v6293
          %6307 = vmatprep.subr.bf16.mxu0 0
          %6308 = vmatpush1.bf16.msra.mxu0 %v6292
          %6309 = vmatprep.subr.bf16.mxu0 0
          %6310 = vmatpush1.bf16.msra.mxu0 %v6291
          %6311 = vmatprep.subr.bf16.mxu0 0
          %6312 = vmatpush1.bf16.msra.mxu0 %v6290
          %6313 = vmatprep.subr.bf16.mxu0 0
          %6314 = vmatpush1.bf16.msra.mxu0 %v6289
          %6315 = vmatprep.subr.bf16.mxu0 0
          %6316 = vmatpush1.bf16.msra.mxu0 %v6288
          %6317 = vmatprep.subr.bf16.mxu0 0
          %6318 = vmatpush1.bf16.msra.mxu0 %v6287
          %6319 = vmatprep.subr.bf16.mxu0 0
          %6320 = vmatpush2.bf16.msra.mxu0 0
          %6321 = vmatprep.subr.bf16.mxu0 0
          %6322 = vmatpush2.bf16.msra.mxu0 0
          %6323 = vmatprep.subr.bf16.mxu0 0
          %6324 = vmatpush2.bf16.msra.mxu0 0
          %6325 = vmatprep.subr.bf16.mxu0 0
          %6326 = vmatpush2.bf16.msra.mxu0 0
          %6327 = vmatprep.subr.bf16.mxu0 0
          %6328 = vmatpush2.bf16.msra.mxu0 0
          %6329 = vmatprep.subr.bf16.mxu0 0
          %6330 = vmatpush2.bf16.msra.mxu0 0
          %6331 = vmatprep.subr.bf16.mxu0 0
          %6332 = vmatpush2.bf16.msra.mxu0 0
          %6333 = vmatprep.subr.bf16.mxu0 0
          %6334 = vmatpush2.bf16.msra.mxu0 0
          %6335 = vmatprep.mubr.bf16.mxu0 0
          %6336 = vmatmul.mubr.bf16.gmra.mxu0 %v6231
          %v6337 = vpop.f32.mrf.mxu0
          %v6338 = vadd.f32 %v6253, %v6337
          %v6339 = vpop.f32.mrf.mxu0
          %v6340 = vpop.f32.mrf.mxu0
          %v6341 = vpop.f32.mrf.mxu0
          %6342 = vdwg.mxu0
          %v6343 = vpack.c.bf16 %v5353, %v5353
          %v6344 = vpack.c.bf16 %v5355, %v5355
          %v6345 = vld [vmem:[#allocation40] sm:$0xff]
          %v6346 = vld [vmem:[#allocation40 + $0x8] sm:$0xff]
          %v6347 = vld [vmem:[#allocation40 + $0x10] sm:$0xff]
          %v6348 = vld [vmem:[#allocation40 + $0x18] sm:$0xff]
          %v6349 = vld [vmem:[#allocation40 + $0x20] sm:$0xff]
          %v6350 = vld [vmem:[#allocation40 + $0x28] sm:$0xff]
          %v6351 = vld [vmem:[#allocation40 + $0x30] sm:$0xff]
          %v6352 = vld [vmem:[#allocation40 + $0x38] sm:$0xff]
          %v6353 = vld [vmem:[#allocation40 + $0x40] sm:$0xff]
          %v6354 = vld [vmem:[#allocation40 + $0x48] sm:$0xff]
          %v6355 = vld [vmem:[#allocation40 + $0x50] sm:$0xff]
          %v6356 = vld [vmem:[#allocation40 + $0x58] sm:$0xff]
          %v6357 = vld [vmem:[#allocation40 + $0x60] sm:$0xff]
          %v6358 = vld [vmem:[#allocation40 + $0x68] sm:$0xff]
          %v6359 = vld [vmem:[#allocation40 + $0x70] sm:$0xff]
          %v6360 = vld [vmem:[#allocation40 + $0x78] sm:$0xff]
          %v6361 = vld [vmem:[#allocation40 + $0x80] sm:$0xff]
          %v6362 = vld [vmem:[#allocation40 + $0x88] sm:$0xff]
          %v6363 = vld [vmem:[#allocation40 + $0x90] sm:$0xff]
          %v6364 = vld [vmem:[#allocation40 + $0x98] sm:$0xff]
          %v6365 = vld [vmem:[#allocation40 + $0xa0] sm:$0xff]
          %v6366 = vld [vmem:[#allocation40 + $0xa8] sm:$0xff]
          %v6367 = vld [vmem:[#allocation40 + $0xb0] sm:$0xff]
          %v6368 = vld [vmem:[#allocation40 + $0xb8] sm:$0xff]
          %v6369 = vld [vmem:[#allocation40 + $0xc0] sm:$0xff]
          %v6370 = vld [vmem:[#allocation40 + $0xc8] sm:$0xff]
          %v6371 = vld [vmem:[#allocation40 + $0xd0] sm:$0xff]
          %v6372 = vld [vmem:[#allocation40 + $0xd8] sm:$0xff]
          %v6373 = vld [vmem:[#allocation40 + $0xe0] sm:$0xff]
          %v6374 = vld [vmem:[#allocation40 + $0xe8] sm:$0xff]
          %v6375 = vld [vmem:[#allocation40 + $0xf0] sm:$0xff]
          %v6376 = vld [vmem:[#allocation40 + $0xf8] sm:$0xff]
          %v6377 = vpack.c.bf16 %v6338, %v6338
          %v6378 = vld [vmem:[#allocation42] sm:$0xff]
          %v6379 = vld [vmem:[#allocation42 + $0x8] sm:$0xff]
          %v6380 = vld [vmem:[#allocation42 + $0x10] sm:$0xff]
          %v6381 = vld [vmem:[#allocation42 + $0x18] sm:$0xff]
          %v6382 = vld [vmem:[#allocation42 + $0x20] sm:$0xff]
          %v6383 = vld [vmem:[#allocation42 + $0x28] sm:$0xff]
          %v6384 = vld [vmem:[#allocation42 + $0x30] sm:$0xff]
          %v6385 = vld [vmem:[#allocation42 + $0x38] sm:$0xff]
          %v6386 = vld [vmem:[#allocation42 + $0x40] sm:$0xff]
          %v6387 = vld [vmem:[#allocation42 + $0x48] sm:$0xff]
          %v6388 = vld [vmem:[#allocation42 + $0x50] sm:$0xff]
          %v6389 = vld [vmem:[#allocation42 + $0x58] sm:$0xff]
          %v6390 = vld [vmem:[#allocation42 + $0x60] sm:$0xff]
          %v6391 = vld [vmem:[#allocation42 + $0x68] sm:$0xff]
          %v6392 = vld [vmem:[#allocation42 + $0x70] sm:$0xff]
          %v6393 = vld [vmem:[#allocation42 + $0x78] sm:$0xff]
          %v6410 = vunpack.c.l.b16 %v6378
          %v6411 = vunpack.c.h.b16 %v6378
          %v6412 = vunpack.c.l.b16 %v6379
          %v6413 = vunpack.c.h.b16 %v6379
          %v6414 = vunpack.c.l.b16 %v6380
          %v6415 = vunpack.c.h.b16 %v6380
          %v6416 = vunpack.c.l.b16 %v6381
          %v6417 = vunpack.c.h.b16 %v6381
          %v6418 = vunpack.c.l.b16 %v6382
          %v6419 = vunpack.c.h.b16 %v6382
          %v6420 = vunpack.c.l.b16 %v6383
          %v6421 = vunpack.c.h.b16 %v6383
          %v6422 = vunpack.c.l.b16 %v6384
          %v6423 = vunpack.c.h.b16 %v6384
          %v6424 = vunpack.c.l.b16 %v6385
          %v6425 = vunpack.c.h.b16 %v6385
          %v6426 = vunpack.c.l.b16 %v6386
          %v6427 = vunpack.c.h.b16 %v6386
          %v6428 = vunpack.c.l.b16 %v6387
          %v6429 = vunpack.c.h.b16 %v6387
          %v6430 = vunpack.c.l.b16 %v6388
          %v6431 = vunpack.c.h.b16 %v6388
          %v6432 = vunpack.c.l.b16 %v6389
          %v6433 = vunpack.c.h.b16 %v6389
          %v6434 = vunpack.c.l.b16 %v6390
          %v6435 = vunpack.c.h.b16 %v6390
          %v6436 = vunpack.c.l.b16 %v6391
          %v6437 = vunpack.c.h.b16 %v6391
          %v6438 = vunpack.c.l.b16 %v6392
          %v6439 = vunpack.c.h.b16 %v6392
          %v6440 = vunpack.c.l.b16 %v6393
          %v6441 = vunpack.c.h.b16 %v6393
          %v6442 = vpack.c.b16 %v6412, %v6410
          %v6443 = vpack.c.b16 %v6413, %v6411
          %v6444 = vpack.c.b16 %v6416, %v6414
          %v6445 = vpack.c.b16 %v6417, %v6415
          %v6446 = vpack.c.b16 %v6420, %v6418
          %v6447 = vpack.c.b16 %v6421, %v6419
          %v6448 = vpack.c.b16 %v6424, %v6422
          %v6449 = vpack.c.b16 %v6425, %v6423
          %v6450 = vpack.c.b16 %v6428, %v6426
          %v6451 = vpack.c.b16 %v6429, %v6427
          %v6452 = vpack.c.b16 %v6432, %v6430
          %v6453 = vpack.c.b16 %v6433, %v6431
          %v6454 = vpack.c.b16 %v6436, %v6434
          %v6455 = vpack.c.b16 %v6437, %v6435
          %v6456 = vpack.c.b16 %v6440, %v6438
          %v6457 = vpack.c.b16 %v6441, %v6439
          %6474 = vmatprep.subr.bf16.mxu0 %v6457
          %6475 = vmatpush1.bf16.msra.mxu0 %v6456
          %6476 = vmatprep.subr.bf16.mxu0 %v6455
          %6477 = vmatpush1.bf16.msra.mxu0 %v6454
          %6478 = vmatprep.subr.bf16.mxu0 %v6453
          %6479 = vmatpush1.bf16.msra.mxu0 %v6452
          %6480 = vmatprep.subr.bf16.mxu0 %v6451
          %6481 = vmatpush1.bf16.msra.mxu0 %v6450
          %6482 = vmatprep.subr.bf16.mxu0 %v6449
          %6483 = vmatpush1.bf16.msra.mxu0 %v6448
          %6484 = vmatprep.subr.bf16.mxu0 %v6447
          %6485 = vmatpush1.bf16.msra.mxu0 %v6446
          %6486 = vmatprep.subr.bf16.mxu0 %v6445
          %6487 = vmatpush1.bf16.msra.mxu0 %v6444
          %6488 = vmatprep.subr.bf16.mxu0 %v6443
          %6489 = vmatpush1.bf16.msra.mxu0 %v6442
          %6490 = vmatprep.subr.bf16.mxu0 0
          %6491 = vmatpush2.bf16.msra.mxu0 0
          %6492 = vmatprep.subr.bf16.mxu0 0
          %6493 = vmatpush2.bf16.msra.mxu0 0
          %6494 = vmatprep.subr.bf16.mxu0 0
          %6495 = vmatpush2.bf16.msra.mxu0 0
          %6496 = vmatprep.subr.bf16.mxu0 0
          %6497 = vmatpush2.bf16.msra.mxu0 0
          %6498 = vmatprep.subr.bf16.mxu0 0
          %6499 = vmatpush2.bf16.msra.mxu0 0
          %6500 = vmatprep.subr.bf16.mxu0 0
          %6501 = vmatpush2.bf16.msra.mxu0 0
          %6502 = vmatprep.subr.bf16.mxu0 0
          %6503 = vmatpush2.bf16.msra.mxu0 0
          %6504 = vmatprep.subr.bf16.mxu0 0
          %6505 = vmatpush2.bf16.msra.mxu0 0
          %6506 = vmatprep.mubr.bf16.mxu0 0
          %6507 = vmatmul.mubr.bf16.gmra.mxu0 %v6377
          %v6508 = vpop.f32.mrf.mxu0
          %v6509 = vadd.f32 0.0, %v6508
          %v6510 = vpop.f32.mrf.mxu0
          %v6511 = vadd.f32 0.0, %v6510
          %v6512 = vpop.f32.mrf.mxu0
          %v6513 = vpop.f32.mrf.mxu0
          %6514 = vdwg.mxu0
          %v6547 = vunpack.c.l.b16 %v6345
          %v6548 = vunpack.c.h.b16 %v6345
          %v6549 = vunpack.c.l.b16 %v6346
          %v6550 = vunpack.c.h.b16 %v6346
          %v6551 = vunpack.c.l.b16 %v6347
          %v6552 = vunpack.c.h.b16 %v6347
          %v6553 = vunpack.c.l.b16 %v6348
          %v6554 = vunpack.c.h.b16 %v6348
          %v6555 = vunpack.c.l.b16 %v6349
          %v6556 = vunpack.c.h.b16 %v6349
          %v6557 = vunpack.c.l.b16 %v6350
          %v6558 = vunpack.c.h.b16 %v6350
          %v6559 = vunpack.c.l.b16 %v6351
          %v6560 = vunpack.c.h.b16 %v6351
          %v6561 = vunpack.c.l.b16 %v6352
          %v6562 = vunpack.c.h.b16 %v6352
          %v6563 = vunpack.c.l.b16 %v6353
          %v6564 = vunpack.c.h.b16 %v6353
          %v6565 = vunpack.c.l.b16 %v6354
          %v6566 = vunpack.c.h.b16 %v6354
          %v6567 = vunpack.c.l.b16 %v6355
          %v6568 = vunpack.c.h.b16 %v6355
          %v6569 = vunpack.c.l.b16 %v6356
          %v6570 = vunpack.c.h.b16 %v6356
          %v6571 = vunpack.c.l.b16 %v6357
          %v6572 = vunpack.c.h.b16 %v6357
          %v6573 = vunpack.c.l.b16 %v6358
          %v6574 = vunpack.c.h.b16 %v6358
          %v6575 = vunpack.c.l.b16 %v6359
          %v6576 = vunpack.c.h.b16 %v6359
          %v6577 = vunpack.c.l.b16 %v6360
          %v6578 = vunpack.c.h.b16 %v6360
          %v6579 = vunpack.c.l.b16 %v6361
          %v6580 = vunpack.c.h.b16 %v6361
          %v6581 = vunpack.c.l.b16 %v6362
          %v6582 = vunpack.c.h.b16 %v6362
          %v6583 = vunpack.c.l.b16 %v6363
          %v6584 = vunpack.c.h.b16 %v6363
          %v6585 = vunpack.c.l.b16 %v6364
          %v6586 = vunpack.c.h.b16 %v6364
          %v6587 = vunpack.c.l.b16 %v6365
          %v6588 = vunpack.c.h.b16 %v6365
          %v6589 = vunpack.c.l.b16 %v6366
          %v6590 = vunpack.c.h.b16 %v6366
          %v6591 = vunpack.c.l.b16 %v6367
          %v6592 = vunpack.c.h.b16 %v6367
          %v6593 = vunpack.c.l.b16 %v6368
          %v6594 = vunpack.c.h.b16 %v6368
          %v6595 = vunpack.c.l.b16 %v6369
          %v6596 = vunpack.c.h.b16 %v6369
          %v6597 = vunpack.c.l.b16 %v6370
          %v6598 = vunpack.c.h.b16 %v6370
          %v6599 = vunpack.c.l.b16 %v6371
          %v6600 = vunpack.c.h.b16 %v6371
          %v6601 = vunpack.c.l.b16 %v6372
          %v6602 = vunpack.c.h.b16 %v6372
          %v6603 = vunpack.c.l.b16 %v6373
          %v6604 = vunpack.c.h.b16 %v6373
          %v6605 = vunpack.c.l.b16 %v6374
          %v6606 = vunpack.c.h.b16 %v6374
          %v6607 = vunpack.c.l.b16 %v6375
          %v6608 = vunpack.c.h.b16 %v6375
          %v6609 = vunpack.c.l.b16 %v6376
          %v6610 = vunpack.c.h.b16 %v6376
          %v6611 = vpack.c.b16 %v6549, %v6547
          %v6612 = vpack.c.b16 %v6550, %v6548
          %v6613 = vpack.c.b16 %v6553, %v6551
          %v6614 = vpack.c.b16 %v6554, %v6552
          %v6615 = vpack.c.b16 %v6557, %v6555
          %v6616 = vpack.c.b16 %v6558, %v6556
          %v6617 = vpack.c.b16 %v6561, %v6559
          %v6618 = vpack.c.b16 %v6562, %v6560
          %v6619 = vpack.c.b16 %v6565, %v6563
          %v6620 = vpack.c.b16 %v6566, %v6564
          %v6621 = vpack.c.b16 %v6569, %v6567
          %v6622 = vpack.c.b16 %v6570, %v6568
          %v6623 = vpack.c.b16 %v6573, %v6571
          %v6624 = vpack.c.b16 %v6574, %v6572
          %v6625 = vpack.c.b16 %v6577, %v6575
          %v6626 = vpack.c.b16 %v6578, %v6576
          %v6627 = vpack.c.b16 %v6581, %v6579
          %v6628 = vpack.c.b16 %v6582, %v6580
          %v6629 = vpack.c.b16 %v6585, %v6583
          %v6630 = vpack.c.b16 %v6586, %v6584
          %v6631 = vpack.c.b16 %v6589, %v6587
          %v6632 = vpack.c.b16 %v6590, %v6588
          %v6633 = vpack.c.b16 %v6593, %v6591
          %v6634 = vpack.c.b16 %v6594, %v6592
          %v6635 = vpack.c.b16 %v6597, %v6595
          %v6636 = vpack.c.b16 %v6598, %v6596
          %v6637 = vpack.c.b16 %v6601, %v6599
          %v6638 = vpack.c.b16 %v6602, %v6600
          %v6639 = vpack.c.b16 %v6605, %v6603
          %v6640 = vpack.c.b16 %v6606, %v6604
          %v6641 = vpack.c.b16 %v6609, %v6607
          %v6642 = vpack.c.b16 %v6610, %v6608
          %6675 = vmatprep.subr.bf16.mxu0 %v6626
          %6676 = vmatpush1.bf16.msra.mxu0 %v6625
          %6677 = vmatprep.subr.bf16.mxu0 %v6624
          %6678 = vmatpush1.bf16.msra.mxu0 %v6623
          %6679 = vmatprep.subr.bf16.mxu0 %v6622
          %6680 = vmatpush1.bf16.msra.mxu0 %v6621
          %6681 = vmatprep.subr.bf16.mxu0 %v6620
          %6682 = vmatpush1.bf16.msra.mxu0 %v6619
          %6683 = vmatprep.subr.bf16.mxu0 %v6618
          %6684 = vmatpush1.bf16.msra.mxu0 %v6617
          %6685 = vmatprep.subr.bf16.mxu0 %v6616
          %6686 = vmatpush1.bf16.msra.mxu0 %v6615
          %6687 = vmatprep.subr.bf16.mxu0 %v6614
          %6688 = vmatpush1.bf16.msra.mxu0 %v6613
          %6689 = vmatprep.subr.bf16.mxu0 %v6612
          %6690 = vmatpush1.bf16.msra.mxu0 %v6611
          %6691 = vmatprep.subr.bf16.mxu0 %v6642
          %6692 = vmatpush2.bf16.msra.mxu0 %v6641
          %6693 = vmatprep.subr.bf16.mxu0 %v6640
          %6694 = vmatpush2.bf16.msra.mxu0 %v6639
          %6695 = vmatprep.subr.bf16.mxu0 %v6638
          %6696 = vmatpush2.bf16.msra.mxu0 %v6637
          %6697 = vmatprep.subr.bf16.mxu0 %v6636
          %6698 = vmatpush2.bf16.msra.mxu0 %v6635
          %6699 = vmatprep.subr.bf16.mxu0 %v6634
          %6700 = vmatpush2.bf16.msra.mxu0 %v6633
          %6701 = vmatprep.subr.bf16.mxu0 %v6632
          %6702 = vmatpush2.bf16.msra.mxu0 %v6631
          %6703 = vmatprep.subr.bf16.mxu0 %v6630
          %6704 = vmatpush2.bf16.msra.mxu0 %v6629
          %6705 = vmatprep.subr.bf16.mxu0 %v6628
          %6706 = vmatpush2.bf16.msra.mxu0 %v6627
          %6707 = vmatprep.mubr.bf16.mxu0 %v6344
          %6708 = vmatmul.mubr.bf16.gmra.mxu0 %v6343
          %v6709 = vpop.f32.mrf.mxu0
          %v6710 = vadd.f32 %v6509, %v6709
          %v6711 = vpop.f32.mrf.mxu0
          %v6712 = vadd.f32 %v6511, %v6711
          %v6713 = vpop.f32.mrf.mxu0
          %v6714 = vpop.f32.mrf.mxu0
          %6715 = vdwg.mxu0
          %v6716 = vpack.c.bf16 %v6145, %v6145
          %v6717 = vpack.c.bf16 %v6147, %v6147
          %v6718 = vld [vmem:[#allocation43] sm:$0xff]
          %v6719 = vld [vmem:[#allocation43 + $0x8] sm:$0xff]
          %v6720 = vld [vmem:[#allocation43 + $0x10] sm:$0xff]
          %v6721 = vld [vmem:[#allocation43 + $0x18] sm:$0xff]
          %v6722 = vld [vmem:[#allocation43 + $0x20] sm:$0xff]
          %v6723 = vld [vmem:[#allocation43 + $0x28] sm:$0xff]
          %v6724 = vld [vmem:[#allocation43 + $0x30] sm:$0xff]
          %v6725 = vld [vmem:[#allocation43 + $0x38] sm:$0xff]
          %v6726 = vld [vmem:[#allocation43 + $0x40] sm:$0xff]
          %v6727 = vld [vmem:[#allocation43 + $0x48] sm:$0xff]
          %v6728 = vld [vmem:[#allocation43 + $0x50] sm:$0xff]
          %v6729 = vld [vmem:[#allocation43 + $0x58] sm:$0xff]
          %v6730 = vld [vmem:[#allocation43 + $0x60] sm:$0xff]
          %v6731 = vld [vmem:[#allocation43 + $0x68] sm:$0xff]
          %v6732 = vld [vmem:[#allocation43 + $0x70] sm:$0xff]
          %v6733 = vld [vmem:[#allocation43 + $0x78] sm:$0xff]
          %v6734 = vld [vmem:[#allocation43 + $0x80] sm:$0xff]
          %v6735 = vld [vmem:[#allocation43 + $0x88] sm:$0xff]
          %v6736 = vld [vmem:[#allocation43 + $0x90] sm:$0xff]
          %v6737 = vld [vmem:[#allocation43 + $0x98] sm:$0xff]
          %v6738 = vld [vmem:[#allocation43 + $0xa0] sm:$0xff]
          %v6739 = vld [vmem:[#allocation43 + $0xa8] sm:$0xff]
          %v6740 = vld [vmem:[#allocation43 + $0xb0] sm:$0xff]
          %v6741 = vld [vmem:[#allocation43 + $0xb8] sm:$0xff]
          %v6742 = vld [vmem:[#allocation43 + $0xc0] sm:$0xff]
          %v6743 = vld [vmem:[#allocation43 + $0xc8] sm:$0xff]
          %v6744 = vld [vmem:[#allocation43 + $0xd0] sm:$0xff]
          %v6745 = vld [vmem:[#allocation43 + $0xd8] sm:$0xff]
          %v6746 = vld [vmem:[#allocation43 + $0xe0] sm:$0xff]
          %v6747 = vld [vmem:[#allocation43 + $0xe8] sm:$0xff]
          %v6748 = vld [vmem:[#allocation43 + $0xf0] sm:$0xff]
          %v6749 = vld [vmem:[#allocation43 + $0xf8] sm:$0xff]
          %v6782 = vunpack.c.l.b16 %v6718
          %v6783 = vunpack.c.h.b16 %v6718
          %v6784 = vunpack.c.l.b16 %v6719
          %v6785 = vunpack.c.h.b16 %v6719
          %v6786 = vunpack.c.l.b16 %v6720
          %v6787 = vunpack.c.h.b16 %v6720
          %v6788 = vunpack.c.l.b16 %v6721
          %v6789 = vunpack.c.h.b16 %v6721
          %v6790 = vunpack.c.l.b16 %v6722
          %v6791 = vunpack.c.h.b16 %v6722
          %v6792 = vunpack.c.l.b16 %v6723
          %v6793 = vunpack.c.h.b16 %v6723
          %v6794 = vunpack.c.l.b16 %v6724
          %v6795 = vunpack.c.h.b16 %v6724
          %v6796 = vunpack.c.l.b16 %v6725
          %v6797 = vunpack.c.h.b16 %v6725
          %v6798 = vunpack.c.l.b16 %v6726
          %v6799 = vunpack.c.h.b16 %v6726
          %v6800 = vunpack.c.l.b16 %v6727
          %v6801 = vunpack.c.h.b16 %v6727
          %v6802 = vunpack.c.l.b16 %v6728
          %v6803 = vunpack.c.h.b16 %v6728
          %v6804 = vunpack.c.l.b16 %v6729
          %v6805 = vunpack.c.h.b16 %v6729
          %v6806 = vunpack.c.l.b16 %v6730
          %v6807 = vunpack.c.h.b16 %v6730
          %v6808 = vunpack.c.l.b16 %v6731
          %v6809 = vunpack.c.h.b16 %v6731
          %v6810 = vunpack.c.l.b16 %v6732
          %v6811 = vunpack.c.h.b16 %v6732
          %v6812 = vunpack.c.l.b16 %v6733
          %v6813 = vunpack.c.h.b16 %v6733
          %v6814 = vunpack.c.l.b16 %v6734
          %v6815 = vunpack.c.h.b16 %v6734
          %v6816 = vunpack.c.l.b16 %v6735
          %v6817 = vunpack.c.h.b16 %v6735
          %v6818 = vunpack.c.l.b16 %v6736
          %v6819 = vunpack.c.h.b16 %v6736
          %v6820 = vunpack.c.l.b16 %v6737
          %v6821 = vunpack.c.h.b16 %v6737
          %v6822 = vunpack.c.l.b16 %v6738
          %v6823 = vunpack.c.h.b16 %v6738
          %v6824 = vunpack.c.l.b16 %v6739
          %v6825 = vunpack.c.h.b16 %v6739
          %v6826 = vunpack.c.l.b16 %v6740
          %v6827 = vunpack.c.h.b16 %v6740
          %v6828 = vunpack.c.l.b16 %v6741
          %v6829 = vunpack.c.h.b16 %v6741
          %v6830 = vunpack.c.l.b16 %v6742
          %v6831 = vunpack.c.h.b16 %v6742
          %v6832 = vunpack.c.l.b16 %v6743
          %v6833 = vunpack.c.h.b16 %v6743
          %v6834 = vunpack.c.l.b16 %v6744
          %v6835 = vunpack.c.h.b16 %v6744
          %v6836 = vunpack.c.l.b16 %v6745
          %v6837 = vunpack.c.h.b16 %v6745
          %v6838 = vunpack.c.l.b16 %v6746
          %v6839 = vunpack.c.h.b16 %v6746
          %v6840 = vunpack.c.l.b16 %v6747
          %v6841 = vunpack.c.h.b16 %v6747
          %v6842 = vunpack.c.l.b16 %v6748
          %v6843 = vunpack.c.h.b16 %v6748
          %v6844 = vunpack.c.l.b16 %v6749
          %v6845 = vunpack.c.h.b16 %v6749
          %v6846 = vpack.c.b16 %v6784, %v6782
          %v6847 = vpack.c.b16 %v6785, %v6783
          %v6848 = vpack.c.b16 %v6788, %v6786
          %v6849 = vpack.c.b16 %v6789, %v6787
          %v6850 = vpack.c.b16 %v6792, %v6790
          %v6851 = vpack.c.b16 %v6793, %v6791
          %v6852 = vpack.c.b16 %v6796, %v6794
          %v6853 = vpack.c.b16 %v6797, %v6795
          %v6854 = vpack.c.b16 %v6800, %v6798
          %v6855 = vpack.c.b16 %v6801, %v6799
          %v6856 = vpack.c.b16 %v6804, %v6802
          %v6857 = vpack.c.b16 %v6805, %v6803
          %v6858 = vpack.c.b16 %v6808, %v6806
          %v6859 = vpack.c.b16 %v6809, %v6807
          %v6860 = vpack.c.b16 %v6812, %v6810
          %v6861 = vpack.c.b16 %v6813, %v6811
          %v6862 = vpack.c.b16 %v6816, %v6814
          %v6863 = vpack.c.b16 %v6817, %v6815
          %v6864 = vpack.c.b16 %v6820, %v6818
          %v6865 = vpack.c.b16 %v6821, %v6819
          %v6866 = vpack.c.b16 %v6824, %v6822
          %v6867 = vpack.c.b16 %v6825, %v6823
          %v6868 = vpack.c.b16 %v6828, %v6826
          %v6869 = vpack.c.b16 %v6829, %v6827
          %v6870 = vpack.c.b16 %v6832, %v6830
          %v6871 = vpack.c.b16 %v6833, %v6831
          %v6872 = vpack.c.b16 %v6836, %v6834
          %v6873 = vpack.c.b16 %v6837, %v6835
          %v6874 = vpack.c.b16 %v6840, %v6838
          %v6875 = vpack.c.b16 %v6841, %v6839
          %v6876 = vpack.c.b16 %v6844, %v6842
          %v6877 = vpack.c.b16 %v6845, %v6843
          %6910 = vmatprep.subr.bf16.mxu0 %v6861
          %6911 = vmatpush1.bf16.msra.mxu0 %v6860
          %6912 = vmatprep.subr.bf16.mxu0 %v6859
          %6913 = vmatpush1.bf16.msra.mxu0 %v6858
          %6914 = vmatprep.subr.bf16.mxu0 %v6857
          %6915 = vmatpush1.bf16.msra.mxu0 %v6856
          %6916 = vmatprep.subr.bf16.mxu0 %v6855
          %6917 = vmatpush1.bf16.msra.mxu0 %v6854
          %6918 = vmatprep.subr.bf16.mxu0 %v6853
          %6919 = vmatpush1.bf16.msra.mxu0 %v6852
          %6920 = vmatprep.subr.bf16.mxu0 %v6851
          %6921 = vmatpush1.bf16.msra.mxu0 %v6850
          %6922 = vmatprep.subr.bf16.mxu0 %v6849
          %6923 = vmatpush1.bf16.msra.mxu0 %v6848
          %6924 = vmatprep.subr.bf16.mxu0 %v6847
          %6925 = vmatpush1.bf16.msra.mxu0 %v6846
          %6926 = vmatprep.subr.bf16.mxu0 %v6877
          %6927 = vmatpush2.bf16.msra.mxu0 %v6876
          %6928 = vmatprep.subr.bf16.mxu0 %v6875
          %6929 = vmatpush2.bf16.msra.mxu0 %v6874
          %6930 = vmatprep.subr.bf16.mxu0 %v6873
          %6931 = vmatpush2.bf16.msra.mxu0 %v6872
          %6932 = vmatprep.subr.bf16.mxu0 %v6871
          %6933 = vmatpush2.bf16.msra.mxu0 %v6870
          %6934 = vmatprep.subr.bf16.mxu0 %v6869
          %6935 = vmatpush2.bf16.msra.mxu0 %v6868
          %6936 = vmatprep.subr.bf16.mxu0 %v6867
          %6937 = vmatpush2.bf16.msra.mxu0 %v6866
          %6938 = vmatprep.subr.bf16.mxu0 %v6865
          %6939 = vmatpush2.bf16.msra.mxu0 %v6864
          %6940 = vmatprep.subr.bf16.mxu0 %v6863
          %6941 = vmatpush2.bf16.msra.mxu0 %v6862
          %6942 = vmatprep.mubr.bf16.mxu0 %v6717
          %6943 = vmatmul.mubr.bf16.gmra.mxu0 %v6716
          %v6944 = vpop.f32.mrf.mxu0
          %v6945 = vadd.f32 0.0, %v6944
          %v6946 = vpop.f32.mrf.mxu0
          %v6947 = vadd.f32 0.0, %v6946
          %v6948 = vpop.f32.mrf.mxu0
          %v6949 = vpop.f32.mrf.mxu0
          %6950 = vdwg.mxu0
          %v6951 = vadd.f32 %v6710, %v6945
          %v6952 = vadd.f32 %v6712, %v6947
          %v6953 = vld [vmem:[#allocation45] sm:$0x3]
          %v6955 = vlaneseq
          %v6956 = vshrl.u32 %v6955, 7
          %v6957 = vsub.s32 0, %v6956
          %v6958 = vrot.slane %v6953, %v6957
          %v6959 = vlaneseq
          %v6960 = vshrl.u32 %v6959, 7
          %v6961 = vsub.s32 1, %v6960
          %v6962 = vrot.slane %v6953, %v6961
          %v6965 = vadd.f32 %v6951, %v6958
          %v6966 = vadd.f32 %v6952, %v6962
          %v6967 = vmax.f32 %v6965, 0.0
          %v6968 = vmax.f32 %v6966, 0.0
          %v6969 = vpack.c.bf16 %v6967, %v6967
          %v6970 = vpack.c.bf16 %v6968, %v6968
          %v6971 = vld [vmem:[%s55] sm:$0xf]
          %v6972 = vld [vmem:[%s55 + $0x4] sm:$0xf]
          %v6973 = vld [vmem:[%s55 + $0x8] sm:$0xf]
          %v6974 = vld [vmem:[%s55 + $0xc] sm:$0xf]
          %v6975 = vld [vmem:[%s55 + $0x10] sm:$0xf]
          %v6976 = vld [vmem:[%s55 + $0x14] sm:$0xf]
          %v6977 = vld [vmem:[%s55 + $0x18] sm:$0xf]
          %v6978 = vld [vmem:[%s55 + $0x1c] sm:$0xf]
          %v6979 = vld [vmem:[%s55 + $0x20] sm:$0xf]
          %v6980 = vld [vmem:[%s55 + $0x24] sm:$0xf]
          %v6981 = vld [vmem:[%s55 + $0x28] sm:$0xf]
          %v6982 = vld [vmem:[%s55 + $0x2c] sm:$0xf]
          %v6983 = vld [vmem:[%s55 + $0x30] sm:$0xf]
          %v6984 = vld [vmem:[%s55 + $0x34] sm:$0xf]
          %v6985 = vld [vmem:[%s55 + $0x38] sm:$0xf]
          %v6986 = vld [vmem:[%s55 + $0x3c] sm:$0xf]
          %v6987 = vld [vmem:[%s55 + $0x40] sm:$0xf]
          %v6988 = vld [vmem:[%s55 + $0x44] sm:$0xf]
          %v6989 = vld [vmem:[%s55 + $0x48] sm:$0xf]
          %v6990 = vld [vmem:[%s55 + $0x4c] sm:$0xf]
          %v6991 = vld [vmem:[%s55 + $0x50] sm:$0xf]
          %v6992 = vld [vmem:[%s55 + $0x54] sm:$0xf]
          %v6993 = vld [vmem:[%s55 + $0x58] sm:$0xf]
          %v6994 = vld [vmem:[%s55 + $0x5c] sm:$0xf]
          %v6995 = vld [vmem:[%s55 + $0x60] sm:$0xf]
          %v6996 = vld [vmem:[%s55 + $0x64] sm:$0xf]
          %v6997 = vld [vmem:[%s55 + $0x68] sm:$0xf]
          %v6998 = vld [vmem:[%s55 + $0x6c] sm:$0xf]
          %v6999 = vld [vmem:[%s55 + $0x70] sm:$0xf]
          %v7000 = vld [vmem:[%s55 + $0x74] sm:$0xf]
          %v7001 = vld [vmem:[%s55 + $0x78] sm:$0xf]
          %v7002 = vld [vmem:[%s55 + $0x7c] sm:$0xf]
          %v7003 = vld [vmem:[#allocation46] sm:$0x1]
          %v7005 = vlaneseq
          %v7006 = vshrl.u32 %v7005, 7
          %v7007 = vsub.s32 0, %v7006
          %v7008 = vrot.slane %v7003, %v7007
          %v7042 = vunpack.c.l.b16 %v6971
          %v7043 = vunpack.c.l.b16 %v6972
          %v7044 = vunpack.c.l.b16 %v6973
          %v7045 = vunpack.c.l.b16 %v6974
          %v7046 = vunpack.c.l.b16 %v6975
          %v7047 = vunpack.c.l.b16 %v6976
          %v7048 = vunpack.c.l.b16 %v6977
          %v7049 = vunpack.c.l.b16 %v6978
          %v7050 = vunpack.c.l.b16 %v6979
          %v7051 = vunpack.c.l.b16 %v6980
          %v7052 = vunpack.c.l.b16 %v6981
          %v7053 = vunpack.c.l.b16 %v6982
          %v7054 = vunpack.c.l.b16 %v6983
          %v7055 = vunpack.c.l.b16 %v6984
          %v7056 = vunpack.c.l.b16 %v6985
          %v7057 = vunpack.c.l.b16 %v6986
          %v7058 = vunpack.c.l.b16 %v6987
          %v7059 = vunpack.c.l.b16 %v6988
          %v7060 = vunpack.c.l.b16 %v6989
          %v7061 = vunpack.c.l.b16 %v6990
          %v7062 = vunpack.c.l.b16 %v6991
          %v7063 = vunpack.c.l.b16 %v6992
          %v7064 = vunpack.c.l.b16 %v6993
          %v7065 = vunpack.c.l.b16 %v6994
          %v7066 = vunpack.c.l.b16 %v6995
          %v7067 = vunpack.c.l.b16 %v6996
          %v7068 = vunpack.c.l.b16 %v6997
          %v7069 = vunpack.c.l.b16 %v6998
          %v7070 = vunpack.c.l.b16 %v6999
          %v7071 = vunpack.c.l.b16 %v7000
          %v7072 = vunpack.c.l.b16 %v7001
          %v7073 = vunpack.c.l.b16 %v7002
          %v7074 = vpack.c.b16 %v7043, %v7042
          %v7075 = vpack.c.b16 %v7045, %v7044
          %v7076 = vpack.c.b16 %v7047, %v7046
          %v7077 = vpack.c.b16 %v7049, %v7048
          %v7078 = vpack.c.b16 %v7051, %v7050
          %v7079 = vpack.c.b16 %v7053, %v7052
          %v7080 = vpack.c.b16 %v7055, %v7054
          %v7081 = vpack.c.b16 %v7057, %v7056
          %v7082 = vpack.c.b16 %v7059, %v7058
          %v7083 = vpack.c.b16 %v7061, %v7060
          %v7084 = vpack.c.b16 %v7063, %v7062
          %v7085 = vpack.c.b16 %v7065, %v7064
          %v7086 = vpack.c.b16 %v7067, %v7066
          %v7087 = vpack.c.b16 %v7069, %v7068
          %v7088 = vpack.c.b16 %v7071, %v7070
          %v7089 = vpack.c.b16 %v7073, %v7072
          %7106 = vmatprep.subr.bf16.mxu0 0
          %7107 = vmatpush1.bf16.msra.mxu0 %v7081
          %7108 = vmatprep.subr.bf16.mxu0 0
          %7109 = vmatpush1.bf16.msra.mxu0 %v7080
          %7110 = vmatprep.subr.bf16.mxu0 0
          %7111 = vmatpush1.bf16.msra.mxu0 %v7079
          %7112 = vmatprep.subr.bf16.mxu0 0
          %7113 = vmatpush1.bf16.msra.mxu0 %v7078
          %7114 = vmatprep.subr.bf16.mxu0 0
          %7115 = vmatpush1.bf16.msra.mxu0 %v7077
          %7116 = vmatprep.subr.bf16.mxu0 0
          %7117 = vmatpush1.bf16.msra.mxu0 %v7076
          %7118 = vmatprep.subr.bf16.mxu0 0
          %7119 = vmatpush1.bf16.msra.mxu0 %v7075
          %7120 = vmatprep.subr.bf16.mxu0 0
          %7121 = vmatpush1.bf16.msra.mxu0 %v7074
          %7122 = vmatprep.subr.bf16.mxu0 0
          %7123 = vmatpush2.bf16.msra.mxu0 %v7089
          %7124 = vmatprep.subr.bf16.mxu0 0
          %7125 = vmatpush2.bf16.msra.mxu0 %v7088
          %7126 = vmatprep.subr.bf16.mxu0 0
          %7127 = vmatpush2.bf16.msra.mxu0 %v7087
          %7128 = vmatprep.subr.bf16.mxu0 0
          %7129 = vmatpush2.bf16.msra.mxu0 %v7086
          %7130 = vmatprep.subr.bf16.mxu0 0
          %7131 = vmatpush2.bf16.msra.mxu0 %v7085
          %7132 = vmatprep.subr.bf16.mxu0 0
          %7133 = vmatpush2.bf16.msra.mxu0 %v7084
          %7134 = vmatprep.subr.bf16.mxu0 0
          %7135 = vmatpush2.bf16.msra.mxu0 %v7083
          %7136 = vmatprep.subr.bf16.mxu0 0
          %7137 = vmatpush2.bf16.msra.mxu0 %v7082
          %7138 = vmatprep.mubr.bf16.mxu0 %v6970
          %7139 = vmatmul.mubr.bf16.gmra.mxu0 %v6969
          %v7140 = vpop.f32.mrf.mxu0
          %v7141 = vadd.f32 %v7008, %v7140
          %v7142 = vpop.f32.mrf.mxu0
          %v7143 = vpop.f32.mrf.mxu0
          %v7144 = vpop.f32.mrf.mxu0
          %7145 = vdwg.mxu0
          %vm7146 = vcmask 9216
          %7147 = vst.msk [vmem:[#allocation48] sm:$0x3] %vm7146, %v7141
        $region256: #{tpu_custom_call.1} parent=135 // pred_fallthru
          _
        // Predicated region
        $region257: #{tpu_custom_call.1} parent=135 // pred_check
          %p7148 = pneg %p746
        $region258: #{tpu_custom_call.1} parent=135 // pred_check_branch
          %7150 = sbr.rel (%p7148) target = $region260
        $region259: #{tpu_custom_call.1} parent=135 // pred_region
          %s7152 = ssub.s32 32, 32
          %7153 = vsyncadd [#allocation6], %s7152
          %s7155 = sshll.u32 [#allocation48], 4
          %s7156 = int_to_ptr.vmem [resolvable:$true] %s7155
          %7158 = dma.vmem_to_hbm [thread:$0]  %s7156, 32, %s59, [#allocation6]
        $region260: #{tpu_custom_call.1} parent=135 // pred_fallthru
          _
        // Predicated region
        $region261: #{tpu_custom_call.1} parent=135 // pred_check
          %p7159 = pneg %p746
        $region262: #{tpu_custom_call.1} parent=135 // pred_check_branch
          %7161 = sbr.rel (%p7159) target = $region264
        $region263: #{tpu_custom_call.1} parent=135 // pred_region
          %7162 = dma.done [#allocation6], 32
        $region264: #{tpu_custom_call.1} parent=135 // pred_fallthru
          _
      $region136: #{tpu_custom_call.1} parent=5 // pred_fallthru
        _
      %p7163 = scmp.le.s32.totalorder 2, %s89
      // Predicated region
      $region265: #{tpu_custom_call.1} parent=5 // pred_check
        %p7164 = pneg %p7163
      $region266: #{tpu_custom_call.1} parent=5 // pred_check_branch
        %7166 = sbr.rel (%p7164) target = $region268
      $region267: #{tpu_custom_call.1} parent=5 // pred_region
        %s7167 = ssub.s32 %s89, 2
      $region268: #{tpu_custom_call.1} parent=5 // pred_fallthru
        _
    $region6: #{tpu_custom_call.1} parent=1 // loop_footer
      %s93 = sadd.s32 1, %s89
    $region7: #{tpu_custom_call.1} parent=1 // loop_footer_branch
      %88 = sbr.rel target = $region3
    $region8: #{tpu_custom_call.1} parent=1 // loop_exit
      _
    %7168 = vsyncpa [#allocation5], 1
    %s7169 = scalar_lea.sflag [#allocation5], 1
    %7170 = vsyncpa %s7169, 1
    %7171 = vsyncpa [#allocation8], 1
    %7172 = vsyncpa [#allocation11], 1
    %s7173 = scalar_lea.sflag [#allocation11], 1
    %7174 = vsyncpa %s7173, 1
    %7175 = vsyncpa [#allocation14], 1
    %s7176 = scalar_lea.sflag [#allocation14], 1
    %7177 = vsyncpa %s7176, 1
    %7178 = vsyncpa [#allocation17], 1
    %7179 = vsyncpa [#allocation20], 1
    %7180 = vsyncpa [#allocation23], 1
    %7181 = vsyncpa [#allocation26], 1
    %7182 = vsyncpa [#allocation29], 1
    %s7183 = scalar_lea.sflag [#allocation29], 1
    %7184 = vsyncpa %s7183, 1
    %7185 = vsyncpa [#allocation32], 1
    %s7186 = scalar_lea.sflag [#allocation32], 1
    %7187 = vsyncpa %s7186, 1
    %7188 = vsyncpa [#allocation35], 1
    %7189 = vsyncpa [#allocation38], 1
    %7190 = vsyncpa [#allocation41], 1
    %7191 = vsyncpa [#allocation44], 1
    %7192 = vsyncpa [#allocation47], 1
    %7193 = vsyncpa [#allocation6], 1
    %s7194 = scalar_lea.sflag [#allocation6], 1
    %7195 = vsyncpa %s7194, 1

</llo_original>
